<compile_context>
chip_gen: v7x
topology: tpu7x:2x2x1
jax: 0.10.0
libtpu: 0.0.40
codegen_flags: <defaults>
</compile_context>

<pallas_src>
import functools

import jax
import jax.numpy as jnp
from jax import lax
from jax.experimental import pallas as pl
from jax.experimental.pallas import tpu as pltpu

LANE = 128
SUBLANE = 8


def _round_up(x, m):
    return ((x + m - 1) // m) * m


def _cdiv(a, b):
    return -(-a // b)


def _const_spec(shape, single_buffer):
    """BlockSpec for a grid-invariant (weight / bias) operand."""
    if single_buffer:
        # Constant index_map => re-fetch never happens; single-buffer to halve
        # the resident weight VMEM (matters at large H and on v7x's 64 MiB).
        return pl.BlockSpec(shape, lambda c: (0, 0), pipeline_mode=pl.Buffered(1))
    return pl.BlockSpec(shape, lambda c: (0, 0))


# -----------------------------------------------------------------------------
# Shared kernel pieces
# -----------------------------------------------------------------------------
def _input_projection(x_ref, wih_ref, bc_ref, gi_scratch, t_chunk, bt, din):
    """One big MXU matmul for the whole chunk's input projection (hoisted out
    of the serial recurrence).  gi columns are [r | z | n], each h_pad wide."""
    x2 = x_ref[...].reshape(t_chunk * bt, din).astype(jnp.bfloat16)
    gi = jnp.dot(x2, wih_ref[...], preferred_element_type=jnp.float32)
    gi_scratch[...] = gi + bc_ref[...]     # pre-folded (b_ir+b_hr, b_iz+b_hz, b_in)


def _gru_recurrence(gi_scratch, whh_ref, bhn_ref, h0, bt, h_pad, t_chunk,
                    unroll, step_epilogue):
    """Serial recurrence over one time chunk.  `step_epilogue(t, h_new)` is
    called once per step (writes per-t output or captures h at t = S-1)."""
    w_hh = whh_ref[...]
    b_hn = jnp.broadcast_to(bhn_ref[...], (bt, h_pad))   # hoisted broadcast

    def step(t, h):
        row = pl.multiple_of(t * bt, bt)                  # bt is a multiple of 8
        gi_t = gi_scratch[pl.ds(row, bt), :]              # (bt, 3*h_pad) f32
        gh = jnp.dot(h.astype(jnp.bfloat16), w_hh,
                     preferred_element_type=jnp.float32)  # (bt, 3*h_pad)
        r = jax.nn.sigmoid(gi_t[:, :h_pad] + gh[:, :h_pad])
        z = jax.nn.sigmoid(gi_t[:, h_pad:2 * h_pad] + gh[:, h_pad:2 * h_pad])
        n = jnp.tanh(gi_t[:, 2 * h_pad:] + r * (gh[:, 2 * h_pad:] + b_hn))
        h = n + z * (h - n)
        step_epilogue(t, h)
        return h

    return lax.fori_loop(0, t_chunk, step, h0, unroll=unroll)


# -----------------------------------------------------------------------------
# Intermediate GRU layer kernel: writes the full (t_chunk, B, H) bf16 output.
# grid = (n_time_chunks,) ["arbitrary"]; hidden state persists in VMEM scratch.
# -----------------------------------------------------------------------------
def _gru_layer_kernel(x_ref, wih_ref, whh_ref, bc_ref, bhn_ref, out_ref,
                      h_scratch, gi_scratch, *, t_chunk, h_pad, unroll):
    c = pl.program_id(0)

    @pl.when(c == 0)
    def _():
        h_scratch[...] = jnp.zeros_like(h_scratch)        # h0 = 0 (init_hidden)

    bt, din = x_ref.shape[1], x_ref.shape[2]
    _input_projection(x_ref, wih_ref, bc_ref, gi_scratch, t_chunk, bt, din)

    def write_out(t, h):
        out_ref[t] = h.astype(out_ref.dtype)               # bf16 activation stream

    h = _gru_recurrence(gi_scratch, whh_ref, bhn_ref, h_scratch[...],
                        bt, h_pad, t_chunk, unroll, write_out)
    h_scratch[...] = h


# -----------------------------------------------------------------------------
# Final GRU layer kernel with fused ReLU + Linear head.
# Never writes the (S, B, H) stream; only the (B, O) head output on the last
# chunk, computed from h captured at the true last timestep t = S-1.
# -----------------------------------------------------------------------------
def _gru_final_kernel(x_ref, wih_ref, whh_ref, bc_ref, bhn_ref,
                      wfc_ref, bfc_ref, out_ref,
                      h_scratch, gi_scratch, hlast_scratch,
                      *, t_chunk, h_pad, seq_len, unroll):
    c = pl.program_id(0)

    @pl.when(c == 0)
    def _():
        h_scratch[...] = jnp.zeros_like(h_scratch)

    bt, din = x_ref.shape[1], x_ref.shape[2]
    _input_projection(x_ref, wih_ref, bc_ref, gi_scratch, t_chunk, bt, din)

    def capture_last(t, h):
        @pl.when(c * t_chunk + t == seq_len - 1)
        def _():
            hlast_scratch[...] = h

    h = _gru_recurrence(gi_scratch, whh_ref, bhn_ref, h_scratch[...],
                        bt, h_pad, t_chunk, unroll, capture_last)
    h_scratch[...] = h

    @pl.when(c == pl.num_programs(0) - 1)
    def _():
        hr = jnp.maximum(hlast_scratch[...], 0.0).astype(jnp.bfloat16)
        out_ref[...] = (jnp.dot(hr, wfc_ref[...],
                                preferred_element_type=jnp.float32)
                        + bfc_ref[...])


# -----------------------------------------------------------------------------
# VMEM accounting (feedback: compute the limit, leave headroom under v7x 64MiB)
# -----------------------------------------------------------------------------
def _layer_vmem_limit(t_chunk, b_pad, din_pad, h_pad, extra_bytes, single_buffer):
    wb = 1 if single_buffer else 2
    n = 0
    n += 2 * t_chunk * b_pad * din_pad * 2                # x blocks (bf16, 2 bufs)
    n += wb * din_pad * 3 * h_pad * 2                     # W_ih (bf16)
    n += wb * h_pad * 3 * h_pad * 2                       # W_hh (bf16)
    n += wb * (3 * h_pad + h_pad) * 4                     # folded biases + b_hn
    n += b_pad * h_pad * 4                                # h scratch
    n += 2 * t_chunk * b_pad * 3 * h_pad * 4              # gi scratch + live value
    n += extra_bytes
    # Generous floor for compiler-internal scratch; cap ~14 MiB under v7x's
    # 64 MiB physical VMEM.
    return int(min(max(2 * n, 32 << 20), 50 << 20))


# -----------------------------------------------------------------------------
# Layer wrappers
# -----------------------------------------------------------------------------
def gru_layer(x, w_ih_t, w_hh_t, b_comb, b_hn, *, t_chunk, single_buffer, unroll):
    """x: (S_pad, B_pad, Din_pad) bf16  ->  (S_pad, B_pad, H_pad) bf16."""
    s_pad, b_pad, din_pad = x.shape
    h_pad = w_hh_t.shape[0]
    n_chunks = s_pad // t_chunk

    extra = 2 * t_chunk * b_pad * h_pad * 2               # bf16 out blocks (2 bufs)
    vmem_limit = _layer_vmem_limit(t_chunk, b_pad, din_pad, h_pad, extra,
                                   single_buffer)

    kernel = functools.partial(_gru_layer_kernel, t_chunk=t_chunk, h_pad=h_pad,
                               unroll=unroll)
    return pl.pallas_call(
        kernel,
        out_shape=jax.ShapeDtypeStruct((s_pad, b_pad, h_pad), jnp.bfloat16),
        grid_spec=pltpu.PrefetchScalarGridSpec(
            num_scalar_prefetch=0,
            grid=(n_chunks,),
            in_specs=[
                pl.BlockSpec((t_chunk, b_pad, din_pad), lambda c: (c, 0, 0)),
                _const_spec((din_pad, 3 * h_pad), single_buffer),
                _const_spec((h_pad, 3 * h_pad), single_buffer),
                _const_spec((1, 3 * h_pad), single_buffer),
                _const_spec((1, h_pad), single_buffer),
            ],
            out_specs=pl.BlockSpec((t_chunk, b_pad, h_pad), lambda c: (c, 0, 0)),
            scratch_shapes=[
                pltpu.VMEM((b_pad, h_pad), jnp.float32),                  # h
                pltpu.VMEM((t_chunk * b_pad, 3 * h_pad), jnp.float32),    # gi
            ],
        ),
        compiler_params=pltpu.CompilerParams(
            # Time axis is a serial recurrence.
            # TODO(synk): v7x — add a leading CORE_PARALLEL batch-tile axis to
            #   use both TensorCores when padded batch >= 16.
            dimension_semantics=("arbitrary",),
            vmem_limit_bytes=vmem_limit,
        ),
    )(x, w_ih_t, w_hh_t, b_comb, b_hn)


def gru_final_layer(x, w_ih_t, w_hh_t, b_comb, b_hn, w_fc_t, b_fc, *,
                    seq_len, t_chunk, single_buffer, unroll):
    """Final GRU layer + fused relu/FC head.  Returns (B_pad, O_pad) f32."""
    s_pad, b_pad, din_pad = x.shape
    h_pad = w_hh_t.shape[0]
    o_pad = w_fc_t.shape[1]
    n_chunks = s_pad // t_chunk

    wb = 1 if single_buffer else 2
    extra = (2 * b_pad * o_pad * 4                         # head out block
             + wb * (h_pad * o_pad * 2 + o_pad * 4)        # head weights / bias
             + b_pad * h_pad * 4)                          # h_last scratch
    vmem_limit = _layer_vmem_limit(t_chunk, b_pad, din_pad, h_pad, extra,
                                   single_buffer)

    kernel = functools.partial(_gru_final_kernel, t_chunk=t_chunk, h_pad=h_pad,
                               seq_len=seq_len, unroll=unroll)
    return pl.pallas_call(
        kernel,
        out_shape=jax.ShapeDtypeStruct((b_pad, o_pad), jnp.float32),
        grid_spec=pltpu.PrefetchScalarGridSpec(
            num_scalar_prefetch=0,
            grid=(n_chunks,),
            in_specs=[
                pl.BlockSpec((t_chunk, b_pad, din_pad), lambda c: (c, 0, 0)),
                _const_spec((din_pad, 3 * h_pad), single_buffer),
                _const_spec((h_pad, 3 * h_pad), single_buffer),
                _const_spec((1, 3 * h_pad), single_buffer),
                _const_spec((1, h_pad), single_buffer),
                _const_spec((h_pad, o_pad), single_buffer),
                _const_spec((1, o_pad), single_buffer),
            ],
            # Output resident across the (serial) time axis; written on the
            # last chunk only.
            out_specs=pl.BlockSpec((b_pad, o_pad), lambda c: (0, 0)),
            scratch_shapes=[
                pltpu.VMEM((b_pad, h_pad), jnp.float32),                  # h
                pltpu.VMEM((t_chunk * b_pad, 3 * h_pad), jnp.float32),    # gi
                pltpu.VMEM((b_pad, h_pad), jnp.float32),                  # h@t=S-1
            ],
        ),
        compiler_params=pltpu.CompilerParams(
            dimension_semantics=("arbitrary",),
            vmem_limit_bytes=vmem_limit,
        ),
    )(x, w_ih_t, w_hh_t, b_comb, b_hn, w_fc_t, b_fc)


# -----------------------------------------------------------------------------
# Full module forward
# -----------------------------------------------------------------------------
def gru_forward(x_bsd, packed, *, t_chunk=None, single_buffer_weights=True):
    """x_bsd: (batch, seq, input_dim) -> (batch, output_dim)."""
    B, S, Din = x_bsd.shape
    b_pad = _round_up(B, SUBLANE)
    din_pad = packed["din0_pad"]

    if t_chunk is None:
        # Hoisted-projection LHS rows = t_chunk * b_pad; aim for >= 256 rows
        # (fills v6e/v7x's 256-wide MXU) without computing past the sequence.
        t_chunk = min(S, max(8, _cdiv(256, b_pad)))
    t_chunk = max(1, min(t_chunk, S))
    n_chunks = _cdiv(S, t_chunk)
    s_pad = n_chunks * t_chunk
    # Fully unroll short chunks; moderate unroll (LLO visibility, bounded vreg
    # pressure) for longer ones.
    unroll = t_chunk if t_chunk <= 8 else 4

    x = jnp.transpose(x_bsd, (1, 0, 2)).astype(jnp.bfloat16)          # (S, B, D)
    x = jnp.zeros((s_pad, b_pad, din_pad), jnp.bfloat16).at[:S, :B, :Din].set(x)

    layers = packed["gru_layers"]
    for layer in layers[:-1]:
        x = gru_layer(x, layer["w_ih_t"], layer["w_hh_t"],
                      layer["b_comb"], layer["b_hn"],
                      t_chunk=t_chunk, single_buffer=single_buffer_weights,
                      unroll=unroll)

    last = layers[-1]
    out = gru_final_layer(x, last["w_ih_t"], last["w_hh_t"],
                          last["b_comb"], last["b_hn"],
                          packed["w_fc_t"], packed["b_fc"],
                          seq_len=S, t_chunk=t_chunk,
                          single_buffer=single_buffer_weights, unroll=unroll)
    return out[:B, :packed["output_dim"]]


# -----------------------------------------------------------------------------
# Params: PyTorch-layout init + packing (pad/transpose/cast/pre-fold biases)
# -----------------------------------------------------------------------------
def init_params(key, input_dim, hidden_dim, output_dim, n_layers):
    """PyTorch-layout parameters (uniform(-1/sqrt(H), 1/sqrt(H)))."""
    params = {"gru_layers": []}
    k = hidden_dim ** -0.5
    keys = jax.random.split(key, 4 * n_layers + 2)
    for layer in range(n_layers):
        d_in = input_dim if layer == 0 else hidden_dim
        k0, k1, k2, k3 = keys[4 * layer:4 * layer + 4]
        params["gru_layers"].append({
            "w_ih": jax.random.uniform(k0, (3 * hidden_dim, d_in), jnp.float32, -k, k),
            "w_hh": jax.random.uniform(k1, (3 * hidden_dim, hidden_dim), jnp.float32, -k, k),
            "b_ih": jax.random.uniform(k2, (3 * hidden_dim,), jnp.float32, -k, k),
            "b_hh": jax.random.uniform(k3, (3 * hidden_dim,), jnp.float32, -k, k),
        })
    params["w_fc"] = jax.random.uniform(keys[-2], (output_dim, hidden_dim),
                                        jnp.float32, -k, k)
    params["b_fc"] = jax.random.uniform(keys[-1], (output_dim,), jnp.float32, -k, k)
    return params


def pack_params(params, input_dim, hidden_dim, output_dim):
    """Pad gate blocks to 128 lanes, transpose for x@W layout, cast weights to
    bf16, and pre-fold biases for the hoisted input projection."""
    h_pad = _round_up(hidden_dim, LANE)
    packed = {"gru_layers": [], "h_pad": h_pad,
              "output_dim": output_dim,
              "din0_pad": _round_up(input_dim, LANE)}
    for li, layer in enumerate(params["gru_layers"]):
        d_in = input_dim if li == 0 else hidden_dim
        d_in_pad = _round_up(input_dim, LANE) if li == 0 else h_pad

        w_ih = layer["w_ih"].reshape(3, hidden_dim, d_in)
        w_ih_p = jnp.zeros((3, h_pad, d_in_pad), jnp.float32
                           ).at[:, :hidden_dim, :d_in].set(w_ih)
        w_ih_t = jnp.transpose(w_ih_p, (2, 0, 1)).reshape(d_in_pad, 3 * h_pad)

        w_hh = layer["w_hh"].reshape(3, hidden_dim, hidden_dim)
        w_hh_p = jnp.zeros((3, h_pad, h_pad), jnp.float32
                           ).at[:, :hidden_dim, :hidden_dim].set(w_hh)
        w_hh_t = jnp.transpose(w_hh_p, (2, 0, 1)).reshape(h_pad, 3 * h_pad)

        b_ih = layer["b_ih"].reshape(3, hidden_dim)
        b_hh = layer["b_hh"].reshape(3, hidden_dim)
        # Fold b_hr, b_hz into the projection bias; b_hn must stay separate.
        b_comb = jnp.zeros((3, h_pad), jnp.float32).at[:, :hidden_dim].set(
            jnp.stack([b_ih[0] + b_hh[0], b_ih[1] + b_hh[1], b_ih[2]]))
        b_hn = jnp.zeros((1, h_pad), jnp.float32).at[0, :hidden_dim].set(b_hh[2])

        packed["gru_layers"].append({
            "w_ih_t": w_ih_t.astype(jnp.bfloat16),
            "w_hh_t": w_hh_t.astype(jnp.bfloat16),
            "b_comb": b_comb.reshape(1, 3 * h_pad),
            "b_hn": b_hn,
        })

    o_pad = _round_up(output_dim, LANE)
    packed["w_fc_t"] = jnp.zeros((h_pad, o_pad), jnp.float32
                                 ).at[:hidden_dim, :output_dim].set(
                                     params["w_fc"].T).astype(jnp.bfloat16)
    packed["b_fc"] = jnp.zeros((1, o_pad), jnp.float32
                               ).at[0, :output_dim].set(params["b_fc"])
    return packed


# -----------------------------------------------------------------------------
# Pure-JAX reference (mirrors the kernel's bf16 weight/activation rounding).
# -----------------------------------------------------------------------------
def gru_reference(x_bsd, params, hidden_dim):
    B, S, _ = x_bsd.shape
    seqs = jnp.transpose(x_bsd, (1, 0, 2))
    for layer in params["gru_layers"]:
        w_ih = layer["w_ih"].astype(jnp.bfloat16).astype(jnp.float32)
        w_hh = layer["w_hh"].astype(jnp.bfloat16).astype(jnp.float32)
        b_ih, b_hh = layer["b_ih"], layer["b_hh"]
        h = jnp.zeros((B, hidden_dim), jnp.float32)
        outs = []
        for t in range(S):
            xt = seqs[t].astype(jnp.bfloat16).astype(jnp.float32)
            gi = xt @ w_ih.T + b_ih
            gh = h.astype(jnp.bfloat16).astype(jnp.float32) @ w_hh.T + b_hh
            i_r, i_z, i_n = jnp.split(gi, 3, axis=1)
            h_r, h_z, h_n = jnp.split(gh, 3, axis=1)
            r = jax.nn.sigmoid(i_r + h_r)
            z = jax.nn.sigmoid(i_z + h_z)
            n = jnp.tanh(i_n + r * h_n)
            h = (1.0 - z) * n + z * h
            outs.append(h)
        seqs = jnp.stack(outs, axis=0)
    return jnp.maximum(seqs[-1], 0.0) @ params["w_fc"].T + params["b_fc"]


if __name__ == "__main__":
    batch, seq, input_dim, hidden_dim, output_dim, n_layers = 2, 8, 4, 32, 3, 2

    key = jax.random.PRNGKey(0)
    kx, kp = jax.random.split(key)
    x = jax.random.normal(kx, (batch, seq, input_dim), dtype=jnp.float32)

    raw_params = init_params(kp, input_dim, hidden_dim, output_dim, n_layers)
    packed = pack_params(raw_params, input_dim, hidden_dim, output_dim)
    ref = gru_reference(x, raw_params, hidden_dim)

    def _run(single_buffer):
        fwd = jax.jit(functools.partial(gru_forward, packed=packed,
                                        single_buffer_weights=single_buffer))
        out = fwd(x)
        jax.block_until_ready(out)
        assert out.shape == (batch, output_dim), out.shape
        max_err = float(jnp.max(jnp.abs(out - ref)))
        assert max_err < 3e-2, f"mismatch vs reference: {max_err}"
        return out

    try:
        out = _run(True)        # single-buffered grid-invariant weights
    except Exception:
        # Fallback if pl.Buffered(1) single-buffering is unsupported on this
        # jax build: identical kernels with default double-buffered weights.
        out = _run(False)

    print("KERNEL_OK")
</pallas_src>

<mosaic_0001>
module attributes {stable_mosaic.version = 11 : i64} {
  func.func @_gru_layer_kernel(%arg0: i32, %arg1: memref<8x8x128xbf16, #tpu.memory_space<vmem>>, %arg2: memref<128x384xbf16, #tpu.memory_space<vmem>>, %arg3: memref<128x384xbf16, #tpu.memory_space<vmem>>, %arg4: memref<1x384xf32, #tpu.memory_space<vmem>>, %arg5: memref<1x128xf32, #tpu.memory_space<vmem>>, %arg6: memref<8x8x128xbf16, #tpu.memory_space<vmem>>, %arg7: memref<8x128xf32, #tpu.memory_space<vmem>>, %arg8: memref<64x384xf32, #tpu.memory_space<vmem>>) attributes {dimension_semantics = [#tpu.dimension_semantics<arbitrary>], iteration_bounds = array<i64: 1>, scalar_prefetch = 0 : i64, scratch_operands = 2 : i64, tpu.core_type = #tpu.core_type<tc>, window_params = [{transform_indices = @transform_0, window_bounds = array<i64: 8, 8, 128>}, {pipeline_mode = #tpu.pipeline_mode<synchronous>, transform_indices = @transform_1, window_bounds = array<i64: 128, 384>}, {pipeline_mode = #tpu.pipeline_mode<synchronous>, transform_indices = @transform_2, window_bounds = array<i64: 128, 384>}, {pipeline_mode = #tpu.pipeline_mode<synchronous>, transform_indices = @transform_3, window_bounds = array<i64: 1, 384>}, {pipeline_mode = #tpu.pipeline_mode<synchronous>, transform_indices = @transform_4, window_bounds = array<i64: 1, 128>}, {transform_indices = @transform_5, window_bounds = array<i64: 8, 8, 128>}]} {
    %c0_i32 = arith.constant 0 : i32
    %0 = arith.cmpi eq, %arg0, %c0_i32 : i32
    %1 = arith.extui %0 : i1 to i32
    %c0_i32_0 = arith.constant 0 : i32
    %2 = arith.cmpi ne, %1, %c0_i32_0 : i32
    scf.if %2 {
      %cst_74 = arith.constant 0.000000e+00 : f32
      %305 = vector.broadcast %cst_74 : f32 to vector<8x128xf32>
      %c0_75 = arith.constant 0 : index
      %c0_76 = arith.constant 0 : index
      %306 = vector.load %arg7[%c0_75, %c0_76] : memref<8x128xf32, #tpu.memory_space<vmem>>, vector<8x128xf32>
      tpu.vector_store %arg7[%c0_75, %c0_76], %305 {strides = array<i32>} : memref<8x128xf32, #tpu.memory_space<vmem>>, vector<8x128xf32>,
    } else {
    }
    %c0 = arith.constant 0 : index
    %c0_1 = arith.constant 0 : index
    %c0_2 = arith.constant 0 : index
    %3 = vector.load %arg1[%c0, %c0_1, %c0_2] : memref<8x8x128xbf16, #tpu.memory_space<vmem>>, vector<8x8x128xbf16>
    %4 = vector.shape_cast %3 : vector<8x8x128xbf16> to vector<64x128xbf16>
    %c0_3 = arith.constant 0 : index
    %c0_4 = arith.constant 0 : index
    %5 = vector.load %arg2[%c0_3, %c0_4] : memref<128x384xbf16, #tpu.memory_space<vmem>>, vector<128x384xbf16>
    %cst = arith.constant dense<0.000000e+00> : vector<64x384xf32>
    %6 = tpu.matmul %4, %5, %cst {dimension_numbers = #tpu.dot_dimension_numbers<[1], [0], [0], [1], [0, 0, 1, 1], [], []>} : vector<64x128xbf16>, vector<128x384xbf16>, vector<64x384xf32> -> vector<64x384xf32>
    %c0_5 = arith.constant 0 : index
    %c0_6 = arith.constant 0 : index
    %7 = vector.load %arg4[%c0_5, %c0_6] : memref<1x384xf32, #tpu.memory_space<vmem>>, vector<1x384xf32>
    %8 = vector.broadcast %7 : vector<1x384xf32> to vector<64x384xf32>
    %9 = arith.addf %6, %8 : vector<64x384xf32>
    %c0_7 = arith.constant 0 : index
    %c0_8 = arith.constant 0 : index
    %10 = vector.load %arg8[%c0_7, %c0_8] : memref<64x384xf32, #tpu.memory_space<vmem>>, vector<64x384xf32>
    tpu.vector_store %arg8[%c0_7, %c0_8], %9 {strides = array<i32>} : memref<64x384xf32, #tpu.memory_space<vmem>>, vector<64x384xf32>,
    %c0_9 = arith.constant 0 : index
    %c0_10 = arith.constant 0 : index
    %11 = vector.load %arg7[%c0_9, %c0_10] : memref<8x128xf32, #tpu.memory_space<vmem>>, vector<8x128xf32>
    %c0_11 = arith.constant 0 : index
    %c0_12 = arith.constant 0 : index
    %12 = vector.load %arg3[%c0_11, %c0_12] : memref<128x384xbf16, #tpu.memory_space<vmem>>, vector<128x384xbf16>
    %c0_13 = arith.constant 0 : index
    %c0_14 = arith.constant 0 : index
    %13 = vector.load %arg5[%c0_13, %c0_14] : memref<1x128xf32, #tpu.memory_space<vmem>>, vector<1x128xf32>
    %14 = vector.shape_cast %13 : vector<1x128xf32> to vector<1x128xf32>
    %15 = vector.broadcast %14 : vector<1x128xf32> to vector<8x128xf32>
    %c0_i32_15 = arith.constant 0 : i32
    %c8_i32 = arith.constant 8 : i32
    %16 = arith.muli %c0_i32_15, %c8_i32 : i32
    %17 = tpu.assume_multiple %16, 8 : i32
    %18 = arith.index_cast %17 : i32 to index
    %c0_16 = arith.constant 0 : index
    %19 = vector.load %arg8[%18, %c0_16] : memref<64x384xf32, #tpu.memory_space<vmem>>, vector<8x384xf32>
    %20 = arith.truncf %11 : vector<8x128xf32> to vector<8x128xbf16>
    %cst_17 = arith.constant dense<0.000000e+00> : vector<8x384xf32>
    %21 = tpu.matmul %20, %12, %cst_17 {dimension_numbers = #tpu.dot_dimension_numbers<[1], [0], [0], [1], [0, 0, 1, 1], [], []>} : vector<8x128xbf16>, vector<128x384xbf16>, vector<8x384xf32> -> vector<8x384xf32>
    %22 = vector.extract_strided_slice %19 {offsets = [0, 0], sizes = [8, 128], strides = [1, 1]} : vector<8x384xf32> to vector<8x128xf32>
    %23 = vector.extract_strided_slice %21 {offsets = [0, 0], sizes = [8, 128], strides = [1, 1]} : vector<8x384xf32> to vector<8x128xf32>
    %24 = arith.addf %22, %23 : vector<8x128xf32>
    %25 = arith.negf %24 : vector<8x128xf32>
    %26 = math.exp %25 : vector<8x128xf32>
    %cst_18 = arith.constant 1.000000e+00 : f32
    %27 = vector.broadcast %cst_18 : f32 to vector<8x128xf32>
    %28 = arith.addf %27, %26 : vector<8x128xf32>
    %29 = arith.divf %27, %28 : vector<8x128xf32>
    %30 = vector.extract_strided_slice %19 {offsets = [0, 128], sizes = [8, 128], strides = [1, 1]} : vector<8x384xf32> to vector<8x128xf32>
    %31 = vector.extract_strided_slice %21 {offsets = [0, 128], sizes = [8, 128], strides = [1, 1]} : vector<8x384xf32> to vector<8x128xf32>
    %32 = arith.addf %30, %31 : vector<8x128xf32>
    %33 = arith.negf %32 : vector<8x128xf32>
    %34 = math.exp %33 : vector<8x128xf32>
    %cst_19 = arith.constant 1.000000e+00 : f32
    %35 = vector.broadcast %cst_19 : f32 to vector<8x128xf32>
    %36 = arith.addf %35, %34 : vector<8x128xf32>
    %37 = arith.divf %35, %36 : vector<8x128xf32>
    %38 = vector.extract_strided_slice %19 {offsets = [0, 256], sizes = [8, 128], strides = [1, 1]} : vector<8x384xf32> to vector<8x128xf32>
    %39 = vector.extract_strided_slice %21 {offsets = [0, 256], sizes = [8, 128], strides = [1, 1]} : vector<8x384xf32> to vector<8x128xf32>
    %40 = arith.addf %39, %15 : vector<8x128xf32>
    %41 = arith.mulf %29, %40 : vector<8x128xf32>
    %42 = arith.addf %38, %41 : vector<8x128xf32>
    %43 = math.tanh %42 : vector<8x128xf32>
    %44 = arith.subf %11, %43 : vector<8x128xf32>
    %45 = arith.mulf %37, %44 : vector<8x128xf32>
    %46 = arith.addf %43, %45 : vector<8x128xf32>
    %47 = arith.truncf %46 : vector<8x128xf32> to vector<8x128xbf16>
    %48 = arith.index_cast %c0_i32_15 : i32 to index
    %c0_20 = arith.constant 0 : index
    %c0_21 = arith.constant 0 : index
    %49 = vector.load %arg6[%48, %c0_20, %c0_21] : memref<8x8x128xbf16, #tpu.memory_space<vmem>>, vector<1x8x128xbf16>
    %50 = vector.shape_cast %49 : vector<1x8x128xbf16> to vector<8x128xbf16>
    %51 = vector.shape_cast %47 : vector<8x128xbf16> to vector<1x8x128xbf16>
    tpu.vector_store %arg6[%48, %c0_20, %c0_21], %51 {strides = array<i32>} : memref<8x8x128xbf16, #tpu.memory_space<vmem>>, vector<1x8x128xbf16>,
    %c1_i32 = arith.constant 1 : i32
    %c8_i32_22 = arith.constant 8 : i32
    %52 = arith.muli %c1_i32, %c8_i32_22 : i32
    %53 = tpu.assume_multiple %52, 8 : i32
    %54 = arith.index_cast %53 : i32 to index
    %c0_23 = arith.constant 0 : index
    %55 = vector.load %arg8[%54, %c0_23] : memref<64x384xf32, #tpu.memory_space<vmem>>, vector<8x384xf32>
    %56 = arith.truncf %46 : vector<8x128xf32> to vector<8x128xbf16>
    %cst_24 = arith.constant dense<0.000000e+00> : vector<8x384xf32>
    %57 = tpu.matmul %56, %12, %cst_24 {dimension_numbers = #tpu.dot_dimension_numbers<[1], [0], [0], [1], [0, 0, 1, 1], [], []>} : vector<8x128xbf16>, vector<128x384xbf16>, vector<8x384xf32> -> vector<8x384xf32>
    %58 = vector.extract_strided_slice %55 {offsets = [0, 0], sizes = [8, 128], strides = [1, 1]} : vector<8x384xf32> to vector<8x128xf32>
    %59 = vector.extract_strided_slice %57 {offsets = [0, 0], sizes = [8, 128], strides = [1, 1]} : vector<8x384xf32> to vector<8x128xf32>
    %60 = arith.addf %58, %59 : vector<8x128xf32>
    %61 = arith.negf %60 : vector<8x128xf32>
    %62 = math.exp %61 : vector<8x128xf32>
    %cst_25 = arith.constant 1.000000e+00 : f32
    %63 = vector.broadcast %cst_25 : f32 to vector<8x128xf32>
    %64 = arith.addf %63, %62 : vector<8x128xf32>
    %65 = arith.divf %63, %64 : vector<8x128xf32>
    %66 = vector.extract_strided_slice %55 {offsets = [0, 128], sizes = [8, 128], strides = [1, 1]} : vector<8x384xf32> to vector<8x128xf32>
    %67 = vector.extract_strided_slice %57 {offsets = [0, 128], sizes = [8, 128], strides = [1, 1]} : vector<8x384xf32> to vector<8x128xf32>
    %68 = arith.addf %66, %67 : vector<8x128xf32>
    %69 = arith.negf %68 : vector<8x128xf32>
    %70 = math.exp %69 : vector<8x128xf32>
    %cst_26 = arith.constant 1.000000e+00 : f32
    %71 = vector.broadcast %cst_26 : f32 to vector<8x128xf32>
    %72 = arith.addf %71, %70 : vector<8x128xf32>
    %73 = arith.divf %71, %72 : vector<8x128xf32>
    %74 = vector.extract_strided_slice %55 {offsets = [0, 256], sizes = [8, 128], strides = [1, 1]} : vector<8x384xf32> to vector<8x128xf32>
    %75 = vector.extract_strided_slice %57 {offsets = [0, 256], sizes = [8, 128], strides = [1, 1]} : vector<8x384xf32> to vector<8x128xf32>
    %76 = arith.addf %75, %15 : vector<8x128xf32>
    %77 = arith.mulf %65, %76 : vector<8x128xf32>
    %78 = arith.addf %74, %77 : vector<8x128xf32>
    %79 = math.tanh %78 : vector<8x128xf32>
    %80 = arith.subf %46, %79 : vector<8x128xf32>
    %81 = arith.mulf %73, %80 : vector<8x128xf32>
    %82 = arith.addf %79, %81 : vector<8x128xf32>
    %83 = arith.truncf %82 : vector<8x128xf32> to vector<8x128xbf16>
    %84 = arith.index_cast %c1_i32 : i32 to index
    %c0_27 = arith.constant 0 : index
    %c0_28 = arith.constant 0 : index
    %85 = vector.load %arg6[%84, %c0_27, %c0_28] : memref<8x8x128xbf16, #tpu.memory_space<vmem>>, vector<1x8x128xbf16>
    %86 = vector.shape_cast %85 : vector<1x8x128xbf16> to vector<8x128xbf16>
    %87 = vector.shape_cast %83 : vector<8x128xbf16> to vector<1x8x128xbf16>
    tpu.vector_store %arg6[%84, %c0_27, %c0_28], %87 {strides = array<i32>} : memref<8x8x128xbf16, #tpu.memory_space<vmem>>, vector<1x8x128xbf16>,
    %c2_i32 = arith.constant 2 : i32
    %c8_i32_29 = arith.constant 8 : i32
    %88 = arith.muli %c2_i32, %c8_i32_29 : i32
    %89 = tpu.assume_multiple %88, 8 : i32
    %90 = arith.index_cast %89 : i32 to index
    %c0_30 = arith.constant 0 : index
    %91 = vector.load %arg8[%90, %c0_30] : memref<64x384xf32, #tpu.memory_space<vmem>>, vector<8x384xf32>
    %92 = arith.truncf %82 : vector<8x128xf32> to vector<8x128xbf16>
    %cst_31 = arith.constant dense<0.000000e+00> : vector<8x384xf32>
    %93 = tpu.matmul %92, %12, %cst_31 {dimension_numbers = #tpu.dot_dimension_numbers<[1], [0], [0], [1], [0, 0, 1, 1], [], []>} : vector<8x128xbf16>, vector<128x384xbf16>, vector<8x384xf32> -> vector<8x384xf32>
    %94 = vector.extract_strided_slice %91 {offsets = [0, 0], sizes = [8, 128], strides = [1, 1]} : vector<8x384xf32> to vector<8x128xf32>
    %95 = vector.extract_strided_slice %93 {offsets = [0, 0], sizes = [8, 128], strides = [1, 1]} : vector<8x384xf32> to vector<8x128xf32>
    %96 = arith.addf %94, %95 : vector<8x128xf32>
    %97 = arith.negf %96 : vector<8x128xf32>
    %98 = math.exp %97 : vector<8x128xf32>
    %cst_32 = arith.constant 1.000000e+00 : f32
    %99 = vector.broadcast %cst_32 : f32 to vector<8x128xf32>
    %100 = arith.addf %99, %98 : vector<8x128xf32>
    %101 = arith.divf %99, %100 : vector<8x128xf32>
    %102 = vector.extract_strided_slice %91 {offsets = [0, 128], sizes = [8, 128], strides = [1, 1]} : vector<8x384xf32> to vector<8x128xf32>
    %103 = vector.extract_strided_slice %93 {offsets = [0, 128], sizes = [8, 128], strides = [1, 1]} : vector<8x384xf32> to vector<8x128xf32>
    %104 = arith.addf %102, %103 : vector<8x128xf32>
    %105 = arith.negf %104 : vector<8x128xf32>
    %106 = math.exp %105 : vector<8x128xf32>
    %cst_33 = arith.constant 1.000000e+00 : f32
    %107 = vector.broadcast %cst_33 : f32 to vector<8x128xf32>
    %108 = arith.addf %107, %106 : vector<8x128xf32>
    %109 = arith.divf %107, %108 : vector<8x128xf32>
    %110 = vector.extract_strided_slice %91 {offsets = [0, 256], sizes = [8, 128], strides = [1, 1]} : vector<8x384xf32> to vector<8x128xf32>
    %111 = vector.extract_strided_slice %93 {offsets = [0, 256], sizes = [8, 128], strides = [1, 1]} : vector<8x384xf32> to vector<8x128xf32>
    %112 = arith.addf %111, %15 : vector<8x128xf32>
    %113 = arith.mulf %101, %112 : vector<8x128xf32>
    %114 = arith.addf %110, %113 : vector<8x128xf32>
    %115 = math.tanh %114 : vector<8x128xf32>
    %116 = arith.subf %82, %115 : vector<8x128xf32>
    %117 = arith.mulf %109, %116 : vector<8x128xf32>
    %118 = arith.addf %115, %117 : vector<8x128xf32>
    %119 = arith.truncf %118 : vector<8x128xf32> to vector<8x128xbf16>
    %120 = arith.index_cast %c2_i32 : i32 to index
    %c0_34 = arith.constant 0 : index
    %c0_35 = arith.constant 0 : index
    %121 = vector.load %arg6[%120, %c0_34, %c0_35] : memref<8x8x128xbf16, #tpu.memory_space<vmem>>, vector<1x8x128xbf16>
    %122 = vector.shape_cast %121 : vector<1x8x128xbf16> to vector<8x128xbf16>
    %123 = vector.shape_cast %119 : vector<8x128xbf16> to vector<1x8x128xbf16>
    tpu.vector_store %arg6[%120, %c0_34, %c0_35], %123 {strides = array<i32>} : memref<8x8x128xbf16, #tpu.memory_space<vmem>>, vector<1x8x128xbf16>,
    %c3_i32 = arith.constant 3 : i32
    %c8_i32_36 = arith.constant 8 : i32
    %124 = arith.muli %c3_i32, %c8_i32_36 : i32
    %125 = tpu.assume_multiple %124, 8 : i32
    %126 = arith.index_cast %125 : i32 to index
    %c0_37 = arith.constant 0 : index
    %127 = vector.load %arg8[%126, %c0_37] : memref<64x384xf32, #tpu.memory_space<vmem>>, vector<8x384xf32>
    %128 = arith.truncf %118 : vector<8x128xf32> to vector<8x128xbf16>
    %cst_38 = arith.constant dense<0.000000e+00> : vector<8x384xf32>
    %129 = tpu.matmul %128, %12, %cst_38 {dimension_numbers = #tpu.dot_dimension_numbers<[1], [0], [0], [1], [0, 0, 1, 1], [], []>} : vector<8x128xbf16>, vector<128x384xbf16>, vector<8x384xf32> -> vector<8x384xf32>
    %130 = vector.extract_strided_slice %127 {offsets = [0, 0], sizes = [8, 128], strides = [1, 1]} : vector<8x384xf32> to vector<8x128xf32>
    %131 = vector.extract_strided_slice %129 {offsets = [0, 0], sizes = [8, 128], strides = [1, 1]} : vector<8x384xf32> to vector<8x128xf32>
    %132 = arith.addf %130, %131 : vector<8x128xf32>
    %133 = arith.negf %132 : vector<8x128xf32>
    %134 = math.exp %133 : vector<8x128xf32>
    %cst_39 = arith.constant 1.000000e+00 : f32
    %135 = vector.broadcast %cst_39 : f32 to vector<8x128xf32>
    %136 = arith.addf %135, %134 : vector<8x128xf32>
    %137 = arith.divf %135, %136 : vector<8x128xf32>
    %138 = vector.extract_strided_slice %127 {offsets = [0, 128], sizes = [8, 128], strides = [1, 1]} : vector<8x384xf32> to vector<8x128xf32>
    %139 = vector.extract_strided_slice %129 {offsets = [0, 128], sizes = [8, 128], strides = [1, 1]} : vector<8x384xf32> to vector<8x128xf32>
    %140 = arith.addf %138, %139 : vector<8x128xf32>
    %141 = arith.negf %140 : vector<8x128xf32>
    %142 = math.exp %141 : vector<8x128xf32>
    %cst_40 = arith.constant 1.000000e+00 : f32
    %143 = vector.broadcast %cst_40 : f32 to vector<8x128xf32>
    %144 = arith.addf %143, %142 : vector<8x128xf32>
    %145 = arith.divf %143, %144 : vector<8x128xf32>
    %146 = vector.extract_strided_slice %127 {offsets = [0, 256], sizes = [8, 128], strides = [1, 1]} : vector<8x384xf32> to vector<8x128xf32>
    %147 = vector.extract_strided_slice %129 {offsets = [0, 256], sizes = [8, 128], strides = [1, 1]} : vector<8x384xf32> to vector<8x128xf32>
    %148 = arith.addf %147, %15 : vector<8x128xf32>
    %149 = arith.mulf %137, %148 : vector<8x128xf32>
    %150 = arith.addf %146, %149 : vector<8x128xf32>
    %151 = math.tanh %150 : vector<8x128xf32>
    %152 = arith.subf %118, %151 : vector<8x128xf32>
    %153 = arith.mulf %145, %152 : vector<8x128xf32>
    %154 = arith.addf %151, %153 : vector<8x128xf32>
    %155 = arith.truncf %154 : vector<8x128xf32> to vector<8x128xbf16>
    %156 = arith.index_cast %c3_i32 : i32 to index
    %c0_41 = arith.constant 0 : index
    %c0_42 = arith.constant 0 : index
    %157 = vector.load %arg6[%156, %c0_41, %c0_42] : memref<8x8x128xbf16, #tpu.memory_space<vmem>>, vector<1x8x128xbf16>
    %158 = vector.shape_cast %157 : vector<1x8x128xbf16> to vector<8x128xbf16>
    %159 = vector.shape_cast %155 : vector<8x128xbf16> to vector<1x8x128xbf16>
    tpu.vector_store %arg6[%156, %c0_41, %c0_42], %159 {strides = array<i32>} : memref<8x8x128xbf16, #tpu.memory_space<vmem>>, vector<1x8x128xbf16>,
    %c4_i32 = arith.constant 4 : i32
    %c8_i32_43 = arith.constant 8 : i32
    %160 = arith.muli %c4_i32, %c8_i32_43 : i32
    %161 = tpu.assume_multiple %160, 8 : i32
    %162 = arith.index_cast %161 : i32 to index
    %c0_44 = arith.constant 0 : index
    %163 = vector.load %arg8[%162, %c0_44] : memref<64x384xf32, #tpu.memory_space<vmem>>, vector<8x384xf32>
    %164 = arith.truncf %154 : vector<8x128xf32> to vector<8x128xbf16>
    %cst_45 = arith.constant dense<0.000000e+00> : vector<8x384xf32>
    %165 = tpu.matmul %164, %12, %cst_45 {dimension_numbers = #tpu.dot_dimension_numbers<[1], [0], [0], [1], [0, 0, 1, 1], [], []>} : vector<8x128xbf16>, vector<128x384xbf16>, vector<8x384xf32> -> vector<8x384xf32>
    %166 = vector.extract_strided_slice %163 {offsets = [0, 0], sizes = [8, 128], strides = [1, 1]} : vector<8x384xf32> to vector<8x128xf32>
    %167 = vector.extract_strided_slice %165 {offsets = [0, 0], sizes = [8, 128], strides = [1, 1]} : vector<8x384xf32> to vector<8x128xf32>
    %168 = arith.addf %166, %167 : vector<8x128xf32>
    %169 = arith.negf %168 : vector<8x128xf32>
    %170 = math.exp %169 : vector<8x128xf32>
    %cst_46 = arith.constant 1.000000e+00 : f32
    %171 = vector.broadcast %cst_46 : f32 to vector<8x128xf32>
    %172 = arith.addf %171, %170 : vector<8x128xf32>
    %173 = arith.divf %171, %172 : vector<8x128xf32>
    %174 = vector.extract_strided_slice %163 {offsets = [0, 128], sizes = [8, 128], strides = [1, 1]} : vector<8x384xf32> to vector<8x128xf32>
    %175 = vector.extract_strided_slice %165 {offsets = [0, 128], sizes = [8, 128], strides = [1, 1]} : vector<8x384xf32> to vector<8x128xf32>
    %176 = arith.addf %174, %175 : vector<8x128xf32>
    %177 = arith.negf %176 : vector<8x128xf32>
    %178 = math.exp %177 : vector<8x128xf32>
    %cst_47 = arith.constant 1.000000e+00 : f32
    %179 = vector.broadcast %cst_47 : f32 to vector<8x128xf32>
    %180 = arith.addf %179, %178 : vector<8x128xf32>
    %181 = arith.divf %179, %180 : vector<8x128xf32>
    %182 = vector.extract_strided_slice %163 {offsets = [0, 256], sizes = [8, 128], strides = [1, 1]} : vector<8x384xf32> to vector<8x128xf32>
    %183 = vector.extract_strided_slice %165 {offsets = [0, 256], sizes = [8, 128], strides = [1, 1]} : vector<8x384xf32> to vector<8x128xf32>
    %184 = arith.addf %183, %15 : vector<8x128xf32>
    %185 = arith.mulf %173, %184 : vector<8x128xf32>
    %186 = arith.addf %182, %185 : vector<8x128xf32>
    %187 = math.tanh %186 : vector<8x128xf32>
    %188 = arith.subf %154, %187 : vector<8x128xf32>
    %189 = arith.mulf %181, %188 : vector<8x128xf32>
    %190 = arith.addf %187, %189 : vector<8x128xf32>
    %191 = arith.truncf %190 : vector<8x128xf32> to vector<8x128xbf16>
    %192 = arith.index_cast %c4_i32 : i32 to index
    %c0_48 = arith.constant 0 : index
    %c0_49 = arith.constant 0 : index
    %193 = vector.load %arg6[%192, %c0_48, %c0_49] : memref<8x8x128xbf16, #tpu.memory_space<vmem>>, vector<1x8x128xbf16>
    %194 = vector.shape_cast %193 : vector<1x8x128xbf16> to vector<8x128xbf16>
    %195 = vector.shape_cast %191 : vector<8x128xbf16> to vector<1x8x128xbf16>
    tpu.vector_store %arg6[%192, %c0_48, %c0_49], %195 {strides = array<i32>} : memref<8x8x128xbf16, #tpu.memory_space<vmem>>, vector<1x8x128xbf16>,
    %c5_i32 = arith.constant 5 : i32
    %c8_i32_50 = arith.constant 8 : i32
    %196 = arith.muli %c5_i32, %c8_i32_50 : i32
    %197 = tpu.assume_multiple %196, 8 : i32
    %198 = arith.index_cast %197 : i32 to index
    %c0_51 = arith.constant 0 : index
    %199 = vector.load %arg8[%198, %c0_51] : memref<64x384xf32, #tpu.memory_space<vmem>>, vector<8x384xf32>
    %200 = arith.truncf %190 : vector<8x128xf32> to vector<8x128xbf16>
    %cst_52 = arith.constant dense<0.000000e+00> : vector<8x384xf32>
    %201 = tpu.matmul %200, %12, %cst_52 {dimension_numbers = #tpu.dot_dimension_numbers<[1], [0], [0], [1], [0, 0, 1, 1], [], []>} : vector<8x128xbf16>, vector<128x384xbf16>, vector<8x384xf32> -> vector<8x384xf32>
    %202 = vector.extract_strided_slice %199 {offsets = [0, 0], sizes = [8, 128], strides = [1, 1]} : vector<8x384xf32> to vector<8x128xf32>
    %203 = vector.extract_strided_slice %201 {offsets = [0, 0], sizes = [8, 128], strides = [1, 1]} : vector<8x384xf32> to vector<8x128xf32>
    %204 = arith.addf %202, %203 : vector<8x128xf32>
    %205 = arith.negf %204 : vector<8x128xf32>
    %206 = math.exp %205 : vector<8x128xf32>
    %cst_53 = arith.constant 1.000000e+00 : f32
    %207 = vector.broadcast %cst_53 : f32 to vector<8x128xf32>
    %208 = arith.addf %207, %206 : vector<8x128xf32>
    %209 = arith.divf %207, %208 : vector<8x128xf32>
    %210 = vector.extract_strided_slice %199 {offsets = [0, 128], sizes = [8, 128], strides = [1, 1]} : vector<8x384xf32> to vector<8x128xf32>
    %211 = vector.extract_strided_slice %201 {offsets = [0, 128], sizes = [8, 128], strides = [1, 1]} : vector<8x384xf32> to vector<8x128xf32>
    %212 = arith.addf %210, %211 : vector<8x128xf32>
    %213 = arith.negf %212 : vector<8x128xf32>
    %214 = math.exp %213 : vector<8x128xf32>
    %cst_54 = arith.constant 1.000000e+00 : f32
    %215 = vector.broadcast %cst_54 : f32 to vector<8x128xf32>
    %216 = arith.addf %215, %214 : vector<8x128xf32>
    %217 = arith.divf %215, %216 : vector<8x128xf32>
    %218 = vector.extract_strided_slice %199 {offsets = [0, 256], sizes = [8, 128], strides = [1, 1]} : vector<8x384xf32> to vector<8x128xf32>
    %219 = vector.extract_strided_slice %201 {offsets = [0, 256], sizes = [8, 128], strides = [1, 1]} : vector<8x384xf32> to vector<8x128xf32>
    %220 = arith.addf %219, %15 : vector<8x128xf32>
    %221 = arith.mulf %209, %220 : vector<8x128xf32>
    %222 = arith.addf %218, %221 : vector<8x128xf32>
    %223 = math.tanh %222 : vector<8x128xf32>
    %224 = arith.subf %190, %223 : vector<8x128xf32>
    %225 = arith.mulf %217, %224 : vector<8x128xf32>
    %226 = arith.addf %223, %225 : vector<8x128xf32>
    %227 = arith.truncf %226 : vector<8x128xf32> to vector<8x128xbf16>
    %228 = arith.index_cast %c5_i32 : i32 to index
    %c0_55 = arith.constant 0 : index
    %c0_56 = arith.constant 0 : index
    %229 = vector.load %arg6[%228, %c0_55, %c0_56] : memref<8x8x128xbf16, #tpu.memory_space<vmem>>, vector<1x8x128xbf16>
    %230 = vector.shape_cast %229 : vector<1x8x128xbf16> to vector<8x128xbf16>
    %231 = vector.shape_cast %227 : vector<8x128xbf16> to vector<1x8x128xbf16>
    tpu.vector_store %arg6[%228, %c0_55, %c0_56], %231 {strides = array<i32>} : memref<8x8x128xbf16, #tpu.memory_space<vmem>>, vector<1x8x128xbf16>,
    %c6_i32 = arith.constant 6 : i32
    %c8_i32_57 = arith.constant 8 : i32
    %232 = arith.muli %c6_i32, %c8_i32_57 : i32
    %233 = tpu.assume_multiple %232, 8 : i32
    %234 = arith.index_cast %233 : i32 to index
    %c0_58 = arith.constant 0 : index
    %235 = vector.load %arg8[%234, %c0_58] : memref<64x384xf32, #tpu.memory_space<vmem>>, vector<8x384xf32>
    %236 = arith.truncf %226 : vector<8x128xf32> to vector<8x128xbf16>
    %cst_59 = arith.constant dense<0.000000e+00> : vector<8x384xf32>
    %237 = tpu.matmul %236, %12, %cst_59 {dimension_numbers = #tpu.dot_dimension_numbers<[1], [0], [0], [1], [0, 0, 1, 1], [], []>} : vector<8x128xbf16>, vector<128x384xbf16>, vector<8x384xf32> -> vector<8x384xf32>
    %238 = vector.extract_strided_slice %235 {offsets = [0, 0], sizes = [8, 128], strides = [1, 1]} : vector<8x384xf32> to vector<8x128xf32>
    %239 = vector.extract_strided_slice %237 {offsets = [0, 0], sizes = [8, 128], strides = [1, 1]} : vector<8x384xf32> to vector<8x128xf32>
    %240 = arith.addf %238, %239 : vector<8x128xf32>
    %241 = arith.negf %240 : vector<8x128xf32>
    %242 = math.exp %241 : vector<8x128xf32>
    %cst_60 = arith.constant 1.000000e+00 : f32
    %243 = vector.broadcast %cst_60 : f32 to vector<8x128xf32>
    %244 = arith.addf %243, %242 : vector<8x128xf32>
    %245 = arith.divf %243, %244 : vector<8x128xf32>
    %246 = vector.extract_strided_slice %235 {offsets = [0, 128], sizes = [8, 128], strides = [1, 1]} : vector<8x384xf32> to vector<8x128xf32>
    %247 = vector.extract_strided_slice %237 {offsets = [0, 128], sizes = [8, 128], strides = [1, 1]} : vector<8x384xf32> to vector<8x128xf32>
    %248 = arith.addf %246, %247 : vector<8x128xf32>
    %249 = arith.negf %248 : vector<8x128xf32>
    %250 = math.exp %249 : vector<8x128xf32>
    %cst_61 = arith.constant 1.000000e+00 : f32
    %251 = vector.broadcast %cst_61 : f32 to vector<8x128xf32>
    %252 = arith.addf %251, %250 : vector<8x128xf32>
    %253 = arith.divf %251, %252 : vector<8x128xf32>
    %254 = vector.extract_strided_slice %235 {offsets = [0, 256], sizes = [8, 128], strides = [1, 1]} : vector<8x384xf32> to vector<8x128xf32>
    %255 = vector.extract_strided_slice %237 {offsets = [0, 256], sizes = [8, 128], strides = [1, 1]} : vector<8x384xf32> to vector<8x128xf32>
    %256 = arith.addf %255, %15 : vector<8x128xf32>
    %257 = arith.mulf %245, %256 : vector<8x128xf32>
    %258 = arith.addf %254, %257 : vector<8x128xf32>
    %259 = math.tanh %258 : vector<8x128xf32>
    %260 = arith.subf %226, %259 : vector<8x128xf32>
    %261 = arith.mulf %253, %260 : vector<8x128xf32>
    %262 = arith.addf %259, %261 : vector<8x128xf32>
    %263 = arith.truncf %262 : vector<8x128xf32> to vector<8x128xbf16>
    %264 = arith.index_cast %c6_i32 : i32 to index
    %c0_62 = arith.constant 0 : index
    %c0_63 = arith.constant 0 : index
    %265 = vector.load %arg6[%264, %c0_62, %c0_63] : memref<8x8x128xbf16, #tpu.memory_space<vmem>>, vector<1x8x128xbf16>
    %266 = vector.shape_cast %265 : vector<1x8x128xbf16> to vector<8x128xbf16>
    %267 = vector.shape_cast %263 : vector<8x128xbf16> to vector<1x8x128xbf16>
    tpu.vector_store %arg6[%264, %c0_62, %c0_63], %267 {strides = array<i32>} : memref<8x8x128xbf16, #tpu.memory_space<vmem>>, vector<1x8x128xbf16>,
    %c7_i32 = arith.constant 7 : i32
    %c8_i32_64 = arith.constant 8 : i32
    %268 = arith.muli %c7_i32, %c8_i32_64 : i32
    %269 = tpu.assume_multiple %268, 8 : i32
    %270 = arith.index_cast %269 : i32 to index
    %c0_65 = arith.constant 0 : index
    %271 = vector.load %arg8[%270, %c0_65] : memref<64x384xf32, #tpu.memory_space<vmem>>, vector<8x384xf32>
    %272 = arith.truncf %262 : vector<8x128xf32> to vector<8x128xbf16>
    %cst_66 = arith.constant dense<0.000000e+00> : vector<8x384xf32>
    %273 = tpu.matmul %272, %12, %cst_66 {dimension_numbers = #tpu.dot_dimension_numbers<[1], [0], [0], [1], [0, 0, 1, 1], [], []>} : vector<8x128xbf16>, vector<128x384xbf16>, vector<8x384xf32> -> vector<8x384xf32>
    %274 = vector.extract_strided_slice %271 {offsets = [0, 0], sizes = [8, 128], strides = [1, 1]} : vector<8x384xf32> to vector<8x128xf32>
    %275 = vector.extract_strided_slice %273 {offsets = [0, 0], sizes = [8, 128], strides = [1, 1]} : vector<8x384xf32> to vector<8x128xf32>
    %276 = arith.addf %274, %275 : vector<8x128xf32>
    %277 = arith.negf %276 : vector<8x128xf32>
    %278 = math.exp %277 : vector<8x128xf32>
    %cst_67 = arith.constant 1.000000e+00 : f32
    %279 = vector.broadcast %cst_67 : f32 to vector<8x128xf32>
    %280 = arith.addf %279, %278 : vector<8x128xf32>
    %281 = arith.divf %279, %280 : vector<8x128xf32>
    %282 = vector.extract_strided_slice %271 {offsets = [0, 128], sizes = [8, 128], strides = [1, 1]} : vector<8x384xf32> to vector<8x128xf32>
    %283 = vector.extract_strided_slice %273 {offsets = [0, 128], sizes = [8, 128], strides = [1, 1]} : vector<8x384xf32> to vector<8x128xf32>
    %284 = arith.addf %282, %283 : vector<8x128xf32>
    %285 = arith.negf %284 : vector<8x128xf32>
    %286 = math.exp %285 : vector<8x128xf32>
    %cst_68 = arith.constant 1.000000e+00 : f32
    %287 = vector.broadcast %cst_68 : f32 to vector<8x128xf32>
    %288 = arith.addf %287, %286 : vector<8x128xf32>
    %289 = arith.divf %287, %288 : vector<8x128xf32>
    %290 = vector.extract_strided_slice %271 {offsets = [0, 256], sizes = [8, 128], strides = [1, 1]} : vector<8x384xf32> to vector<8x128xf32>
    %291 = vector.extract_strided_slice %273 {offsets = [0, 256], sizes = [8, 128], strides = [1, 1]} : vector<8x384xf32> to vector<8x128xf32>
    %292 = arith.addf %291, %15 : vector<8x128xf32>
    %293 = arith.mulf %281, %292 : vector<8x128xf32>
    %294 = arith.addf %290, %293 : vector<8x128xf32>
    %295 = math.tanh %294 : vector<8x128xf32>
    %296 = arith.subf %262, %295 : vector<8x128xf32>
    %297 = arith.mulf %289, %296 : vector<8x128xf32>
    %298 = arith.addf %295, %297 : vector<8x128xf32>
    %299 = arith.truncf %298 : vector<8x128xf32> to vector<8x128xbf16>
    %300 = arith.index_cast %c7_i32 : i32 to index
    %c0_69 = arith.constant 0 : index
    %c0_70 = arith.constant 0 : index
    %301 = vector.load %arg6[%300, %c0_69, %c0_70] : memref<8x8x128xbf16, #tpu.memory_space<vmem>>, vector<1x8x128xbf16>
    %302 = vector.shape_cast %301 : vector<1x8x128xbf16> to vector<8x128xbf16>
    %303 = vector.shape_cast %299 : vector<8x128xbf16> to vector<1x8x128xbf16>
    tpu.vector_store %arg6[%300, %c0_69, %c0_70], %303 {strides = array<i32>} : memref<8x8x128xbf16, #tpu.memory_space<vmem>>, vector<1x8x128xbf16>,
    %c8_i32_71 = arith.constant 8 : i32
    %c0_72 = arith.constant 0 : index
    %c0_73 = arith.constant 0 : index
    %304 = vector.load %arg7[%c0_72, %c0_73] : memref<8x128xf32, #tpu.memory_space<vmem>>, vector<8x128xf32>
    tpu.vector_store %arg7[%c0_72, %c0_73], %298 {strides = array<i32>} : memref<8x128xf32, #tpu.memory_space<vmem>>, vector<8x128xf32>,
    return
  }
  func.func @transform_0(%arg0: i32) -> (i32, i32, i32) {
    %c0_i32 = arith.constant 0 : i32
    %c0_i32_0 = arith.constant 0 : i32
    %c0_i32_1 = arith.constant 0 : i32
    return %arg0, %c0_i32, %c0_i32_0 : i32, i32, i32
  }
  func.func @transform_1(%arg0: i32) -> (i32, i32) {
    %c0_i32 = arith.constant 0 : i32
    %c0_i32_0 = arith.constant 0 : i32
    %c0_i32_1 = arith.constant 0 : i32
    return %c0_i32, %c0_i32_0 : i32, i32
  }
  func.func @transform_2(%arg0: i32) -> (i32, i32) {
    %c0_i32 = arith.constant 0 : i32
    %c0_i32_0 = arith.constant 0 : i32
    %c0_i32_1 = arith.constant 0 : i32
    return %c0_i32, %c0_i32_0 : i32, i32
  }
  func.func @transform_3(%arg0: i32) -> (i32, i32) {
    %c0_i32 = arith.constant 0 : i32
    %c0_i32_0 = arith.constant 0 : i32
    %c0_i32_1 = arith.constant 0 : i32
    return %c0_i32, %c0_i32_0 : i32, i32
  }
  func.func @transform_4(%arg0: i32) -> (i32, i32) {
    %c0_i32 = arith.constant 0 : i32
    %c0_i32_0 = arith.constant 0 : i32
    %c0_i32_1 = arith.constant 0 : i32
    return %c0_i32, %c0_i32_0 : i32, i32
  }
  func.func @transform_5(%arg0: i32) -> (i32, i32, i32) {
    %c0_i32 = arith.constant 0 : i32
    %c0_i32_0 = arith.constant 0 : i32
    %c0_i32_1 = arith.constant 0 : i32
    return %arg0, %c0_i32, %c0_i32_0 : i32, i32, i32
  }
}

module attributes {stable_mosaic.version = 11 : i64} {
  func.func @_gru_final_kernel(%arg0: i32, %arg1: memref<8x8x128xbf16, #tpu.memory_space<vmem>>, %arg2: memref<128x384xbf16, #tpu.memory_space<vmem>>, %arg3: memref<128x384xbf16, #tpu.memory_space<vmem>>, %arg4: memref<1x384xf32, #tpu.memory_space<vmem>>, %arg5: memref<1x128xf32, #tpu.memory_space<vmem>>, %arg6: memref<128x128xbf16, #tpu.memory_space<vmem>>, %arg7: memref<1x128xf32, #tpu.memory_space<vmem>>, %arg8: memref<8x128xf32, #tpu.memory_space<vmem>>, %arg9: memref<8x128xf32, #tpu.memory_space<vmem>>, %arg10: memref<64x384xf32, #tpu.memory_space<vmem>>, %arg11: memref<8x128xf32, #tpu.memory_space<vmem>>) attributes {dimension_semantics = [#tpu.dimension_semantics<arbitrary>], iteration_bounds = array<i64: 1>, scalar_prefetch = 0 : i64, scratch_operands = 3 : i64, tpu.core_type = #tpu.core_type<tc>, window_params = [{transform_indices = @transform_0, window_bounds = array<i64: 8, 8, 128>}, {pipeline_mode = #tpu.pipeline_mode<synchronous>, transform_indices = @transform_1, window_bounds = array<i64: 128, 384>}, {pipeline_mode = #tpu.pipeline_mode<synchronous>, transform_indices = @transform_2, window_bounds = array<i64: 128, 384>}, {pipeline_mode = #tpu.pipeline_mode<synchronous>, transform_indices = @transform_3, window_bounds = array<i64: 1, 384>}, {pipeline_mode = #tpu.pipeline_mode<synchronous>, transform_indices = @transform_4, window_bounds = array<i64: 1, 128>}, {pipeline_mode = #tpu.pipeline_mode<synchronous>, transform_indices = @transform_5, window_bounds = array<i64: 128, 128>}, {pipeline_mode = #tpu.pipeline_mode<synchronous>, transform_indices = @transform_6, window_bounds = array<i64: 1, 128>}, {pipeline_mode = #tpu.pipeline_mode<synchronous>, transform_indices = @transform_7, window_bounds = array<i64: 8, 128>}]} {
    %c0_i32 = arith.constant 0 : i32
    %0 = arith.cmpi eq, %arg0, %c0_i32 : i32
    %1 = arith.extui %0 : i1 to i32
    %c0_i32_0 = arith.constant 0 : i32
    %2 = arith.cmpi ne, %1, %c0_i32_0 : i32
    scf.if %2 {
      %cst_84 = arith.constant 0.000000e+00 : f32
      %308 = vector.broadcast %cst_84 : f32 to vector<8x128xf32>
      %c0_85 = arith.constant 0 : index
      %c0_86 = arith.constant 0 : index
      %309 = vector.load %arg9[%c0_85, %c0_86] : memref<8x128xf32, #tpu.memory_space<vmem>>, vector<8x128xf32>
      tpu.vector_store %arg9[%c0_85, %c0_86], %308 {strides = array<i32>} : memref<8x128xf32, #tpu.memory_space<vmem>>, vector<8x128xf32>,
    } else {
    }
    %c0 = arith.constant 0 : index
    %c0_1 = arith.constant 0 : index
    %c0_2 = arith.constant 0 : index
    %3 = vector.load %arg1[%c0, %c0_1, %c0_2] : memref<8x8x128xbf16, #tpu.memory_space<vmem>>, vector<8x8x128xbf16>
    %4 = vector.shape_cast %3 : vector<8x8x128xbf16> to vector<64x128xbf16>
    %c0_3 = arith.constant 0 : index
    %c0_4 = arith.constant 0 : index
    %5 = vector.load %arg2[%c0_3, %c0_4] : memref<128x384xbf16, #tpu.memory_space<vmem>>, vector<128x384xbf16>
    %cst = arith.constant dense<0.000000e+00> : vector<64x384xf32>
    %6 = tpu.matmul %4, %5, %cst {dimension_numbers = #tpu.dot_dimension_numbers<[1], [0], [0], [1], [0, 0, 1, 1], [], []>} : vector<64x128xbf16>, vector<128x384xbf16>, vector<64x384xf32> -> vector<64x384xf32>
    %c0_5 = arith.constant 0 : index
    %c0_6 = arith.constant 0 : index
    %7 = vector.load %arg4[%c0_5, %c0_6] : memref<1x384xf32, #tpu.memory_space<vmem>>, vector<1x384xf32>
    %8 = vector.broadcast %7 : vector<1x384xf32> to vector<64x384xf32>
    %9 = arith.addf %6, %8 : vector<64x384xf32>
    %c0_7 = arith.constant 0 : index
    %c0_8 = arith.constant 0 : index
    %10 = vector.load %arg10[%c0_7, %c0_8] : memref<64x384xf32, #tpu.memory_space<vmem>>, vector<64x384xf32>
    tpu.vector_store %arg10[%c0_7, %c0_8], %9 {strides = array<i32>} : memref<64x384xf32, #tpu.memory_space<vmem>>, vector<64x384xf32>,
    %c0_9 = arith.constant 0 : index
    %c0_10 = arith.constant 0 : index
    %11 = vector.load %arg9[%c0_9, %c0_10] : memref<8x128xf32, #tpu.memory_space<vmem>>, vector<8x128xf32>
    %c0_11 = arith.constant 0 : index
    %c0_12 = arith.constant 0 : index
    %12 = vector.load %arg3[%c0_11, %c0_12] : memref<128x384xbf16, #tpu.memory_space<vmem>>, vector<128x384xbf16>
    %c0_13 = arith.constant 0 : index
    %c0_14 = arith.constant 0 : index
    %13 = vector.load %arg5[%c0_13, %c0_14] : memref<1x128xf32, #tpu.memory_space<vmem>>, vector<1x128xf32>
    %14 = vector.shape_cast %13 : vector<1x128xf32> to vector<1x128xf32>
    %15 = vector.broadcast %14 : vector<1x128xf32> to vector<8x128xf32>
    %c0_i32_15 = arith.constant 0 : i32
    %c8_i32 = arith.constant 8 : i32
    %16 = arith.muli %c0_i32_15, %c8_i32 : i32
    %17 = tpu.assume_multiple %16, 8 : i32
    %18 = arith.index_cast %17 : i32 to index
    %c0_16 = arith.constant 0 : index
    %19 = vector.load %arg10[%18, %c0_16] : memref<64x384xf32, #tpu.memory_space<vmem>>, vector<8x384xf32>
    %20 = arith.truncf %11 : vector<8x128xf32> to vector<8x128xbf16>
    %cst_17 = arith.constant dense<0.000000e+00> : vector<8x384xf32>
    %21 = tpu.matmul %20, %12, %cst_17 {dimension_numbers = #tpu.dot_dimension_numbers<[1], [0], [0], [1], [0, 0, 1, 1], [], []>} : vector<8x128xbf16>, vector<128x384xbf16>, vector<8x384xf32> -> vector<8x384xf32>
    %22 = vector.extract_strided_slice %19 {offsets = [0, 0], sizes = [8, 128], strides = [1, 1]} : vector<8x384xf32> to vector<8x128xf32>
    %23 = vector.extract_strided_slice %21 {offsets = [0, 0], sizes = [8, 128], strides = [1, 1]} : vector<8x384xf32> to vector<8x128xf32>
    %24 = arith.addf %22, %23 : vector<8x128xf32>
    %25 = arith.negf %24 : vector<8x128xf32>
    %26 = math.exp %25 : vector<8x128xf32>
    %cst_18 = arith.constant 1.000000e+00 : f32
    %27 = vector.broadcast %cst_18 : f32 to vector<8x128xf32>
    %28 = arith.addf %27, %26 : vector<8x128xf32>
    %29 = arith.divf %27, %28 : vector<8x128xf32>
    %30 = vector.extract_strided_slice %19 {offsets = [0, 128], sizes = [8, 128], strides = [1, 1]} : vector<8x384xf32> to vector<8x128xf32>
    %31 = vector.extract_strided_slice %21 {offsets = [0, 128], sizes = [8, 128], strides = [1, 1]} : vector<8x384xf32> to vector<8x128xf32>
    %32 = arith.addf %30, %31 : vector<8x128xf32>
    %33 = arith.negf %32 : vector<8x128xf32>
    %34 = math.exp %33 : vector<8x128xf32>
    %cst_19 = arith.constant 1.000000e+00 : f32
    %35 = vector.broadcast %cst_19 : f32 to vector<8x128xf32>
    %36 = arith.addf %35, %34 : vector<8x128xf32>
    %37 = arith.divf %35, %36 : vector<8x128xf32>
    %38 = vector.extract_strided_slice %19 {offsets = [0, 256], sizes = [8, 128], strides = [1, 1]} : vector<8x384xf32> to vector<8x128xf32>
    %39 = vector.extract_strided_slice %21 {offsets = [0, 256], sizes = [8, 128], strides = [1, 1]} : vector<8x384xf32> to vector<8x128xf32>
    %40 = arith.addf %39, %15 : vector<8x128xf32>
    %41 = arith.mulf %29, %40 : vector<8x128xf32>
    %42 = arith.addf %38, %41 : vector<8x128xf32>
    %43 = math.tanh %42 : vector<8x128xf32>
    %44 = arith.subf %11, %43 : vector<8x128xf32>
    %45 = arith.mulf %37, %44 : vector<8x128xf32>
    %46 = arith.addf %43, %45 : vector<8x128xf32>
    %c8_i32_20 = arith.constant 8 : i32
    %47 = arith.muli %arg0, %c8_i32_20 : i32
    %48 = arith.addi %47, %c0_i32_15 : i32
    %c7_i32 = arith.constant 7 : i32
    %49 = arith.cmpi eq, %48, %c7_i32 : i32
    %50 = arith.extui %49 : i1 to i32
    %c0_i32_21 = arith.constant 0 : i32
    %51 = arith.cmpi ne, %50, %c0_i32_21 : i32
    scf.if %51 {
      %c0_84 = arith.constant 0 : index
      %c0_85 = arith.constant 0 : index
      %308 = vector.load %arg11[%c0_84, %c0_85] : memref<8x128xf32, #tpu.memory_space<vmem>>, vector<8x128xf32>
      tpu.vector_store %arg11[%c0_84, %c0_85], %46 {strides = array<i32>} : memref<8x128xf32, #tpu.memory_space<vmem>>, vector<8x128xf32>,
    } else {
    }
    %c1_i32 = arith.constant 1 : i32
    %c8_i32_22 = arith.constant 8 : i32
    %52 = arith.muli %c1_i32, %c8_i32_22 : i32
    %53 = tpu.assume_multiple %52, 8 : i32
    %54 = arith.index_cast %53 : i32 to index
    %c0_23 = arith.constant 0 : index
    %55 = vector.load %arg10[%54, %c0_23] : memref<64x384xf32, #tpu.memory_space<vmem>>, vector<8x384xf32>
    %56 = arith.truncf %46 : vector<8x128xf32> to vector<8x128xbf16>
    %cst_24 = arith.constant dense<0.000000e+00> : vector<8x384xf32>
    %57 = tpu.matmul %56, %12, %cst_24 {dimension_numbers = #tpu.dot_dimension_numbers<[1], [0], [0], [1], [0, 0, 1, 1], [], []>} : vector<8x128xbf16>, vector<128x384xbf16>, vector<8x384xf32> -> vector<8x384xf32>
    %58 = vector.extract_strided_slice %55 {offsets = [0, 0], sizes = [8, 128], strides = [1, 1]} : vector<8x384xf32> to vector<8x128xf32>
    %59 = vector.extract_strided_slice %57 {offsets = [0, 0], sizes = [8, 128], strides = [1, 1]} : vector<8x384xf32> to vector<8x128xf32>
    %60 = arith.addf %58, %59 : vector<8x128xf32>
    %61 = arith.negf %60 : vector<8x128xf32>
    %62 = math.exp %61 : vector<8x128xf32>
    %cst_25 = arith.constant 1.000000e+00 : f32
    %63 = vector.broadcast %cst_25 : f32 to vector<8x128xf32>
    %64 = arith.addf %63, %62 : vector<8x128xf32>
    %65 = arith.divf %63, %64 : vector<8x128xf32>
    %66 = vector.extract_strided_slice %55 {offsets = [0, 128], sizes = [8, 128], strides = [1, 1]} : vector<8x384xf32> to vector<8x128xf32>
    %67 = vector.extract_strided_slice %57 {offsets = [0, 128], sizes = [8, 128], strides = [1, 1]} : vector<8x384xf32> to vector<8x128xf32>
    %68 = arith.addf %66, %67 : vector<8x128xf32>
    %69 = arith.negf %68 : vector<8x128xf32>
    %70 = math.exp %69 : vector<8x128xf32>
    %cst_26 = arith.constant 1.000000e+00 : f32
    %71 = vector.broadcast %cst_26 : f32 to vector<8x128xf32>
    %72 = arith.addf %71, %70 : vector<8x128xf32>
    %73 = arith.divf %71, %72 : vector<8x128xf32>
    %74 = vector.extract_strided_slice %55 {offsets = [0, 256], sizes = [8, 128], strides = [1, 1]} : vector<8x384xf32> to vector<8x128xf32>
    %75 = vector.extract_strided_slice %57 {offsets = [0, 256], sizes = [8, 128], strides = [1, 1]} : vector<8x384xf32> to vector<8x128xf32>
    %76 = arith.addf %75, %15 : vector<8x128xf32>
    %77 = arith.mulf %65, %76 : vector<8x128xf32>
    %78 = arith.addf %74, %77 : vector<8x128xf32>
    %79 = math.tanh %78 : vector<8x128xf32>
    %80 = arith.subf %46, %79 : vector<8x128xf32>
    %81 = arith.mulf %73, %80 : vector<8x128xf32>
    %82 = arith.addf %79, %81 : vector<8x128xf32>
    %c8_i32_27 = arith.constant 8 : i32
    %83 = arith.muli %arg0, %c8_i32_27 : i32
    %84 = arith.addi %83, %c1_i32 : i32
    %c7_i32_28 = arith.constant 7 : i32
    %85 = arith.cmpi eq, %84, %c7_i32_28 : i32
    %86 = arith.extui %85 : i1 to i32
    %c0_i32_29 = arith.constant 0 : i32
    %87 = arith.cmpi ne, %86, %c0_i32_29 : i32
    scf.if %87 {
      %c0_84 = arith.constant 0 : index
      %c0_85 = arith.constant 0 : index
      %308 = vector.load %arg11[%c0_84, %c0_85] : memref<8x128xf32, #tpu.memory_space<vmem>>, vector<8x128xf32>
      tpu.vector_store %arg11[%c0_84, %c0_85], %82 {strides = array<i32>} : memref<8x128xf32, #tpu.memory_space<vmem>>, vector<8x128xf32>,
    } else {
    }
    %c2_i32 = arith.constant 2 : i32
    %c8_i32_30 = arith.constant 8 : i32
    %88 = arith.muli %c2_i32, %c8_i32_30 : i32
    %89 = tpu.assume_multiple %88, 8 : i32
    %90 = arith.index_cast %89 : i32 to index
    %c0_31 = arith.constant 0 : index
    %91 = vector.load %arg10[%90, %c0_31] : memref<64x384xf32, #tpu.memory_space<vmem>>, vector<8x384xf32>
    %92 = arith.truncf %82 : vector<8x128xf32> to vector<8x128xbf16>
    %cst_32 = arith.constant dense<0.000000e+00> : vector<8x384xf32>
    %93 = tpu.matmul %92, %12, %cst_32 {dimension_numbers = #tpu.dot_dimension_numbers<[1], [0], [0], [1], [0, 0, 1, 1], [], []>} : vector<8x128xbf16>, vector<128x384xbf16>, vector<8x384xf32> -> vector<8x384xf32>
    %94 = vector.extract_strided_slice %91 {offsets = [0, 0], sizes = [8, 128], strides = [1, 1]} : vector<8x384xf32> to vector<8x128xf32>
    %95 = vector.extract_strided_slice %93 {offsets = [0, 0], sizes = [8, 128], strides = [1, 1]} : vector<8x384xf32> to vector<8x128xf32>
    %96 = arith.addf %94, %95 : vector<8x128xf32>
    %97 = arith.negf %96 : vector<8x128xf32>
    %98 = math.exp %97 : vector<8x128xf32>
    %cst_33 = arith.constant 1.000000e+00 : f32
    %99 = vector.broadcast %cst_33 : f32 to vector<8x128xf32>
    %100 = arith.addf %99, %98 : vector<8x128xf32>
    %101 = arith.divf %99, %100 : vector<8x128xf32>
    %102 = vector.extract_strided_slice %91 {offsets = [0, 128], sizes = [8, 128], strides = [1, 1]} : vector<8x384xf32> to vector<8x128xf32>
    %103 = vector.extract_strided_slice %93 {offsets = [0, 128], sizes = [8, 128], strides = [1, 1]} : vector<8x384xf32> to vector<8x128xf32>
    %104 = arith.addf %102, %103 : vector<8x128xf32>
    %105 = arith.negf %104 : vector<8x128xf32>
    %106 = math.exp %105 : vector<8x128xf32>
    %cst_34 = arith.constant 1.000000e+00 : f32
    %107 = vector.broadcast %cst_34 : f32 to vector<8x128xf32>
    %108 = arith.addf %107, %106 : vector<8x128xf32>
    %109 = arith.divf %107, %108 : vector<8x128xf32>
    %110 = vector.extract_strided_slice %91 {offsets = [0, 256], sizes = [8, 128], strides = [1, 1]} : vector<8x384xf32> to vector<8x128xf32>
    %111 = vector.extract_strided_slice %93 {offsets = [0, 256], sizes = [8, 128], strides = [1, 1]} : vector<8x384xf32> to vector<8x128xf32>
    %112 = arith.addf %111, %15 : vector<8x128xf32>
    %113 = arith.mulf %101, %112 : vector<8x128xf32>
    %114 = arith.addf %110, %113 : vector<8x128xf32>
    %115 = math.tanh %114 : vector<8x128xf32>
    %116 = arith.subf %82, %115 : vector<8x128xf32>
    %117 = arith.mulf %109, %116 : vector<8x128xf32>
    %118 = arith.addf %115, %117 : vector<8x128xf32>
    %c8_i32_35 = arith.constant 8 : i32
    %119 = arith.muli %arg0, %c8_i32_35 : i32
    %120 = arith.addi %119, %c2_i32 : i32
    %c7_i32_36 = arith.constant 7 : i32
    %121 = arith.cmpi eq, %120, %c7_i32_36 : i32
    %122 = arith.extui %121 : i1 to i32
    %c0_i32_37 = arith.constant 0 : i32
    %123 = arith.cmpi ne, %122, %c0_i32_37 : i32
    scf.if %123 {
      %c0_84 = arith.constant 0 : index
      %c0_85 = arith.constant 0 : index
      %308 = vector.load %arg11[%c0_84, %c0_85] : memref<8x128xf32, #tpu.memory_space<vmem>>, vector<8x128xf32>
      tpu.vector_store %arg11[%c0_84, %c0_85], %118 {strides = array<i32>} : memref<8x128xf32, #tpu.memory_space<vmem>>, vector<8x128xf32>,
    } else {
    }
    %c3_i32 = arith.constant 3 : i32
    %c8_i32_38 = arith.constant 8 : i32
    %124 = arith.muli %c3_i32, %c8_i32_38 : i32
    %125 = tpu.assume_multiple %124, 8 : i32
    %126 = arith.index_cast %125 : i32 to index
    %c0_39 = arith.constant 0 : index
    %127 = vector.load %arg10[%126, %c0_39] : memref<64x384xf32, #tpu.memory_space<vmem>>, vector<8x384xf32>
    %128 = arith.truncf %118 : vector<8x128xf32> to vector<8x128xbf16>
    %cst_40 = arith.constant dense<0.000000e+00> : vector<8x384xf32>
    %129 = tpu.matmul %128, %12, %cst_40 {dimension_numbers = #tpu.dot_dimension_numbers<[1], [0], [0], [1], [0, 0, 1, 1], [], []>} : vector<8x128xbf16>, vector<128x384xbf16>, vector<8x384xf32> -> vector<8x384xf32>
    %130 = vector.extract_strided_slice %127 {offsets = [0, 0], sizes = [8, 128], strides = [1, 1]} : vector<8x384xf32> to vector<8x128xf32>
    %131 = vector.extract_strided_slice %129 {offsets = [0, 0], sizes = [8, 128], strides = [1, 1]} : vector<8x384xf32> to vector<8x128xf32>
    %132 = arith.addf %130, %131 : vector<8x128xf32>
    %133 = arith.negf %132 : vector<8x128xf32>
    %134 = math.exp %133 : vector<8x128xf32>
    %cst_41 = arith.constant 1.000000e+00 : f32
    %135 = vector.broadcast %cst_41 : f32 to vector<8x128xf32>
    %136 = arith.addf %135, %134 : vector<8x128xf32>
    %137 = arith.divf %135, %136 : vector<8x128xf32>
    %138 = vector.extract_strided_slice %127 {offsets = [0, 128], sizes = [8, 128], strides = [1, 1]} : vector<8x384xf32> to vector<8x128xf32>
    %139 = vector.extract_strided_slice %129 {offsets = [0, 128], sizes = [8, 128], strides = [1, 1]} : vector<8x384xf32> to vector<8x128xf32>
    %140 = arith.addf %138, %139 : vector<8x128xf32>
    %141 = arith.negf %140 : vector<8x128xf32>
    %142 = math.exp %141 : vector<8x128xf32>
    %cst_42 = arith.constant 1.000000e+00 : f32
    %143 = vector.broadcast %cst_42 : f32 to vector<8x128xf32>
    %144 = arith.addf %143, %142 : vector<8x128xf32>
    %145 = arith.divf %143, %144 : vector<8x128xf32>
    %146 = vector.extract_strided_slice %127 {offsets = [0, 256], sizes = [8, 128], strides = [1, 1]} : vector<8x384xf32> to vector<8x128xf32>
    %147 = vector.extract_strided_slice %129 {offsets = [0, 256], sizes = [8, 128], strides = [1, 1]} : vector<8x384xf32> to vector<8x128xf32>
    %148 = arith.addf %147, %15 : vector<8x128xf32>
    %149 = arith.mulf %137, %148 : vector<8x128xf32>
    %150 = arith.addf %146, %149 : vector<8x128xf32>
    %151 = math.tanh %150 : vector<8x128xf32>
    %152 = arith.subf %118, %151 : vector<8x128xf32>
    %153 = arith.mulf %145, %152 : vector<8x128xf32>
    %154 = arith.addf %151, %153 : vector<8x128xf32>
    %c8_i32_43 = arith.constant 8 : i32
    %155 = arith.muli %arg0, %c8_i32_43 : i32
    %156 = arith.addi %155, %c3_i32 : i32
    %c7_i32_44 = arith.constant 7 : i32
    %157 = arith.cmpi eq, %156, %c7_i32_44 : i32
    %158 = arith.extui %157 : i1 to i32
    %c0_i32_45 = arith.constant 0 : i32
    %159 = arith.cmpi ne, %158, %c0_i32_45 : i32
    scf.if %159 {
      %c0_84 = arith.constant 0 : index
      %c0_85 = arith.constant 0 : index
      %308 = vector.load %arg11[%c0_84, %c0_85] : memref<8x128xf32, #tpu.memory_space<vmem>>, vector<8x128xf32>
      tpu.vector_store %arg11[%c0_84, %c0_85], %154 {strides = array<i32>} : memref<8x128xf32, #tpu.memory_space<vmem>>, vector<8x128xf32>,
    } else {
    }
    %c4_i32 = arith.constant 4 : i32
    %c8_i32_46 = arith.constant 8 : i32
    %160 = arith.muli %c4_i32, %c8_i32_46 : i32
    %161 = tpu.assume_multiple %160, 8 : i32
    %162 = arith.index_cast %161 : i32 to index
    %c0_47 = arith.constant 0 : index
    %163 = vector.load %arg10[%162, %c0_47] : memref<64x384xf32, #tpu.memory_space<vmem>>, vector<8x384xf32>
    %164 = arith.truncf %154 : vector<8x128xf32> to vector<8x128xbf16>
    %cst_48 = arith.constant dense<0.000000e+00> : vector<8x384xf32>
    %165 = tpu.matmul %164, %12, %cst_48 {dimension_numbers = #tpu.dot_dimension_numbers<[1], [0], [0], [1], [0, 0, 1, 1], [], []>} : vector<8x128xbf16>, vector<128x384xbf16>, vector<8x384xf32> -> vector<8x384xf32>
    %166 = vector.extract_strided_slice %163 {offsets = [0, 0], sizes = [8, 128], strides = [1, 1]} : vector<8x384xf32> to vector<8x128xf32>
    %167 = vector.extract_strided_slice %165 {offsets = [0, 0], sizes = [8, 128], strides = [1, 1]} : vector<8x384xf32> to vector<8x128xf32>
    %168 = arith.addf %166, %167 : vector<8x128xf32>
    %169 = arith.negf %168 : vector<8x128xf32>
    %170 = math.exp %169 : vector<8x128xf32>
    %cst_49 = arith.constant 1.000000e+00 : f32
    %171 = vector.broadcast %cst_49 : f32 to vector<8x128xf32>
    %172 = arith.addf %171, %170 : vector<8x128xf32>
    %173 = arith.divf %171, %172 : vector<8x128xf32>
    %174 = vector.extract_strided_slice %163 {offsets = [0, 128], sizes = [8, 128], strides = [1, 1]} : vector<8x384xf32> to vector<8x128xf32>
    %175 = vector.extract_strided_slice %165 {offsets = [0, 128], sizes = [8, 128], strides = [1, 1]} : vector<8x384xf32> to vector<8x128xf32>
    %176 = arith.addf %174, %175 : vector<8x128xf32>
    %177 = arith.negf %176 : vector<8x128xf32>
    %178 = math.exp %177 : vector<8x128xf32>
    %cst_50 = arith.constant 1.000000e+00 : f32
    %179 = vector.broadcast %cst_50 : f32 to vector<8x128xf32>
    %180 = arith.addf %179, %178 : vector<8x128xf32>
    %181 = arith.divf %179, %180 : vector<8x128xf32>
    %182 = vector.extract_strided_slice %163 {offsets = [0, 256], sizes = [8, 128], strides = [1, 1]} : vector<8x384xf32> to vector<8x128xf32>
    %183 = vector.extract_strided_slice %165 {offsets = [0, 256], sizes = [8, 128], strides = [1, 1]} : vector<8x384xf32> to vector<8x128xf32>
    %184 = arith.addf %183, %15 : vector<8x128xf32>
    %185 = arith.mulf %173, %184 : vector<8x128xf32>
    %186 = arith.addf %182, %185 : vector<8x128xf32>
    %187 = math.tanh %186 : vector<8x128xf32>
    %188 = arith.subf %154, %187 : vector<8x128xf32>
    %189 = arith.mulf %181, %188 : vector<8x128xf32>
    %190 = arith.addf %187, %189 : vector<8x128xf32>
    %c8_i32_51 = arith.constant 8 : i32
    %191 = arith.muli %arg0, %c8_i32_51 : i32
    %192 = arith.addi %191, %c4_i32 : i32
    %c7_i32_52 = arith.constant 7 : i32
    %193 = arith.cmpi eq, %192, %c7_i32_52 : i32
    %194 = arith.extui %193 : i1 to i32
    %c0_i32_53 = arith.constant 0 : i32
    %195 = arith.cmpi ne, %194, %c0_i32_53 : i32
    scf.if %195 {
      %c0_84 = arith.constant 0 : index
      %c0_85 = arith.constant 0 : index
      %308 = vector.load %arg11[%c0_84, %c0_85] : memref<8x128xf32, #tpu.memory_space<vmem>>, vector<8x128xf32>
      tpu.vector_store %arg11[%c0_84, %c0_85], %190 {strides = array<i32>} : memref<8x128xf32, #tpu.memory_space<vmem>>, vector<8x128xf32>,
    } else {
    }
    %c5_i32 = arith.constant 5 : i32
    %c8_i32_54 = arith.constant 8 : i32
    %196 = arith.muli %c5_i32, %c8_i32_54 : i32
    %197 = tpu.assume_multiple %196, 8 : i32
    %198 = arith.index_cast %197 : i32 to index
    %c0_55 = arith.constant 0 : index
    %199 = vector.load %arg10[%198, %c0_55] : memref<64x384xf32, #tpu.memory_space<vmem>>, vector<8x384xf32>
    %200 = arith.truncf %190 : vector<8x128xf32> to vector<8x128xbf16>
    %cst_56 = arith.constant dense<0.000000e+00> : vector<8x384xf32>
    %201 = tpu.matmul %200, %12, %cst_56 {dimension_numbers = #tpu.dot_dimension_numbers<[1], [0], [0], [1], [0, 0, 1, 1], [], []>} : vector<8x128xbf16>, vector<128x384xbf16>, vector<8x384xf32> -> vector<8x384xf32>
    %202 = vector.extract_strided_slice %199 {offsets = [0, 0], sizes = [8, 128], strides = [1, 1]} : vector<8x384xf32> to vector<8x128xf32>
    %203 = vector.extract_strided_slice %201 {offsets = [0, 0], sizes = [8, 128], strides = [1, 1]} : vector<8x384xf32> to vector<8x128xf32>
    %204 = arith.addf %202, %203 : vector<8x128xf32>
    %205 = arith.negf %204 : vector<8x128xf32>
    %206 = math.exp %205 : vector<8x128xf32>
    %cst_57 = arith.constant 1.000000e+00 : f32
    %207 = vector.broadcast %cst_57 : f32 to vector<8x128xf32>
    %208 = arith.addf %207, %206 : vector<8x128xf32>
    %209 = arith.divf %207, %208 : vector<8x128xf32>
    %210 = vector.extract_strided_slice %199 {offsets = [0, 128], sizes = [8, 128], strides = [1, 1]} : vector<8x384xf32> to vector<8x128xf32>
    %211 = vector.extract_strided_slice %201 {offsets = [0, 128], sizes = [8, 128], strides = [1, 1]} : vector<8x384xf32> to vector<8x128xf32>
    %212 = arith.addf %210, %211 : vector<8x128xf32>
    %213 = arith.negf %212 : vector<8x128xf32>
    %214 = math.exp %213 : vector<8x128xf32>
    %cst_58 = arith.constant 1.000000e+00 : f32
    %215 = vector.broadcast %cst_58 : f32 to vector<8x128xf32>
    %216 = arith.addf %215, %214 : vector<8x128xf32>
    %217 = arith.divf %215, %216 : vector<8x128xf32>
    %218 = vector.extract_strided_slice %199 {offsets = [0, 256], sizes = [8, 128], strides = [1, 1]} : vector<8x384xf32> to vector<8x128xf32>
    %219 = vector.extract_strided_slice %201 {offsets = [0, 256], sizes = [8, 128], strides = [1, 1]} : vector<8x384xf32> to vector<8x128xf32>
    %220 = arith.addf %219, %15 : vector<8x128xf32>
    %221 = arith.mulf %209, %220 : vector<8x128xf32>
    %222 = arith.addf %218, %221 : vector<8x128xf32>
    %223 = math.tanh %222 : vector<8x128xf32>
    %224 = arith.subf %190, %223 : vector<8x128xf32>
    %225 = arith.mulf %217, %224 : vector<8x128xf32>
    %226 = arith.addf %223, %225 : vector<8x128xf32>
    %c8_i32_59 = arith.constant 8 : i32
    %227 = arith.muli %arg0, %c8_i32_59 : i32
    %228 = arith.addi %227, %c5_i32 : i32
    %c7_i32_60 = arith.constant 7 : i32
    %229 = arith.cmpi eq, %228, %c7_i32_60 : i32
    %230 = arith.extui %229 : i1 to i32
    %c0_i32_61 = arith.constant 0 : i32
    %231 = arith.cmpi ne, %230, %c0_i32_61 : i32
    scf.if %231 {
      %c0_84 = arith.constant 0 : index
      %c0_85 = arith.constant 0 : index
      %308 = vector.load %arg11[%c0_84, %c0_85] : memref<8x128xf32, #tpu.memory_space<vmem>>, vector<8x128xf32>
      tpu.vector_store %arg11[%c0_84, %c0_85], %226 {strides = array<i32>} : memref<8x128xf32, #tpu.memory_space<vmem>>, vector<8x128xf32>,
    } else {
    }
    %c6_i32 = arith.constant 6 : i32
    %c8_i32_62 = arith.constant 8 : i32
    %232 = arith.muli %c6_i32, %c8_i32_62 : i32
    %233 = tpu.assume_multiple %232, 8 : i32
    %234 = arith.index_cast %233 : i32 to index
    %c0_63 = arith.constant 0 : index
    %235 = vector.load %arg10[%234, %c0_63] : memref<64x384xf32, #tpu.memory_space<vmem>>, vector<8x384xf32>
    %236 = arith.truncf %226 : vector<8x128xf32> to vector<8x128xbf16>
    %cst_64 = arith.constant dense<0.000000e+00> : vector<8x384xf32>
    %237 = tpu.matmul %236, %12, %cst_64 {dimension_numbers = #tpu.dot_dimension_numbers<[1], [0], [0], [1], [0, 0, 1, 1], [], []>} : vector<8x128xbf16>, vector<128x384xbf16>, vector<8x384xf32> -> vector<8x384xf32>
    %238 = vector.extract_strided_slice %235 {offsets = [0, 0], sizes = [8, 128], strides = [1, 1]} : vector<8x384xf32> to vector<8x128xf32>
    %239 = vector.extract_strided_slice %237 {offsets = [0, 0], sizes = [8, 128], strides = [1, 1]} : vector<8x384xf32> to vector<8x128xf32>
    %240 = arith.addf %238, %239 : vector<8x128xf32>
    %241 = arith.negf %240 : vector<8x128xf32>
    %242 = math.exp %241 : vector<8x128xf32>
    %cst_65 = arith.constant 1.000000e+00 : f32
    %243 = vector.broadcast %cst_65 : f32 to vector<8x128xf32>
    %244 = arith.addf %243, %242 : vector<8x128xf32>
    %245 = arith.divf %243, %244 : vector<8x128xf32>
    %246 = vector.extract_strided_slice %235 {offsets = [0, 128], sizes = [8, 128], strides = [1, 1]} : vector<8x384xf32> to vector<8x128xf32>
    %247 = vector.extract_strided_slice %237 {offsets = [0, 128], sizes = [8, 128], strides = [1, 1]} : vector<8x384xf32> to vector<8x128xf32>
    %248 = arith.addf %246, %247 : vector<8x128xf32>
    %249 = arith.negf %248 : vector<8x128xf32>
    %250 = math.exp %249 : vector<8x128xf32>
    %cst_66 = arith.constant 1.000000e+00 : f32
    %251 = vector.broadcast %cst_66 : f32 to vector<8x128xf32>
    %252 = arith.addf %251, %250 : vector<8x128xf32>
    %253 = arith.divf %251, %252 : vector<8x128xf32>
    %254 = vector.extract_strided_slice %235 {offsets = [0, 256], sizes = [8, 128], strides = [1, 1]} : vector<8x384xf32> to vector<8x128xf32>
    %255 = vector.extract_strided_slice %237 {offsets = [0, 256], sizes = [8, 128], strides = [1, 1]} : vector<8x384xf32> to vector<8x128xf32>
    %256 = arith.addf %255, %15 : vector<8x128xf32>
    %257 = arith.mulf %245, %256 : vector<8x128xf32>
    %258 = arith.addf %254, %257 : vector<8x128xf32>
    %259 = math.tanh %258 : vector<8x128xf32>
    %260 = arith.subf %226, %259 : vector<8x128xf32>
    %261 = arith.mulf %253, %260 : vector<8x128xf32>
    %262 = arith.addf %259, %261 : vector<8x128xf32>
    %c8_i32_67 = arith.constant 8 : i32
    %263 = arith.muli %arg0, %c8_i32_67 : i32
    %264 = arith.addi %263, %c6_i32 : i32
    %c7_i32_68 = arith.constant 7 : i32
    %265 = arith.cmpi eq, %264, %c7_i32_68 : i32
    %266 = arith.extui %265 : i1 to i32
    %c0_i32_69 = arith.constant 0 : i32
    %267 = arith.cmpi ne, %266, %c0_i32_69 : i32
    scf.if %267 {
      %c0_84 = arith.constant 0 : index
      %c0_85 = arith.constant 0 : index
      %308 = vector.load %arg11[%c0_84, %c0_85] : memref<8x128xf32, #tpu.memory_space<vmem>>, vector<8x128xf32>
      tpu.vector_store %arg11[%c0_84, %c0_85], %262 {strides = array<i32>} : memref<8x128xf32, #tpu.memory_space<vmem>>, vector<8x128xf32>,
    } else {
    }
    %c7_i32_70 = arith.constant 7 : i32
    %c8_i32_71 = arith.constant 8 : i32
    %268 = arith.muli %c7_i32_70, %c8_i32_71 : i32
    %269 = tpu.assume_multiple %268, 8 : i32
    %270 = arith.index_cast %269 : i32 to index
    %c0_72 = arith.constant 0 : index
    %271 = vector.load %arg10[%270, %c0_72] : memref<64x384xf32, #tpu.memory_space<vmem>>, vector<8x384xf32>
    %272 = arith.truncf %262 : vector<8x128xf32> to vector<8x128xbf16>
    %cst_73 = arith.constant dense<0.000000e+00> : vector<8x384xf32>
    %273 = tpu.matmul %272, %12, %cst_73 {dimension_numbers = #tpu.dot_dimension_numbers<[1], [0], [0], [1], [0, 0, 1, 1], [], []>} : vector<8x128xbf16>, vector<128x384xbf16>, vector<8x384xf32> -> vector<8x384xf32>
    %274 = vector.extract_strided_slice %271 {offsets = [0, 0], sizes = [8, 128], strides = [1, 1]} : vector<8x384xf32> to vector<8x128xf32>
    %275 = vector.extract_strided_slice %273 {offsets = [0, 0], sizes = [8, 128], strides = [1, 1]} : vector<8x384xf32> to vector<8x128xf32>
    %276 = arith.addf %274, %275 : vector<8x128xf32>
    %277 = arith.negf %276 : vector<8x128xf32>
    %278 = math.exp %277 : vector<8x128xf32>
    %cst_74 = arith.constant 1.000000e+00 : f32
    %279 = vector.broadcast %cst_74 : f32 to vector<8x128xf32>
    %280 = arith.addf %279, %278 : vector<8x128xf32>
    %281 = arith.divf %279, %280 : vector<8x128xf32>
    %282 = vector.extract_strided_slice %271 {offsets = [0, 128], sizes = [8, 128], strides = [1, 1]} : vector<8x384xf32> to vector<8x128xf32>
    %283 = vector.extract_strided_slice %273 {offsets = [0, 128], sizes = [8, 128], strides = [1, 1]} : vector<8x384xf32> to vector<8x128xf32>
    %284 = arith.addf %282, %283 : vector<8x128xf32>
    %285 = arith.negf %284 : vector<8x128xf32>
    %286 = math.exp %285 : vector<8x128xf32>
    %cst_75 = arith.constant 1.000000e+00 : f32
    %287 = vector.broadcast %cst_75 : f32 to vector<8x128xf32>
    %288 = arith.addf %287, %286 : vector<8x128xf32>
    %289 = arith.divf %287, %288 : vector<8x128xf32>
    %290 = vector.extract_strided_slice %271 {offsets = [0, 256], sizes = [8, 128], strides = [1, 1]} : vector<8x384xf32> to vector<8x128xf32>
    %291 = vector.extract_strided_slice %273 {offsets = [0, 256], sizes = [8, 128], strides = [1, 1]} : vector<8x384xf32> to vector<8x128xf32>
    %292 = arith.addf %291, %15 : vector<8x128xf32>
    %293 = arith.mulf %281, %292 : vector<8x128xf32>
    %294 = arith.addf %290, %293 : vector<8x128xf32>
    %295 = math.tanh %294 : vector<8x128xf32>
    %296 = arith.subf %262, %295 : vector<8x128xf32>
    %297 = arith.mulf %289, %296 : vector<8x128xf32>
    %298 = arith.addf %295, %297 : vector<8x128xf32>
    %c8_i32_76 = arith.constant 8 : i32
    %299 = arith.muli %arg0, %c8_i32_76 : i32
    %300 = arith.addi %299, %c7_i32_70 : i32
    %c7_i32_77 = arith.constant 7 : i32
    %301 = arith.cmpi eq, %300, %c7_i32_77 : i32
    %302 = arith.extui %301 : i1 to i32
    %c0_i32_78 = arith.constant 0 : i32
    %303 = arith.cmpi ne, %302, %c0_i32_78 : i32
    scf.if %303 {
      %c0_84 = arith.constant 0 : index
      %c0_85 = arith.constant 0 : index
      %308 = vector.load %arg11[%c0_84, %c0_85] : memref<8x128xf32, #tpu.memory_space<vmem>>, vector<8x128xf32>
      tpu.vector_store %arg11[%c0_84, %c0_85], %298 {strides = array<i32>} : memref<8x128xf32, #tpu.memory_space<vmem>>, vector<8x128xf32>,
    } else {
    }
    %c8_i32_79 = arith.constant 8 : i32
    %c0_80 = arith.constant 0 : index
    %c0_81 = arith.constant 0 : index
    %304 = vector.load %arg9[%c0_80, %c0_81] : memref<8x128xf32, #tpu.memory_space<vmem>>, vector<8x128xf32>
    tpu.vector_store %arg9[%c0_80, %c0_81], %298 {strides = array<i32>} : memref<8x128xf32, #tpu.memory_space<vmem>>, vector<8x128xf32>,
    %c0_i32_82 = arith.constant 0 : i32
    %305 = arith.cmpi eq, %arg0, %c0_i32_82 : i32
    %306 = arith.extui %305 : i1 to i32
    %c0_i32_83 = arith.constant 0 : i32
    %307 = arith.cmpi ne, %306, %c0_i32_83 : i32
    scf.if %307 {
      %c0_84 = arith.constant 0 : index
      %c0_85 = arith.constant 0 : index
      %308 = vector.load %arg11[%c0_84, %c0_85] : memref<8x128xf32, #tpu.memory_space<vmem>>, vector<8x128xf32>
      %cst_86 = arith.constant 0.000000e+00 : f32
      %309 = vector.broadcast %cst_86 : f32 to vector<8x128xf32>
      %310 = arith.maximumf %308, %309 : vector<8x128xf32>
      %311 = arith.truncf %310 : vector<8x128xf32> to vector<8x128xbf16>
      %c0_87 = arith.constant 0 : index
      %c0_88 = arith.constant 0 : index
      %312 = vector.load %arg6[%c0_87, %c0_88] : memref<128x128xbf16, #tpu.memory_space<vmem>>, vector<128x128xbf16>
      %cst_89 = arith.constant dense<0.000000e+00> : vector<8x128xf32>
      %313 = tpu.matmul %311, %312, %cst_89 {dimension_numbers = #tpu.dot_dimension_numbers<[1], [0], [0], [1], [0, 0, 1, 1], [], []>} : vector<8x128xbf16>, vector<128x128xbf16>, vector<8x128xf32> -> vector<8x128xf32>
      %c0_90 = arith.constant 0 : index
      %c0_91 = arith.constant 0 : index
      %314 = vector.load %arg7[%c0_90, %c0_91] : memref<1x128xf32, #tpu.memory_space<vmem>>, vector<1x128xf32>
      %315 = vector.broadcast %314 : vector<1x128xf32> to vector<8x128xf32>
      %316 = arith.addf %313, %315 : vector<8x128xf32>
      %c0_92 = arith.constant 0 : index
      %c0_93 = arith.constant 0 : index
      %317 = vector.load %arg8[%c0_92, %c0_93] : memref<8x128xf32, #tpu.memory_space<vmem>>, vector<8x128xf32>
      tpu.vector_store %arg8[%c0_92, %c0_93], %316 {strides = array<i32>} : memref<8x128xf32, #tpu.memory_space<vmem>>, vector<8x128xf32>,
    } else {
    }
    return
  }
  func.func @transform_0(%arg0: i32) -> (i32, i32, i32) {
    %c0_i32 = arith.constant 0 : i32
    %c0_i32_0 = arith.constant 0 : i32
    %c0_i32_1 = arith.constant 0 : i32
    return %arg0, %c0_i32, %c0_i32_0 : i32, i32, i32
  }
  func.func @transform_1(%arg0: i32) -> (i32, i32) {
    %c0_i32 = arith.constant 0 : i32
    %c0_i32_0 = arith.constant 0 : i32
    %c0_i32_1 = arith.constant 0 : i32
    return %c0_i32, %c0_i32_0 : i32, i32
  }
  func.func @transform_2(%arg0: i32) -> (i32, i32) {
    %c0_i32 = arith.constant 0 : i32
    %c0_i32_0 = arith.constant 0 : i32
    %c0_i32_1 = arith.constant 0 : i32
    return %c0_i32, %c0_i32_0 : i32, i32
  }
  func.func @transform_3(%arg0: i32) -> (i32, i32) {
    %c0_i32 = arith.constant 0 : i32
    %c0_i32_0 = arith.constant 0 : i32
    %c0_i32_1 = arith.constant 0 : i32
    return %c0_i32, %c0_i32_0 : i32, i32
  }
  func.func @transform_4(%arg0: i32) -> (i32, i32) {
    %c0_i32 = arith.constant 0 : i32
    %c0_i32_0 = arith.constant 0 : i32
    %c0_i32_1 = arith.constant 0 : i32
    return %c0_i32, %c0_i32_0 : i32, i32
  }
  func.func @transform_5(%arg0: i32) -> (i32, i32) {
    %c0_i32 = arith.constant 0 : i32
    %c0_i32_0 = arith.constant 0 : i32
    %c0_i32_1 = arith.constant 0 : i32
    return %c0_i32, %c0_i32_0 : i32, i32
  }
  func.func @transform_6(%arg0: i32) -> (i32, i32) {
    %c0_i32 = arith.constant 0 : i32
    %c0_i32_0 = arith.constant 0 : i32
    %c0_i32_1 = arith.constant 0 : i32
    return %c0_i32, %c0_i32_0 : i32, i32
  }
  func.func @transform_7(%arg0: i32) -> (i32, i32) {
    %c0_i32 = arith.constant 0 : i32
    %c0_i32_0 = arith.constant 0 : i32
    %c0_i32_1 = arith.constant 0 : i32
    return %c0_i32, %c0_i32_0 : i32, i32
  }
}

module attributes {stable_mosaic.version = 11 : i64} {
  func.func @_gru_final_kernel(%arg0: i32, %arg1: memref<8x8x128xbf16, #tpu.memory_space<vmem>>, %arg2: memref<128x384xbf16, #tpu.memory_space<vmem>>, %arg3: memref<128x384xbf16, #tpu.memory_space<vmem>>, %arg4: memref<1x384xf32, #tpu.memory_space<vmem>>, %arg5: memref<1x128xf32, #tpu.memory_space<vmem>>, %arg6: memref<128x128xbf16, #tpu.memory_space<vmem>>, %arg7: memref<1x128xf32, #tpu.memory_space<vmem>>, %arg8: memref<8x128xf32, #tpu.memory_space<vmem>>, %arg9: memref<8x128xf32, #tpu.memory_space<vmem>>, %arg10: memref<64x384xf32, #tpu.memory_space<vmem>>, %arg11: memref<8x128xf32, #tpu.memory_space<vmem>>) attributes {dimension_semantics = [#tpu.dimension_semantics<arbitrary>], iteration_bounds = array<i64: 1>, scalar_prefetch = 0 : i64, scratch_operands = 3 : i64, tpu.core_type = #tpu.core_type<tc>, window_params = [{transform_indices = @transform_0, window_bounds = array<i64: 8, 8, 128>}, {pipeline_mode = #tpu.pipeline_mode<synchronous>, transform_indices = @transform_1, window_bounds = array<i64: 128, 384>}, {pipeline_mode = #tpu.pipeline_mode<synchronous>, transform_indices = @transform_2, window_bounds = array<i64: 128, 384>}, {pipeline_mode = #tpu.pipeline_mode<synchronous>, transform_indices = @transform_3, window_bounds = array<i64: 1, 384>}, {pipeline_mode = #tpu.pipeline_mode<synchronous>, transform_indices = @transform_4, window_bounds = array<i64: 1, 128>}, {pipeline_mode = #tpu.pipeline_mode<synchronous>, transform_indices = @transform_5, window_bounds = array<i64: 128, 128>}, {pipeline_mode = #tpu.pipeline_mode<synchronous>, transform_indices = @transform_6, window_bounds = array<i64: 1, 128>}, {pipeline_mode = #tpu.pipeline_mode<synchronous>, transform_indices = @transform_7, window_bounds = array<i64: 8, 128>}]} {
    %c0_i32 = arith.constant 0 : i32
    %0 = arith.cmpi eq, %arg0, %c0_i32 : i32
    %1 = arith.extui %0 : i1 to i32
    %c0_i32_0 = arith.constant 0 : i32
    %2 = arith.cmpi ne, %1, %c0_i32_0 : i32
    scf.if %2 {
      %cst_84 = arith.constant 0.000000e+00 : f32
      %308 = vector.broadcast %cst_84 : f32 to vector<8x128xf32>
      %c0_85 = arith.constant 0 : index
      %c0_86 = arith.constant 0 : index
      %309 = vector.load %arg9[%c0_85, %c0_86] : memref<8x128xf32, #tpu.memory_space<vmem>>, vector<8x128xf32>
      tpu.vector_store %arg9[%c0_85, %c0_86], %308 {strides = array<i32>} : memref<8x128xf32, #tpu.memory_space<vmem>>, vector<8x128xf32>,
    } else {
    }
    %c0 = arith.constant 0 : index
    %c0_1 = arith.constant 0 : index
    %c0_2 = arith.constant 0 : index
    %3 = vector.load %arg1[%c0, %c0_1, %c0_2] : memref<8x8x128xbf16, #tpu.memory_space<vmem>>, vector<8x8x128xbf16>
    %4 = vector.shape_cast %3 : vector<8x8x128xbf16> to vector<64x128xbf16>
    %c0_3 = arith.constant 0 : index
    %c0_4 = arith.constant 0 : index
    %5 = vector.load %arg2[%c0_3, %c0_4] : memref<128x384xbf16, #tpu.memory_space<vmem>>, vector<128x384xbf16>
    %cst = arith.constant dense<0.000000e+00> : vector<64x384xf32>
    %6 = tpu.matmul %4, %5, %cst {dimension_numbers = #tpu.dot_dimension_numbers<[1], [0], [0], [1], [0, 0, 1, 1], [], []>} : vector<64x128xbf16>, vector<128x384xbf16>, vector<64x384xf32> -> vector<64x384xf32>
    %c0_5 = arith.constant 0 : index
    %c0_6 = arith.constant 0 : index
    %7 = vector.load %arg4[%c0_5, %c0_6] : memref<1x384xf32, #tpu.memory_space<vmem>>, vector<1x384xf32>
    %8 = vector.broadcast %7 : vector<1x384xf32> to vector<64x384xf32>
    %9 = arith.addf %6, %8 : vector<64x384xf32>
    %c0_7 = arith.constant 0 : index
    %c0_8 = arith.constant 0 : index
    %10 = vector.load %arg10[%c0_7, %c0_8] : memref<64x384xf32, #tpu.memory_space<vmem>>, vector<64x384xf32>
    tpu.vector_store %arg10[%c0_7, %c0_8], %9 {strides = array<i32>} : memref<64x384xf32, #tpu.memory_space<vmem>>, vector<64x384xf32>,
    %c0_9 = arith.constant 0 : index
    %c0_10 = arith.constant 0 : index
    %11 = vector.load %arg9[%c0_9, %c0_10] : memref<8x128xf32, #tpu.memory_space<vmem>>, vector<8x128xf32>
    %c0_11 = arith.constant 0 : index
    %c0_12 = arith.constant 0 : index
    %12 = vector.load %arg3[%c0_11, %c0_12] : memref<128x384xbf16, #tpu.memory_space<vmem>>, vector<128x384xbf16>
    %c0_13 = arith.constant 0 : index
    %c0_14 = arith.constant 0 : index
    %13 = vector.load %arg5[%c0_13, %c0_14] : memref<1x128xf32, #tpu.memory_space<vmem>>, vector<1x128xf32>
    %14 = vector.shape_cast %13 : vector<1x128xf32> to vector<1x128xf32>
    %15 = vector.broadcast %14 : vector<1x128xf32> to vector<8x128xf32>
    %c0_i32_15 = arith.constant 0 : i32
    %c8_i32 = arith.constant 8 : i32
    %16 = arith.muli %c0_i32_15, %c8_i32 : i32
    %17 = tpu.assume_multiple %16, 8 : i32
    %18 = arith.index_cast %17 : i32 to index
    %c0_16 = arith.constant 0 : index
    %19 = vector.load %arg10[%18, %c0_16] : memref<64x384xf32, #tpu.memory_space<vmem>>, vector<8x384xf32>
    %20 = arith.truncf %11 : vector<8x128xf32> to vector<8x128xbf16>
    %cst_17 = arith.constant dense<0.000000e+00> : vector<8x384xf32>
    %21 = tpu.matmul %20, %12, %cst_17 {dimension_numbers = #tpu.dot_dimension_numbers<[1], [0], [0], [1], [0, 0, 1, 1], [], []>} : vector<8x128xbf16>, vector<128x384xbf16>, vector<8x384xf32> -> vector<8x384xf32>
    %22 = vector.extract_strided_slice %19 {offsets = [0, 0], sizes = [8, 128], strides = [1, 1]} : vector<8x384xf32> to vector<8x128xf32>
    %23 = vector.extract_strided_slice %21 {offsets = [0, 0], sizes = [8, 128], strides = [1, 1]} : vector<8x384xf32> to vector<8x128xf32>
    %24 = arith.addf %22, %23 : vector<8x128xf32>
    %25 = arith.negf %24 : vector<8x128xf32>
    %26 = math.exp %25 : vector<8x128xf32>
    %cst_18 = arith.constant 1.000000e+00 : f32
    %27 = vector.broadcast %cst_18 : f32 to vector<8x128xf32>
    %28 = arith.addf %27, %26 : vector<8x128xf32>
    %29 = arith.divf %27, %28 : vector<8x128xf32>
    %30 = vector.extract_strided_slice %19 {offsets = [0, 128], sizes = [8, 128], strides = [1, 1]} : vector<8x384xf32> to vector<8x128xf32>
    %31 = vector.extract_strided_slice %21 {offsets = [0, 128], sizes = [8, 128], strides = [1, 1]} : vector<8x384xf32> to vector<8x128xf32>
    %32 = arith.addf %30, %31 : vector<8x128xf32>
    %33 = arith.negf %32 : vector<8x128xf32>
    %34 = math.exp %33 : vector<8x128xf32>
    %cst_19 = arith.constant 1.000000e+00 : f32
    %35 = vector.broadcast %cst_19 : f32 to vector<8x128xf32>
    %36 = arith.addf %35, %34 : vector<8x128xf32>
    %37 = arith.divf %35, %36 : vector<8x128xf32>
    %38 = vector.extract_strided_slice %19 {offsets = [0, 256], sizes = [8, 128], strides = [1, 1]} : vector<8x384xf32> to vector<8x128xf32>
    %39 = vector.extract_strided_slice %21 {offsets = [0, 256], sizes = [8, 128], strides = [1, 1]} : vector<8x384xf32> to vector<8x128xf32>
    %40 = arith.addf %39, %15 : vector<8x128xf32>
    %41 = arith.mulf %29, %40 : vector<8x128xf32>
    %42 = arith.addf %38, %41 : vector<8x128xf32>
    %43 = math.tanh %42 : vector<8x128xf32>
    %44 = arith.subf %11, %43 : vector<8x128xf32>
    %45 = arith.mulf %37, %44 : vector<8x128xf32>
    %46 = arith.addf %43, %45 : vector<8x128xf32>
    %c8_i32_20 = arith.constant 8 : i32
    %47 = arith.muli %arg0, %c8_i32_20 : i32
    %48 = arith.addi %47, %c0_i32_15 : i32
    %c7_i32 = arith.constant 7 : i32
    %49 = arith.cmpi eq, %48, %c7_i32 : i32
    %50 = arith.extui %49 : i1 to i32
    %c0_i32_21 = arith.constant 0 : i32
    %51 = arith.cmpi ne, %50, %c0_i32_21 : i32
    scf.if %51 {
      %c0_84 = arith.constant 0 : index
      %c0_85 = arith.constant 0 : index
      %308 = vector.load %arg11[%c0_84, %c0_85] : memref<8x128xf32, #tpu.memory_space<vmem>>, vector<8x128xf32>
      tpu.vector_store %arg11[%c0_84, %c0_85], %46 {strides = array<i32>} : memref<8x128xf32, #tpu.memory_space<vmem>>, vector<8x128xf32>,
    } else {
    }
    %c1_i32 = arith.constant 1 : i32
    %c8_i32_22 = arith.constant 8 : i32
    %52 = arith.muli %c1_i32, %c8_i32_22 : i32
    %53 = tpu.assume_multiple %52, 8 : i32
    %54 = arith.index_cast %53 : i32 to index
    %c0_23 = arith.constant 0 : index
    %55 = vector.load %arg10[%54, %c0_23] : memref<64x384xf32, #tpu.memory_space<vmem>>, vector<8x384xf32>
    %56 = arith.truncf %46 : vector<8x128xf32> to vector<8x128xbf16>
    %cst_24 = arith.constant dense<0.000000e+00> : vector<8x384xf32>
    %57 = tpu.matmul %56, %12, %cst_24 {dimension_numbers = #tpu.dot_dimension_numbers<[1], [0], [0], [1], [0, 0, 1, 1], [], []>} : vector<8x128xbf16>, vector<128x384xbf16>, vector<8x384xf32> -> vector<8x384xf32>
    %58 = vector.extract_strided_slice %55 {offsets = [0, 0], sizes = [8, 128], strides = [1, 1]} : vector<8x384xf32> to vector<8x128xf32>
    %59 = vector.extract_strided_slice %57 {offsets = [0, 0], sizes = [8, 128], strides = [1, 1]} : vector<8x384xf32> to vector<8x128xf32>
    %60 = arith.addf %58, %59 : vector<8x128xf32>
    %61 = arith.negf %60 : vector<8x128xf32>
    %62 = math.exp %61 : vector<8x128xf32>
    %cst_25 = arith.constant 1.000000e+00 : f32
    %63 = vector.broadcast %cst_25 : f32 to vector<8x128xf32>
    %64 = arith.addf %63, %62 : vector<8x128xf32>
    %65 = arith.divf %63, %64 : vector<8x128xf32>
    %66 = vector.extract_strided_slice %55 {offsets = [0, 128], sizes = [8, 128], strides = [1, 1]} : vector<8x384xf32> to vector<8x128xf32>
    %67 = vector.extract_strided_slice %57 {offsets = [0, 128], sizes = [8, 128], strides = [1, 1]} : vector<8x384xf32> to vector<8x128xf32>
    %68 = arith.addf %66, %67 : vector<8x128xf32>
    %69 = arith.negf %68 : vector<8x128xf32>
    %70 = math.exp %69 : vector<8x128xf32>
    %cst_26 = arith.constant 1.000000e+00 : f32
    %71 = vector.broadcast %cst_26 : f32 to vector<8x128xf32>
    %72 = arith.addf %71, %70 : vector<8x128xf32>
    %73 = arith.divf %71, %72 : vector<8x128xf32>
    %74 = vector.extract_strided_slice %55 {offsets = [0, 256], sizes = [8, 128], strides = [1, 1]} : vector<8x384xf32> to vector<8x128xf32>
    %75 = vector.extract_strided_slice %57 {offsets = [0, 256], sizes = [8, 128], strides = [1, 1]} : vector<8x384xf32> to vector<8x128xf32>
    %76 = arith.addf %75, %15 : vector<8x128xf32>
    %77 = arith.mulf %65, %76 : vector<8x128xf32>
    %78 = arith.addf %74, %77 : vector<8x128xf32>
    %79 = math.tanh %78 : vector<8x128xf32>
    %80 = arith.subf %46, %79 : vector<8x128xf32>
    %81 = arith.mulf %73, %80 : vector<8x128xf32>
    %82 = arith.addf %79, %81 : vector<8x128xf32>
    %c8_i32_27 = arith.constant 8 : i32
    %83 = arith.muli %arg0, %c8_i32_27 : i32
    %84 = arith.addi %83, %c1_i32 : i32
    %c7_i32_28 = arith.constant 7 : i32
    %85 = arith.cmpi eq, %84, %c7_i32_28 : i32
    %86 = arith.extui %85 : i1 to i32
    %c0_i32_29 = arith.constant 0 : i32
    %87 = arith.cmpi ne, %86, %c0_i32_29 : i32
    scf.if %87 {
      %c0_84 = arith.constant 0 : index
      %c0_85 = arith.constant 0 : index
      %308 = vector.load %arg11[%c0_84, %c0_85] : memref<8x128xf32, #tpu.memory_space<vmem>>, vector<8x128xf32>
      tpu.vector_store %arg11[%c0_84, %c0_85], %82 {strides = array<i32>} : memref<8x128xf32, #tpu.memory_space<vmem>>, vector<8x128xf32>,
    } else {
    }
    %c2_i32 = arith.constant 2 : i32
    %c8_i32_30 = arith.constant 8 : i32
    %88 = arith.muli %c2_i32, %c8_i32_30 : i32
    %89 = tpu.assume_multiple %88, 8 : i32
    %90 = arith.index_cast %89 : i32 to index
    %c0_31 = arith.constant 0 : index
    %91 = vector.load %arg10[%90, %c0_31] : memref<64x384xf32, #tpu.memory_space<vmem>>, vector<8x384xf32>
    %92 = arith.truncf %82 : vector<8x128xf32> to vector<8x128xbf16>
    %cst_32 = arith.constant dense<0.000000e+00> : vector<8x384xf32>
    %93 = tpu.matmul %92, %12, %cst_32 {dimension_numbers = #tpu.dot_dimension_numbers<[1], [0], [0], [1], [0, 0, 1, 1], [], []>} : vector<8x128xbf16>, vector<128x384xbf16>, vector<8x384xf32> -> vector<8x384xf32>
    %94 = vector.extract_strided_slice %91 {offsets = [0, 0], sizes = [8, 128], strides = [1, 1]} : vector<8x384xf32> to vector<8x128xf32>
    %95 = vector.extract_strided_slice %93 {offsets = [0, 0], sizes = [8, 128], strides = [1, 1]} : vector<8x384xf32> to vector<8x128xf32>
    %96 = arith.addf %94, %95 : vector<8x128xf32>
    %97 = arith.negf %96 : vector<8x128xf32>
    %98 = math.exp %97 : vector<8x128xf32>
    %cst_33 = arith.constant 1.000000e+00 : f32
    %99 = vector.broadcast %cst_33 : f32 to vector<8x128xf32>
    %100 = arith.addf %99, %98 : vector<8x128xf32>
    %101 = arith.divf %99, %100 : vector<8x128xf32>
    %102 = vector.extract_strided_slice %91 {offsets = [0, 128], sizes = [8, 128], strides = [1, 1]} : vector<8x384xf32> to vector<8x128xf32>
    %103 = vector.extract_strided_slice %93 {offsets = [0, 128], sizes = [8, 128], strides = [1, 1]} : vector<8x384xf32> to vector<8x128xf32>
    %104 = arith.addf %102, %103 : vector<8x128xf32>
    %105 = arith.negf %104 : vector<8x128xf32>
    %106 = math.exp %105 : vector<8x128xf32>
    %cst_34 = arith.constant 1.000000e+00 : f32
    %107 = vector.broadcast %cst_34 : f32 to vector<8x128xf32>
    %108 = arith.addf %107, %106 : vector<8x128xf32>
    %109 = arith.divf %107, %108 : vector<8x128xf32>
    %110 = vector.extract_strided_slice %91 {offsets = [0, 256], sizes = [8, 128], strides = [1, 1]} : vector<8x384xf32> to vector<8x128xf32>
    %111 = vector.extract_strided_slice %93 {offsets = [0, 256], sizes = [8, 128], strides = [1, 1]} : vector<8x384xf32> to vector<8x128xf32>
    %112 = arith.addf %111, %15 : vector<8x128xf32>
    %113 = arith.mulf %101, %112 : vector<8x128xf32>
    %114 = arith.addf %110, %113 : vector<8x128xf32>
    %115 = math.tanh %114 : vector<8x128xf32>
    %116 = arith.subf %82, %115 : vector<8x128xf32>
    %117 = arith.mulf %109, %116 : vector<8x128xf32>
    %118 = arith.addf %115, %117 : vector<8x128xf32>
    %c8_i32_35 = arith.constant 8 : i32
    %119 = arith.muli %arg0, %c8_i32_35 : i32
    %120 = arith.addi %119, %c2_i32 : i32
    %c7_i32_36 = arith.constant 7 : i32
    %121 = arith.cmpi eq, %120, %c7_i32_36 : i32
    %122 = arith.extui %121 : i1 to i32
    %c0_i32_37 = arith.constant 0 : i32
    %123 = arith.cmpi ne, %122, %c0_i32_37 : i32
    scf.if %123 {
      %c0_84 = arith.constant 0 : index
      %c0_85 = arith.constant 0 : index
      %308 = vector.load %arg11[%c0_84, %c0_85] : memref<8x128xf32, #tpu.memory_space<vmem>>, vector<8x128xf32>
      tpu.vector_store %arg11[%c0_84, %c0_85], %118 {strides = array<i32>} : memref<8x128xf32, #tpu.memory_space<vmem>>, vector<8x128xf32>,
    } else {
    }
    %c3_i32 = arith.constant 3 : i32
    %c8_i32_38 = arith.constant 8 : i32
    %124 = arith.muli %c3_i32, %c8_i32_38 : i32
    %125 = tpu.assume_multiple %124, 8 : i32
    %126 = arith.index_cast %125 : i32 to index
    %c0_39 = arith.constant 0 : index
    %127 = vector.load %arg10[%126, %c0_39] : memref<64x384xf32, #tpu.memory_space<vmem>>, vector<8x384xf32>
    %128 = arith.truncf %118 : vector<8x128xf32> to vector<8x128xbf16>
    %cst_40 = arith.constant dense<0.000000e+00> : vector<8x384xf32>
    %129 = tpu.matmul %128, %12, %cst_40 {dimension_numbers = #tpu.dot_dimension_numbers<[1], [0], [0], [1], [0, 0, 1, 1], [], []>} : vector<8x128xbf16>, vector<128x384xbf16>, vector<8x384xf32> -> vector<8x384xf32>
    %130 = vector.extract_strided_slice %127 {offsets = [0, 0], sizes = [8, 128], strides = [1, 1]} : vector<8x384xf32> to vector<8x128xf32>
    %131 = vector.extract_strided_slice %129 {offsets = [0, 0], sizes = [8, 128], strides = [1, 1]} : vector<8x384xf32> to vector<8x128xf32>
    %132 = arith.addf %130, %131 : vector<8x128xf32>
    %133 = arith.negf %132 : vector<8x128xf32>
    %134 = math.exp %133 : vector<8x128xf32>
    %cst_41 = arith.constant 1.000000e+00 : f32
    %135 = vector.broadcast %cst_41 : f32 to vector<8x128xf32>
    %136 = arith.addf %135, %134 : vector<8x128xf32>
    %137 = arith.divf %135, %136 : vector<8x128xf32>
    %138 = vector.extract_strided_slice %127 {offsets = [0, 128], sizes = [8, 128], strides = [1, 1]} : vector<8x384xf32> to vector<8x128xf32>
    %139 = vector.extract_strided_slice %129 {offsets = [0, 128], sizes = [8, 128], strides = [1, 1]} : vector<8x384xf32> to vector<8x128xf32>
    %140 = arith.addf %138, %139 : vector<8x128xf32>
    %141 = arith.negf %140 : vector<8x128xf32>
    %142 = math.exp %141 : vector<8x128xf32>
    %cst_42 = arith.constant 1.000000e+00 : f32
    %143 = vector.broadcast %cst_42 : f32 to vector<8x128xf32>
    %144 = arith.addf %143, %142 : vector<8x128xf32>
    %145 = arith.divf %143, %144 : vector<8x128xf32>
    %146 = vector.extract_strided_slice %127 {offsets = [0, 256], sizes = [8, 128], strides = [1, 1]} : vector<8x384xf32> to vector<8x128xf32>
    %147 = vector.extract_strided_slice %129 {offsets = [0, 256], sizes = [8, 128], strides = [1, 1]} : vector<8x384xf32> to vector<8x128xf32>
    %148 = arith.addf %147, %15 : vector<8x128xf32>
    %149 = arith.mulf %137, %148 : vector<8x128xf32>
    %150 = arith.addf %146, %149 : vector<8x128xf32>
    %151 = math.tanh %150 : vector<8x128xf32>
    %152 = arith.subf %118, %151 : vector<8x128xf32>
    %153 = arith.mulf %145, %152 : vector<8x128xf32>
    %154 = arith.addf %151, %153 : vector<8x128xf32>
    %c8_i32_43 = arith.constant 8 : i32
    %155 = arith.muli %arg0, %c8_i32_43 : i32
    %156 = arith.addi %155, %c3_i32 : i32
    %c7_i32_44 = arith.constant 7 : i32
    %157 = arith.cmpi eq, %156, %c7_i32_44 : i32
    %158 = arith.extui %157 : i1 to i32
    %c0_i32_45 = arith.constant 0 : i32
    %159 = arith.cmpi ne, %158, %c0_i32_45 : i32
    scf.if %159 {
      %c0_84 = arith.constant 0 : index
      %c0_85 = arith.constant 0 : index
      %308 = vector.load %arg11[%c0_84, %c0_85] : memref<8x128xf32, #tpu.memory_space<vmem>>, vector<8x128xf32>
      tpu.vector_store %arg11[%c0_84, %c0_85], %154 {strides = array<i32>} : memref<8x128xf32, #tpu.memory_space<vmem>>, vector<8x128xf32>,
    } else {
    }
    %c4_i32 = arith.constant 4 : i32
    %c8_i32_46 = arith.constant 8 : i32
    %160 = arith.muli %c4_i32, %c8_i32_46 : i32
    %161 = tpu.assume_multiple %160, 8 : i32
    %162 = arith.index_cast %161 : i32 to index
    %c0_47 = arith.constant 0 : index
    %163 = vector.load %arg10[%162, %c0_47] : memref<64x384xf32, #tpu.memory_space<vmem>>, vector<8x384xf32>
    %164 = arith.truncf %154 : vector<8x128xf32> to vector<8x128xbf16>
    %cst_48 = arith.constant dense<0.000000e+00> : vector<8x384xf32>
    %165 = tpu.matmul %164, %12, %cst_48 {dimension_numbers = #tpu.dot_dimension_numbers<[1], [0], [0], [1], [0, 0, 1, 1], [], []>} : vector<8x128xbf16>, vector<128x384xbf16>, vector<8x384xf32> -> vector<8x384xf32>
    %166 = vector.extract_strided_slice %163 {offsets = [0, 0], sizes = [8, 128], strides = [1, 1]} : vector<8x384xf32> to vector<8x128xf32>
    %167 = vector.extract_strided_slice %165 {offsets = [0, 0], sizes = [8, 128], strides = [1, 1]} : vector<8x384xf32> to vector<8x128xf32>
    %168 = arith.addf %166, %167 : vector<8x128xf32>
    %169 = arith.negf %168 : vector<8x128xf32>
    %170 = math.exp %169 : vector<8x128xf32>
    %cst_49 = arith.constant 1.000000e+00 : f32
    %171 = vector.broadcast %cst_49 : f32 to vector<8x128xf32>
    %172 = arith.addf %171, %170 : vector<8x128xf32>
    %173 = arith.divf %171, %172 : vector<8x128xf32>
    %174 = vector.extract_strided_slice %163 {offsets = [0, 128], sizes = [8, 128], strides = [1, 1]} : vector<8x384xf32> to vector<8x128xf32>
    %175 = vector.extract_strided_slice %165 {offsets = [0, 128], sizes = [8, 128], strides = [1, 1]} : vector<8x384xf32> to vector<8x128xf32>
    %176 = arith.addf %174, %175 : vector<8x128xf32>
    %177 = arith.negf %176 : vector<8x128xf32>
    %178 = math.exp %177 : vector<8x128xf32>
    %cst_50 = arith.constant 1.000000e+00 : f32
    %179 = vector.broadcast %cst_50 : f32 to vector<8x128xf32>
    %180 = arith.addf %179, %178 : vector<8x128xf32>
    %181 = arith.divf %179, %180 : vector<8x128xf32>
    %182 = vector.extract_strided_slice %163 {offsets = [0, 256], sizes = [8, 128], strides = [1, 1]} : vector<8x384xf32> to vector<8x128xf32>
    %183 = vector.extract_strided_slice %165 {offsets = [0, 256], sizes = [8, 128], strides = [1, 1]} : vector<8x384xf32> to vector<8x128xf32>
    %184 = arith.addf %183, %15 : vector<8x128xf32>
    %185 = arith.mulf %173, %184 : vector<8x128xf32>
    %186 = arith.addf %182, %185 : vector<8x128xf32>
    %187 = math.tanh %186 : vector<8x128xf32>
    %188 = arith.subf %154, %187 : vector<8x128xf32>
    %189 = arith.mulf %181, %188 : vector<8x128xf32>
    %190 = arith.addf %187, %189 : vector<8x128xf32>
    %c8_i32_51 = arith.constant 8 : i32
    %191 = arith.muli %arg0, %c8_i32_51 : i32
    %192 = arith.addi %191, %c4_i32 : i32
    %c7_i32_52 = arith.constant 7 : i32
    %193 = arith.cmpi eq, %192, %c7_i32_52 : i32
    %194 = arith.extui %193 : i1 to i32
    %c0_i32_53 = arith.constant 0 : i32
    %195 = arith.cmpi ne, %194, %c0_i32_53 : i32
    scf.if %195 {
      %c0_84 = arith.constant 0 : index
      %c0_85 = arith.constant 0 : index
      %308 = vector.load %arg11[%c0_84, %c0_85] : memref<8x128xf32, #tpu.memory_space<vmem>>, vector<8x128xf32>
      tpu.vector_store %arg11[%c0_84, %c0_85], %190 {strides = array<i32>} : memref<8x128xf32, #tpu.memory_space<vmem>>, vector<8x128xf32>,
    } else {
    }
    %c5_i32 = arith.constant 5 : i32
    %c8_i32_54 = arith.constant 8 : i32
    %196 = arith.muli %c5_i32, %c8_i32_54 : i32
    %197 = tpu.assume_multiple %196, 8 : i32
    %198 = arith.index_cast %197 : i32 to index
    %c0_55 = arith.constant 0 : index
    %199 = vector.load %arg10[%198, %c0_55] : memref<64x384xf32, #tpu.memory_space<vmem>>, vector<8x384xf32>
    %200 = arith.truncf %190 : vector<8x128xf32> to vector<8x128xbf16>
    %cst_56 = arith.constant dense<0.000000e+00> : vector<8x384xf32>
    %201 = tpu.matmul %200, %12, %cst_56 {dimension_numbers = #tpu.dot_dimension_numbers<[1], [0], [0], [1], [0, 0, 1, 1], [], []>} : vector<8x128xbf16>, vector<128x384xbf16>, vector<8x384xf32> -> vector<8x384xf32>
    %202 = vector.extract_strided_slice %199 {offsets = [0, 0], sizes = [8, 128], strides = [1, 1]} : vector<8x384xf32> to vector<8x128xf32>
    %203 = vector.extract_strided_slice %201 {offsets = [0, 0], sizes = [8, 128], strides = [1, 1]} : vector<8x384xf32> to vector<8x128xf32>
    %204 = arith.addf %202, %203 : vector<8x128xf32>
    %205 = arith.negf %204 : vector<8x128xf32>
    %206 = math.exp %205 : vector<8x128xf32>
    %cst_57 = arith.constant 1.000000e+00 : f32
    %207 = vector.broadcast %cst_57 : f32 to vector<8x128xf32>
    %208 = arith.addf %207, %206 : vector<8x128xf32>
    %209 = arith.divf %207, %208 : vector<8x128xf32>
    %210 = vector.extract_strided_slice %199 {offsets = [0, 128], sizes = [8, 128], strides = [1, 1]} : vector<8x384xf32> to vector<8x128xf32>
    %211 = vector.extract_strided_slice %201 {offsets = [0, 128], sizes = [8, 128], strides = [1, 1]} : vector<8x384xf32> to vector<8x128xf32>
    %212 = arith.addf %210, %211 : vector<8x128xf32>
    %213 = arith.negf %212 : vector<8x128xf32>
    %214 = math.exp %213 : vector<8x128xf32>
    %cst_58 = arith.constant 1.000000e+00 : f32
    %215 = vector.broadcast %cst_58 : f32 to vector<8x128xf32>
    %216 = arith.addf %215, %214 : vector<8x128xf32>
    %217 = arith.divf %215, %216 : vector<8x128xf32>
    %218 = vector.extract_strided_slice %199 {offsets = [0, 256], sizes = [8, 128], strides = [1, 1]} : vector<8x384xf32> to vector<8x128xf32>
    %219 = vector.extract_strided_slice %201 {offsets = [0, 256], sizes = [8, 128], strides = [1, 1]} : vector<8x384xf32> to vector<8x128xf32>
    %220 = arith.addf %219, %15 : vector<8x128xf32>
    %221 = arith.mulf %209, %220 : vector<8x128xf32>
    %222 = arith.addf %218, %221 : vector<8x128xf32>
    %223 = math.tanh %222 : vector<8x128xf32>
    %224 = arith.subf %190, %223 : vector<8x128xf32>
    %225 = arith.mulf %217, %224 : vector<8x128xf32>
    %226 = arith.addf %223, %225 : vector<8x128xf32>
    %c8_i32_59 = arith.constant 8 : i32
    %227 = arith.muli %arg0, %c8_i32_59 : i32
    %228 = arith.addi %227, %c5_i32 : i32
    %c7_i32_60 = arith.constant 7 : i32
    %229 = arith.cmpi eq, %228, %c7_i32_60 : i32
    %230 = arith.extui %229 : i1 to i32
    %c0_i32_61 = arith.constant 0 : i32
    %231 = arith.cmpi ne, %230, %c0_i32_61 : i32
    scf.if %231 {
      %c0_84 = arith.constant 0 : index
      %c0_85 = arith.constant 0 : index
      %308 = vector.load %arg11[%c0_84, %c0_85] : memref<8x128xf32, #tpu.memory_space<vmem>>, vector<8x128xf32>
      tpu.vector_store %arg11[%c0_84, %c0_85], %226 {strides = array<i32>} : memref<8x128xf32, #tpu.memory_space<vmem>>, vector<8x128xf32>,
    } else {
    }
    %c6_i32 = arith.constant 6 : i32
    %c8_i32_62 = arith.constant 8 : i32
    %232 = arith.muli %c6_i32, %c8_i32_62 : i32
    %233 = tpu.assume_multiple %232, 8 : i32
    %234 = arith.index_cast %233 : i32 to index
    %c0_63 = arith.constant 0 : index
    %235 = vector.load %arg10[%234, %c0_63] : memref<64x384xf32, #tpu.memory_space<vmem>>, vector<8x384xf32>
    %236 = arith.truncf %226 : vector<8x128xf32> to vector<8x128xbf16>
    %cst_64 = arith.constant dense<0.000000e+00> : vector<8x384xf32>
    %237 = tpu.matmul %236, %12, %cst_64 {dimension_numbers = #tpu.dot_dimension_numbers<[1], [0], [0], [1], [0, 0, 1, 1], [], []>} : vector<8x128xbf16>, vector<128x384xbf16>, vector<8x384xf32> -> vector<8x384xf32>
    %238 = vector.extract_strided_slice %235 {offsets = [0, 0], sizes = [8, 128], strides = [1, 1]} : vector<8x384xf32> to vector<8x128xf32>
    %239 = vector.extract_strided_slice %237 {offsets = [0, 0], sizes = [8, 128], strides = [1, 1]} : vector<8x384xf32> to vector<8x128xf32>
    %240 = arith.addf %238, %239 : vector<8x128xf32>
    %241 = arith.negf %240 : vector<8x128xf32>
    %242 = math.exp %241 : vector<8x128xf32>
    %cst_65 = arith.constant 1.000000e+00 : f32
    %243 = vector.broadcast %cst_65 : f32 to vector<8x128xf32>
    %244 = arith.addf %243, %242 : vector<8x128xf32>
    %245 = arith.divf %243, %244 : vector<8x128xf32>
    %246 = vector.extract_strided_slice %235 {offsets = [0, 128], sizes = [8, 128], strides = [1, 1]} : vector<8x384xf32> to vector<8x128xf32>
    %247 = vector.extract_strided_slice %237 {offsets = [0, 128], sizes = [8, 128], strides = [1, 1]} : vector<8x384xf32> to vector<8x128xf32>
    %248 = arith.addf %246, %247 : vector<8x128xf32>
    %249 = arith.negf %248 : vector<8x128xf32>
    %250 = math.exp %249 : vector<8x128xf32>
    %cst_66 = arith.constant 1.000000e+00 : f32
    %251 = vector.broadcast %cst_66 : f32 to vector<8x128xf32>
    %252 = arith.addf %251, %250 : vector<8x128xf32>
    %253 = arith.divf %251, %252 : vector<8x128xf32>
    %254 = vector.extract_strided_slice %235 {offsets = [0, 256], sizes = [8, 128], strides = [1, 1]} : vector<8x384xf32> to vector<8x128xf32>
    %255 = vector.extract_strided_slice %237 {offsets = [0, 256], sizes = [8, 128], strides = [1, 1]} : vector<8x384xf32> to vector<8x128xf32>
    %256 = arith.addf %255, %15 : vector<8x128xf32>
    %257 = arith.mulf %245, %256 : vector<8x128xf32>
    %258 = arith.addf %254, %257 : vector<8x128xf32>
    %259 = math.tanh %258 : vector<8x128xf32>
    %260 = arith.subf %226, %259 : vector<8x128xf32>
    %261 = arith.mulf %253, %260 : vector<8x128xf32>
    %262 = arith.addf %259, %261 : vector<8x128xf32>
    %c8_i32_67 = arith.constant 8 : i32
    %263 = arith.muli %arg0, %c8_i32_67 : i32
    %264 = arith.addi %263, %c6_i32 : i32
    %c7_i32_68 = arith.constant 7 : i32
    %265 = arith.cmpi eq, %264, %c7_i32_68 : i32
    %266 = arith.extui %265 : i1 to i32
    %c0_i32_69 = arith.constant 0 : i32
    %267 = arith.cmpi ne, %266, %c0_i32_69 : i32
    scf.if %267 {
      %c0_84 = arith.constant 0 : index
      %c0_85 = arith.constant 0 : index
      %308 = vector.load %arg11[%c0_84, %c0_85] : memref<8x128xf32, #tpu.memory_space<vmem>>, vector<8x128xf32>
      tpu.vector_store %arg11[%c0_84, %c0_85], %262 {strides = array<i32>} : memref<8x128xf32, #tpu.memory_space<vmem>>, vector<8x128xf32>,
    } else {
    }
    %c7_i32_70 = arith.constant 7 : i32
    %c8_i32_71 = arith.constant 8 : i32
    %268 = arith.muli %c7_i32_70, %c8_i32_71 : i32
    %269 = tpu.assume_multiple %268, 8 : i32
    %270 = arith.index_cast %269 : i32 to index
    %c0_72 = arith.constant 0 : index
    %271 = vector.load %arg10[%270, %c0_72] : memref<64x384xf32, #tpu.memory_space<vmem>>, vector<8x384xf32>
    %272 = arith.truncf %262 : vector<8x128xf32> to vector<8x128xbf16>
    %cst_73 = arith.constant dense<0.000000e+00> : vector<8x384xf32>
    %273 = tpu.matmul %272, %12, %cst_73 {dimension_numbers = #tpu.dot_dimension_numbers<[1], [0], [0], [1], [0, 0, 1, 1], [], []>} : vector<8x128xbf16>, vector<128x384xbf16>, vector<8x384xf32> -> vector<8x384xf32>
    %274 = vector.extract_strided_slice %271 {offsets = [0, 0], sizes = [8, 128], strides = [1, 1]} : vector<8x384xf32> to vector<8x128xf32>
    %275 = vector.extract_strided_slice %273 {offsets = [0, 0], sizes = [8, 128], strides = [1, 1]} : vector<8x384xf32> to vector<8x128xf32>
    %276 = arith.addf %274, %275 : vector<8x128xf32>
    %277 = arith.negf %276 : vector<8x128xf32>
    %278 = math.exp %277 : vector<8x128xf32>
    %cst_74 = arith.constant 1.000000e+00 : f32
    %279 = vector.broadcast %cst_74 : f32 to vector<8x128xf32>
    %280 = arith.addf %279, %278 : vector<8x128xf32>
    %281 = arith.divf %279, %280 : vector<8x128xf32>
    %282 = vector.extract_strided_slice %271 {offsets = [0, 128], sizes = [8, 128], strides = [1, 1]} : vector<8x384xf32> to vector<8x128xf32>
    %283 = vector.extract_strided_slice %273 {offsets = [0, 128], sizes = [8, 128], strides = [1, 1]} : vector<8x384xf32> to vector<8x128xf32>
    %284 = arith.addf %282, %283 : vector<8x128xf32>
    %285 = arith.negf %284 : vector<8x128xf32>
    %286 = math.exp %285 : vector<8x128xf32>
    %cst_75 = arith.constant 1.000000e+00 : f32
    %287 = vector.broadcast %cst_75 : f32 to vector<8x128xf32>
    %288 = arith.addf %287, %286 : vector<8x128xf32>
    %289 = arith.divf %287, %288 : vector<8x128xf32>
    %290 = vector.extract_strided_slice %271 {offsets = [0, 256], sizes = [8, 128], strides = [1, 1]} : vector<8x384xf32> to vector<8x128xf32>
    %291 = vector.extract_strided_slice %273 {offsets = [0, 256], sizes = [8, 128], strides = [1, 1]} : vector<8x384xf32> to vector<8x128xf32>
    %292 = arith.addf %291, %15 : vector<8x128xf32>
    %293 = arith.mulf %281, %292 : vector<8x128xf32>
    %294 = arith.addf %290, %293 : vector<8x128xf32>
    %295 = math.tanh %294 : vector<8x128xf32>
    %296 = arith.subf %262, %295 : vector<8x128xf32>
    %297 = arith.mulf %289, %296 : vector<8x128xf32>
    %298 = arith.addf %295, %297 : vector<8x128xf32>
    %c8_i32_76 = arith.constant 8 : i32
    %299 = arith.muli %arg0, %c8_i32_76 : i32
    %300 = arith.addi %299, %c7_i32_70 : i32
    %c7_i32_77 = arith.constant 7 : i32
    %301 = arith.cmpi eq, %300, %c7_i32_77 : i32
    %302 = arith.extui %301 : i1 to i32
    %c0_i32_78 = arith.constant 0 : i32
    %303 = arith.cmpi ne, %302, %c0_i32_78 : i32
    scf.if %303 {
      %c0_84 = arith.constant 0 : index
      %c0_85 = arith.constant 0 : index
      %308 = vector.load %arg11[%c0_84, %c0_85] : memref<8x128xf32, #tpu.memory_space<vmem>>, vector<8x128xf32>
      tpu.vector_store %arg11[%c0_84, %c0_85], %298 {strides = array<i32>} : memref<8x128xf32, #tpu.memory_space<vmem>>, vector<8x128xf32>,
    } else {
    }
    %c8_i32_79 = arith.constant 8 : i32
    %c0_80 = arith.constant 0 : index
    %c0_81 = arith.constant 0 : index
    %304 = vector.load %arg9[%c0_80, %c0_81] : memref<8x128xf32, #tpu.memory_space<vmem>>, vector<8x128xf32>
    tpu.vector_store %arg9[%c0_80, %c0_81], %298 {strides = array<i32>} : memref<8x128xf32, #tpu.memory_space<vmem>>, vector<8x128xf32>,
    %c0_i32_82 = arith.constant 0 : i32
    %305 = arith.cmpi eq, %arg0, %c0_i32_82 : i32
    %306 = arith.extui %305 : i1 to i32
    %c0_i32_83 = arith.constant 0 : i32
    %307 = arith.cmpi ne, %306, %c0_i32_83 : i32
    scf.if %307 {
      %c0_84 = arith.constant 0 : index
      %c0_85 = arith.constant 0 : index
      %308 = vector.load %arg11[%c0_84, %c0_85] : memref<8x128xf32, #tpu.memory_space<vmem>>, vector<8x128xf32>
      %cst_86 = arith.constant 0.000000e+00 : f32
      %309 = vector.broadcast %cst_86 : f32 to vector<8x128xf32>
      %310 = arith.maximumf %308, %309 : vector<8x128xf32>
      %311 = arith.truncf %310 : vector<8x128xf32> to vector<8x128xbf16>
      %c0_87 = arith.constant 0 : index
      %c0_88 = arith.constant 0 : index
      %312 = vector.load %arg6[%c0_87, %c0_88] : memref<128x128xbf16, #tpu.memory_space<vmem>>, vector<128x128xbf16>
      %cst_89 = arith.constant dense<0.000000e+00> : vector<8x128xf32>
      %313 = tpu.matmul %311, %312, %cst_89 {dimension_numbers = #tpu.dot_dimension_numbers<[1], [0], [0], [1], [0, 0, 1, 1], [], []>} : vector<8x128xbf16>, vector<128x128xbf16>, vector<8x128xf32> -> vector<8x128xf32>
      %c0_90 = arith.constant 0 : index
      %c0_91 = arith.constant 0 : index
      %314 = vector.load %arg7[%c0_90, %c0_91] : memref<1x128xf32, #tpu.memory_space<vmem>>, vector<1x128xf32>
      %315 = vector.broadcast %314 : vector<1x128xf32> to vector<8x128xf32>
      %316 = arith.addf %313, %315 : vector<8x128xf32>
      %c0_92 = arith.constant 0 : index
      %c0_93 = arith.constant 0 : index
      %317 = vector.load %arg8[%c0_92, %c0_93] : memref<8x128xf32, #tpu.memory_space<vmem>>, vector<8x128xf32>
      tpu.vector_store %arg8[%c0_92, %c0_93], %316 {strides = array<i32>} : memref<8x128xf32, #tpu.memory_space<vmem>>, vector<8x128xf32>,
    } else {
    }
    return
  }
  func.func @transform_0(%arg0: i32) -> (i32, i32, i32) {
    %c0_i32 = arith.constant 0 : i32
    %c0_i32_0 = arith.constant 0 : i32
    %c0_i32_1 = arith.constant 0 : i32
    return %arg0, %c0_i32, %c0_i32_0 : i32, i32, i32
  }
  func.func @transform_1(%arg0: i32) -> (i32, i32) {
    %c0_i32 = arith.constant 0 : i32
    %c0_i32_0 = arith.constant 0 : i32
    %c0_i32_1 = arith.constant 0 : i32
    return %c0_i32, %c0_i32_0 : i32, i32
  }
  func.func @transform_2(%arg0: i32) -> (i32, i32) {
    %c0_i32 = arith.constant 0 : i32
    %c0_i32_0 = arith.constant 0 : i32
    %c0_i32_1 = arith.constant 0 : i32
    return %c0_i32, %c0_i32_0 : i32, i32
  }
  func.func @transform_3(%arg0: i32) -> (i32, i32) {
    %c0_i32 = arith.constant 0 : i32
    %c0_i32_0 = arith.constant 0 : i32
    %c0_i32_1 = arith.constant 0 : i32
    return %c0_i32, %c0_i32_0 : i32, i32
  }
  func.func @transform_4(%arg0: i32) -> (i32, i32) {
    %c0_i32 = arith.constant 0 : i32
    %c0_i32_0 = arith.constant 0 : i32
    %c0_i32_1 = arith.constant 0 : i32
    return %c0_i32, %c0_i32_0 : i32, i32
  }
  func.func @transform_5(%arg0: i32) -> (i32, i32) {
    %c0_i32 = arith.constant 0 : i32
    %c0_i32_0 = arith.constant 0 : i32
    %c0_i32_1 = arith.constant 0 : i32
    return %c0_i32, %c0_i32_0 : i32, i32
  }
  func.func @transform_6(%arg0: i32) -> (i32, i32) {
    %c0_i32 = arith.constant 0 : i32
    %c0_i32_0 = arith.constant 0 : i32
    %c0_i32_1 = arith.constant 0 : i32
    return %c0_i32, %c0_i32_0 : i32, i32
  }
  func.func @transform_7(%arg0: i32) -> (i32, i32) {
    %c0_i32 = arith.constant 0 : i32
    %c0_i32_0 = arith.constant 0 : i32
    %c0_i32_1 = arith.constant 0 : i32
    return %c0_i32, %c0_i32_0 : i32, i32
  }
}

module attributes {stable_mosaic.version = 11 : i64} {
  func.func @_gru_layer_kernel(%arg0: i32, %arg1: memref<8x8x128xbf16, #tpu.memory_space<vmem>>, %arg2: memref<128x384xbf16, #tpu.memory_space<vmem>>, %arg3: memref<128x384xbf16, #tpu.memory_space<vmem>>, %arg4: memref<1x384xf32, #tpu.memory_space<vmem>>, %arg5: memref<1x128xf32, #tpu.memory_space<vmem>>, %arg6: memref<8x8x128xbf16, #tpu.memory_space<vmem>>, %arg7: memref<8x128xf32, #tpu.memory_space<vmem>>, %arg8: memref<64x384xf32, #tpu.memory_space<vmem>>) attributes {dimension_semantics = [#tpu.dimension_semantics<arbitrary>], iteration_bounds = array<i64: 1>, scalar_prefetch = 0 : i64, scratch_operands = 2 : i64, tpu.core_type = #tpu.core_type<tc>, window_params = [{transform_indices = @transform_0, window_bounds = array<i64: 8, 8, 128>}, {pipeline_mode = #tpu.pipeline_mode<synchronous>, transform_indices = @transform_1, window_bounds = array<i64: 128, 384>}, {pipeline_mode = #tpu.pipeline_mode<synchronous>, transform_indices = @transform_2, window_bounds = array<i64: 128, 384>}, {pipeline_mode = #tpu.pipeline_mode<synchronous>, transform_indices = @transform_3, window_bounds = array<i64: 1, 384>}, {pipeline_mode = #tpu.pipeline_mode<synchronous>, transform_indices = @transform_4, window_bounds = array<i64: 1, 128>}, {transform_indices = @transform_5, window_bounds = array<i64: 8, 8, 128>}]} {
    %c0_i32 = arith.constant 0 : i32
    %0 = arith.cmpi eq, %arg0, %c0_i32 : i32
    %1 = arith.extui %0 : i1 to i32
    %c0_i32_0 = arith.constant 0 : i32
    %2 = arith.cmpi ne, %1, %c0_i32_0 : i32
    scf.if %2 {
      %cst_74 = arith.constant 0.000000e+00 : f32
      %305 = vector.broadcast %cst_74 : f32 to vector<8x128xf32>
      %c0_75 = arith.constant 0 : index
      %c0_76 = arith.constant 0 : index
      %306 = vector.load %arg7[%c0_75, %c0_76] : memref<8x128xf32, #tpu.memory_space<vmem>>, vector<8x128xf32>
      tpu.vector_store %arg7[%c0_75, %c0_76], %305 {strides = array<i32>} : memref<8x128xf32, #tpu.memory_space<vmem>>, vector<8x128xf32>,
    } else {
    }
    %c0 = arith.constant 0 : index
    %c0_1 = arith.constant 0 : index
    %c0_2 = arith.constant 0 : index
    %3 = vector.load %arg1[%c0, %c0_1, %c0_2] : memref<8x8x128xbf16, #tpu.memory_space<vmem>>, vector<8x8x128xbf16>
    %4 = vector.shape_cast %3 : vector<8x8x128xbf16> to vector<64x128xbf16>
    %c0_3 = arith.constant 0 : index
    %c0_4 = arith.constant 0 : index
    %5 = vector.load %arg2[%c0_3, %c0_4] : memref<128x384xbf16, #tpu.memory_space<vmem>>, vector<128x384xbf16>
    %cst = arith.constant dense<0.000000e+00> : vector<64x384xf32>
    %6 = tpu.matmul %4, %5, %cst {dimension_numbers = #tpu.dot_dimension_numbers<[1], [0], [0], [1], [0, 0, 1, 1], [], []>} : vector<64x128xbf16>, vector<128x384xbf16>, vector<64x384xf32> -> vector<64x384xf32>
    %c0_5 = arith.constant 0 : index
    %c0_6 = arith.constant 0 : index
    %7 = vector.load %arg4[%c0_5, %c0_6] : memref<1x384xf32, #tpu.memory_space<vmem>>, vector<1x384xf32>
    %8 = vector.broadcast %7 : vector<1x384xf32> to vector<64x384xf32>
    %9 = arith.addf %6, %8 : vector<64x384xf32>
    %c0_7 = arith.constant 0 : index
    %c0_8 = arith.constant 0 : index
    %10 = vector.load %arg8[%c0_7, %c0_8] : memref<64x384xf32, #tpu.memory_space<vmem>>, vector<64x384xf32>
    tpu.vector_store %arg8[%c0_7, %c0_8], %9 {strides = array<i32>} : memref<64x384xf32, #tpu.memory_space<vmem>>, vector<64x384xf32>,
    %c0_9 = arith.constant 0 : index
    %c0_10 = arith.constant 0 : index
    %11 = vector.load %arg7[%c0_9, %c0_10] : memref<8x128xf32, #tpu.memory_space<vmem>>, vector<8x128xf32>
    %c0_11 = arith.constant 0 : index
    %c0_12 = arith.constant 0 : index
    %12 = vector.load %arg3[%c0_11, %c0_12] : memref<128x384xbf16, #tpu.memory_space<vmem>>, vector<128x384xbf16>
    %c0_13 = arith.constant 0 : index
    %c0_14 = arith.constant 0 : index
    %13 = vector.load %arg5[%c0_13, %c0_14] : memref<1x128xf32, #tpu.memory_space<vmem>>, vector<1x128xf32>
    %14 = vector.shape_cast %13 : vector<1x128xf32> to vector<1x128xf32>
    %15 = vector.broadcast %14 : vector<1x128xf32> to vector<8x128xf32>
    %c0_i32_15 = arith.constant 0 : i32
    %c8_i32 = arith.constant 8 : i32
    %16 = arith.muli %c0_i32_15, %c8_i32 : i32
    %17 = tpu.assume_multiple %16, 8 : i32
    %18 = arith.index_cast %17 : i32 to index
    %c0_16 = arith.constant 0 : index
    %19 = vector.load %arg8[%18, %c0_16] : memref<64x384xf32, #tpu.memory_space<vmem>>, vector<8x384xf32>
    %20 = arith.truncf %11 : vector<8x128xf32> to vector<8x128xbf16>
    %cst_17 = arith.constant dense<0.000000e+00> : vector<8x384xf32>
    %21 = tpu.matmul %20, %12, %cst_17 {dimension_numbers = #tpu.dot_dimension_numbers<[1], [0], [0], [1], [0, 0, 1, 1], [], []>} : vector<8x128xbf16>, vector<128x384xbf16>, vector<8x384xf32> -> vector<8x384xf32>
    %22 = vector.extract_strided_slice %19 {offsets = [0, 0], sizes = [8, 128], strides = [1, 1]} : vector<8x384xf32> to vector<8x128xf32>
    %23 = vector.extract_strided_slice %21 {offsets = [0, 0], sizes = [8, 128], strides = [1, 1]} : vector<8x384xf32> to vector<8x128xf32>
    %24 = arith.addf %22, %23 : vector<8x128xf32>
    %25 = arith.negf %24 : vector<8x128xf32>
    %26 = math.exp %25 : vector<8x128xf32>
    %cst_18 = arith.constant 1.000000e+00 : f32
    %27 = vector.broadcast %cst_18 : f32 to vector<8x128xf32>
    %28 = arith.addf %27, %26 : vector<8x128xf32>
    %29 = arith.divf %27, %28 : vector<8x128xf32>
    %30 = vector.extract_strided_slice %19 {offsets = [0, 128], sizes = [8, 128], strides = [1, 1]} : vector<8x384xf32> to vector<8x128xf32>
    %31 = vector.extract_strided_slice %21 {offsets = [0, 128], sizes = [8, 128], strides = [1, 1]} : vector<8x384xf32> to vector<8x128xf32>
    %32 = arith.addf %30, %31 : vector<8x128xf32>
    %33 = arith.negf %32 : vector<8x128xf32>
    %34 = math.exp %33 : vector<8x128xf32>
    %cst_19 = arith.constant 1.000000e+00 : f32
    %35 = vector.broadcast %cst_19 : f32 to vector<8x128xf32>
    %36 = arith.addf %35, %34 : vector<8x128xf32>
    %37 = arith.divf %35, %36 : vector<8x128xf32>
    %38 = vector.extract_strided_slice %19 {offsets = [0, 256], sizes = [8, 128], strides = [1, 1]} : vector<8x384xf32> to vector<8x128xf32>
    %39 = vector.extract_strided_slice %21 {offsets = [0, 256], sizes = [8, 128], strides = [1, 1]} : vector<8x384xf32> to vector<8x128xf32>
    %40 = arith.addf %39, %15 : vector<8x128xf32>
    %41 = arith.mulf %29, %40 : vector<8x128xf32>
    %42 = arith.addf %38, %41 : vector<8x128xf32>
    %43 = math.tanh %42 : vector<8x128xf32>
    %44 = arith.subf %11, %43 : vector<8x128xf32>
    %45 = arith.mulf %37, %44 : vector<8x128xf32>
    %46 = arith.addf %43, %45 : vector<8x128xf32>
    %47 = arith.truncf %46 : vector<8x128xf32> to vector<8x128xbf16>
    %48 = arith.index_cast %c0_i32_15 : i32 to index
    %c0_20 = arith.constant 0 : index
    %c0_21 = arith.constant 0 : index
    %49 = vector.load %arg6[%48, %c0_20, %c0_21] : memref<8x8x128xbf16, #tpu.memory_space<vmem>>, vector<1x8x128xbf16>
    %50 = vector.shape_cast %49 : vector<1x8x128xbf16> to vector<8x128xbf16>
    %51 = vector.shape_cast %47 : vector<8x128xbf16> to vector<1x8x128xbf16>
    tpu.vector_store %arg6[%48, %c0_20, %c0_21], %51 {strides = array<i32>} : memref<8x8x128xbf16, #tpu.memory_space<vmem>>, vector<1x8x128xbf16>,
    %c1_i32 = arith.constant 1 : i32
    %c8_i32_22 = arith.constant 8 : i32
    %52 = arith.muli %c1_i32, %c8_i32_22 : i32
    %53 = tpu.assume_multiple %52, 8 : i32
    %54 = arith.index_cast %53 : i32 to index
    %c0_23 = arith.constant 0 : index
    %55 = vector.load %arg8[%54, %c0_23] : memref<64x384xf32, #tpu.memory_space<vmem>>, vector<8x384xf32>
    %56 = arith.truncf %46 : vector<8x128xf32> to vector<8x128xbf16>
    %cst_24 = arith.constant dense<0.000000e+00> : vector<8x384xf32>
    %57 = tpu.matmul %56, %12, %cst_24 {dimension_numbers = #tpu.dot_dimension_numbers<[1], [0], [0], [1], [0, 0, 1, 1], [], []>} : vector<8x128xbf16>, vector<128x384xbf16>, vector<8x384xf32> -> vector<8x384xf32>
    %58 = vector.extract_strided_slice %55 {offsets = [0, 0], sizes = [8, 128], strides = [1, 1]} : vector<8x384xf32> to vector<8x128xf32>
    %59 = vector.extract_strided_slice %57 {offsets = [0, 0], sizes = [8, 128], strides = [1, 1]} : vector<8x384xf32> to vector<8x128xf32>
    %60 = arith.addf %58, %59 : vector<8x128xf32>
    %61 = arith.negf %60 : vector<8x128xf32>
    %62 = math.exp %61 : vector<8x128xf32>
    %cst_25 = arith.constant 1.000000e+00 : f32
    %63 = vector.broadcast %cst_25 : f32 to vector<8x128xf32>
    %64 = arith.addf %63, %62 : vector<8x128xf32>
    %65 = arith.divf %63, %64 : vector<8x128xf32>
    %66 = vector.extract_strided_slice %55 {offsets = [0, 128], sizes = [8, 128], strides = [1, 1]} : vector<8x384xf32> to vector<8x128xf32>
    %67 = vector.extract_strided_slice %57 {offsets = [0, 128], sizes = [8, 128], strides = [1, 1]} : vector<8x384xf32> to vector<8x128xf32>
    %68 = arith.addf %66, %67 : vector<8x128xf32>
    %69 = arith.negf %68 : vector<8x128xf32>
    %70 = math.exp %69 : vector<8x128xf32>
    %cst_26 = arith.constant 1.000000e+00 : f32
    %71 = vector.broadcast %cst_26 : f32 to vector<8x128xf32>
    %72 = arith.addf %71, %70 : vector<8x128xf32>
    %73 = arith.divf %71, %72 : vector<8x128xf32>
    %74 = vector.extract_strided_slice %55 {offsets = [0, 256], sizes = [8, 128], strides = [1, 1]} : vector<8x384xf32> to vector<8x128xf32>
    %75 = vector.extract_strided_slice %57 {offsets = [0, 256], sizes = [8, 128], strides = [1, 1]} : vector<8x384xf32> to vector<8x128xf32>
    %76 = arith.addf %75, %15 : vector<8x128xf32>
    %77 = arith.mulf %65, %76 : vector<8x128xf32>
    %78 = arith.addf %74, %77 : vector<8x128xf32>
    %79 = math.tanh %78 : vector<8x128xf32>
    %80 = arith.subf %46, %79 : vector<8x128xf32>
    %81 = arith.mulf %73, %80 : vector<8x128xf32>
    %82 = arith.addf %79, %81 : vector<8x128xf32>
    %83 = arith.truncf %82 : vector<8x128xf32> to vector<8x128xbf16>
    %84 = arith.index_cast %c1_i32 : i32 to index
    %c0_27 = arith.constant 0 : index
    %c0_28 = arith.constant 0 : index
    %85 = vector.load %arg6[%84, %c0_27, %c0_28] : memref<8x8x128xbf16, #tpu.memory_space<vmem>>, vector<1x8x128xbf16>
    %86 = vector.shape_cast %85 : vector<1x8x128xbf16> to vector<8x128xbf16>
    %87 = vector.shape_cast %83 : vector<8x128xbf16> to vector<1x8x128xbf16>
    tpu.vector_store %arg6[%84, %c0_27, %c0_28], %87 {strides = array<i32>} : memref<8x8x128xbf16, #tpu.memory_space<vmem>>, vector<1x8x128xbf16>,
    %c2_i32 = arith.constant 2 : i32
    %c8_i32_29 = arith.constant 8 : i32
    %88 = arith.muli %c2_i32, %c8_i32_29 : i32
    %89 = tpu.assume_multiple %88, 8 : i32
    %90 = arith.index_cast %89 : i32 to index
    %c0_30 = arith.constant 0 : index
    %91 = vector.load %arg8[%90, %c0_30] : memref<64x384xf32, #tpu.memory_space<vmem>>, vector<8x384xf32>
    %92 = arith.truncf %82 : vector<8x128xf32> to vector<8x128xbf16>
    %cst_31 = arith.constant dense<0.000000e+00> : vector<8x384xf32>
    %93 = tpu.matmul %92, %12, %cst_31 {dimension_numbers = #tpu.dot_dimension_numbers<[1], [0], [0], [1], [0, 0, 1, 1], [], []>} : vector<8x128xbf16>, vector<128x384xbf16>, vector<8x384xf32> -> vector<8x384xf32>
    %94 = vector.extract_strided_slice %91 {offsets = [0, 0], sizes = [8, 128], strides = [1, 1]} : vector<8x384xf32> to vector<8x128xf32>
    %95 = vector.extract_strided_slice %93 {offsets = [0, 0], sizes = [8, 128], strides = [1, 1]} : vector<8x384xf32> to vector<8x128xf32>
    %96 = arith.addf %94, %95 : vector<8x128xf32>
    %97 = arith.negf %96 : vector<8x128xf32>
    %98 = math.exp %97 : vector<8x128xf32>
    %cst_32 = arith.constant 1.000000e+00 : f32
    %99 = vector.broadcast %cst_32 : f32 to vector<8x128xf32>
    %100 = arith.addf %99, %98 : vector<8x128xf32>
    %101 = arith.divf %99, %100 : vector<8x128xf32>
    %102 = vector.extract_strided_slice %91 {offsets = [0, 128], sizes = [8, 128], strides = [1, 1]} : vector<8x384xf32> to vector<8x128xf32>
    %103 = vector.extract_strided_slice %93 {offsets = [0, 128], sizes = [8, 128], strides = [1, 1]} : vector<8x384xf32> to vector<8x128xf32>
    %104 = arith.addf %102, %103 : vector<8x128xf32>
    %105 = arith.negf %104 : vector<8x128xf32>
    %106 = math.exp %105 : vector<8x128xf32>
    %cst_33 = arith.constant 1.000000e+00 : f32
    %107 = vector.broadcast %cst_33 : f32 to vector<8x128xf32>
    %108 = arith.addf %107, %106 : vector<8x128xf32>
    %109 = arith.divf %107, %108 : vector<8x128xf32>
    %110 = vector.extract_strided_slice %91 {offsets = [0, 256], sizes = [8, 128], strides = [1, 1]} : vector<8x384xf32> to vector<8x128xf32>
    %111 = vector.extract_strided_slice %93 {offsets = [0, 256], sizes = [8, 128], strides = [1, 1]} : vector<8x384xf32> to vector<8x128xf32>
    %112 = arith.addf %111, %15 : vector<8x128xf32>
    %113 = arith.mulf %101, %112 : vector<8x128xf32>
    %114 = arith.addf %110, %113 : vector<8x128xf32>
    %115 = math.tanh %114 : vector<8x128xf32>
    %116 = arith.subf %82, %115 : vector<8x128xf32>
    %117 = arith.mulf %109, %116 : vector<8x128xf32>
    %118 = arith.addf %115, %117 : vector<8x128xf32>
    %119 = arith.truncf %118 : vector<8x128xf32> to vector<8x128xbf16>
    %120 = arith.index_cast %c2_i32 : i32 to index
    %c0_34 = arith.constant 0 : index
    %c0_35 = arith.constant 0 : index
    %121 = vector.load %arg6[%120, %c0_34, %c0_35] : memref<8x8x128xbf16, #tpu.memory_space<vmem>>, vector<1x8x128xbf16>
    %122 = vector.shape_cast %121 : vector<1x8x128xbf16> to vector<8x128xbf16>
    %123 = vector.shape_cast %119 : vector<8x128xbf16> to vector<1x8x128xbf16>
    tpu.vector_store %arg6[%120, %c0_34, %c0_35], %123 {strides = array<i32>} : memref<8x8x128xbf16, #tpu.memory_space<vmem>>, vector<1x8x128xbf16>,
    %c3_i32 = arith.constant 3 : i32
    %c8_i32_36 = arith.constant 8 : i32
    %124 = arith.muli %c3_i32, %c8_i32_36 : i32
    %125 = tpu.assume_multiple %124, 8 : i32
    %126 = arith.index_cast %125 : i32 to index
    %c0_37 = arith.constant 0 : index
    %127 = vector.load %arg8[%126, %c0_37] : memref<64x384xf32, #tpu.memory_space<vmem>>, vector<8x384xf32>
    %128 = arith.truncf %118 : vector<8x128xf32> to vector<8x128xbf16>
    %cst_38 = arith.constant dense<0.000000e+00> : vector<8x384xf32>
    %129 = tpu.matmul %128, %12, %cst_38 {dimension_numbers = #tpu.dot_dimension_numbers<[1], [0], [0], [1], [0, 0, 1, 1], [], []>} : vector<8x128xbf16>, vector<128x384xbf16>, vector<8x384xf32> -> vector<8x384xf32>
    %130 = vector.extract_strided_slice %127 {offsets = [0, 0], sizes = [8, 128], strides = [1, 1]} : vector<8x384xf32> to vector<8x128xf32>
    %131 = vector.extract_strided_slice %129 {offsets = [0, 0], sizes = [8, 128], strides = [1, 1]} : vector<8x384xf32> to vector<8x128xf32>
    %132 = arith.addf %130, %131 : vector<8x128xf32>
    %133 = arith.negf %132 : vector<8x128xf32>
    %134 = math.exp %133 : vector<8x128xf32>
    %cst_39 = arith.constant 1.000000e+00 : f32
    %135 = vector.broadcast %cst_39 : f32 to vector<8x128xf32>
    %136 = arith.addf %135, %134 : vector<8x128xf32>
    %137 = arith.divf %135, %136 : vector<8x128xf32>
    %138 = vector.extract_strided_slice %127 {offsets = [0, 128], sizes = [8, 128], strides = [1, 1]} : vector<8x384xf32> to vector<8x128xf32>
    %139 = vector.extract_strided_slice %129 {offsets = [0, 128], sizes = [8, 128], strides = [1, 1]} : vector<8x384xf32> to vector<8x128xf32>
    %140 = arith.addf %138, %139 : vector<8x128xf32>
    %141 = arith.negf %140 : vector<8x128xf32>
    %142 = math.exp %141 : vector<8x128xf32>
    %cst_40 = arith.constant 1.000000e+00 : f32
    %143 = vector.broadcast %cst_40 : f32 to vector<8x128xf32>
    %144 = arith.addf %143, %142 : vector<8x128xf32>
    %145 = arith.divf %143, %144 : vector<8x128xf32>
    %146 = vector.extract_strided_slice %127 {offsets = [0, 256], sizes = [8, 128], strides = [1, 1]} : vector<8x384xf32> to vector<8x128xf32>
    %147 = vector.extract_strided_slice %129 {offsets = [0, 256], sizes = [8, 128], strides = [1, 1]} : vector<8x384xf32> to vector<8x128xf32>
    %148 = arith.addf %147, %15 : vector<8x128xf32>
    %149 = arith.mulf %137, %148 : vector<8x128xf32>
    %150 = arith.addf %146, %149 : vector<8x128xf32>
    %151 = math.tanh %150 : vector<8x128xf32>
    %152 = arith.subf %118, %151 : vector<8x128xf32>
    %153 = arith.mulf %145, %152 : vector<8x128xf32>
    %154 = arith.addf %151, %153 : vector<8x128xf32>
    %155 = arith.truncf %154 : vector<8x128xf32> to vector<8x128xbf16>
    %156 = arith.index_cast %c3_i32 : i32 to index
    %c0_41 = arith.constant 0 : index
    %c0_42 = arith.constant 0 : index
    %157 = vector.load %arg6[%156, %c0_41, %c0_42] : memref<8x8x128xbf16, #tpu.memory_space<vmem>>, vector<1x8x128xbf16>
    %158 = vector.shape_cast %157 : vector<1x8x128xbf16> to vector<8x128xbf16>
    %159 = vector.shape_cast %155 : vector<8x128xbf16> to vector<1x8x128xbf16>
    tpu.vector_store %arg6[%156, %c0_41, %c0_42], %159 {strides = array<i32>} : memref<8x8x128xbf16, #tpu.memory_space<vmem>>, vector<1x8x128xbf16>,
    %c4_i32 = arith.constant 4 : i32
    %c8_i32_43 = arith.constant 8 : i32
    %160 = arith.muli %c4_i32, %c8_i32_43 : i32
    %161 = tpu.assume_multiple %160, 8 : i32
    %162 = arith.index_cast %161 : i32 to index
    %c0_44 = arith.constant 0 : index
    %163 = vector.load %arg8[%162, %c0_44] : memref<64x384xf32, #tpu.memory_space<vmem>>, vector<8x384xf32>
    %164 = arith.truncf %154 : vector<8x128xf32> to vector<8x128xbf16>
    %cst_45 = arith.constant dense<0.000000e+00> : vector<8x384xf32>
    %165 = tpu.matmul %164, %12, %cst_45 {dimension_numbers = #tpu.dot_dimension_numbers<[1], [0], [0], [1], [0, 0, 1, 1], [], []>} : vector<8x128xbf16>, vector<128x384xbf16>, vector<8x384xf32> -> vector<8x384xf32>
    %166 = vector.extract_strided_slice %163 {offsets = [0, 0], sizes = [8, 128], strides = [1, 1]} : vector<8x384xf32> to vector<8x128xf32>
    %167 = vector.extract_strided_slice %165 {offsets = [0, 0], sizes = [8, 128], strides = [1, 1]} : vector<8x384xf32> to vector<8x128xf32>
    %168 = arith.addf %166, %167 : vector<8x128xf32>
    %169 = arith.negf %168 : vector<8x128xf32>
    %170 = math.exp %169 : vector<8x128xf32>
    %cst_46 = arith.constant 1.000000e+00 : f32
    %171 = vector.broadcast %cst_46 : f32 to vector<8x128xf32>
    %172 = arith.addf %171, %170 : vector<8x128xf32>
    %173 = arith.divf %171, %172 : vector<8x128xf32>
    %174 = vector.extract_strided_slice %163 {offsets = [0, 128], sizes = [8, 128], strides = [1, 1]} : vector<8x384xf32> to vector<8x128xf32>
    %175 = vector.extract_strided_slice %165 {offsets = [0, 128], sizes = [8, 128], strides = [1, 1]} : vector<8x384xf32> to vector<8x128xf32>
    %176 = arith.addf %174, %175 : vector<8x128xf32>
    %177 = arith.negf %176 : vector<8x128xf32>
    %178 = math.exp %177 : vector<8x128xf32>
    %cst_47 = arith.constant 1.000000e+00 : f32
    %179 = vector.broadcast %cst_47 : f32 to vector<8x128xf32>
    %180 = arith.addf %179, %178 : vector<8x128xf32>
    %181 = arith.divf %179, %180 : vector<8x128xf32>
    %182 = vector.extract_strided_slice %163 {offsets = [0, 256], sizes = [8, 128], strides = [1, 1]} : vector<8x384xf32> to vector<8x128xf32>
    %183 = vector.extract_strided_slice %165 {offsets = [0, 256], sizes = [8, 128], strides = [1, 1]} : vector<8x384xf32> to vector<8x128xf32>
    %184 = arith.addf %183, %15 : vector<8x128xf32>
    %185 = arith.mulf %173, %184 : vector<8x128xf32>
    %186 = arith.addf %182, %185 : vector<8x128xf32>
    %187 = math.tanh %186 : vector<8x128xf32>
    %188 = arith.subf %154, %187 : vector<8x128xf32>
    %189 = arith.mulf %181, %188 : vector<8x128xf32>
    %190 = arith.addf %187, %189 : vector<8x128xf32>
    %191 = arith.truncf %190 : vector<8x128xf32> to vector<8x128xbf16>
    %192 = arith.index_cast %c4_i32 : i32 to index
    %c0_48 = arith.constant 0 : index
    %c0_49 = arith.constant 0 : index
    %193 = vector.load %arg6[%192, %c0_48, %c0_49] : memref<8x8x128xbf16, #tpu.memory_space<vmem>>, vector<1x8x128xbf16>
    %194 = vector.shape_cast %193 : vector<1x8x128xbf16> to vector<8x128xbf16>
    %195 = vector.shape_cast %191 : vector<8x128xbf16> to vector<1x8x128xbf16>
    tpu.vector_store %arg6[%192, %c0_48, %c0_49], %195 {strides = array<i32>} : memref<8x8x128xbf16, #tpu.memory_space<vmem>>, vector<1x8x128xbf16>,
    %c5_i32 = arith.constant 5 : i32
    %c8_i32_50 = arith.constant 8 : i32
    %196 = arith.muli %c5_i32, %c8_i32_50 : i32
    %197 = tpu.assume_multiple %196, 8 : i32
    %198 = arith.index_cast %197 : i32 to index
    %c0_51 = arith.constant 0 : index
    %199 = vector.load %arg8[%198, %c0_51] : memref<64x384xf32, #tpu.memory_space<vmem>>, vector<8x384xf32>
    %200 = arith.truncf %190 : vector<8x128xf32> to vector<8x128xbf16>
    %cst_52 = arith.constant dense<0.000000e+00> : vector<8x384xf32>
    %201 = tpu.matmul %200, %12, %cst_52 {dimension_numbers = #tpu.dot_dimension_numbers<[1], [0], [0], [1], [0, 0, 1, 1], [], []>} : vector<8x128xbf16>, vector<128x384xbf16>, vector<8x384xf32> -> vector<8x384xf32>
    %202 = vector.extract_strided_slice %199 {offsets = [0, 0], sizes = [8, 128], strides = [1, 1]} : vector<8x384xf32> to vector<8x128xf32>
    %203 = vector.extract_strided_slice %201 {offsets = [0, 0], sizes = [8, 128], strides = [1, 1]} : vector<8x384xf32> to vector<8x128xf32>
    %204 = arith.addf %202, %203 : vector<8x128xf32>
    %205 = arith.negf %204 : vector<8x128xf32>
    %206 = math.exp %205 : vector<8x128xf32>
    %cst_53 = arith.constant 1.000000e+00 : f32
    %207 = vector.broadcast %cst_53 : f32 to vector<8x128xf32>
    %208 = arith.addf %207, %206 : vector<8x128xf32>
    %209 = arith.divf %207, %208 : vector<8x128xf32>
    %210 = vector.extract_strided_slice %199 {offsets = [0, 128], sizes = [8, 128], strides = [1, 1]} : vector<8x384xf32> to vector<8x128xf32>
    %211 = vector.extract_strided_slice %201 {offsets = [0, 128], sizes = [8, 128], strides = [1, 1]} : vector<8x384xf32> to vector<8x128xf32>
    %212 = arith.addf %210, %211 : vector<8x128xf32>
    %213 = arith.negf %212 : vector<8x128xf32>
    %214 = math.exp %213 : vector<8x128xf32>
    %cst_54 = arith.constant 1.000000e+00 : f32
    %215 = vector.broadcast %cst_54 : f32 to vector<8x128xf32>
    %216 = arith.addf %215, %214 : vector<8x128xf32>
    %217 = arith.divf %215, %216 : vector<8x128xf32>
    %218 = vector.extract_strided_slice %199 {offsets = [0, 256], sizes = [8, 128], strides = [1, 1]} : vector<8x384xf32> to vector<8x128xf32>
    %219 = vector.extract_strided_slice %201 {offsets = [0, 256], sizes = [8, 128], strides = [1, 1]} : vector<8x384xf32> to vector<8x128xf32>
    %220 = arith.addf %219, %15 : vector<8x128xf32>
    %221 = arith.mulf %209, %220 : vector<8x128xf32>
    %222 = arith.addf %218, %221 : vector<8x128xf32>
    %223 = math.tanh %222 : vector<8x128xf32>
    %224 = arith.subf %190, %223 : vector<8x128xf32>
    %225 = arith.mulf %217, %224 : vector<8x128xf32>
    %226 = arith.addf %223, %225 : vector<8x128xf32>
    %227 = arith.truncf %226 : vector<8x128xf32> to vector<8x128xbf16>
    %228 = arith.index_cast %c5_i32 : i32 to index
    %c0_55 = arith.constant 0 : index
    %c0_56 = arith.constant 0 : index
    %229 = vector.load %arg6[%228, %c0_55, %c0_56] : memref<8x8x128xbf16, #tpu.memory_space<vmem>>, vector<1x8x128xbf16>
    %230 = vector.shape_cast %229 : vector<1x8x128xbf16> to vector<8x128xbf16>
    %231 = vector.shape_cast %227 : vector<8x128xbf16> to vector<1x8x128xbf16>
    tpu.vector_store %arg6[%228, %c0_55, %c0_56], %231 {strides = array<i32>} : memref<8x8x128xbf16, #tpu.memory_space<vmem>>, vector<1x8x128xbf16>,
    %c6_i32 = arith.constant 6 : i32
    %c8_i32_57 = arith.constant 8 : i32
    %232 = arith.muli %c6_i32, %c8_i32_57 : i32
    %233 = tpu.assume_multiple %232, 8 : i32
    %234 = arith.index_cast %233 : i32 to index
    %c0_58 = arith.constant 0 : index
    %235 = vector.load %arg8[%234, %c0_58] : memref<64x384xf32, #tpu.memory_space<vmem>>, vector<8x384xf32>
    %236 = arith.truncf %226 : vector<8x128xf32> to vector<8x128xbf16>
    %cst_59 = arith.constant dense<0.000000e+00> : vector<8x384xf32>
    %237 = tpu.matmul %236, %12, %cst_59 {dimension_numbers = #tpu.dot_dimension_numbers<[1], [0], [0], [1], [0, 0, 1, 1], [], []>} : vector<8x128xbf16>, vector<128x384xbf16>, vector<8x384xf32> -> vector<8x384xf32>
    %238 = vector.extract_strided_slice %235 {offsets = [0, 0], sizes = [8, 128], strides = [1, 1]} : vector<8x384xf32> to vector<8x128xf32>
    %239 = vector.extract_strided_slice %237 {offsets = [0, 0], sizes = [8, 128], strides = [1, 1]} : vector<8x384xf32> to vector<8x128xf32>
    %240 = arith.addf %238, %239 : vector<8x128xf32>
    %241 = arith.negf %240 : vector<8x128xf32>
    %242 = math.exp %241 : vector<8x128xf32>
    %cst_60 = arith.constant 1.000000e+00 : f32
    %243 = vector.broadcast %cst_60 : f32 to vector<8x128xf32>
    %244 = arith.addf %243, %242 : vector<8x128xf32>
    %245 = arith.divf %243, %244 : vector<8x128xf32>
    %246 = vector.extract_strided_slice %235 {offsets = [0, 128], sizes = [8, 128], strides = [1, 1]} : vector<8x384xf32> to vector<8x128xf32>
    %247 = vector.extract_strided_slice %237 {offsets = [0, 128], sizes = [8, 128], strides = [1, 1]} : vector<8x384xf32> to vector<8x128xf32>
    %248 = arith.addf %246, %247 : vector<8x128xf32>
    %249 = arith.negf %248 : vector<8x128xf32>
    %250 = math.exp %249 : vector<8x128xf32>
    %cst_61 = arith.constant 1.000000e+00 : f32
    %251 = vector.broadcast %cst_61 : f32 to vector<8x128xf32>
    %252 = arith.addf %251, %250 : vector<8x128xf32>
    %253 = arith.divf %251, %252 : vector<8x128xf32>
    %254 = vector.extract_strided_slice %235 {offsets = [0, 256], sizes = [8, 128], strides = [1, 1]} : vector<8x384xf32> to vector<8x128xf32>
    %255 = vector.extract_strided_slice %237 {offsets = [0, 256], sizes = [8, 128], strides = [1, 1]} : vector<8x384xf32> to vector<8x128xf32>
    %256 = arith.addf %255, %15 : vector<8x128xf32>
    %257 = arith.mulf %245, %256 : vector<8x128xf32>
    %258 = arith.addf %254, %257 : vector<8x128xf32>
    %259 = math.tanh %258 : vector<8x128xf32>
    %260 = arith.subf %226, %259 : vector<8x128xf32>
    %261 = arith.mulf %253, %260 : vector<8x128xf32>
    %262 = arith.addf %259, %261 : vector<8x128xf32>
    %263 = arith.truncf %262 : vector<8x128xf32> to vector<8x128xbf16>
    %264 = arith.index_cast %c6_i32 : i32 to index
    %c0_62 = arith.constant 0 : index
    %c0_63 = arith.constant 0 : index
    %265 = vector.load %arg6[%264, %c0_62, %c0_63] : memref<8x8x128xbf16, #tpu.memory_space<vmem>>, vector<1x8x128xbf16>
    %266 = vector.shape_cast %265 : vector<1x8x128xbf16> to vector<8x128xbf16>
    %267 = vector.shape_cast %263 : vector<8x128xbf16> to vector<1x8x128xbf16>
    tpu.vector_store %arg6[%264, %c0_62, %c0_63], %267 {strides = array<i32>} : memref<8x8x128xbf16, #tpu.memory_space<vmem>>, vector<1x8x128xbf16>,
    %c7_i32 = arith.constant 7 : i32
    %c8_i32_64 = arith.constant 8 : i32
    %268 = arith.muli %c7_i32, %c8_i32_64 : i32
    %269 = tpu.assume_multiple %268, 8 : i32
    %270 = arith.index_cast %269 : i32 to index
    %c0_65 = arith.constant 0 : index
    %271 = vector.load %arg8[%270, %c0_65] : memref<64x384xf32, #tpu.memory_space<vmem>>, vector<8x384xf32>
    %272 = arith.truncf %262 : vector<8x128xf32> to vector<8x128xbf16>
    %cst_66 = arith.constant dense<0.000000e+00> : vector<8x384xf32>
    %273 = tpu.matmul %272, %12, %cst_66 {dimension_numbers = #tpu.dot_dimension_numbers<[1], [0], [0], [1], [0, 0, 1, 1], [], []>} : vector<8x128xbf16>, vector<128x384xbf16>, vector<8x384xf32> -> vector<8x384xf32>
    %274 = vector.extract_strided_slice %271 {offsets = [0, 0], sizes = [8, 128], strides = [1, 1]} : vector<8x384xf32> to vector<8x128xf32>
    %275 = vector.extract_strided_slice %273 {offsets = [0, 0], sizes = [8, 128], strides = [1, 1]} : vector<8x384xf32> to vector<8x128xf32>
    %276 = arith.addf %274, %275 : vector<8x128xf32>
    %277 = arith.negf %276 : vector<8x128xf32>
    %278 = math.exp %277 : vector<8x128xf32>
    %cst_67 = arith.constant 1.000000e+00 : f32
    %279 = vector.broadcast %cst_67 : f32 to vector<8x128xf32>
    %280 = arith.addf %279, %278 : vector<8x128xf32>
    %281 = arith.divf %279, %280 : vector<8x128xf32>
    %282 = vector.extract_strided_slice %271 {offsets = [0, 128], sizes = [8, 128], strides = [1, 1]} : vector<8x384xf32> to vector<8x128xf32>
    %283 = vector.extract_strided_slice %273 {offsets = [0, 128], sizes = [8, 128], strides = [1, 1]} : vector<8x384xf32> to vector<8x128xf32>
    %284 = arith.addf %282, %283 : vector<8x128xf32>
    %285 = arith.negf %284 : vector<8x128xf32>
    %286 = math.exp %285 : vector<8x128xf32>
    %cst_68 = arith.constant 1.000000e+00 : f32
    %287 = vector.broadcast %cst_68 : f32 to vector<8x128xf32>
    %288 = arith.addf %287, %286 : vector<8x128xf32>
    %289 = arith.divf %287, %288 : vector<8x128xf32>
    %290 = vector.extract_strided_slice %271 {offsets = [0, 256], sizes = [8, 128], strides = [1, 1]} : vector<8x384xf32> to vector<8x128xf32>
    %291 = vector.extract_strided_slice %273 {offsets = [0, 256], sizes = [8, 128], strides = [1, 1]} : vector<8x384xf32> to vector<8x128xf32>
    %292 = arith.addf %291, %15 : vector<8x128xf32>
    %293 = arith.mulf %281, %292 : vector<8x128xf32>
    %294 = arith.addf %290, %293 : vector<8x128xf32>
    %295 = math.tanh %294 : vector<8x128xf32>
    %296 = arith.subf %262, %295 : vector<8x128xf32>
    %297 = arith.mulf %289, %296 : vector<8x128xf32>
    %298 = arith.addf %295, %297 : vector<8x128xf32>
    %299 = arith.truncf %298 : vector<8x128xf32> to vector<8x128xbf16>
    %300 = arith.index_cast %c7_i32 : i32 to index
    %c0_69 = arith.constant 0 : index
    %c0_70 = arith.constant 0 : index
    %301 = vector.load %arg6[%300, %c0_69, %c0_70] : memref<8x8x128xbf16, #tpu.memory_space<vmem>>, vector<1x8x128xbf16>
    %302 = vector.shape_cast %301 : vector<1x8x128xbf16> to vector<8x128xbf16>
    %303 = vector.shape_cast %299 : vector<8x128xbf16> to vector<1x8x128xbf16>
    tpu.vector_store %arg6[%300, %c0_69, %c0_70], %303 {strides = array<i32>} : memref<8x8x128xbf16, #tpu.memory_space<vmem>>, vector<1x8x128xbf16>,
    %c8_i32_71 = arith.constant 8 : i32
    %c0_72 = arith.constant 0 : index
    %c0_73 = arith.constant 0 : index
    %304 = vector.load %arg7[%c0_72, %c0_73] : memref<8x128xf32, #tpu.memory_space<vmem>>, vector<8x128xf32>
    tpu.vector_store %arg7[%c0_72, %c0_73], %298 {strides = array<i32>} : memref<8x128xf32, #tpu.memory_space<vmem>>, vector<8x128xf32>,
    return
  }
  func.func @transform_0(%arg0: i32) -> (i32, i32, i32) {
    %c0_i32 = arith.constant 0 : i32
    %c0_i32_0 = arith.constant 0 : i32
    %c0_i32_1 = arith.constant 0 : i32
    return %arg0, %c0_i32, %c0_i32_0 : i32, i32, i32
  }
  func.func @transform_1(%arg0: i32) -> (i32, i32) {
    %c0_i32 = arith.constant 0 : i32
    %c0_i32_0 = arith.constant 0 : i32
    %c0_i32_1 = arith.constant 0 : i32
    return %c0_i32, %c0_i32_0 : i32, i32
  }
  func.func @transform_2(%arg0: i32) -> (i32, i32) {
    %c0_i32 = arith.constant 0 : i32
    %c0_i32_0 = arith.constant 0 : i32
    %c0_i32_1 = arith.constant 0 : i32
    return %c0_i32, %c0_i32_0 : i32, i32
  }
  func.func @transform_3(%arg0: i32) -> (i32, i32) {
    %c0_i32 = arith.constant 0 : i32
    %c0_i32_0 = arith.constant 0 : i32
    %c0_i32_1 = arith.constant 0 : i32
    return %c0_i32, %c0_i32_0 : i32, i32
  }
  func.func @transform_4(%arg0: i32) -> (i32, i32) {
    %c0_i32 = arith.constant 0 : i32
    %c0_i32_0 = arith.constant 0 : i32
    %c0_i32_1 = arith.constant 0 : i32
    return %c0_i32, %c0_i32_0 : i32, i32
  }
  func.func @transform_5(%arg0: i32) -> (i32, i32, i32) {
    %c0_i32 = arith.constant 0 : i32
    %c0_i32_0 = arith.constant 0 : i32
    %c0_i32_1 = arith.constant 0 : i32
    return %arg0, %c0_i32, %c0_i32_0 : i32, i32, i32
  }
}

</mosaic_0001>

<llo_original>
// kernel: gru_forward.2
$region0: #{gru_forward.2}
  #allocation0 [shape = 'u32[]', space=smem, size = 0x4, offset = 0x4, fixed_abs, tag = 'smem constant byte address 0x4 - core index']
  #allocation1 [shape = 'u32[144,128]{1,0:T(1,128)}', space=vmem, size = 0x12000, scoped, tag = 'internal scratch']
  #allocation2 [shape = 'f32[8,128]{1,0:T(8,128)}', space=vmem, size = 0x1000, scoped, tag = 'scratch operand']
  #allocation3 [shape = 'f32[64,384]{1,0:T(8,128)}', space=vmem, size = 0x18000, scoped, tag = 'scratch operand']
  %s0 = inlined_call_operand.vmem [shape: bf16[8,8,128], index: 0, kind: input, shape index: {}]
  %s1 = inlined_call_operand.vmem [shape: bf16[128,384], index: 1, kind: input, shape index: {}]
  %s2 = inlined_call_operand.vmem [shape: bf16[128,384], index: 2, kind: input, shape index: {}]
  %s3 = inlined_call_operand.vmem [shape: f32[1,384], index: 3, kind: input, shape index: {}]
  %s4 = inlined_call_operand.vmem [shape: f32[1,128], index: 4, kind: input, shape index: {}]
  %s5 = inlined_call_operand.vmem [shape: bf16[8,8,128], index: 5, kind: output, shape index: {}]
  %s6 = sld [smem:[#allocation0]]
  $region34: #{gru_forward.2} parent=0
    _
  %s8 = ssub.s32 1, %s6
  %s9 = scalar_select 0, %s8, %s6
  // Predicated region
  $region2: #{gru_forward.2} parent=0 // pred_check
    _
  $region3: #{gru_forward.2} parent=0 // pred_check_branch
    %11 = sbr.rel (0) target = $region5
  $region4: #{gru_forward.2} parent=0 // pred_region
    _
  $region5: #{gru_forward.2} parent=0 // pred_fallthru
    _
  // Predicated region
  $region6: #{gru_forward.2} parent=0 // pred_check
    _
  $region7: #{gru_forward.2} parent=0 // pred_check_branch
    %13 = sbr.rel (0) target = $region9
  $region8: #{gru_forward.2} parent=0 // pred_region
    _
  $region9: #{gru_forward.2} parent=0 // pred_fallthru
    _
  // Predicated region
  $region10: #{gru_forward.2} parent=0 // pred_check
    _
  $region11: #{gru_forward.2} parent=0 // pred_check_branch
    %15 = sbr.rel (0) target = $region13
  $region12: #{gru_forward.2} parent=0 // pred_region
    _
  $region13: #{gru_forward.2} parent=0 // pred_fallthru
    _
  // Predicated region
  $region14: #{gru_forward.2} parent=0 // pred_check
    _
  $region15: #{gru_forward.2} parent=0 // pred_check_branch
    %17 = sbr.rel (0) target = $region17
  $region16: #{gru_forward.2} parent=0 // pred_region
    _
  $region17: #{gru_forward.2} parent=0 // pred_fallthru
    _
  // Predicated region
  $region18: #{gru_forward.2} parent=0 // pred_check
    _
  $region19: #{gru_forward.2} parent=0 // pred_check_branch
    %19 = sbr.rel (0) target = $region21
  $region20: #{gru_forward.2} parent=0 // pred_region
    _
  $region21: #{gru_forward.2} parent=0 // pred_fallthru
    _
  %p21 = scmp.eq.s32.totalorder 0, 0
  // Predicated region
  $region22: #{gru_forward.2} parent=0 // pred_check
    %p22 = pneg %p21
  $region23: #{gru_forward.2} parent=0 // pred_check_branch
    %24 = sbr.rel (%p22) target = $region25
  $region24: #{gru_forward.2} parent=0 // pred_region
    %25 = vst [vmem:[#allocation2] sm:$0xff] 0.0
  $region25: #{gru_forward.2} parent=0 // pred_fallthru
    _
  %v26 = vld [vmem:[%s0] sm:$0xf]
  %v27 = vld [vmem:[%s0 + $0x4] sm:$0xf]
  %v28 = vld [vmem:[%s0 + $0x8] sm:$0xf]
  %v29 = vld [vmem:[%s0 + $0xc] sm:$0xf]
  %v30 = vld [vmem:[%s0 + $0x10] sm:$0xf]
  %v31 = vld [vmem:[%s0 + $0x14] sm:$0xf]
  %v32 = vld [vmem:[%s0 + $0x18] sm:$0xf]
  %v33 = vld [vmem:[%s0 + $0x1c] sm:$0xf]
  %v34 = vld [vmem:[%s1] sm:$0xff]
  %v35 = vld [vmem:[%s1 + $0x8] sm:$0xf]
  %v36 = vld [vmem:[%s1 + $0xc] sm:$0xff]
  %v37 = vld [vmem:[%s1 + $0x14] sm:$0xf]
  %v38 = vld [vmem:[%s1 + $0x18] sm:$0xff]
  %v39 = vld [vmem:[%s1 + $0x20] sm:$0xf]
  %v40 = vld [vmem:[%s1 + $0x24] sm:$0xff]
  %v41 = vld [vmem:[%s1 + $0x2c] sm:$0xf]
  %v42 = vld [vmem:[%s1 + $0x30] sm:$0xff]
  %v43 = vld [vmem:[%s1 + $0x38] sm:$0xf]
  %v44 = vld [vmem:[%s1 + $0x3c] sm:$0xff]
  %v45 = vld [vmem:[%s1 + $0x44] sm:$0xf]
  %v46 = vld [vmem:[%s1 + $0x48] sm:$0xff]
  %v47 = vld [vmem:[%s1 + $0x50] sm:$0xf]
  %v48 = vld [vmem:[%s1 + $0x54] sm:$0xff]
  %v49 = vld [vmem:[%s1 + $0x5c] sm:$0xf]
  %v50 = vld [vmem:[%s1 + $0x60] sm:$0xff]
  %v51 = vld [vmem:[%s1 + $0x68] sm:$0xf]
  %v52 = vld [vmem:[%s1 + $0x6c] sm:$0xff]
  %v53 = vld [vmem:[%s1 + $0x74] sm:$0xf]
  %v54 = vld [vmem:[%s1 + $0x78] sm:$0xff]
  %v55 = vld [vmem:[%s1 + $0x80] sm:$0xf]
  %v56 = vld [vmem:[%s1 + $0x84] sm:$0xff]
  %v57 = vld [vmem:[%s1 + $0x8c] sm:$0xf]
  %v58 = vld [vmem:[%s1 + $0x90] sm:$0xff]
  %v59 = vld [vmem:[%s1 + $0x98] sm:$0xf]
  %v60 = vld [vmem:[%s1 + $0x9c] sm:$0xff]
  %v61 = vld [vmem:[%s1 + $0xa4] sm:$0xf]
  %v62 = vld [vmem:[%s1 + $0xa8] sm:$0xff]
  %v63 = vld [vmem:[%s1 + $0xb0] sm:$0xf]
  %v64 = vld [vmem:[%s1 + $0xb4] sm:$0xff]
  %v65 = vld [vmem:[%s1 + $0xbc] sm:$0xf]
  %v66 = vld [vmem:[%s3] sm:$0x7]
  %v68 = vlaneseq
  %v69 = vshrl.u32 %v68, 7
  %v70 = vsub.s32 0, %v69
  %v71 = vrot.slane %v66, %v70
  %v72 = vlaneseq
  %v73 = vshrl.u32 %v72, 7
  %v74 = vsub.s32 1, %v73
  %v75 = vrot.slane %v66, %v74
  %v76 = vlaneseq
  %v77 = vshrl.u32 %v76, 7
  %v78 = vsub.s32 2, %v77
  %v79 = vrot.slane %v66, %v78
  %v91 = vunpack.c.l.b16 %v26
  %v92 = vunpack.c.l.b16 %v27
  %v93 = vunpack.c.l.b16 %v28
  %v94 = vunpack.c.l.b16 %v29
  %v95 = vunpack.c.l.b16 %v30
  %v96 = vunpack.c.l.b16 %v31
  %v97 = vunpack.c.l.b16 %v32
  %v98 = vunpack.c.l.b16 %v33
  %v99 = vpack.c.b16 %v92, %v91
  %v100 = vpack.c.b16 %v94, %v93
  %v101 = vpack.c.b16 %v96, %v95
  %v102 = vpack.c.b16 %v98, %v97
  %v139 = vunpack.c.l.b16 %v34
  %v140 = vunpack.c.h.b16 %v34
  %v141 = vunpack.c.l.b16 %v35
  %v142 = vunpack.c.l.b16 %v36
  %v143 = vunpack.c.h.b16 %v36
  %v144 = vunpack.c.l.b16 %v37
  %v145 = vunpack.c.l.b16 %v38
  %v146 = vunpack.c.h.b16 %v38
  %v147 = vunpack.c.l.b16 %v39
  %v148 = vunpack.c.l.b16 %v40
  %v149 = vunpack.c.h.b16 %v40
  %v150 = vunpack.c.l.b16 %v41
  %v151 = vunpack.c.l.b16 %v42
  %v152 = vunpack.c.h.b16 %v42
  %v153 = vunpack.c.l.b16 %v43
  %v154 = vunpack.c.l.b16 %v44
  %v155 = vunpack.c.h.b16 %v44
  %v156 = vunpack.c.l.b16 %v45
  %v157 = vunpack.c.l.b16 %v46
  %v158 = vunpack.c.h.b16 %v46
  %v159 = vunpack.c.l.b16 %v47
  %v160 = vunpack.c.l.b16 %v48
  %v161 = vunpack.c.h.b16 %v48
  %v162 = vunpack.c.l.b16 %v49
  %v163 = vunpack.c.l.b16 %v50
  %v164 = vunpack.c.h.b16 %v50
  %v165 = vunpack.c.l.b16 %v51
  %v166 = vunpack.c.l.b16 %v52
  %v167 = vunpack.c.h.b16 %v52
  %v168 = vunpack.c.l.b16 %v53
  %v169 = vunpack.c.l.b16 %v54
  %v170 = vunpack.c.h.b16 %v54
  %v171 = vunpack.c.l.b16 %v55
  %v172 = vunpack.c.l.b16 %v56
  %v173 = vunpack.c.h.b16 %v56
  %v174 = vunpack.c.l.b16 %v57
  %v175 = vunpack.c.l.b16 %v58
  %v176 = vunpack.c.h.b16 %v58
  %v177 = vunpack.c.l.b16 %v59
  %v178 = vunpack.c.l.b16 %v60
  %v179 = vunpack.c.h.b16 %v60
  %v180 = vunpack.c.l.b16 %v61
  %v181 = vunpack.c.l.b16 %v62
  %v182 = vunpack.c.h.b16 %v62
  %v183 = vunpack.c.l.b16 %v63
  %v184 = vunpack.c.l.b16 %v64
  %v185 = vunpack.c.h.b16 %v64
  %v186 = vunpack.c.l.b16 %v65
  %v187 = vpack.c.b16 %v142, %v139
  %v188 = vpack.c.b16 %v143, %v140
  %v189 = vpack.c.b16 %v144, %v141
  %v190 = vpack.c.b16 %v148, %v145
  %v191 = vpack.c.b16 %v149, %v146
  %v192 = vpack.c.b16 %v150, %v147
  %v193 = vpack.c.b16 %v154, %v151
  %v194 = vpack.c.b16 %v155, %v152
  %v195 = vpack.c.b16 %v156, %v153
  %v196 = vpack.c.b16 %v160, %v157
  %v197 = vpack.c.b16 %v161, %v158
  %v198 = vpack.c.b16 %v162, %v159
  %v199 = vpack.c.b16 %v166, %v163
  %v200 = vpack.c.b16 %v167, %v164
  %v201 = vpack.c.b16 %v168, %v165
  %v202 = vpack.c.b16 %v172, %v169
  %v203 = vpack.c.b16 %v173, %v170
  %v204 = vpack.c.b16 %v174, %v171
  %v205 = vpack.c.b16 %v178, %v175
  %v206 = vpack.c.b16 %v179, %v176
  %v207 = vpack.c.b16 %v180, %v177
  %v208 = vpack.c.b16 %v184, %v181
  %v209 = vpack.c.b16 %v185, %v182
  %v210 = vpack.c.b16 %v186, %v183
  %235 = vmatprep.subr.bf16.mxu0 %v188
  %236 = vmatpush1.bf16.msra.mxu0 %v187
  %237 = vmatprep.subr.bf16.mxu0 %v191
  %238 = vmatpush1.bf16.msra.mxu0 %v190
  %239 = vmatprep.subr.bf16.mxu0 %v194
  %240 = vmatpush1.bf16.msra.mxu0 %v193
  %241 = vmatprep.subr.bf16.mxu0 %v197
  %242 = vmatpush1.bf16.msra.mxu0 %v196
  %243 = vmatprep.subr.bf16.mxu0 %v200
  %244 = vmatpush1.bf16.msra.mxu0 %v199
  %245 = vmatprep.subr.bf16.mxu0 %v203
  %246 = vmatpush1.bf16.msra.mxu0 %v202
  %247 = vmatprep.subr.bf16.mxu0 %v206
  %248 = vmatpush1.bf16.msra.mxu0 %v205
  %249 = vmatprep.subr.bf16.mxu0 %v209
  %250 = vmatpush1.bf16.msra.mxu0 %v208
  %251 = vmatprep.subr.bf16.mxu0 0
  %252 = vmatpush1.bf16.msra.mxu0 0
  %253 = vmatprep.subr.bf16.mxu0 0
  %254 = vmatpush1.bf16.msra.mxu0 0
  %255 = vmatprep.subr.bf16.mxu0 0
  %256 = vmatpush1.bf16.msra.mxu0 0
  %257 = vmatprep.subr.bf16.mxu0 0
  %258 = vmatpush1.bf16.msra.mxu0 0
  %259 = vmatprep.subr.bf16.mxu0 0
  %260 = vmatpush1.bf16.msra.mxu0 0
  %261 = vmatprep.subr.bf16.mxu0 0
  %262 = vmatpush1.bf16.msra.mxu0 0
  %263 = vmatprep.subr.bf16.mxu0 0
  %264 = vmatpush1.bf16.msra.mxu0 0
  %265 = vmatprep.subr.bf16.mxu0 0
  %266 = vmatpush1.bf16.msra.mxu0 0
  %267 = vmatprep.mubr.bf16.mxu0 0
  %268 = vmatmul.mubr.bf16.gmra.mrb[0].mxu0 %v99
  %v269 = vpop.f32.mrb[0].mxu0
  %v270 = vadd.f32 %v71, %v269
  %v271 = vpop.f32.mrb[0].mxu0
  %v272 = vadd.f32 %v75, %v271
  %v273 = vpop.f32.mrb[0].mxu0
  %v274 = vadd.f32 %v71, %v273
  %v275 = vpop.f32.mrb[0].mxu0
  %v276 = vadd.f32 %v75, %v275
  %277 = vmatprep.mubr.bf16.mxu0 0
  %278 = vmatmul.mubr.bf16.gmra.mrb[0].mxu0 %v100
  %v279 = vpop.f32.mrb[0].mxu0
  %v280 = vadd.f32 %v71, %v279
  %v281 = vpop.f32.mrb[0].mxu0
  %v282 = vadd.f32 %v75, %v281
  %v283 = vpop.f32.mrb[0].mxu0
  %v284 = vadd.f32 %v71, %v283
  %v285 = vpop.f32.mrb[0].mxu0
  %v286 = vadd.f32 %v75, %v285
  %287 = vmatprep.mubr.bf16.mxu0 0
  %288 = vmatmul.mubr.bf16.gmra.mrb[0].mxu0 %v101
  %v289 = vpop.f32.mrb[0].mxu0
  %v290 = vadd.f32 %v71, %v289
  %v291 = vpop.f32.mrb[0].mxu0
  %v292 = vadd.f32 %v75, %v291
  %v293 = vpop.f32.mrb[0].mxu0
  %v294 = vadd.f32 %v71, %v293
  %v295 = vpop.f32.mrb[0].mxu0
  %v296 = vadd.f32 %v75, %v295
  %297 = vmatprep.mubr.bf16.mxu0 0
  %298 = vmatmul.mubr.bf16.gmra.mrb[0].mxu0 %v102
  %v299 = vpop.f32.mrb[0].mxu0
  %v300 = vadd.f32 %v71, %v299
  %v301 = vpop.f32.mrb[0].mxu0
  %v302 = vadd.f32 %v75, %v301
  %v303 = vpop.f32.mrb[0].mxu0
  %v304 = vadd.f32 %v71, %v303
  %v305 = vpop.f32.mrb[0].mxu0
  %v306 = vadd.f32 %v75, %v305
  %307 = vdwg.mxu0
  %308 = vmatprep.subr.bf16.mxu0 0
  %309 = vmatpush1.bf16.msra.mxu0 %v189
  %310 = vmatprep.subr.bf16.mxu0 0
  %311 = vmatpush1.bf16.msra.mxu0 %v192
  %312 = vmatprep.subr.bf16.mxu0 0
  %313 = vmatpush1.bf16.msra.mxu0 %v195
  %314 = vmatprep.subr.bf16.mxu0 0
  %315 = vmatpush1.bf16.msra.mxu0 %v198
  %316 = vmatprep.subr.bf16.mxu0 0
  %317 = vmatpush1.bf16.msra.mxu0 %v201
  %318 = vmatprep.subr.bf16.mxu0 0
  %319 = vmatpush1.bf16.msra.mxu0 %v204
  %320 = vmatprep.subr.bf16.mxu0 0
  %321 = vmatpush1.bf16.msra.mxu0 %v207
  %322 = vmatprep.subr.bf16.mxu0 0
  %323 = vmatpush1.bf16.msra.mxu0 %v210
  %324 = vmatprep.subr.bf16.mxu0 0
  %325 = vmatpush1.bf16.msra.mxu0 0
  %326 = vmatprep.subr.bf16.mxu0 0
  %327 = vmatpush1.bf16.msra.mxu0 0
  %328 = vmatprep.subr.bf16.mxu0 0
  %329 = vmatpush1.bf16.msra.mxu0 0
  %330 = vmatprep.subr.bf16.mxu0 0
  %331 = vmatpush1.bf16.msra.mxu0 0
  %332 = vmatprep.subr.bf16.mxu0 0
  %333 = vmatpush1.bf16.msra.mxu0 0
  %334 = vmatprep.subr.bf16.mxu0 0
  %335 = vmatpush1.bf16.msra.mxu0 0
  %336 = vmatprep.subr.bf16.mxu0 0
  %337 = vmatpush1.bf16.msra.mxu0 0
  %338 = vmatprep.subr.bf16.mxu0 0
  %339 = vmatpush1.bf16.msra.mxu0 0
  %340 = vmatprep.mubr.bf16.mxu0 0
  %341 = vmatmul.mubr.bf16.gmra.mrb[0].mxu0 %v99
  %v342 = vpop.f32.mrb[0].mxu0
  %v343 = vadd.f32 %v79, %v342
  %v344 = vpop.f32.mrb[0].mxu0
  %v345 = vpop.f32.mrb[0].mxu0
  %v346 = vadd.f32 %v79, %v345
  %v347 = vpop.f32.mrb[0].mxu0
  %348 = vmatprep.mubr.bf16.mxu0 0
  %349 = vmatmul.mubr.bf16.gmra.mrb[0].mxu0 %v100
  %v350 = vpop.f32.mrb[0].mxu0
  %v351 = vadd.f32 %v79, %v350
  %v352 = vpop.f32.mrb[0].mxu0
  %v353 = vpop.f32.mrb[0].mxu0
  %v354 = vadd.f32 %v79, %v353
  %v355 = vpop.f32.mrb[0].mxu0
  %356 = vmatprep.mubr.bf16.mxu0 0
  %357 = vmatmul.mubr.bf16.gmra.mrb[0].mxu0 %v101
  %v358 = vpop.f32.mrb[0].mxu0
  %v359 = vadd.f32 %v79, %v358
  %v360 = vpop.f32.mrb[0].mxu0
  %v361 = vpop.f32.mrb[0].mxu0
  %v362 = vadd.f32 %v79, %v361
  %v363 = vpop.f32.mrb[0].mxu0
  %364 = vmatprep.mubr.bf16.mxu0 0
  %365 = vmatmul.mubr.bf16.gmra.mrb[0].mxu0 %v102
  %v366 = vpop.f32.mrb[0].mxu0
  %v367 = vadd.f32 %v79, %v366
  %v368 = vpop.f32.mrb[0].mxu0
  %v369 = vpop.f32.mrb[0].mxu0
  %v370 = vadd.f32 %v79, %v369
  %v371 = vpop.f32.mrb[0].mxu0
  %372 = vdwg.mxu0
  %373 = vst [vmem:[#allocation3] sm:$0xff] %v270
  %374 = vst [vmem:[#allocation3 + $0x8] sm:$0xff] %v272
  %375 = vst [vmem:[#allocation3 + $0x10] sm:$0xff] %v343
  %376 = vst [vmem:[#allocation3 + $0x18] sm:$0xff] %v274
  %377 = vst [vmem:[#allocation3 + $0x20] sm:$0xff] %v276
  %378 = vst [vmem:[#allocation3 + $0x28] sm:$0xff] %v346
  %379 = vst [vmem:[#allocation3 + $0x30] sm:$0xff] %v280
  %380 = vst [vmem:[#allocation3 + $0x38] sm:$0xff] %v282
  %381 = vst [vmem:[#allocation3 + $0x40] sm:$0xff] %v351
  %382 = vst [vmem:[#allocation3 + $0x48] sm:$0xff] %v284
  %383 = vst [vmem:[#allocation3 + $0x50] sm:$0xff] %v286
  %384 = vst [vmem:[#allocation3 + $0x58] sm:$0xff] %v354
  %385 = vst [vmem:[#allocation3 + $0x60] sm:$0xff] %v290
  %386 = vst [vmem:[#allocation3 + $0x68] sm:$0xff] %v292
  %387 = vst [vmem:[#allocation3 + $0x70] sm:$0xff] %v359
  %388 = vst [vmem:[#allocation3 + $0x78] sm:$0xff] %v294
  %389 = vst [vmem:[#allocation3 + $0x80] sm:$0xff] %v296
  %390 = vst [vmem:[#allocation3 + $0x88] sm:$0xff] %v362
  %391 = vst [vmem:[#allocation3 + $0x90] sm:$0xff] %v300
  %392 = vst [vmem:[#allocation3 + $0x98] sm:$0xff] %v302
  %393 = vst [vmem:[#allocation3 + $0xa0] sm:$0xff] %v367
  %394 = vst [vmem:[#allocation3 + $0xa8] sm:$0xff] %v304
  %395 = vst [vmem:[#allocation3 + $0xb0] sm:$0xff] %v306
  %396 = vst [vmem:[#allocation3 + $0xb8] sm:$0xff] %v370
  %v397 = vld [vmem:[#allocation2] sm:$0xff]
  %v398 = vld [vmem:[%s2] sm:$0xff]
  %v399 = vld [vmem:[%s2 + $0x8] sm:$0xf]
  %v400 = vld [vmem:[%s2 + $0xc] sm:$0xff]
  %v401 = vld [vmem:[%s2 + $0x14] sm:$0xf]
  %v402 = vld [vmem:[%s2 + $0x18] sm:$0xff]
  %v403 = vld [vmem:[%s2 + $0x20] sm:$0xf]
  %v404 = vld [vmem:[%s2 + $0x24] sm:$0xff]
  %v405 = vld [vmem:[%s2 + $0x2c] sm:$0xf]
  %v406 = vld [vmem:[%s2 + $0x30] sm:$0xff]
  %v407 = vld [vmem:[%s2 + $0x38] sm:$0xf]
  %v408 = vld [vmem:[%s2 + $0x3c] sm:$0xff]
  %v409 = vld [vmem:[%s2 + $0x44] sm:$0xf]
  %v410 = vld [vmem:[%s2 + $0x48] sm:$0xff]
  %v411 = vld [vmem:[%s2 + $0x50] sm:$0xf]
  %v412 = vld [vmem:[%s2 + $0x54] sm:$0xff]
  %v413 = vld [vmem:[%s2 + $0x5c] sm:$0xf]
  %v414 = vld [vmem:[%s2 + $0x60] sm:$0xff]
  %v415 = vld [vmem:[%s2 + $0x68] sm:$0xf]
  %v416 = vld [vmem:[%s2 + $0x6c] sm:$0xff]
  %v417 = vld [vmem:[%s2 + $0x74] sm:$0xf]
  %v418 = vld [vmem:[%s2 + $0x78] sm:$0xff]
  %v419 = vld [vmem:[%s2 + $0x80] sm:$0xf]
  %v420 = vld [vmem:[%s2 + $0x84] sm:$0xff]
  %v421 = vld [vmem:[%s2 + $0x8c] sm:$0xf]
  %v422 = vld [vmem:[%s2 + $0x90] sm:$0xff]
  %v423 = vld [vmem:[%s2 + $0x98] sm:$0xf]
  %v424 = vld [vmem:[%s2 + $0x9c] sm:$0xff]
  %v425 = vld [vmem:[%s2 + $0xa4] sm:$0xf]
  %v426 = vld [vmem:[%s2 + $0xa8] sm:$0xff]
  %v427 = vld [vmem:[%s2 + $0xb0] sm:$0xf]
  %v428 = vld [vmem:[%s2 + $0xb4] sm:$0xff]
  %v429 = vld [vmem:[%s2 + $0xbc] sm:$0xf]
  %v430 = vld [vmem:[%s4] sm:$0x1]
  %v432 = vlaneseq
  %v433 = vshrl.u32 %v432, 7
  %v434 = vsub.s32 0, %v433
  %v435 = vrot.slane %v430, %v434
  %s437 = smul.u32 0, 3
  %s438 = smul.addr %s437, 8
  %s439 = scalar_lea.vmem [#allocation3], %s438
  %v440 = vld [vmem:[%s439] sm:$0xff]
  %v441 = vld [vmem:[%s439 + $0x8] sm:$0xff]
  %v442 = vld [vmem:[%s439 + $0x10] sm:$0xff]
  %v443 = vpack.c.bf16 %v397, %v397
  %v476 = vunpack.c.l.b16 %v398
  %v477 = vunpack.c.h.b16 %v398
  %v478 = vunpack.c.l.b16 %v399
  %v479 = vunpack.c.l.b16 %v400
  %v480 = vunpack.c.h.b16 %v400
  %v481 = vunpack.c.l.b16 %v401
  %v482 = vunpack.c.l.b16 %v402
  %v483 = vunpack.c.h.b16 %v402
  %v484 = vunpack.c.l.b16 %v403
  %v485 = vunpack.c.l.b16 %v404
  %v486 = vunpack.c.h.b16 %v404
  %v487 = vunpack.c.l.b16 %v405
  %v488 = vunpack.c.l.b16 %v406
  %v489 = vunpack.c.h.b16 %v406
  %v490 = vunpack.c.l.b16 %v407
  %v491 = vunpack.c.l.b16 %v408
  %v492 = vunpack.c.h.b16 %v408
  %v493 = vunpack.c.l.b16 %v409
  %v494 = vunpack.c.l.b16 %v410
  %v495 = vunpack.c.h.b16 %v410
  %v496 = vunpack.c.l.b16 %v411
  %v497 = vunpack.c.l.b16 %v412
  %v498 = vunpack.c.h.b16 %v412
  %v499 = vunpack.c.l.b16 %v413
  %v500 = vunpack.c.l.b16 %v414
  %v501 = vunpack.c.h.b16 %v414
  %v502 = vunpack.c.l.b16 %v415
  %v503 = vunpack.c.l.b16 %v416
  %v504 = vunpack.c.h.b16 %v416
  %v505 = vunpack.c.l.b16 %v417
  %v506 = vunpack.c.l.b16 %v418
  %v507 = vunpack.c.h.b16 %v418
  %v508 = vunpack.c.l.b16 %v419
  %v509 = vunpack.c.l.b16 %v420
  %v510 = vunpack.c.h.b16 %v420
  %v511 = vunpack.c.l.b16 %v421
  %v512 = vunpack.c.l.b16 %v422
  %v513 = vunpack.c.h.b16 %v422
  %v514 = vunpack.c.l.b16 %v423
  %v515 = vunpack.c.l.b16 %v424
  %v516 = vunpack.c.h.b16 %v424
  %v517 = vunpack.c.l.b16 %v425
  %v518 = vunpack.c.l.b16 %v426
  %v519 = vunpack.c.h.b16 %v426
  %v520 = vunpack.c.l.b16 %v427
  %v521 = vunpack.c.l.b16 %v428
  %v522 = vunpack.c.h.b16 %v428
  %v523 = vunpack.c.l.b16 %v429
  %v524 = vpack.c.b16 %v479, %v476
  %v525 = vpack.c.b16 %v480, %v477
  %v526 = vpack.c.b16 %v481, %v478
  %v527 = vpack.c.b16 %v485, %v482
  %v528 = vpack.c.b16 %v486, %v483
  %v529 = vpack.c.b16 %v487, %v484
  %v530 = vpack.c.b16 %v491, %v488
  %v531 = vpack.c.b16 %v492, %v489
  %v532 = vpack.c.b16 %v493, %v490
  %v533 = vpack.c.b16 %v497, %v494
  %v534 = vpack.c.b16 %v498, %v495
  %v535 = vpack.c.b16 %v499, %v496
  %v536 = vpack.c.b16 %v503, %v500
  %v537 = vpack.c.b16 %v504, %v501
  %v538 = vpack.c.b16 %v505, %v502
  %v539 = vpack.c.b16 %v509, %v506
  %v540 = vpack.c.b16 %v510, %v507
  %v541 = vpack.c.b16 %v511, %v508
  %v542 = vpack.c.b16 %v515, %v512
  %v543 = vpack.c.b16 %v516, %v513
  %v544 = vpack.c.b16 %v517, %v514
  %v545 = vpack.c.b16 %v521, %v518
  %v546 = vpack.c.b16 %v522, %v519
  %v547 = vpack.c.b16 %v523, %v520
  %572 = vmatprep.subr.bf16.mxu0 %v525
  %573 = vmatpush1.bf16.msra.mxu0 %v524
  %574 = vmatprep.subr.bf16.mxu0 %v528
  %575 = vmatpush1.bf16.msra.mxu0 %v527
  %576 = vmatprep.subr.bf16.mxu0 %v531
  %577 = vmatpush1.bf16.msra.mxu0 %v530
  %578 = vmatprep.subr.bf16.mxu0 %v534
  %579 = vmatpush1.bf16.msra.mxu0 %v533
  %580 = vmatprep.subr.bf16.mxu0 %v537
  %581 = vmatpush1.bf16.msra.mxu0 %v536
  %582 = vmatprep.subr.bf16.mxu0 %v540
  %583 = vmatpush1.bf16.msra.mxu0 %v539
  %584 = vmatprep.subr.bf16.mxu0 %v543
  %585 = vmatpush1.bf16.msra.mxu0 %v542
  %586 = vmatprep.subr.bf16.mxu0 %v546
  %587 = vmatpush1.bf16.msra.mxu0 %v545
  %588 = vmatprep.subr.bf16.mxu0 0
  %589 = vmatpush1.bf16.msra.mxu0 0
  %590 = vmatprep.subr.bf16.mxu0 0
  %591 = vmatpush1.bf16.msra.mxu0 0
  %592 = vmatprep.subr.bf16.mxu0 0
  %593 = vmatpush1.bf16.msra.mxu0 0
  %594 = vmatprep.subr.bf16.mxu0 0
  %595 = vmatpush1.bf16.msra.mxu0 0
  %596 = vmatprep.subr.bf16.mxu0 0
  %597 = vmatpush1.bf16.msra.mxu0 0
  %598 = vmatprep.subr.bf16.mxu0 0
  %599 = vmatpush1.bf16.msra.mxu0 0
  %600 = vmatprep.subr.bf16.mxu0 0
  %601 = vmatpush1.bf16.msra.mxu0 0
  %602 = vmatprep.subr.bf16.mxu0 0
  %603 = vmatpush1.bf16.msra.mxu0 0
  %604 = vmatprep.mubr.bf16.mxu0 0
  %605 = vmatmul.mubr.bf16.gmra.mrb[0].mxu0 %v443
  %v606 = vpop.f32.mrb[0].mxu0
  %v607 = vadd.f32 0.0, %v606
  %v608 = vpop.f32.mrb[0].mxu0
  %v609 = vadd.f32 0.0, %v608
  %v610 = vpop.f32.mrb[0].mxu0
  %v611 = vpop.f32.mrb[0].mxu0
  %612 = vdwg.mxu0
  %613 = vmatprep.subr.bf16.mxu0 0
  %614 = vmatpush1.bf16.msra.mxu0 %v526
  %615 = vmatprep.subr.bf16.mxu0 0
  %616 = vmatpush1.bf16.msra.mxu0 %v529
  %617 = vmatprep.subr.bf16.mxu0 0
  %618 = vmatpush1.bf16.msra.mxu0 %v532
  %619 = vmatprep.subr.bf16.mxu0 0
  %620 = vmatpush1.bf16.msra.mxu0 %v535
  %621 = vmatprep.subr.bf16.mxu0 0
  %622 = vmatpush1.bf16.msra.mxu0 %v538
  %623 = vmatprep.subr.bf16.mxu0 0
  %624 = vmatpush1.bf16.msra.mxu0 %v541
  %625 = vmatprep.subr.bf16.mxu0 0
  %626 = vmatpush1.bf16.msra.mxu0 %v544
  %627 = vmatprep.subr.bf16.mxu0 0
  %628 = vmatpush1.bf16.msra.mxu0 %v547
  %629 = vmatprep.subr.bf16.mxu0 0
  %630 = vmatpush1.bf16.msra.mxu0 0
  %631 = vmatprep.subr.bf16.mxu0 0
  %632 = vmatpush1.bf16.msra.mxu0 0
  %633 = vmatprep.subr.bf16.mxu0 0
  %634 = vmatpush1.bf16.msra.mxu0 0
  %635 = vmatprep.subr.bf16.mxu0 0
  %636 = vmatpush1.bf16.msra.mxu0 0
  %637 = vmatprep.subr.bf16.mxu0 0
  %638 = vmatpush1.bf16.msra.mxu0 0
  %639 = vmatprep.subr.bf16.mxu0 0
  %640 = vmatpush1.bf16.msra.mxu0 0
  %641 = vmatprep.subr.bf16.mxu0 0
  %642 = vmatpush1.bf16.msra.mxu0 0
  %643 = vmatprep.subr.bf16.mxu0 0
  %644 = vmatpush1.bf16.msra.mxu0 0
  %645 = vmatprep.mubr.bf16.mxu0 0
  %646 = vmatmul.mubr.bf16.gmra.mrb[0].mxu0 %v443
  %v647 = vpop.f32.mrb[0].mxu0
  %v648 = vadd.f32 0.0, %v647
  %v649 = vpop.f32.mrb[0].mxu0
  %v650 = vpop.f32.mrb[0].mxu0
  %v651 = vpop.f32.mrb[0].mxu0
  %652 = vdwg.mxu0
  %v653 = vadd.f32 %v440, %v607
  %v654 = vxor.u32 %v653, 2147483648
  %v655 = vmul.f32 %v654, 1.442695
  %v656 = vpow.pop %v655
  %v657 = vadd.f32 %v656, 1.0
  %v658 = vrcp.pop %v657
  %v659 = vmul.f32 1.0, %v658
  %v660 = vadd.f32 %v441, %v609
  %v661 = vxor.u32 %v660, 2147483648
  %v662 = vmul.f32 %v661, 1.442695
  %v663 = vpow.pop %v662
  %v664 = vadd.f32 %v663, 1.0
  %v665 = vrcp.pop %v664
  %v666 = vmul.f32 1.0, %v665
  %v667 = vadd.f32 %v648, %v435
  %v668 = vmul.f32 %v659, %v667
  %v669 = vadd.f32 %v442, %v668
  %v670 = vtanh.pop %v669
  %v671 = vsub.f32 %v397, %v670
  %v672 = vmul.f32 %v666, %v671
  %v673 = vadd.f32 %v670, %v672
  %v674 = vpack.c.bf16 %v673, %v673
  %675 = vst [vmem:[%s5] sm:$0xf] %v674
  %s676 = smul.u32 1, 3
  %s677 = smul.addr %s676, 8
  %s678 = scalar_lea.vmem [#allocation3], %s677
  %v679 = vld [vmem:[%s678] sm:$0xff]
  %v680 = vld [vmem:[%s678 + $0x8] sm:$0xff]
  %v681 = vld [vmem:[%s678 + $0x10] sm:$0xff]
  %682 = vmatprep.subr.bf16.mxu0 %v525
  %683 = vmatpush1.bf16.msra.mxu0 %v524
  %684 = vmatprep.subr.bf16.mxu0 %v528
  %685 = vmatpush1.bf16.msra.mxu0 %v527
  %686 = vmatprep.subr.bf16.mxu0 %v531
  %687 = vmatpush1.bf16.msra.mxu0 %v530
  %688 = vmatprep.subr.bf16.mxu0 %v534
  %689 = vmatpush1.bf16.msra.mxu0 %v533
  %690 = vmatprep.subr.bf16.mxu0 %v537
  %691 = vmatpush1.bf16.msra.mxu0 %v536
  %692 = vmatprep.subr.bf16.mxu0 %v540
  %693 = vmatpush1.bf16.msra.mxu0 %v539
  %694 = vmatprep.subr.bf16.mxu0 %v543
  %695 = vmatpush1.bf16.msra.mxu0 %v542
  %696 = vmatprep.subr.bf16.mxu0 %v546
  %697 = vmatpush1.bf16.msra.mxu0 %v545
  %698 = vmatprep.subr.bf16.mxu0 0
  %699 = vmatpush1.bf16.msra.mxu0 0
  %700 = vmatprep.subr.bf16.mxu0 0
  %701 = vmatpush1.bf16.msra.mxu0 0
  %702 = vmatprep.subr.bf16.mxu0 0
  %703 = vmatpush1.bf16.msra.mxu0 0
  %704 = vmatprep.subr.bf16.mxu0 0
  %705 = vmatpush1.bf16.msra.mxu0 0
  %706 = vmatprep.subr.bf16.mxu0 0
  %707 = vmatpush1.bf16.msra.mxu0 0
  %708 = vmatprep.subr.bf16.mxu0 0
  %709 = vmatpush1.bf16.msra.mxu0 0
  %710 = vmatprep.subr.bf16.mxu0 0
  %711 = vmatpush1.bf16.msra.mxu0 0
  %712 = vmatprep.subr.bf16.mxu0 0
  %713 = vmatpush1.bf16.msra.mxu0 0
  %714 = vmatprep.mubr.bf16.mxu0 0
  %715 = vmatmul.mubr.bf16.gmra.mrb[0].mxu0 %v674
  %v716 = vpop.f32.mrb[0].mxu0
  %v717 = vadd.f32 0.0, %v716
  %v718 = vpop.f32.mrb[0].mxu0
  %v719 = vadd.f32 0.0, %v718
  %v720 = vpop.f32.mrb[0].mxu0
  %v721 = vpop.f32.mrb[0].mxu0
  %722 = vdwg.mxu0
  %723 = vmatprep.subr.bf16.mxu0 0
  %724 = vmatpush1.bf16.msra.mxu0 %v526
  %725 = vmatprep.subr.bf16.mxu0 0
  %726 = vmatpush1.bf16.msra.mxu0 %v529
  %727 = vmatprep.subr.bf16.mxu0 0
  %728 = vmatpush1.bf16.msra.mxu0 %v532
  %729 = vmatprep.subr.bf16.mxu0 0
  %730 = vmatpush1.bf16.msra.mxu0 %v535
  %731 = vmatprep.subr.bf16.mxu0 0
  %732 = vmatpush1.bf16.msra.mxu0 %v538
  %733 = vmatprep.subr.bf16.mxu0 0
  %734 = vmatpush1.bf16.msra.mxu0 %v541
  %735 = vmatprep.subr.bf16.mxu0 0
  %736 = vmatpush1.bf16.msra.mxu0 %v544
  %737 = vmatprep.subr.bf16.mxu0 0
  %738 = vmatpush1.bf16.msra.mxu0 %v547
  %739 = vmatprep.subr.bf16.mxu0 0
  %740 = vmatpush1.bf16.msra.mxu0 0
  %741 = vmatprep.subr.bf16.mxu0 0
  %742 = vmatpush1.bf16.msra.mxu0 0
  %743 = vmatprep.subr.bf16.mxu0 0
  %744 = vmatpush1.bf16.msra.mxu0 0
  %745 = vmatprep.subr.bf16.mxu0 0
  %746 = vmatpush1.bf16.msra.mxu0 0
  %747 = vmatprep.subr.bf16.mxu0 0
  %748 = vmatpush1.bf16.msra.mxu0 0
  %749 = vmatprep.subr.bf16.mxu0 0
  %750 = vmatpush1.bf16.msra.mxu0 0
  %751 = vmatprep.subr.bf16.mxu0 0
  %752 = vmatpush1.bf16.msra.mxu0 0
  %753 = vmatprep.subr.bf16.mxu0 0
  %754 = vmatpush1.bf16.msra.mxu0 0
  %755 = vmatprep.mubr.bf16.mxu0 0
  %756 = vmatmul.mubr.bf16.gmra.mrb[0].mxu0 %v674
  %v757 = vpop.f32.mrb[0].mxu0
  %v758 = vadd.f32 0.0, %v757
  %v759 = vpop.f32.mrb[0].mxu0
  %v760 = vpop.f32.mrb[0].mxu0
  %v761 = vpop.f32.mrb[0].mxu0
  %762 = vdwg.mxu0
  %v763 = vadd.f32 %v679, %v717
  %v764 = vxor.u32 %v763, 2147483648
  %v765 = vmul.f32 %v764, 1.442695
  %v766 = vpow.pop %v765
  %v767 = vadd.f32 %v766, 1.0
  %v768 = vrcp.pop %v767
  %v769 = vmul.f32 1.0, %v768
  %v770 = vadd.f32 %v680, %v719
  %v771 = vxor.u32 %v770, 2147483648
  %v772 = vmul.f32 %v771, 1.442695
  %v773 = vpow.pop %v772
  %v774 = vadd.f32 %v773, 1.0
  %v775 = vrcp.pop %v774
  %v776 = vmul.f32 1.0, %v775
  %v777 = vadd.f32 %v758, %v435
  %v778 = vmul.f32 %v769, %v777
  %v779 = vadd.f32 %v681, %v778
  %v780 = vtanh.pop %v779
  %v781 = vsub.f32 %v673, %v780
  %v782 = vmul.f32 %v776, %v781
  %v783 = vadd.f32 %v780, %v782
  %v784 = vpack.c.bf16 %v783, %v783
  %s785 = scalar_lea.vmem %s5, 4
  %786 = vst [vmem:[%s785] sm:$0xf] %v784
  %s787 = smul.u32 2, 3
  %s788 = smul.addr %s787, 8
  %s789 = scalar_lea.vmem [#allocation3], %s788
  %v790 = vld [vmem:[%s789] sm:$0xff]
  %v791 = vld [vmem:[%s789 + $0x8] sm:$0xff]
  %v792 = vld [vmem:[%s789 + $0x10] sm:$0xff]
  %793 = vmatprep.subr.bf16.mxu0 %v525
  %794 = vmatpush1.bf16.msra.mxu0 %v524
  %795 = vmatprep.subr.bf16.mxu0 %v528
  %796 = vmatpush1.bf16.msra.mxu0 %v527
  %797 = vmatprep.subr.bf16.mxu0 %v531
  %798 = vmatpush1.bf16.msra.mxu0 %v530
  %799 = vmatprep.subr.bf16.mxu0 %v534
  %800 = vmatpush1.bf16.msra.mxu0 %v533
  %801 = vmatprep.subr.bf16.mxu0 %v537
  %802 = vmatpush1.bf16.msra.mxu0 %v536
  %803 = vmatprep.subr.bf16.mxu0 %v540
  %804 = vmatpush1.bf16.msra.mxu0 %v539
  %805 = vmatprep.subr.bf16.mxu0 %v543
  %806 = vmatpush1.bf16.msra.mxu0 %v542
  %807 = vmatprep.subr.bf16.mxu0 %v546
  %808 = vmatpush1.bf16.msra.mxu0 %v545
  %809 = vmatprep.subr.bf16.mxu0 0
  %810 = vmatpush1.bf16.msra.mxu0 0
  %811 = vmatprep.subr.bf16.mxu0 0
  %812 = vmatpush1.bf16.msra.mxu0 0
  %813 = vmatprep.subr.bf16.mxu0 0
  %814 = vmatpush1.bf16.msra.mxu0 0
  %815 = vmatprep.subr.bf16.mxu0 0
  %816 = vmatpush1.bf16.msra.mxu0 0
  %817 = vmatprep.subr.bf16.mxu0 0
  %818 = vmatpush1.bf16.msra.mxu0 0
  %819 = vmatprep.subr.bf16.mxu0 0
  %820 = vmatpush1.bf16.msra.mxu0 0
  %821 = vmatprep.subr.bf16.mxu0 0
  %822 = vmatpush1.bf16.msra.mxu0 0
  %823 = vmatprep.subr.bf16.mxu0 0
  %824 = vmatpush1.bf16.msra.mxu0 0
  %825 = vmatprep.mubr.bf16.mxu0 0
  %826 = vmatmul.mubr.bf16.gmra.mrb[0].mxu0 %v784
  %v827 = vpop.f32.mrb[0].mxu0
  %v828 = vadd.f32 0.0, %v827
  %v829 = vpop.f32.mrb[0].mxu0
  %v830 = vadd.f32 0.0, %v829
  %v831 = vpop.f32.mrb[0].mxu0
  %v832 = vpop.f32.mrb[0].mxu0
  %833 = vdwg.mxu0
  %834 = vmatprep.subr.bf16.mxu0 0
  %835 = vmatpush1.bf16.msra.mxu0 %v526
  %836 = vmatprep.subr.bf16.mxu0 0
  %837 = vmatpush1.bf16.msra.mxu0 %v529
  %838 = vmatprep.subr.bf16.mxu0 0
  %839 = vmatpush1.bf16.msra.mxu0 %v532
  %840 = vmatprep.subr.bf16.mxu0 0
  %841 = vmatpush1.bf16.msra.mxu0 %v535
  %842 = vmatprep.subr.bf16.mxu0 0
  %843 = vmatpush1.bf16.msra.mxu0 %v538
  %844 = vmatprep.subr.bf16.mxu0 0
  %845 = vmatpush1.bf16.msra.mxu0 %v541
  %846 = vmatprep.subr.bf16.mxu0 0
  %847 = vmatpush1.bf16.msra.mxu0 %v544
  %848 = vmatprep.subr.bf16.mxu0 0
  %849 = vmatpush1.bf16.msra.mxu0 %v547
  %850 = vmatprep.subr.bf16.mxu0 0
  %851 = vmatpush1.bf16.msra.mxu0 0
  %852 = vmatprep.subr.bf16.mxu0 0
  %853 = vmatpush1.bf16.msra.mxu0 0
  %854 = vmatprep.subr.bf16.mxu0 0
  %855 = vmatpush1.bf16.msra.mxu0 0
  %856 = vmatprep.subr.bf16.mxu0 0
  %857 = vmatpush1.bf16.msra.mxu0 0
  %858 = vmatprep.subr.bf16.mxu0 0
  %859 = vmatpush1.bf16.msra.mxu0 0
  %860 = vmatprep.subr.bf16.mxu0 0
  %861 = vmatpush1.bf16.msra.mxu0 0
  %862 = vmatprep.subr.bf16.mxu0 0
  %863 = vmatpush1.bf16.msra.mxu0 0
  %864 = vmatprep.subr.bf16.mxu0 0
  %865 = vmatpush1.bf16.msra.mxu0 0
  %866 = vmatprep.mubr.bf16.mxu0 0
  %867 = vmatmul.mubr.bf16.gmra.mrb[0].mxu0 %v784
  %v868 = vpop.f32.mrb[0].mxu0
  %v869 = vadd.f32 0.0, %v868
  %v870 = vpop.f32.mrb[0].mxu0
  %v871 = vpop.f32.mrb[0].mxu0
  %v872 = vpop.f32.mrb[0].mxu0
  %873 = vdwg.mxu0
  %v874 = vadd.f32 %v790, %v828
  %v875 = vxor.u32 %v874, 2147483648
  %v876 = vmul.f32 %v875, 1.442695
  %v877 = vpow.pop %v876
  %v878 = vadd.f32 %v877, 1.0
  %v879 = vrcp.pop %v878
  %v880 = vmul.f32 1.0, %v879
  %v881 = vadd.f32 %v791, %v830
  %v882 = vxor.u32 %v881, 2147483648
  %v883 = vmul.f32 %v882, 1.442695
  %v884 = vpow.pop %v883
  %v885 = vadd.f32 %v884, 1.0
  %v886 = vrcp.pop %v885
  %v887 = vmul.f32 1.0, %v886
  %v888 = vadd.f32 %v869, %v435
  %v889 = vmul.f32 %v880, %v888
  %v890 = vadd.f32 %v792, %v889
  %v891 = vtanh.pop %v890
  %v892 = vsub.f32 %v783, %v891
  %v893 = vmul.f32 %v887, %v892
  %v894 = vadd.f32 %v891, %v893
  %v895 = vpack.c.bf16 %v894, %v894
  %s896 = scalar_lea.vmem %s5, 8
  %897 = vst [vmem:[%s896] sm:$0xf] %v895
  %s898 = smul.u32 3, 3
  %s899 = smul.addr %s898, 8
  %s900 = scalar_lea.vmem [#allocation3], %s899
  %v901 = vld [vmem:[%s900] sm:$0xff]
  %v902 = vld [vmem:[%s900 + $0x8] sm:$0xff]
  %v903 = vld [vmem:[%s900 + $0x10] sm:$0xff]
  %904 = vmatprep.subr.bf16.mxu0 %v525
  %905 = vmatpush1.bf16.msra.mxu0 %v524
  %906 = vmatprep.subr.bf16.mxu0 %v528
  %907 = vmatpush1.bf16.msra.mxu0 %v527
  %908 = vmatprep.subr.bf16.mxu0 %v531
  %909 = vmatpush1.bf16.msra.mxu0 %v530
  %910 = vmatprep.subr.bf16.mxu0 %v534
  %911 = vmatpush1.bf16.msra.mxu0 %v533
  %912 = vmatprep.subr.bf16.mxu0 %v537
  %913 = vmatpush1.bf16.msra.mxu0 %v536
  %914 = vmatprep.subr.bf16.mxu0 %v540
  %915 = vmatpush1.bf16.msra.mxu0 %v539
  %916 = vmatprep.subr.bf16.mxu0 %v543
  %917 = vmatpush1.bf16.msra.mxu0 %v542
  %918 = vmatprep.subr.bf16.mxu0 %v546
  %919 = vmatpush1.bf16.msra.mxu0 %v545
  %920 = vmatprep.subr.bf16.mxu0 0
  %921 = vmatpush1.bf16.msra.mxu0 0
  %922 = vmatprep.subr.bf16.mxu0 0
  %923 = vmatpush1.bf16.msra.mxu0 0
  %924 = vmatprep.subr.bf16.mxu0 0
  %925 = vmatpush1.bf16.msra.mxu0 0
  %926 = vmatprep.subr.bf16.mxu0 0
  %927 = vmatpush1.bf16.msra.mxu0 0
  %928 = vmatprep.subr.bf16.mxu0 0
  %929 = vmatpush1.bf16.msra.mxu0 0
  %930 = vmatprep.subr.bf16.mxu0 0
  %931 = vmatpush1.bf16.msra.mxu0 0
  %932 = vmatprep.subr.bf16.mxu0 0
  %933 = vmatpush1.bf16.msra.mxu0 0
  %934 = vmatprep.subr.bf16.mxu0 0
  %935 = vmatpush1.bf16.msra.mxu0 0
  %936 = vmatprep.mubr.bf16.mxu0 0
  %937 = vmatmul.mubr.bf16.gmra.mrb[0].mxu0 %v895
  %v938 = vpop.f32.mrb[0].mxu0
  %v939 = vadd.f32 0.0, %v938
  %v940 = vpop.f32.mrb[0].mxu0
  %v941 = vadd.f32 0.0, %v940
  %v942 = vpop.f32.mrb[0].mxu0
  %v943 = vpop.f32.mrb[0].mxu0
  %944 = vdwg.mxu0
  %945 = vmatprep.subr.bf16.mxu0 0
  %946 = vmatpush1.bf16.msra.mxu0 %v526
  %947 = vmatprep.subr.bf16.mxu0 0
  %948 = vmatpush1.bf16.msra.mxu0 %v529
  %949 = vmatprep.subr.bf16.mxu0 0
  %950 = vmatpush1.bf16.msra.mxu0 %v532
  %951 = vmatprep.subr.bf16.mxu0 0
  %952 = vmatpush1.bf16.msra.mxu0 %v535
  %953 = vmatprep.subr.bf16.mxu0 0
  %954 = vmatpush1.bf16.msra.mxu0 %v538
  %955 = vmatprep.subr.bf16.mxu0 0
  %956 = vmatpush1.bf16.msra.mxu0 %v541
  %957 = vmatprep.subr.bf16.mxu0 0
  %958 = vmatpush1.bf16.msra.mxu0 %v544
  %959 = vmatprep.subr.bf16.mxu0 0
  %960 = vmatpush1.bf16.msra.mxu0 %v547
  %961 = vmatprep.subr.bf16.mxu0 0
  %962 = vmatpush1.bf16.msra.mxu0 0
  %963 = vmatprep.subr.bf16.mxu0 0
  %964 = vmatpush1.bf16.msra.mxu0 0
  %965 = vmatprep.subr.bf16.mxu0 0
  %966 = vmatpush1.bf16.msra.mxu0 0
  %967 = vmatprep.subr.bf16.mxu0 0
  %968 = vmatpush1.bf16.msra.mxu0 0
  %969 = vmatprep.subr.bf16.mxu0 0
  %970 = vmatpush1.bf16.msra.mxu0 0
  %971 = vmatprep.subr.bf16.mxu0 0
  %972 = vmatpush1.bf16.msra.mxu0 0
  %973 = vmatprep.subr.bf16.mxu0 0
  %974 = vmatpush1.bf16.msra.mxu0 0
  %975 = vmatprep.subr.bf16.mxu0 0
  %976 = vmatpush1.bf16.msra.mxu0 0
  %977 = vmatprep.mubr.bf16.mxu0 0
  %978 = vmatmul.mubr.bf16.gmra.mrb[0].mxu0 %v895
  %v979 = vpop.f32.mrb[0].mxu0
  %v980 = vadd.f32 0.0, %v979
  %v981 = vpop.f32.mrb[0].mxu0
  %v982 = vpop.f32.mrb[0].mxu0
  %v983 = vpop.f32.mrb[0].mxu0
  %984 = vdwg.mxu0
  %v985 = vadd.f32 %v901, %v939
  %v986 = vxor.u32 %v985, 2147483648
  %v987 = vmul.f32 %v986, 1.442695
  %v988 = vpow.pop %v987
  %v989 = vadd.f32 %v988, 1.0
  %v990 = vrcp.pop %v989
  %v991 = vmul.f32 1.0, %v990
  %v992 = vadd.f32 %v902, %v941
  %v993 = vxor.u32 %v992, 2147483648
  %v994 = vmul.f32 %v993, 1.442695
  %v995 = vpow.pop %v994
  %v996 = vadd.f32 %v995, 1.0
  %v997 = vrcp.pop %v996
  %v998 = vmul.f32 1.0, %v997
  %v999 = vadd.f32 %v980, %v435
  %v1000 = vmul.f32 %v991, %v999
  %v1001 = vadd.f32 %v903, %v1000
  %v1002 = vtanh.pop %v1001
  %v1003 = vsub.f32 %v894, %v1002
  %v1004 = vmul.f32 %v998, %v1003
  %v1005 = vadd.f32 %v1002, %v1004
  %v1006 = vpack.c.bf16 %v1005, %v1005
  %s1007 = scalar_lea.vmem %s5, 12
  %1008 = vst [vmem:[%s1007] sm:$0xf] %v1006
  %s1009 = smul.u32 4, 3
  %s1010 = smul.addr %s1009, 8
  %s1011 = scalar_lea.vmem [#allocation3], %s1010
  %v1012 = vld [vmem:[%s1011] sm:$0xff]
  %v1013 = vld [vmem:[%s1011 + $0x8] sm:$0xff]
  %v1014 = vld [vmem:[%s1011 + $0x10] sm:$0xff]
  %1015 = vmatprep.subr.bf16.mxu0 %v525
  %1016 = vmatpush1.bf16.msra.mxu0 %v524
  %1017 = vmatprep.subr.bf16.mxu0 %v528
  %1018 = vmatpush1.bf16.msra.mxu0 %v527
  %1019 = vmatprep.subr.bf16.mxu0 %v531
  %1020 = vmatpush1.bf16.msra.mxu0 %v530
  %1021 = vmatprep.subr.bf16.mxu0 %v534
  %1022 = vmatpush1.bf16.msra.mxu0 %v533
  %1023 = vmatprep.subr.bf16.mxu0 %v537
  %1024 = vmatpush1.bf16.msra.mxu0 %v536
  %1025 = vmatprep.subr.bf16.mxu0 %v540
  %1026 = vmatpush1.bf16.msra.mxu0 %v539
  %1027 = vmatprep.subr.bf16.mxu0 %v543
  %1028 = vmatpush1.bf16.msra.mxu0 %v542
  %1029 = vmatprep.subr.bf16.mxu0 %v546
  %1030 = vmatpush1.bf16.msra.mxu0 %v545
  %1031 = vmatprep.subr.bf16.mxu0 0
  %1032 = vmatpush1.bf16.msra.mxu0 0
  %1033 = vmatprep.subr.bf16.mxu0 0
  %1034 = vmatpush1.bf16.msra.mxu0 0
  %1035 = vmatprep.subr.bf16.mxu0 0
  %1036 = vmatpush1.bf16.msra.mxu0 0
  %1037 = vmatprep.subr.bf16.mxu0 0
  %1038 = vmatpush1.bf16.msra.mxu0 0
  %1039 = vmatprep.subr.bf16.mxu0 0
  %1040 = vmatpush1.bf16.msra.mxu0 0
  %1041 = vmatprep.subr.bf16.mxu0 0
  %1042 = vmatpush1.bf16.msra.mxu0 0
  %1043 = vmatprep.subr.bf16.mxu0 0
  %1044 = vmatpush1.bf16.msra.mxu0 0
  %1045 = vmatprep.subr.bf16.mxu0 0
  %1046 = vmatpush1.bf16.msra.mxu0 0
  %1047 = vmatprep.mubr.bf16.mxu0 0
  %1048 = vmatmul.mubr.bf16.gmra.mrb[0].mxu0 %v1006
  %v1049 = vpop.f32.mrb[0].mxu0
  %v1050 = vadd.f32 0.0, %v1049
  %v1051 = vpop.f32.mrb[0].mxu0
  %v1052 = vadd.f32 0.0, %v1051
  %v1053 = vpop.f32.mrb[0].mxu0
  %v1054 = vpop.f32.mrb[0].mxu0
  %1055 = vdwg.mxu0
  %1056 = vmatprep.subr.bf16.mxu0 0
  %1057 = vmatpush1.bf16.msra.mxu0 %v526
  %1058 = vmatprep.subr.bf16.mxu0 0
  %1059 = vmatpush1.bf16.msra.mxu0 %v529
  %1060 = vmatprep.subr.bf16.mxu0 0
  %1061 = vmatpush1.bf16.msra.mxu0 %v532
  %1062 = vmatprep.subr.bf16.mxu0 0
  %1063 = vmatpush1.bf16.msra.mxu0 %v535
  %1064 = vmatprep.subr.bf16.mxu0 0
  %1065 = vmatpush1.bf16.msra.mxu0 %v538
  %1066 = vmatprep.subr.bf16.mxu0 0
  %1067 = vmatpush1.bf16.msra.mxu0 %v541
  %1068 = vmatprep.subr.bf16.mxu0 0
  %1069 = vmatpush1.bf16.msra.mxu0 %v544
  %1070 = vmatprep.subr.bf16.mxu0 0
  %1071 = vmatpush1.bf16.msra.mxu0 %v547
  %1072 = vmatprep.subr.bf16.mxu0 0
  %1073 = vmatpush1.bf16.msra.mxu0 0
  %1074 = vmatprep.subr.bf16.mxu0 0
  %1075 = vmatpush1.bf16.msra.mxu0 0
  %1076 = vmatprep.subr.bf16.mxu0 0
  %1077 = vmatpush1.bf16.msra.mxu0 0
  %1078 = vmatprep.subr.bf16.mxu0 0
  %1079 = vmatpush1.bf16.msra.mxu0 0
  %1080 = vmatprep.subr.bf16.mxu0 0
  %1081 = vmatpush1.bf16.msra.mxu0 0
  %1082 = vmatprep.subr.bf16.mxu0 0
  %1083 = vmatpush1.bf16.msra.mxu0 0
  %1084 = vmatprep.subr.bf16.mxu0 0
  %1085 = vmatpush1.bf16.msra.mxu0 0
  %1086 = vmatprep.subr.bf16.mxu0 0
  %1087 = vmatpush1.bf16.msra.mxu0 0
  %1088 = vmatprep.mubr.bf16.mxu0 0
  %1089 = vmatmul.mubr.bf16.gmra.mrb[0].mxu0 %v1006
  %v1090 = vpop.f32.mrb[0].mxu0
  %v1091 = vadd.f32 0.0, %v1090
  %v1092 = vpop.f32.mrb[0].mxu0
  %v1093 = vpop.f32.mrb[0].mxu0
  %v1094 = vpop.f32.mrb[0].mxu0
  %1095 = vdwg.mxu0
  %v1096 = vadd.f32 %v1012, %v1050
  %v1097 = vxor.u32 %v1096, 2147483648
  %v1098 = vmul.f32 %v1097, 1.442695
  %v1099 = vpow.pop %v1098
  %v1100 = vadd.f32 %v1099, 1.0
  %v1101 = vrcp.pop %v1100
  %v1102 = vmul.f32 1.0, %v1101
  %v1103 = vadd.f32 %v1013, %v1052
  %v1104 = vxor.u32 %v1103, 2147483648
  %v1105 = vmul.f32 %v1104, 1.442695
  %v1106 = vpow.pop %v1105
  %v1107 = vadd.f32 %v1106, 1.0
  %v1108 = vrcp.pop %v1107
  %v1109 = vmul.f32 1.0, %v1108
  %v1110 = vadd.f32 %v1091, %v435
  %v1111 = vmul.f32 %v1102, %v1110
  %v1112 = vadd.f32 %v1014, %v1111
  %v1113 = vtanh.pop %v1112
  %v1114 = vsub.f32 %v1005, %v1113
  %v1115 = vmul.f32 %v1109, %v1114
  %v1116 = vadd.f32 %v1113, %v1115
  %v1117 = vpack.c.bf16 %v1116, %v1116
  %s1118 = scalar_lea.vmem %s5, 16
  %1119 = vst [vmem:[%s1118] sm:$0xf] %v1117
  %s1120 = smul.u32 5, 3
  %s1121 = smul.addr %s1120, 8
  %s1122 = scalar_lea.vmem [#allocation3], %s1121
  %v1123 = vld [vmem:[%s1122] sm:$0xff]
  %v1124 = vld [vmem:[%s1122 + $0x8] sm:$0xff]
  %v1125 = vld [vmem:[%s1122 + $0x10] sm:$0xff]
  %1126 = vmatprep.subr.bf16.mxu0 %v525
  %1127 = vmatpush1.bf16.msra.mxu0 %v524
  %1128 = vmatprep.subr.bf16.mxu0 %v528
  %1129 = vmatpush1.bf16.msra.mxu0 %v527
  %1130 = vmatprep.subr.bf16.mxu0 %v531
  %1131 = vmatpush1.bf16.msra.mxu0 %v530
  %1132 = vmatprep.subr.bf16.mxu0 %v534
  %1133 = vmatpush1.bf16.msra.mxu0 %v533
  %1134 = vmatprep.subr.bf16.mxu0 %v537
  %1135 = vmatpush1.bf16.msra.mxu0 %v536
  %1136 = vmatprep.subr.bf16.mxu0 %v540
  %1137 = vmatpush1.bf16.msra.mxu0 %v539
  %1138 = vmatprep.subr.bf16.mxu0 %v543
  %1139 = vmatpush1.bf16.msra.mxu0 %v542
  %1140 = vmatprep.subr.bf16.mxu0 %v546
  %1141 = vmatpush1.bf16.msra.mxu0 %v545
  %1142 = vmatprep.subr.bf16.mxu0 0
  %1143 = vmatpush1.bf16.msra.mxu0 0
  %1144 = vmatprep.subr.bf16.mxu0 0
  %1145 = vmatpush1.bf16.msra.mxu0 0
  %1146 = vmatprep.subr.bf16.mxu0 0
  %1147 = vmatpush1.bf16.msra.mxu0 0
  %1148 = vmatprep.subr.bf16.mxu0 0
  %1149 = vmatpush1.bf16.msra.mxu0 0
  %1150 = vmatprep.subr.bf16.mxu0 0
  %1151 = vmatpush1.bf16.msra.mxu0 0
  %1152 = vmatprep.subr.bf16.mxu0 0
  %1153 = vmatpush1.bf16.msra.mxu0 0
  %1154 = vmatprep.subr.bf16.mxu0 0
  %1155 = vmatpush1.bf16.msra.mxu0 0
  %1156 = vmatprep.subr.bf16.mxu0 0
  %1157 = vmatpush1.bf16.msra.mxu0 0
  %1158 = vmatprep.mubr.bf16.mxu0 0
  %1159 = vmatmul.mubr.bf16.gmra.mrb[0].mxu0 %v1117
  %v1160 = vpop.f32.mrb[0].mxu0
  %v1161 = vadd.f32 0.0, %v1160
  %v1162 = vpop.f32.mrb[0].mxu0
  %v1163 = vadd.f32 0.0, %v1162
  %v1164 = vpop.f32.mrb[0].mxu0
  %v1165 = vpop.f32.mrb[0].mxu0
  %1166 = vdwg.mxu0
  %1167 = vmatprep.subr.bf16.mxu0 0
  %1168 = vmatpush1.bf16.msra.mxu0 %v526
  %1169 = vmatprep.subr.bf16.mxu0 0
  %1170 = vmatpush1.bf16.msra.mxu0 %v529
  %1171 = vmatprep.subr.bf16.mxu0 0
  %1172 = vmatpush1.bf16.msra.mxu0 %v532
  %1173 = vmatprep.subr.bf16.mxu0 0
  %1174 = vmatpush1.bf16.msra.mxu0 %v535
  %1175 = vmatprep.subr.bf16.mxu0 0
  %1176 = vmatpush1.bf16.msra.mxu0 %v538
  %1177 = vmatprep.subr.bf16.mxu0 0
  %1178 = vmatpush1.bf16.msra.mxu0 %v541
  %1179 = vmatprep.subr.bf16.mxu0 0
  %1180 = vmatpush1.bf16.msra.mxu0 %v544
  %1181 = vmatprep.subr.bf16.mxu0 0
  %1182 = vmatpush1.bf16.msra.mxu0 %v547
  %1183 = vmatprep.subr.bf16.mxu0 0
  %1184 = vmatpush1.bf16.msra.mxu0 0
  %1185 = vmatprep.subr.bf16.mxu0 0
  %1186 = vmatpush1.bf16.msra.mxu0 0
  %1187 = vmatprep.subr.bf16.mxu0 0
  %1188 = vmatpush1.bf16.msra.mxu0 0
  %1189 = vmatprep.subr.bf16.mxu0 0
  %1190 = vmatpush1.bf16.msra.mxu0 0
  %1191 = vmatprep.subr.bf16.mxu0 0
  %1192 = vmatpush1.bf16.msra.mxu0 0
  %1193 = vmatprep.subr.bf16.mxu0 0
  %1194 = vmatpush1.bf16.msra.mxu0 0
  %1195 = vmatprep.subr.bf16.mxu0 0
  %1196 = vmatpush1.bf16.msra.mxu0 0
  %1197 = vmatprep.subr.bf16.mxu0 0
  %1198 = vmatpush1.bf16.msra.mxu0 0
  %1199 = vmatprep.mubr.bf16.mxu0 0
  %1200 = vmatmul.mubr.bf16.gmra.mrb[0].mxu0 %v1117
  %v1201 = vpop.f32.mrb[0].mxu0
  %v1202 = vadd.f32 0.0, %v1201
  %v1203 = vpop.f32.mrb[0].mxu0
  %v1204 = vpop.f32.mrb[0].mxu0
  %v1205 = vpop.f32.mrb[0].mxu0
  %1206 = vdwg.mxu0
  %v1207 = vadd.f32 %v1123, %v1161
  %v1208 = vxor.u32 %v1207, 2147483648
  %v1209 = vmul.f32 %v1208, 1.442695
  %v1210 = vpow.pop %v1209
  %v1211 = vadd.f32 %v1210, 1.0
  %v1212 = vrcp.pop %v1211
  %v1213 = vmul.f32 1.0, %v1212
  %v1214 = vadd.f32 %v1124, %v1163
  %v1215 = vxor.u32 %v1214, 2147483648
  %v1216 = vmul.f32 %v1215, 1.442695
  %v1217 = vpow.pop %v1216
  %v1218 = vadd.f32 %v1217, 1.0
  %v1219 = vrcp.pop %v1218
  %v1220 = vmul.f32 1.0, %v1219
  %v1221 = vadd.f32 %v1202, %v435
  %v1222 = vmul.f32 %v1213, %v1221
  %v1223 = vadd.f32 %v1125, %v1222
  %v1224 = vtanh.pop %v1223
  %v1225 = vsub.f32 %v1116, %v1224
  %v1226 = vmul.f32 %v1220, %v1225
  %v1227 = vadd.f32 %v1224, %v1226
  %v1228 = vpack.c.bf16 %v1227, %v1227
  %s1229 = scalar_lea.vmem %s5, 20
  %1230 = vst [vmem:[%s1229] sm:$0xf] %v1228
  %s1231 = smul.u32 6, 3
  %s1232 = smul.addr %s1231, 8
  %s1233 = scalar_lea.vmem [#allocation3], %s1232
  %v1234 = vld [vmem:[%s1233] sm:$0xff]
  %v1235 = vld [vmem:[%s1233 + $0x8] sm:$0xff]
  %v1236 = vld [vmem:[%s1233 + $0x10] sm:$0xff]
  %1237 = vmatprep.subr.bf16.mxu0 %v525
  %1238 = vmatpush1.bf16.msra.mxu0 %v524
  %1239 = vmatprep.subr.bf16.mxu0 %v528
  %1240 = vmatpush1.bf16.msra.mxu0 %v527
  %1241 = vmatprep.subr.bf16.mxu0 %v531
  %1242 = vmatpush1.bf16.msra.mxu0 %v530
  %1243 = vmatprep.subr.bf16.mxu0 %v534
  %1244 = vmatpush1.bf16.msra.mxu0 %v533
  %1245 = vmatprep.subr.bf16.mxu0 %v537
  %1246 = vmatpush1.bf16.msra.mxu0 %v536
  %1247 = vmatprep.subr.bf16.mxu0 %v540
  %1248 = vmatpush1.bf16.msra.mxu0 %v539
  %1249 = vmatprep.subr.bf16.mxu0 %v543
  %1250 = vmatpush1.bf16.msra.mxu0 %v542
  %1251 = vmatprep.subr.bf16.mxu0 %v546
  %1252 = vmatpush1.bf16.msra.mxu0 %v545
  %1253 = vmatprep.subr.bf16.mxu0 0
  %1254 = vmatpush1.bf16.msra.mxu0 0
  %1255 = vmatprep.subr.bf16.mxu0 0
  %1256 = vmatpush1.bf16.msra.mxu0 0
  %1257 = vmatprep.subr.bf16.mxu0 0
  %1258 = vmatpush1.bf16.msra.mxu0 0
  %1259 = vmatprep.subr.bf16.mxu0 0
  %1260 = vmatpush1.bf16.msra.mxu0 0
  %1261 = vmatprep.subr.bf16.mxu0 0
  %1262 = vmatpush1.bf16.msra.mxu0 0
  %1263 = vmatprep.subr.bf16.mxu0 0
  %1264 = vmatpush1.bf16.msra.mxu0 0
  %1265 = vmatprep.subr.bf16.mxu0 0
  %1266 = vmatpush1.bf16.msra.mxu0 0
  %1267 = vmatprep.subr.bf16.mxu0 0
  %1268 = vmatpush1.bf16.msra.mxu0 0
  %1269 = vmatprep.mubr.bf16.mxu0 0
  %1270 = vmatmul.mubr.bf16.gmra.mrb[0].mxu0 %v1228
  %v1271 = vpop.f32.mrb[0].mxu0
  %v1272 = vadd.f32 0.0, %v1271
  %v1273 = vpop.f32.mrb[0].mxu0
  %v1274 = vadd.f32 0.0, %v1273
  %v1275 = vpop.f32.mrb[0].mxu0
  %v1276 = vpop.f32.mrb[0].mxu0
  %1277 = vdwg.mxu0
  %1278 = vmatprep.subr.bf16.mxu0 0
  %1279 = vmatpush1.bf16.msra.mxu0 %v526
  %1280 = vmatprep.subr.bf16.mxu0 0
  %1281 = vmatpush1.bf16.msra.mxu0 %v529
  %1282 = vmatprep.subr.bf16.mxu0 0
  %1283 = vmatpush1.bf16.msra.mxu0 %v532
  %1284 = vmatprep.subr.bf16.mxu0 0
  %1285 = vmatpush1.bf16.msra.mxu0 %v535
  %1286 = vmatprep.subr.bf16.mxu0 0
  %1287 = vmatpush1.bf16.msra.mxu0 %v538
  %1288 = vmatprep.subr.bf16.mxu0 0
  %1289 = vmatpush1.bf16.msra.mxu0 %v541
  %1290 = vmatprep.subr.bf16.mxu0 0
  %1291 = vmatpush1.bf16.msra.mxu0 %v544
  %1292 = vmatprep.subr.bf16.mxu0 0
  %1293 = vmatpush1.bf16.msra.mxu0 %v547
  %1294 = vmatprep.subr.bf16.mxu0 0
  %1295 = vmatpush1.bf16.msra.mxu0 0
  %1296 = vmatprep.subr.bf16.mxu0 0
  %1297 = vmatpush1.bf16.msra.mxu0 0
  %1298 = vmatprep.subr.bf16.mxu0 0
  %1299 = vmatpush1.bf16.msra.mxu0 0
  %1300 = vmatprep.subr.bf16.mxu0 0
  %1301 = vmatpush1.bf16.msra.mxu0 0
  %1302 = vmatprep.subr.bf16.mxu0 0
  %1303 = vmatpush1.bf16.msra.mxu0 0
  %1304 = vmatprep.subr.bf16.mxu0 0
  %1305 = vmatpush1.bf16.msra.mxu0 0
  %1306 = vmatprep.subr.bf16.mxu0 0
  %1307 = vmatpush1.bf16.msra.mxu0 0
  %1308 = vmatprep.subr.bf16.mxu0 0
  %1309 = vmatpush1.bf16.msra.mxu0 0
  %1310 = vmatprep.mubr.bf16.mxu0 0
  %1311 = vmatmul.mubr.bf16.gmra.mrb[0].mxu0 %v1228
  %v1312 = vpop.f32.mrb[0].mxu0
  %v1313 = vadd.f32 0.0, %v1312
  %v1314 = vpop.f32.mrb[0].mxu0
  %v1315 = vpop.f32.mrb[0].mxu0
  %v1316 = vpop.f32.mrb[0].mxu0
  %1317 = vdwg.mxu0
  %v1318 = vadd.f32 %v1234, %v1272
  %v1319 = vxor.u32 %v1318, 2147483648
  %v1320 = vmul.f32 %v1319, 1.442695
  %v1321 = vpow.pop %v1320
  %v1322 = vadd.f32 %v1321, 1.0
  %v1323 = vrcp.pop %v1322
  %v1324 = vmul.f32 1.0, %v1323
  %v1325 = vadd.f32 %v1235, %v1274
  %v1326 = vxor.u32 %v1325, 2147483648
  %v1327 = vmul.f32 %v1326, 1.442695
  %v1328 = vpow.pop %v1327
  %v1329 = vadd.f32 %v1328, 1.0
  %v1330 = vrcp.pop %v1329
  %v1331 = vmul.f32 1.0, %v1330
  %v1332 = vadd.f32 %v1313, %v435
  %v1333 = vmul.f32 %v1324, %v1332
  %v1334 = vadd.f32 %v1236, %v1333
  %v1335 = vtanh.pop %v1334
  %v1336 = vsub.f32 %v1227, %v1335
  %v1337 = vmul.f32 %v1331, %v1336
  %v1338 = vadd.f32 %v1335, %v1337
  %v1339 = vpack.c.bf16 %v1338, %v1338
  %s1340 = scalar_lea.vmem %s5, 24
  %1341 = vst [vmem:[%s1340] sm:$0xf] %v1339
  %s1342 = smul.u32 7, 3
  %s1343 = smul.addr %s1342, 8
  %s1344 = scalar_lea.vmem [#allocation3], %s1343
  %v1345 = vld [vmem:[%s1344] sm:$0xff]
  %v1346 = vld [vmem:[%s1344 + $0x8] sm:$0xff]
  %v1347 = vld [vmem:[%s1344 + $0x10] sm:$0xff]
  %1348 = vmatprep.subr.bf16.mxu0 %v525
  %1349 = vmatpush1.bf16.msra.mxu0 %v524
  %1350 = vmatprep.subr.bf16.mxu0 %v528
  %1351 = vmatpush1.bf16.msra.mxu0 %v527
  %1352 = vmatprep.subr.bf16.mxu0 %v531
  %1353 = vmatpush1.bf16.msra.mxu0 %v530
  %1354 = vmatprep.subr.bf16.mxu0 %v534
  %1355 = vmatpush1.bf16.msra.mxu0 %v533
  %1356 = vmatprep.subr.bf16.mxu0 %v537
  %1357 = vmatpush1.bf16.msra.mxu0 %v536
  %1358 = vmatprep.subr.bf16.mxu0 %v540
  %1359 = vmatpush1.bf16.msra.mxu0 %v539
  %1360 = vmatprep.subr.bf16.mxu0 %v543
  %1361 = vmatpush1.bf16.msra.mxu0 %v542
  %1362 = vmatprep.subr.bf16.mxu0 %v546
  %1363 = vmatpush1.bf16.msra.mxu0 %v545
  %1364 = vmatprep.subr.bf16.mxu0 0
  %1365 = vmatpush1.bf16.msra.mxu0 0
  %1366 = vmatprep.subr.bf16.mxu0 0
  %1367 = vmatpush1.bf16.msra.mxu0 0
  %1368 = vmatprep.subr.bf16.mxu0 0
  %1369 = vmatpush1.bf16.msra.mxu0 0
  %1370 = vmatprep.subr.bf16.mxu0 0
  %1371 = vmatpush1.bf16.msra.mxu0 0
  %1372 = vmatprep.subr.bf16.mxu0 0
  %1373 = vmatpush1.bf16.msra.mxu0 0
  %1374 = vmatprep.subr.bf16.mxu0 0
  %1375 = vmatpush1.bf16.msra.mxu0 0
  %1376 = vmatprep.subr.bf16.mxu0 0
  %1377 = vmatpush1.bf16.msra.mxu0 0
  %1378 = vmatprep.subr.bf16.mxu0 0
  %1379 = vmatpush1.bf16.msra.mxu0 0
  %1380 = vmatprep.mubr.bf16.mxu0 0
  %1381 = vmatmul.mubr.bf16.gmra.mrb[0].mxu0 %v1339
  %v1382 = vpop.f32.mrb[0].mxu0
  %v1383 = vadd.f32 0.0, %v1382
  %v1384 = vpop.f32.mrb[0].mxu0
  %v1385 = vadd.f32 0.0, %v1384
  %v1386 = vpop.f32.mrb[0].mxu0
  %v1387 = vpop.f32.mrb[0].mxu0
  %1388 = vdwg.mxu0
  %1389 = vmatprep.subr.bf16.mxu0 0
  %1390 = vmatpush1.bf16.msra.mxu0 %v526
  %1391 = vmatprep.subr.bf16.mxu0 0
  %1392 = vmatpush1.bf16.msra.mxu0 %v529
  %1393 = vmatprep.subr.bf16.mxu0 0
  %1394 = vmatpush1.bf16.msra.mxu0 %v532
  %1395 = vmatprep.subr.bf16.mxu0 0
  %1396 = vmatpush1.bf16.msra.mxu0 %v535
  %1397 = vmatprep.subr.bf16.mxu0 0
  %1398 = vmatpush1.bf16.msra.mxu0 %v538
  %1399 = vmatprep.subr.bf16.mxu0 0
  %1400 = vmatpush1.bf16.msra.mxu0 %v541
  %1401 = vmatprep.subr.bf16.mxu0 0
  %1402 = vmatpush1.bf16.msra.mxu0 %v544
  %1403 = vmatprep.subr.bf16.mxu0 0
  %1404 = vmatpush1.bf16.msra.mxu0 %v547
  %1405 = vmatprep.subr.bf16.mxu0 0
  %1406 = vmatpush1.bf16.msra.mxu0 0
  %1407 = vmatprep.subr.bf16.mxu0 0
  %1408 = vmatpush1.bf16.msra.mxu0 0
  %1409 = vmatprep.subr.bf16.mxu0 0
  %1410 = vmatpush1.bf16.msra.mxu0 0
  %1411 = vmatprep.subr.bf16.mxu0 0
  %1412 = vmatpush1.bf16.msra.mxu0 0
  %1413 = vmatprep.subr.bf16.mxu0 0
  %1414 = vmatpush1.bf16.msra.mxu0 0
  %1415 = vmatprep.subr.bf16.mxu0 0
  %1416 = vmatpush1.bf16.msra.mxu0 0
  %1417 = vmatprep.subr.bf16.mxu0 0
  %1418 = vmatpush1.bf16.msra.mxu0 0
  %1419 = vmatprep.subr.bf16.mxu0 0
  %1420 = vmatpush1.bf16.msra.mxu0 0
  %1421 = vmatprep.mubr.bf16.mxu0 0
  %1422 = vmatmul.mubr.bf16.gmra.mrb[0].mxu0 %v1339
  %v1423 = vpop.f32.mrb[0].mxu0
  %v1424 = vadd.f32 0.0, %v1423
  %v1425 = vpop.f32.mrb[0].mxu0
  %v1426 = vpop.f32.mrb[0].mxu0
  %v1427 = vpop.f32.mrb[0].mxu0
  %1428 = vdwg.mxu0
  %v1429 = vadd.f32 %v1345, %v1383
  %v1430 = vxor.u32 %v1429, 2147483648
  %v1431 = vmul.f32 %v1430, 1.442695
  %v1432 = vpow.pop %v1431
  %v1433 = vadd.f32 %v1432, 1.0
  %v1434 = vrcp.pop %v1433
  %v1435 = vmul.f32 1.0, %v1434
  %v1436 = vadd.f32 %v1346, %v1385
  %v1437 = vxor.u32 %v1436, 2147483648
  %v1438 = vmul.f32 %v1437, 1.442695
  %v1439 = vpow.pop %v1438
  %v1440 = vadd.f32 %v1439, 1.0
  %v1441 = vrcp.pop %v1440
  %v1442 = vmul.f32 1.0, %v1441
  %v1443 = vadd.f32 %v1424, %v435
  %v1444 = vmul.f32 %v1435, %v1443
  %v1445 = vadd.f32 %v1347, %v1444
  %v1446 = vtanh.pop %v1445
  %v1447 = vsub.f32 %v1338, %v1446
  %v1448 = vmul.f32 %v1442, %v1447
  %v1449 = vadd.f32 %v1446, %v1448
  %v1450 = vpack.c.bf16 %v1449, %v1449
  %s1451 = scalar_lea.vmem %s5, 28
  %1452 = vst [vmem:[%s1451] sm:$0xf] %v1450
  %1453 = vst [vmem:[#allocation2] sm:$0xff] %v1449
  // Predicated region
  $region26: #{gru_forward.2} parent=0 // pred_check
    _
  $region27: #{gru_forward.2} parent=0 // pred_check_branch
    %1455 = sbr.rel (0) target = $region29
  $region28: #{gru_forward.2} parent=0 // pred_region
    _
  $region29: #{gru_forward.2} parent=0 // pred_fallthru
    _
  // Predicated region
  $region30: #{gru_forward.2} parent=0 // pred_check
    _
  $region31: #{gru_forward.2} parent=0 // pred_check_branch
    %1457 = sbr.rel (0) target = $region33
  $region32: #{gru_forward.2} parent=0 // pred_region
    _
  $region33: #{gru_forward.2} parent=0 // pred_fallthru
    _

// kernel: gru_forward.3
$region0: #{gru_forward.3}
  #allocation0 [shape = 'u32[]', space=smem, size = 0x4, offset = 0x4, fixed_abs, tag = 'smem constant byte address 0x4 - core index']
  #allocation1 [shape = 'u32[144,128]{1,0:T(1,128)}', space=vmem, size = 0x12000, scoped, tag = 'internal scratch']
  #allocation2 [shape = 'f32[8,128]{1,0:T(8,128)}', space=vmem, size = 0x1000, scoped, tag = 'scratch operand']
  #allocation3 [shape = 'f32[64,384]{1,0:T(8,128)}', space=vmem, size = 0x18000, scoped, tag = 'scratch operand']
  #allocation4 [shape = 'f32[8,128]{1,0:T(8,128)}', space=vmem, size = 0x1000, scoped, tag = 'scratch operand']
  %s0 = inlined_call_operand.vmem [shape: bf16[8,8,128], index: 0, kind: input, shape index: {}]
  %s1 = inlined_call_operand.vmem [shape: bf16[128,384], index: 1, kind: input, shape index: {}]
  %s2 = inlined_call_operand.vmem [shape: bf16[128,384], index: 2, kind: input, shape index: {}]
  %s3 = inlined_call_operand.vmem [shape: f32[1,384], index: 3, kind: input, shape index: {}]
  %s4 = inlined_call_operand.vmem [shape: f32[1,128], index: 4, kind: input, shape index: {}]
  %s5 = inlined_call_operand.vmem [shape: bf16[128,128], index: 5, kind: input, shape index: {}]
  %s6 = inlined_call_operand.vmem [shape: f32[1,128], index: 6, kind: input, shape index: {}]
  %s7 = inlined_call_operand.vmem [shape: f32[8,128], index: 7, kind: output, shape index: {}]
  %s8 = sld [smem:[#allocation0]]
  $region78: #{gru_forward.3} parent=0
    _
  %s10 = ssub.s32 1, %s8
  %s11 = scalar_select 0, %s10, %s8
  // Predicated region
  $region2: #{gru_forward.3} parent=0 // pred_check
    _
  $region3: #{gru_forward.3} parent=0 // pred_check_branch
    %13 = sbr.rel (0) target = $region5
  $region4: #{gru_forward.3} parent=0 // pred_region
    _
  $region5: #{gru_forward.3} parent=0 // pred_fallthru
    _
  // Predicated region
  $region6: #{gru_forward.3} parent=0 // pred_check
    _
  $region7: #{gru_forward.3} parent=0 // pred_check_branch
    %15 = sbr.rel (0) target = $region9
  $region8: #{gru_forward.3} parent=0 // pred_region
    _
  $region9: #{gru_forward.3} parent=0 // pred_fallthru
    _
  // Predicated region
  $region10: #{gru_forward.3} parent=0 // pred_check
    _
  $region11: #{gru_forward.3} parent=0 // pred_check_branch
    %17 = sbr.rel (0) target = $region13
  $region12: #{gru_forward.3} parent=0 // pred_region
    _
  $region13: #{gru_forward.3} parent=0 // pred_fallthru
    _
  // Predicated region
  $region14: #{gru_forward.3} parent=0 // pred_check
    _
  $region15: #{gru_forward.3} parent=0 // pred_check_branch
    %19 = sbr.rel (0) target = $region17
  $region16: #{gru_forward.3} parent=0 // pred_region
    _
  $region17: #{gru_forward.3} parent=0 // pred_fallthru
    _
  // Predicated region
  $region18: #{gru_forward.3} parent=0 // pred_check
    _
  $region19: #{gru_forward.3} parent=0 // pred_check_branch
    %21 = sbr.rel (0) target = $region21
  $region20: #{gru_forward.3} parent=0 // pred_region
    _
  $region21: #{gru_forward.3} parent=0 // pred_fallthru
    _
  // Predicated region
  $region22: #{gru_forward.3} parent=0 // pred_check
    _
  $region23: #{gru_forward.3} parent=0 // pred_check_branch
    %23 = sbr.rel (0) target = $region25
  $region24: #{gru_forward.3} parent=0 // pred_region
    _
  $region25: #{gru_forward.3} parent=0 // pred_fallthru
    _
  // Predicated region
  $region26: #{gru_forward.3} parent=0 // pred_check
    _
  $region27: #{gru_forward.3} parent=0 // pred_check_branch
    %25 = sbr.rel (0) target = $region29
  $region28: #{gru_forward.3} parent=0 // pred_region
    _
  $region29: #{gru_forward.3} parent=0 // pred_fallthru
    _
  %p27 = scmp.eq.s32.totalorder 0, 0
  // Predicated region
  $region30: #{gru_forward.3} parent=0 // pred_check
    %p28 = pneg %p27
  $region31: #{gru_forward.3} parent=0 // pred_check_branch
    %30 = sbr.rel (%p28) target = $region33
  $region32: #{gru_forward.3} parent=0 // pred_region
    %31 = vst [vmem:[#allocation2] sm:$0xff] 0.0
  $region33: #{gru_forward.3} parent=0 // pred_fallthru
    _
  %v32 = vld [vmem:[%s0] sm:$0xf]
  %v33 = vld [vmem:[%s0 + $0x4] sm:$0xf]
  %v34 = vld [vmem:[%s0 + $0x8] sm:$0xf]
  %v35 = vld [vmem:[%s0 + $0xc] sm:$0xf]
  %v36 = vld [vmem:[%s0 + $0x10] sm:$0xf]
  %v37 = vld [vmem:[%s0 + $0x14] sm:$0xf]
  %v38 = vld [vmem:[%s0 + $0x18] sm:$0xf]
  %v39 = vld [vmem:[%s0 + $0x1c] sm:$0xf]
  %v40 = vld [vmem:[%s1] sm:$0xff]
  %v41 = vld [vmem:[%s1 + $0x8] sm:$0xf]
  %v42 = vld [vmem:[%s1 + $0xc] sm:$0xff]
  %v43 = vld [vmem:[%s1 + $0x14] sm:$0xf]
  %v44 = vld [vmem:[%s1 + $0x18] sm:$0xff]
  %v45 = vld [vmem:[%s1 + $0x20] sm:$0xf]
  %v46 = vld [vmem:[%s1 + $0x24] sm:$0xff]
  %v47 = vld [vmem:[%s1 + $0x2c] sm:$0xf]
  %v48 = vld [vmem:[%s1 + $0x30] sm:$0xff]
  %v49 = vld [vmem:[%s1 + $0x38] sm:$0xf]
  %v50 = vld [vmem:[%s1 + $0x3c] sm:$0xff]
  %v51 = vld [vmem:[%s1 + $0x44] sm:$0xf]
  %v52 = vld [vmem:[%s1 + $0x48] sm:$0xff]
  %v53 = vld [vmem:[%s1 + $0x50] sm:$0xf]
  %v54 = vld [vmem:[%s1 + $0x54] sm:$0xff]
  %v55 = vld [vmem:[%s1 + $0x5c] sm:$0xf]
  %v56 = vld [vmem:[%s1 + $0x60] sm:$0xff]
  %v57 = vld [vmem:[%s1 + $0x68] sm:$0xf]
  %v58 = vld [vmem:[%s1 + $0x6c] sm:$0xff]
  %v59 = vld [vmem:[%s1 + $0x74] sm:$0xf]
  %v60 = vld [vmem:[%s1 + $0x78] sm:$0xff]
  %v61 = vld [vmem:[%s1 + $0x80] sm:$0xf]
  %v62 = vld [vmem:[%s1 + $0x84] sm:$0xff]
  %v63 = vld [vmem:[%s1 + $0x8c] sm:$0xf]
  %v64 = vld [vmem:[%s1 + $0x90] sm:$0xff]
  %v65 = vld [vmem:[%s1 + $0x98] sm:$0xf]
  %v66 = vld [vmem:[%s1 + $0x9c] sm:$0xff]
  %v67 = vld [vmem:[%s1 + $0xa4] sm:$0xf]
  %v68 = vld [vmem:[%s1 + $0xa8] sm:$0xff]
  %v69 = vld [vmem:[%s1 + $0xb0] sm:$0xf]
  %v70 = vld [vmem:[%s1 + $0xb4] sm:$0xff]
  %v71 = vld [vmem:[%s1 + $0xbc] sm:$0xf]
  %v72 = vld [vmem:[%s3] sm:$0x7]
  %v74 = vlaneseq
  %v75 = vshrl.u32 %v74, 7
  %v76 = vsub.s32 0, %v75
  %v77 = vrot.slane %v72, %v76
  %v78 = vlaneseq
  %v79 = vshrl.u32 %v78, 7
  %v80 = vsub.s32 1, %v79
  %v81 = vrot.slane %v72, %v80
  %v82 = vlaneseq
  %v83 = vshrl.u32 %v82, 7
  %v84 = vsub.s32 2, %v83
  %v85 = vrot.slane %v72, %v84
  %v97 = vunpack.c.l.b16 %v32
  %v98 = vunpack.c.l.b16 %v33
  %v99 = vunpack.c.l.b16 %v34
  %v100 = vunpack.c.l.b16 %v35
  %v101 = vunpack.c.l.b16 %v36
  %v102 = vunpack.c.l.b16 %v37
  %v103 = vunpack.c.l.b16 %v38
  %v104 = vunpack.c.l.b16 %v39
  %v105 = vpack.c.b16 %v98, %v97
  %v106 = vpack.c.b16 %v100, %v99
  %v107 = vpack.c.b16 %v102, %v101
  %v108 = vpack.c.b16 %v104, %v103
  %v145 = vunpack.c.l.b16 %v40
  %v146 = vunpack.c.h.b16 %v40
  %v147 = vunpack.c.l.b16 %v41
  %v148 = vunpack.c.l.b16 %v42
  %v149 = vunpack.c.h.b16 %v42
  %v150 = vunpack.c.l.b16 %v43
  %v151 = vunpack.c.l.b16 %v44
  %v152 = vunpack.c.h.b16 %v44
  %v153 = vunpack.c.l.b16 %v45
  %v154 = vunpack.c.l.b16 %v46
  %v155 = vunpack.c.h.b16 %v46
  %v156 = vunpack.c.l.b16 %v47
  %v157 = vunpack.c.l.b16 %v48
  %v158 = vunpack.c.h.b16 %v48
  %v159 = vunpack.c.l.b16 %v49
  %v160 = vunpack.c.l.b16 %v50
  %v161 = vunpack.c.h.b16 %v50
  %v162 = vunpack.c.l.b16 %v51
  %v163 = vunpack.c.l.b16 %v52
  %v164 = vunpack.c.h.b16 %v52
  %v165 = vunpack.c.l.b16 %v53
  %v166 = vunpack.c.l.b16 %v54
  %v167 = vunpack.c.h.b16 %v54
  %v168 = vunpack.c.l.b16 %v55
  %v169 = vunpack.c.l.b16 %v56
  %v170 = vunpack.c.h.b16 %v56
  %v171 = vunpack.c.l.b16 %v57
  %v172 = vunpack.c.l.b16 %v58
  %v173 = vunpack.c.h.b16 %v58
  %v174 = vunpack.c.l.b16 %v59
  %v175 = vunpack.c.l.b16 %v60
  %v176 = vunpack.c.h.b16 %v60
  %v177 = vunpack.c.l.b16 %v61
  %v178 = vunpack.c.l.b16 %v62
  %v179 = vunpack.c.h.b16 %v62
  %v180 = vunpack.c.l.b16 %v63
  %v181 = vunpack.c.l.b16 %v64
  %v182 = vunpack.c.h.b16 %v64
  %v183 = vunpack.c.l.b16 %v65
  %v184 = vunpack.c.l.b16 %v66
  %v185 = vunpack.c.h.b16 %v66
  %v186 = vunpack.c.l.b16 %v67
  %v187 = vunpack.c.l.b16 %v68
  %v188 = vunpack.c.h.b16 %v68
  %v189 = vunpack.c.l.b16 %v69
  %v190 = vunpack.c.l.b16 %v70
  %v191 = vunpack.c.h.b16 %v70
  %v192 = vunpack.c.l.b16 %v71
  %v193 = vpack.c.b16 %v148, %v145
  %v194 = vpack.c.b16 %v149, %v146
  %v195 = vpack.c.b16 %v150, %v147
  %v196 = vpack.c.b16 %v154, %v151
  %v197 = vpack.c.b16 %v155, %v152
  %v198 = vpack.c.b16 %v156, %v153
  %v199 = vpack.c.b16 %v160, %v157
  %v200 = vpack.c.b16 %v161, %v158
  %v201 = vpack.c.b16 %v162, %v159
  %v202 = vpack.c.b16 %v166, %v163
  %v203 = vpack.c.b16 %v167, %v164
  %v204 = vpack.c.b16 %v168, %v165
  %v205 = vpack.c.b16 %v172, %v169
  %v206 = vpack.c.b16 %v173, %v170
  %v207 = vpack.c.b16 %v174, %v171
  %v208 = vpack.c.b16 %v178, %v175
  %v209 = vpack.c.b16 %v179, %v176
  %v210 = vpack.c.b16 %v180, %v177
  %v211 = vpack.c.b16 %v184, %v181
  %v212 = vpack.c.b16 %v185, %v182
  %v213 = vpack.c.b16 %v186, %v183
  %v214 = vpack.c.b16 %v190, %v187
  %v215 = vpack.c.b16 %v191, %v188
  %v216 = vpack.c.b16 %v192, %v189
  %241 = vmatprep.subr.bf16.mxu0 %v194
  %242 = vmatpush1.bf16.msra.mxu0 %v193
  %243 = vmatprep.subr.bf16.mxu0 %v197
  %244 = vmatpush1.bf16.msra.mxu0 %v196
  %245 = vmatprep.subr.bf16.mxu0 %v200
  %246 = vmatpush1.bf16.msra.mxu0 %v199
  %247 = vmatprep.subr.bf16.mxu0 %v203
  %248 = vmatpush1.bf16.msra.mxu0 %v202
  %249 = vmatprep.subr.bf16.mxu0 %v206
  %250 = vmatpush1.bf16.msra.mxu0 %v205
  %251 = vmatprep.subr.bf16.mxu0 %v209
  %252 = vmatpush1.bf16.msra.mxu0 %v208
  %253 = vmatprep.subr.bf16.mxu0 %v212
  %254 = vmatpush1.bf16.msra.mxu0 %v211
  %255 = vmatprep.subr.bf16.mxu0 %v215
  %256 = vmatpush1.bf16.msra.mxu0 %v214
  %257 = vmatprep.subr.bf16.mxu0 0
  %258 = vmatpush1.bf16.msra.mxu0 0
  %259 = vmatprep.subr.bf16.mxu0 0
  %260 = vmatpush1.bf16.msra.mxu0 0
  %261 = vmatprep.subr.bf16.mxu0 0
  %262 = vmatpush1.bf16.msra.mxu0 0
  %263 = vmatprep.subr.bf16.mxu0 0
  %264 = vmatpush1.bf16.msra.mxu0 0
  %265 = vmatprep.subr.bf16.mxu0 0
  %266 = vmatpush1.bf16.msra.mxu0 0
  %267 = vmatprep.subr.bf16.mxu0 0
  %268 = vmatpush1.bf16.msra.mxu0 0
  %269 = vmatprep.subr.bf16.mxu0 0
  %270 = vmatpush1.bf16.msra.mxu0 0
  %271 = vmatprep.subr.bf16.mxu0 0
  %272 = vmatpush1.bf16.msra.mxu0 0
  %273 = vmatprep.mubr.bf16.mxu0 0
  %274 = vmatmul.mubr.bf16.gmra.mrb[0].mxu0 %v105
  %v275 = vpop.f32.mrb[0].mxu0
  %v276 = vadd.f32 %v77, %v275
  %v277 = vpop.f32.mrb[0].mxu0
  %v278 = vadd.f32 %v81, %v277
  %v279 = vpop.f32.mrb[0].mxu0
  %v280 = vadd.f32 %v77, %v279
  %v281 = vpop.f32.mrb[0].mxu0
  %v282 = vadd.f32 %v81, %v281
  %283 = vmatprep.mubr.bf16.mxu0 0
  %284 = vmatmul.mubr.bf16.gmra.mrb[0].mxu0 %v106
  %v285 = vpop.f32.mrb[0].mxu0
  %v286 = vadd.f32 %v77, %v285
  %v287 = vpop.f32.mrb[0].mxu0
  %v288 = vadd.f32 %v81, %v287
  %v289 = vpop.f32.mrb[0].mxu0
  %v290 = vadd.f32 %v77, %v289
  %v291 = vpop.f32.mrb[0].mxu0
  %v292 = vadd.f32 %v81, %v291
  %293 = vmatprep.mubr.bf16.mxu0 0
  %294 = vmatmul.mubr.bf16.gmra.mrb[0].mxu0 %v107
  %v295 = vpop.f32.mrb[0].mxu0
  %v296 = vadd.f32 %v77, %v295
  %v297 = vpop.f32.mrb[0].mxu0
  %v298 = vadd.f32 %v81, %v297
  %v299 = vpop.f32.mrb[0].mxu0
  %v300 = vadd.f32 %v77, %v299
  %v301 = vpop.f32.mrb[0].mxu0
  %v302 = vadd.f32 %v81, %v301
  %303 = vmatprep.mubr.bf16.mxu0 0
  %304 = vmatmul.mubr.bf16.gmra.mrb[0].mxu0 %v108
  %v305 = vpop.f32.mrb[0].mxu0
  %v306 = vadd.f32 %v77, %v305
  %v307 = vpop.f32.mrb[0].mxu0
  %v308 = vadd.f32 %v81, %v307
  %v309 = vpop.f32.mrb[0].mxu0
  %v310 = vadd.f32 %v77, %v309
  %v311 = vpop.f32.mrb[0].mxu0
  %v312 = vadd.f32 %v81, %v311
  %313 = vdwg.mxu0
  %314 = vmatprep.subr.bf16.mxu0 0
  %315 = vmatpush1.bf16.msra.mxu0 %v195
  %316 = vmatprep.subr.bf16.mxu0 0
  %317 = vmatpush1.bf16.msra.mxu0 %v198
  %318 = vmatprep.subr.bf16.mxu0 0
  %319 = vmatpush1.bf16.msra.mxu0 %v201
  %320 = vmatprep.subr.bf16.mxu0 0
  %321 = vmatpush1.bf16.msra.mxu0 %v204
  %322 = vmatprep.subr.bf16.mxu0 0
  %323 = vmatpush1.bf16.msra.mxu0 %v207
  %324 = vmatprep.subr.bf16.mxu0 0
  %325 = vmatpush1.bf16.msra.mxu0 %v210
  %326 = vmatprep.subr.bf16.mxu0 0
  %327 = vmatpush1.bf16.msra.mxu0 %v213
  %328 = vmatprep.subr.bf16.mxu0 0
  %329 = vmatpush1.bf16.msra.mxu0 %v216
  %330 = vmatprep.subr.bf16.mxu0 0
  %331 = vmatpush1.bf16.msra.mxu0 0
  %332 = vmatprep.subr.bf16.mxu0 0
  %333 = vmatpush1.bf16.msra.mxu0 0
  %334 = vmatprep.subr.bf16.mxu0 0
  %335 = vmatpush1.bf16.msra.mxu0 0
  %336 = vmatprep.subr.bf16.mxu0 0
  %337 = vmatpush1.bf16.msra.mxu0 0
  %338 = vmatprep.subr.bf16.mxu0 0
  %339 = vmatpush1.bf16.msra.mxu0 0
  %340 = vmatprep.subr.bf16.mxu0 0
  %341 = vmatpush1.bf16.msra.mxu0 0
  %342 = vmatprep.subr.bf16.mxu0 0
  %343 = vmatpush1.bf16.msra.mxu0 0
  %344 = vmatprep.subr.bf16.mxu0 0
  %345 = vmatpush1.bf16.msra.mxu0 0
  %346 = vmatprep.mubr.bf16.mxu0 0
  %347 = vmatmul.mubr.bf16.gmra.mrb[0].mxu0 %v105
  %v348 = vpop.f32.mrb[0].mxu0
  %v349 = vadd.f32 %v85, %v348
  %v350 = vpop.f32.mrb[0].mxu0
  %v351 = vpop.f32.mrb[0].mxu0
  %v352 = vadd.f32 %v85, %v351
  %v353 = vpop.f32.mrb[0].mxu0
  %354 = vmatprep.mubr.bf16.mxu0 0
  %355 = vmatmul.mubr.bf16.gmra.mrb[0].mxu0 %v106
  %v356 = vpop.f32.mrb[0].mxu0
  %v357 = vadd.f32 %v85, %v356
  %v358 = vpop.f32.mrb[0].mxu0
  %v359 = vpop.f32.mrb[0].mxu0
  %v360 = vadd.f32 %v85, %v359
  %v361 = vpop.f32.mrb[0].mxu0
  %362 = vmatprep.mubr.bf16.mxu0 0
  %363 = vmatmul.mubr.bf16.gmra.mrb[0].mxu0 %v107
  %v364 = vpop.f32.mrb[0].mxu0
  %v365 = vadd.f32 %v85, %v364
  %v366 = vpop.f32.mrb[0].mxu0
  %v367 = vpop.f32.mrb[0].mxu0
  %v368 = vadd.f32 %v85, %v367
  %v369 = vpop.f32.mrb[0].mxu0
  %370 = vmatprep.mubr.bf16.mxu0 0
  %371 = vmatmul.mubr.bf16.gmra.mrb[0].mxu0 %v108
  %v372 = vpop.f32.mrb[0].mxu0
  %v373 = vadd.f32 %v85, %v372
  %v374 = vpop.f32.mrb[0].mxu0
  %v375 = vpop.f32.mrb[0].mxu0
  %v376 = vadd.f32 %v85, %v375
  %v377 = vpop.f32.mrb[0].mxu0
  %378 = vdwg.mxu0
  %379 = vst [vmem:[#allocation3] sm:$0xff] %v276
  %380 = vst [vmem:[#allocation3 + $0x8] sm:$0xff] %v278
  %381 = vst [vmem:[#allocation3 + $0x10] sm:$0xff] %v349
  %382 = vst [vmem:[#allocation3 + $0x18] sm:$0xff] %v280
  %383 = vst [vmem:[#allocation3 + $0x20] sm:$0xff] %v282
  %384 = vst [vmem:[#allocation3 + $0x28] sm:$0xff] %v352
  %385 = vst [vmem:[#allocation3 + $0x30] sm:$0xff] %v286
  %386 = vst [vmem:[#allocation3 + $0x38] sm:$0xff] %v288
  %387 = vst [vmem:[#allocation3 + $0x40] sm:$0xff] %v357
  %388 = vst [vmem:[#allocation3 + $0x48] sm:$0xff] %v290
  %389 = vst [vmem:[#allocation3 + $0x50] sm:$0xff] %v292
  %390 = vst [vmem:[#allocation3 + $0x58] sm:$0xff] %v360
  %391 = vst [vmem:[#allocation3 + $0x60] sm:$0xff] %v296
  %392 = vst [vmem:[#allocation3 + $0x68] sm:$0xff] %v298
  %393 = vst [vmem:[#allocation3 + $0x70] sm:$0xff] %v365
  %394 = vst [vmem:[#allocation3 + $0x78] sm:$0xff] %v300
  %395 = vst [vmem:[#allocation3 + $0x80] sm:$0xff] %v302
  %396 = vst [vmem:[#allocation3 + $0x88] sm:$0xff] %v368
  %397 = vst [vmem:[#allocation3 + $0x90] sm:$0xff] %v306
  %398 = vst [vmem:[#allocation3 + $0x98] sm:$0xff] %v308
  %399 = vst [vmem:[#allocation3 + $0xa0] sm:$0xff] %v373
  %400 = vst [vmem:[#allocation3 + $0xa8] sm:$0xff] %v310
  %401 = vst [vmem:[#allocation3 + $0xb0] sm:$0xff] %v312
  %402 = vst [vmem:[#allocation3 + $0xb8] sm:$0xff] %v376
  %v403 = vld [vmem:[#allocation2] sm:$0xff]
  %v404 = vld [vmem:[%s2] sm:$0xff]
  %v405 = vld [vmem:[%s2 + $0x8] sm:$0xf]
  %v406 = vld [vmem:[%s2 + $0xc] sm:$0xff]
  %v407 = vld [vmem:[%s2 + $0x14] sm:$0xf]
  %v408 = vld [vmem:[%s2 + $0x18] sm:$0xff]
  %v409 = vld [vmem:[%s2 + $0x20] sm:$0xf]
  %v410 = vld [vmem:[%s2 + $0x24] sm:$0xff]
  %v411 = vld [vmem:[%s2 + $0x2c] sm:$0xf]
  %v412 = vld [vmem:[%s2 + $0x30] sm:$0xff]
  %v413 = vld [vmem:[%s2 + $0x38] sm:$0xf]
  %v414 = vld [vmem:[%s2 + $0x3c] sm:$0xff]
  %v415 = vld [vmem:[%s2 + $0x44] sm:$0xf]
  %v416 = vld [vmem:[%s2 + $0x48] sm:$0xff]
  %v417 = vld [vmem:[%s2 + $0x50] sm:$0xf]
  %v418 = vld [vmem:[%s2 + $0x54] sm:$0xff]
  %v419 = vld [vmem:[%s2 + $0x5c] sm:$0xf]
  %v420 = vld [vmem:[%s2 + $0x60] sm:$0xff]
  %v421 = vld [vmem:[%s2 + $0x68] sm:$0xf]
  %v422 = vld [vmem:[%s2 + $0x6c] sm:$0xff]
  %v423 = vld [vmem:[%s2 + $0x74] sm:$0xf]
  %v424 = vld [vmem:[%s2 + $0x78] sm:$0xff]
  %v425 = vld [vmem:[%s2 + $0x80] sm:$0xf]
  %v426 = vld [vmem:[%s2 + $0x84] sm:$0xff]
  %v427 = vld [vmem:[%s2 + $0x8c] sm:$0xf]
  %v428 = vld [vmem:[%s2 + $0x90] sm:$0xff]
  %v429 = vld [vmem:[%s2 + $0x98] sm:$0xf]
  %v430 = vld [vmem:[%s2 + $0x9c] sm:$0xff]
  %v431 = vld [vmem:[%s2 + $0xa4] sm:$0xf]
  %v432 = vld [vmem:[%s2 + $0xa8] sm:$0xff]
  %v433 = vld [vmem:[%s2 + $0xb0] sm:$0xf]
  %v434 = vld [vmem:[%s2 + $0xb4] sm:$0xff]
  %v435 = vld [vmem:[%s2 + $0xbc] sm:$0xf]
  %v436 = vld [vmem:[%s4] sm:$0x1]
  %v438 = vlaneseq
  %v439 = vshrl.u32 %v438, 7
  %v440 = vsub.s32 0, %v439
  %v441 = vrot.slane %v436, %v440
  %s443 = smul.u32 0, 3
  %s444 = smul.addr %s443, 8
  %s445 = scalar_lea.vmem [#allocation3], %s444
  %v446 = vld [vmem:[%s445] sm:$0xff]
  %v447 = vld [vmem:[%s445 + $0x8] sm:$0xff]
  %v448 = vld [vmem:[%s445 + $0x10] sm:$0xff]
  %v449 = vpack.c.bf16 %v403, %v403
  %v482 = vunpack.c.l.b16 %v404
  %v483 = vunpack.c.h.b16 %v404
  %v484 = vunpack.c.l.b16 %v405
  %v485 = vunpack.c.l.b16 %v406
  %v486 = vunpack.c.h.b16 %v406
  %v487 = vunpack.c.l.b16 %v407
  %v488 = vunpack.c.l.b16 %v408
  %v489 = vunpack.c.h.b16 %v408
  %v490 = vunpack.c.l.b16 %v409
  %v491 = vunpack.c.l.b16 %v410
  %v492 = vunpack.c.h.b16 %v410
  %v493 = vunpack.c.l.b16 %v411
  %v494 = vunpack.c.l.b16 %v412
  %v495 = vunpack.c.h.b16 %v412
  %v496 = vunpack.c.l.b16 %v413
  %v497 = vunpack.c.l.b16 %v414
  %v498 = vunpack.c.h.b16 %v414
  %v499 = vunpack.c.l.b16 %v415
  %v500 = vunpack.c.l.b16 %v416
  %v501 = vunpack.c.h.b16 %v416
  %v502 = vunpack.c.l.b16 %v417
  %v503 = vunpack.c.l.b16 %v418
  %v504 = vunpack.c.h.b16 %v418
  %v505 = vunpack.c.l.b16 %v419
  %v506 = vunpack.c.l.b16 %v420
  %v507 = vunpack.c.h.b16 %v420
  %v508 = vunpack.c.l.b16 %v421
  %v509 = vunpack.c.l.b16 %v422
  %v510 = vunpack.c.h.b16 %v422
  %v511 = vunpack.c.l.b16 %v423
  %v512 = vunpack.c.l.b16 %v424
  %v513 = vunpack.c.h.b16 %v424
  %v514 = vunpack.c.l.b16 %v425
  %v515 = vunpack.c.l.b16 %v426
  %v516 = vunpack.c.h.b16 %v426
  %v517 = vunpack.c.l.b16 %v427
  %v518 = vunpack.c.l.b16 %v428
  %v519 = vunpack.c.h.b16 %v428
  %v520 = vunpack.c.l.b16 %v429
  %v521 = vunpack.c.l.b16 %v430
  %v522 = vunpack.c.h.b16 %v430
  %v523 = vunpack.c.l.b16 %v431
  %v524 = vunpack.c.l.b16 %v432
  %v525 = vunpack.c.h.b16 %v432
  %v526 = vunpack.c.l.b16 %v433
  %v527 = vunpack.c.l.b16 %v434
  %v528 = vunpack.c.h.b16 %v434
  %v529 = vunpack.c.l.b16 %v435
  %v530 = vpack.c.b16 %v485, %v482
  %v531 = vpack.c.b16 %v486, %v483
  %v532 = vpack.c.b16 %v487, %v484
  %v533 = vpack.c.b16 %v491, %v488
  %v534 = vpack.c.b16 %v492, %v489
  %v535 = vpack.c.b16 %v493, %v490
  %v536 = vpack.c.b16 %v497, %v494
  %v537 = vpack.c.b16 %v498, %v495
  %v538 = vpack.c.b16 %v499, %v496
  %v539 = vpack.c.b16 %v503, %v500
  %v540 = vpack.c.b16 %v504, %v501
  %v541 = vpack.c.b16 %v505, %v502
  %v542 = vpack.c.b16 %v509, %v506
  %v543 = vpack.c.b16 %v510, %v507
  %v544 = vpack.c.b16 %v511, %v508
  %v545 = vpack.c.b16 %v515, %v512
  %v546 = vpack.c.b16 %v516, %v513
  %v547 = vpack.c.b16 %v517, %v514
  %v548 = vpack.c.b16 %v521, %v518
  %v549 = vpack.c.b16 %v522, %v519
  %v550 = vpack.c.b16 %v523, %v520
  %v551 = vpack.c.b16 %v527, %v524
  %v552 = vpack.c.b16 %v528, %v525
  %v553 = vpack.c.b16 %v529, %v526
  %578 = vmatprep.subr.bf16.mxu0 %v531
  %579 = vmatpush1.bf16.msra.mxu0 %v530
  %580 = vmatprep.subr.bf16.mxu0 %v534
  %581 = vmatpush1.bf16.msra.mxu0 %v533
  %582 = vmatprep.subr.bf16.mxu0 %v537
  %583 = vmatpush1.bf16.msra.mxu0 %v536
  %584 = vmatprep.subr.bf16.mxu0 %v540
  %585 = vmatpush1.bf16.msra.mxu0 %v539
  %586 = vmatprep.subr.bf16.mxu0 %v543
  %587 = vmatpush1.bf16.msra.mxu0 %v542
  %588 = vmatprep.subr.bf16.mxu0 %v546
  %589 = vmatpush1.bf16.msra.mxu0 %v545
  %590 = vmatprep.subr.bf16.mxu0 %v549
  %591 = vmatpush1.bf16.msra.mxu0 %v548
  %592 = vmatprep.subr.bf16.mxu0 %v552
  %593 = vmatpush1.bf16.msra.mxu0 %v551
  %594 = vmatprep.subr.bf16.mxu0 0
  %595 = vmatpush1.bf16.msra.mxu0 0
  %596 = vmatprep.subr.bf16.mxu0 0
  %597 = vmatpush1.bf16.msra.mxu0 0
  %598 = vmatprep.subr.bf16.mxu0 0
  %599 = vmatpush1.bf16.msra.mxu0 0
  %600 = vmatprep.subr.bf16.mxu0 0
  %601 = vmatpush1.bf16.msra.mxu0 0
  %602 = vmatprep.subr.bf16.mxu0 0
  %603 = vmatpush1.bf16.msra.mxu0 0
  %604 = vmatprep.subr.bf16.mxu0 0
  %605 = vmatpush1.bf16.msra.mxu0 0
  %606 = vmatprep.subr.bf16.mxu0 0
  %607 = vmatpush1.bf16.msra.mxu0 0
  %608 = vmatprep.subr.bf16.mxu0 0
  %609 = vmatpush1.bf16.msra.mxu0 0
  %610 = vmatprep.mubr.bf16.mxu0 0
  %611 = vmatmul.mubr.bf16.gmra.mrb[0].mxu0 %v449
  %v612 = vpop.f32.mrb[0].mxu0
  %v613 = vadd.f32 0.0, %v612
  %v614 = vpop.f32.mrb[0].mxu0
  %v615 = vadd.f32 0.0, %v614
  %v616 = vpop.f32.mrb[0].mxu0
  %v617 = vpop.f32.mrb[0].mxu0
  %618 = vdwg.mxu0
  %619 = vmatprep.subr.bf16.mxu0 0
  %620 = vmatpush1.bf16.msra.mxu0 %v532
  %621 = vmatprep.subr.bf16.mxu0 0
  %622 = vmatpush1.bf16.msra.mxu0 %v535
  %623 = vmatprep.subr.bf16.mxu0 0
  %624 = vmatpush1.bf16.msra.mxu0 %v538
  %625 = vmatprep.subr.bf16.mxu0 0
  %626 = vmatpush1.bf16.msra.mxu0 %v541
  %627 = vmatprep.subr.bf16.mxu0 0
  %628 = vmatpush1.bf16.msra.mxu0 %v544
  %629 = vmatprep.subr.bf16.mxu0 0
  %630 = vmatpush1.bf16.msra.mxu0 %v547
  %631 = vmatprep.subr.bf16.mxu0 0
  %632 = vmatpush1.bf16.msra.mxu0 %v550
  %633 = vmatprep.subr.bf16.mxu0 0
  %634 = vmatpush1.bf16.msra.mxu0 %v553
  %635 = vmatprep.subr.bf16.mxu0 0
  %636 = vmatpush1.bf16.msra.mxu0 0
  %637 = vmatprep.subr.bf16.mxu0 0
  %638 = vmatpush1.bf16.msra.mxu0 0
  %639 = vmatprep.subr.bf16.mxu0 0
  %640 = vmatpush1.bf16.msra.mxu0 0
  %641 = vmatprep.subr.bf16.mxu0 0
  %642 = vmatpush1.bf16.msra.mxu0 0
  %643 = vmatprep.subr.bf16.mxu0 0
  %644 = vmatpush1.bf16.msra.mxu0 0
  %645 = vmatprep.subr.bf16.mxu0 0
  %646 = vmatpush1.bf16.msra.mxu0 0
  %647 = vmatprep.subr.bf16.mxu0 0
  %648 = vmatpush1.bf16.msra.mxu0 0
  %649 = vmatprep.subr.bf16.mxu0 0
  %650 = vmatpush1.bf16.msra.mxu0 0
  %651 = vmatprep.mubr.bf16.mxu0 0
  %652 = vmatmul.mubr.bf16.gmra.mrb[0].mxu0 %v449
  %v653 = vpop.f32.mrb[0].mxu0
  %v654 = vadd.f32 0.0, %v653
  %v655 = vpop.f32.mrb[0].mxu0
  %v656 = vpop.f32.mrb[0].mxu0
  %v657 = vpop.f32.mrb[0].mxu0
  %658 = vdwg.mxu0
  %v659 = vadd.f32 %v446, %v613
  %v660 = vxor.u32 %v659, 2147483648
  %v661 = vmul.f32 %v660, 1.442695
  %v662 = vpow.pop %v661
  %v663 = vadd.f32 %v662, 1.0
  %v664 = vrcp.pop %v663
  %v665 = vmul.f32 1.0, %v664
  %v666 = vadd.f32 %v447, %v615
  %v667 = vxor.u32 %v666, 2147483648
  %v668 = vmul.f32 %v667, 1.442695
  %v669 = vpow.pop %v668
  %v670 = vadd.f32 %v669, 1.0
  %v671 = vrcp.pop %v670
  %v672 = vmul.f32 1.0, %v671
  %v673 = vadd.f32 %v654, %v441
  %v674 = vmul.f32 %v665, %v673
  %v675 = vadd.f32 %v448, %v674
  %v676 = vtanh.pop %v675
  %v677 = vsub.f32 %v403, %v676
  %v678 = vmul.f32 %v672, %v677
  %v679 = vadd.f32 %v676, %v678
  %s680 = smul.u32 0, 8
  %p681 = scmp.eq.s32.totalorder %s680, 7
  // Predicated region
  $region34: #{gru_forward.3} parent=0 // pred_check
    %p682 = pneg %p681
  $region35: #{gru_forward.3} parent=0 // pred_check_branch
    %684 = sbr.rel (%p682) target = $region37
  $region36: #{gru_forward.3} parent=0 // pred_region
    %685 = vst [vmem:[#allocation4] sm:$0xff] %v679
  $region37: #{gru_forward.3} parent=0 // pred_fallthru
    _
  %s686 = smul.u32 1, 3
  %s687 = smul.addr %s686, 8
  %s688 = scalar_lea.vmem [#allocation3], %s687
  %v689 = vld [vmem:[%s688] sm:$0xff]
  %v690 = vld [vmem:[%s688 + $0x8] sm:$0xff]
  %v691 = vld [vmem:[%s688 + $0x10] sm:$0xff]
  %v692 = vpack.c.bf16 %v679, %v679
  %693 = vmatprep.subr.bf16.mxu0 %v531
  %694 = vmatpush1.bf16.msra.mxu0 %v530
  %695 = vmatprep.subr.bf16.mxu0 %v534
  %696 = vmatpush1.bf16.msra.mxu0 %v533
  %697 = vmatprep.subr.bf16.mxu0 %v537
  %698 = vmatpush1.bf16.msra.mxu0 %v536
  %699 = vmatprep.subr.bf16.mxu0 %v540
  %700 = vmatpush1.bf16.msra.mxu0 %v539
  %701 = vmatprep.subr.bf16.mxu0 %v543
  %702 = vmatpush1.bf16.msra.mxu0 %v542
  %703 = vmatprep.subr.bf16.mxu0 %v546
  %704 = vmatpush1.bf16.msra.mxu0 %v545
  %705 = vmatprep.subr.bf16.mxu0 %v549
  %706 = vmatpush1.bf16.msra.mxu0 %v548
  %707 = vmatprep.subr.bf16.mxu0 %v552
  %708 = vmatpush1.bf16.msra.mxu0 %v551
  %709 = vmatprep.subr.bf16.mxu0 0
  %710 = vmatpush1.bf16.msra.mxu0 0
  %711 = vmatprep.subr.bf16.mxu0 0
  %712 = vmatpush1.bf16.msra.mxu0 0
  %713 = vmatprep.subr.bf16.mxu0 0
  %714 = vmatpush1.bf16.msra.mxu0 0
  %715 = vmatprep.subr.bf16.mxu0 0
  %716 = vmatpush1.bf16.msra.mxu0 0
  %717 = vmatprep.subr.bf16.mxu0 0
  %718 = vmatpush1.bf16.msra.mxu0 0
  %719 = vmatprep.subr.bf16.mxu0 0
  %720 = vmatpush1.bf16.msra.mxu0 0
  %721 = vmatprep.subr.bf16.mxu0 0
  %722 = vmatpush1.bf16.msra.mxu0 0
  %723 = vmatprep.subr.bf16.mxu0 0
  %724 = vmatpush1.bf16.msra.mxu0 0
  %725 = vmatprep.mubr.bf16.mxu0 0
  %726 = vmatmul.mubr.bf16.gmra.mrb[0].mxu0 %v692
  %v727 = vpop.f32.mrb[0].mxu0
  %v728 = vadd.f32 0.0, %v727
  %v729 = vpop.f32.mrb[0].mxu0
  %v730 = vadd.f32 0.0, %v729
  %v731 = vpop.f32.mrb[0].mxu0
  %v732 = vpop.f32.mrb[0].mxu0
  %733 = vdwg.mxu0
  %734 = vmatprep.subr.bf16.mxu0 0
  %735 = vmatpush1.bf16.msra.mxu0 %v532
  %736 = vmatprep.subr.bf16.mxu0 0
  %737 = vmatpush1.bf16.msra.mxu0 %v535
  %738 = vmatprep.subr.bf16.mxu0 0
  %739 = vmatpush1.bf16.msra.mxu0 %v538
  %740 = vmatprep.subr.bf16.mxu0 0
  %741 = vmatpush1.bf16.msra.mxu0 %v541
  %742 = vmatprep.subr.bf16.mxu0 0
  %743 = vmatpush1.bf16.msra.mxu0 %v544
  %744 = vmatprep.subr.bf16.mxu0 0
  %745 = vmatpush1.bf16.msra.mxu0 %v547
  %746 = vmatprep.subr.bf16.mxu0 0
  %747 = vmatpush1.bf16.msra.mxu0 %v550
  %748 = vmatprep.subr.bf16.mxu0 0
  %749 = vmatpush1.bf16.msra.mxu0 %v553
  %750 = vmatprep.subr.bf16.mxu0 0
  %751 = vmatpush1.bf16.msra.mxu0 0
  %752 = vmatprep.subr.bf16.mxu0 0
  %753 = vmatpush1.bf16.msra.mxu0 0
  %754 = vmatprep.subr.bf16.mxu0 0
  %755 = vmatpush1.bf16.msra.mxu0 0
  %756 = vmatprep.subr.bf16.mxu0 0
  %757 = vmatpush1.bf16.msra.mxu0 0
  %758 = vmatprep.subr.bf16.mxu0 0
  %759 = vmatpush1.bf16.msra.mxu0 0
  %760 = vmatprep.subr.bf16.mxu0 0
  %761 = vmatpush1.bf16.msra.mxu0 0
  %762 = vmatprep.subr.bf16.mxu0 0
  %763 = vmatpush1.bf16.msra.mxu0 0
  %764 = vmatprep.subr.bf16.mxu0 0
  %765 = vmatpush1.bf16.msra.mxu0 0
  %766 = vmatprep.mubr.bf16.mxu0 0
  %767 = vmatmul.mubr.bf16.gmra.mrb[0].mxu0 %v692
  %v768 = vpop.f32.mrb[0].mxu0
  %v769 = vadd.f32 0.0, %v768
  %v770 = vpop.f32.mrb[0].mxu0
  %v771 = vpop.f32.mrb[0].mxu0
  %v772 = vpop.f32.mrb[0].mxu0
  %773 = vdwg.mxu0
  %v774 = vadd.f32 %v689, %v728
  %v775 = vxor.u32 %v774, 2147483648
  %v776 = vmul.f32 %v775, 1.442695
  %v777 = vpow.pop %v776
  %v778 = vadd.f32 %v777, 1.0
  %v779 = vrcp.pop %v778
  %v780 = vmul.f32 1.0, %v779
  %v781 = vadd.f32 %v690, %v730
  %v782 = vxor.u32 %v781, 2147483648
  %v783 = vmul.f32 %v782, 1.442695
  %v784 = vpow.pop %v783
  %v785 = vadd.f32 %v784, 1.0
  %v786 = vrcp.pop %v785
  %v787 = vmul.f32 1.0, %v786
  %v788 = vadd.f32 %v769, %v441
  %v789 = vmul.f32 %v780, %v788
  %v790 = vadd.f32 %v691, %v789
  %v791 = vtanh.pop %v790
  %v792 = vsub.f32 %v679, %v791
  %v793 = vmul.f32 %v787, %v792
  %v794 = vadd.f32 %v791, %v793
  %s795 = sadd.s32 %s680, 1
  %p796 = scmp.eq.s32.totalorder %s795, 7
  // Predicated region
  $region38: #{gru_forward.3} parent=0 // pred_check
    %p797 = pneg %p796
  $region39: #{gru_forward.3} parent=0 // pred_check_branch
    %799 = sbr.rel (%p797) target = $region41
  $region40: #{gru_forward.3} parent=0 // pred_region
    %800 = vst [vmem:[#allocation4] sm:$0xff] %v794
  $region41: #{gru_forward.3} parent=0 // pred_fallthru
    _
  %s801 = smul.u32 2, 3
  %s802 = smul.addr %s801, 8
  %s803 = scalar_lea.vmem [#allocation3], %s802
  %v804 = vld [vmem:[%s803] sm:$0xff]
  %v805 = vld [vmem:[%s803 + $0x8] sm:$0xff]
  %v806 = vld [vmem:[%s803 + $0x10] sm:$0xff]
  %v807 = vpack.c.bf16 %v794, %v794
  %808 = vmatprep.subr.bf16.mxu0 %v531
  %809 = vmatpush1.bf16.msra.mxu0 %v530
  %810 = vmatprep.subr.bf16.mxu0 %v534
  %811 = vmatpush1.bf16.msra.mxu0 %v533
  %812 = vmatprep.subr.bf16.mxu0 %v537
  %813 = vmatpush1.bf16.msra.mxu0 %v536
  %814 = vmatprep.subr.bf16.mxu0 %v540
  %815 = vmatpush1.bf16.msra.mxu0 %v539
  %816 = vmatprep.subr.bf16.mxu0 %v543
  %817 = vmatpush1.bf16.msra.mxu0 %v542
  %818 = vmatprep.subr.bf16.mxu0 %v546
  %819 = vmatpush1.bf16.msra.mxu0 %v545
  %820 = vmatprep.subr.bf16.mxu0 %v549
  %821 = vmatpush1.bf16.msra.mxu0 %v548
  %822 = vmatprep.subr.bf16.mxu0 %v552
  %823 = vmatpush1.bf16.msra.mxu0 %v551
  %824 = vmatprep.subr.bf16.mxu0 0
  %825 = vmatpush1.bf16.msra.mxu0 0
  %826 = vmatprep.subr.bf16.mxu0 0
  %827 = vmatpush1.bf16.msra.mxu0 0
  %828 = vmatprep.subr.bf16.mxu0 0
  %829 = vmatpush1.bf16.msra.mxu0 0
  %830 = vmatprep.subr.bf16.mxu0 0
  %831 = vmatpush1.bf16.msra.mxu0 0
  %832 = vmatprep.subr.bf16.mxu0 0
  %833 = vmatpush1.bf16.msra.mxu0 0
  %834 = vmatprep.subr.bf16.mxu0 0
  %835 = vmatpush1.bf16.msra.mxu0 0
  %836 = vmatprep.subr.bf16.mxu0 0
  %837 = vmatpush1.bf16.msra.mxu0 0
  %838 = vmatprep.subr.bf16.mxu0 0
  %839 = vmatpush1.bf16.msra.mxu0 0
  %840 = vmatprep.mubr.bf16.mxu0 0
  %841 = vmatmul.mubr.bf16.gmra.mrb[0].mxu0 %v807
  %v842 = vpop.f32.mrb[0].mxu0
  %v843 = vadd.f32 0.0, %v842
  %v844 = vpop.f32.mrb[0].mxu0
  %v845 = vadd.f32 0.0, %v844
  %v846 = vpop.f32.mrb[0].mxu0
  %v847 = vpop.f32.mrb[0].mxu0
  %848 = vdwg.mxu0
  %849 = vmatprep.subr.bf16.mxu0 0
  %850 = vmatpush1.bf16.msra.mxu0 %v532
  %851 = vmatprep.subr.bf16.mxu0 0
  %852 = vmatpush1.bf16.msra.mxu0 %v535
  %853 = vmatprep.subr.bf16.mxu0 0
  %854 = vmatpush1.bf16.msra.mxu0 %v538
  %855 = vmatprep.subr.bf16.mxu0 0
  %856 = vmatpush1.bf16.msra.mxu0 %v541
  %857 = vmatprep.subr.bf16.mxu0 0
  %858 = vmatpush1.bf16.msra.mxu0 %v544
  %859 = vmatprep.subr.bf16.mxu0 0
  %860 = vmatpush1.bf16.msra.mxu0 %v547
  %861 = vmatprep.subr.bf16.mxu0 0
  %862 = vmatpush1.bf16.msra.mxu0 %v550
  %863 = vmatprep.subr.bf16.mxu0 0
  %864 = vmatpush1.bf16.msra.mxu0 %v553
  %865 = vmatprep.subr.bf16.mxu0 0
  %866 = vmatpush1.bf16.msra.mxu0 0
  %867 = vmatprep.subr.bf16.mxu0 0
  %868 = vmatpush1.bf16.msra.mxu0 0
  %869 = vmatprep.subr.bf16.mxu0 0
  %870 = vmatpush1.bf16.msra.mxu0 0
  %871 = vmatprep.subr.bf16.mxu0 0
  %872 = vmatpush1.bf16.msra.mxu0 0
  %873 = vmatprep.subr.bf16.mxu0 0
  %874 = vmatpush1.bf16.msra.mxu0 0
  %875 = vmatprep.subr.bf16.mxu0 0
  %876 = vmatpush1.bf16.msra.mxu0 0
  %877 = vmatprep.subr.bf16.mxu0 0
  %878 = vmatpush1.bf16.msra.mxu0 0
  %879 = vmatprep.subr.bf16.mxu0 0
  %880 = vmatpush1.bf16.msra.mxu0 0
  %881 = vmatprep.mubr.bf16.mxu0 0
  %882 = vmatmul.mubr.bf16.gmra.mrb[0].mxu0 %v807
  %v883 = vpop.f32.mrb[0].mxu0
  %v884 = vadd.f32 0.0, %v883
  %v885 = vpop.f32.mrb[0].mxu0
  %v886 = vpop.f32.mrb[0].mxu0
  %v887 = vpop.f32.mrb[0].mxu0
  %888 = vdwg.mxu0
  %v889 = vadd.f32 %v804, %v843
  %v890 = vxor.u32 %v889, 2147483648
  %v891 = vmul.f32 %v890, 1.442695
  %v892 = vpow.pop %v891
  %v893 = vadd.f32 %v892, 1.0
  %v894 = vrcp.pop %v893
  %v895 = vmul.f32 1.0, %v894
  %v896 = vadd.f32 %v805, %v845
  %v897 = vxor.u32 %v896, 2147483648
  %v898 = vmul.f32 %v897, 1.442695
  %v899 = vpow.pop %v898
  %v900 = vadd.f32 %v899, 1.0
  %v901 = vrcp.pop %v900
  %v902 = vmul.f32 1.0, %v901
  %v903 = vadd.f32 %v884, %v441
  %v904 = vmul.f32 %v895, %v903
  %v905 = vadd.f32 %v806, %v904
  %v906 = vtanh.pop %v905
  %v907 = vsub.f32 %v794, %v906
  %v908 = vmul.f32 %v902, %v907
  %v909 = vadd.f32 %v906, %v908
  %s910 = sadd.s32 %s680, 2
  %p911 = scmp.eq.s32.totalorder %s910, 7
  // Predicated region
  $region42: #{gru_forward.3} parent=0 // pred_check
    %p912 = pneg %p911
  $region43: #{gru_forward.3} parent=0 // pred_check_branch
    %914 = sbr.rel (%p912) target = $region45
  $region44: #{gru_forward.3} parent=0 // pred_region
    %915 = vst [vmem:[#allocation4] sm:$0xff] %v909
  $region45: #{gru_forward.3} parent=0 // pred_fallthru
    _
  %s916 = smul.u32 3, 3
  %s917 = smul.addr %s916, 8
  %s918 = scalar_lea.vmem [#allocation3], %s917
  %v919 = vld [vmem:[%s918] sm:$0xff]
  %v920 = vld [vmem:[%s918 + $0x8] sm:$0xff]
  %v921 = vld [vmem:[%s918 + $0x10] sm:$0xff]
  %v922 = vpack.c.bf16 %v909, %v909
  %923 = vmatprep.subr.bf16.mxu0 %v531
  %924 = vmatpush1.bf16.msra.mxu0 %v530
  %925 = vmatprep.subr.bf16.mxu0 %v534
  %926 = vmatpush1.bf16.msra.mxu0 %v533
  %927 = vmatprep.subr.bf16.mxu0 %v537
  %928 = vmatpush1.bf16.msra.mxu0 %v536
  %929 = vmatprep.subr.bf16.mxu0 %v540
  %930 = vmatpush1.bf16.msra.mxu0 %v539
  %931 = vmatprep.subr.bf16.mxu0 %v543
  %932 = vmatpush1.bf16.msra.mxu0 %v542
  %933 = vmatprep.subr.bf16.mxu0 %v546
  %934 = vmatpush1.bf16.msra.mxu0 %v545
  %935 = vmatprep.subr.bf16.mxu0 %v549
  %936 = vmatpush1.bf16.msra.mxu0 %v548
  %937 = vmatprep.subr.bf16.mxu0 %v552
  %938 = vmatpush1.bf16.msra.mxu0 %v551
  %939 = vmatprep.subr.bf16.mxu0 0
  %940 = vmatpush1.bf16.msra.mxu0 0
  %941 = vmatprep.subr.bf16.mxu0 0
  %942 = vmatpush1.bf16.msra.mxu0 0
  %943 = vmatprep.subr.bf16.mxu0 0
  %944 = vmatpush1.bf16.msra.mxu0 0
  %945 = vmatprep.subr.bf16.mxu0 0
  %946 = vmatpush1.bf16.msra.mxu0 0
  %947 = vmatprep.subr.bf16.mxu0 0
  %948 = vmatpush1.bf16.msra.mxu0 0
  %949 = vmatprep.subr.bf16.mxu0 0
  %950 = vmatpush1.bf16.msra.mxu0 0
  %951 = vmatprep.subr.bf16.mxu0 0
  %952 = vmatpush1.bf16.msra.mxu0 0
  %953 = vmatprep.subr.bf16.mxu0 0
  %954 = vmatpush1.bf16.msra.mxu0 0
  %955 = vmatprep.mubr.bf16.mxu0 0
  %956 = vmatmul.mubr.bf16.gmra.mrb[0].mxu0 %v922
  %v957 = vpop.f32.mrb[0].mxu0
  %v958 = vadd.f32 0.0, %v957
  %v959 = vpop.f32.mrb[0].mxu0
  %v960 = vadd.f32 0.0, %v959
  %v961 = vpop.f32.mrb[0].mxu0
  %v962 = vpop.f32.mrb[0].mxu0
  %963 = vdwg.mxu0
  %964 = vmatprep.subr.bf16.mxu0 0
  %965 = vmatpush1.bf16.msra.mxu0 %v532
  %966 = vmatprep.subr.bf16.mxu0 0
  %967 = vmatpush1.bf16.msra.mxu0 %v535
  %968 = vmatprep.subr.bf16.mxu0 0
  %969 = vmatpush1.bf16.msra.mxu0 %v538
  %970 = vmatprep.subr.bf16.mxu0 0
  %971 = vmatpush1.bf16.msra.mxu0 %v541
  %972 = vmatprep.subr.bf16.mxu0 0
  %973 = vmatpush1.bf16.msra.mxu0 %v544
  %974 = vmatprep.subr.bf16.mxu0 0
  %975 = vmatpush1.bf16.msra.mxu0 %v547
  %976 = vmatprep.subr.bf16.mxu0 0
  %977 = vmatpush1.bf16.msra.mxu0 %v550
  %978 = vmatprep.subr.bf16.mxu0 0
  %979 = vmatpush1.bf16.msra.mxu0 %v553
  %980 = vmatprep.subr.bf16.mxu0 0
  %981 = vmatpush1.bf16.msra.mxu0 0
  %982 = vmatprep.subr.bf16.mxu0 0
  %983 = vmatpush1.bf16.msra.mxu0 0
  %984 = vmatprep.subr.bf16.mxu0 0
  %985 = vmatpush1.bf16.msra.mxu0 0
  %986 = vmatprep.subr.bf16.mxu0 0
  %987 = vmatpush1.bf16.msra.mxu0 0
  %988 = vmatprep.subr.bf16.mxu0 0
  %989 = vmatpush1.bf16.msra.mxu0 0
  %990 = vmatprep.subr.bf16.mxu0 0
  %991 = vmatpush1.bf16.msra.mxu0 0
  %992 = vmatprep.subr.bf16.mxu0 0
  %993 = vmatpush1.bf16.msra.mxu0 0
  %994 = vmatprep.subr.bf16.mxu0 0
  %995 = vmatpush1.bf16.msra.mxu0 0
  %996 = vmatprep.mubr.bf16.mxu0 0
  %997 = vmatmul.mubr.bf16.gmra.mrb[0].mxu0 %v922
  %v998 = vpop.f32.mrb[0].mxu0
  %v999 = vadd.f32 0.0, %v998
  %v1000 = vpop.f32.mrb[0].mxu0
  %v1001 = vpop.f32.mrb[0].mxu0
  %v1002 = vpop.f32.mrb[0].mxu0
  %1003 = vdwg.mxu0
  %v1004 = vadd.f32 %v919, %v958
  %v1005 = vxor.u32 %v1004, 2147483648
  %v1006 = vmul.f32 %v1005, 1.442695
  %v1007 = vpow.pop %v1006
  %v1008 = vadd.f32 %v1007, 1.0
  %v1009 = vrcp.pop %v1008
  %v1010 = vmul.f32 1.0, %v1009
  %v1011 = vadd.f32 %v920, %v960
  %v1012 = vxor.u32 %v1011, 2147483648
  %v1013 = vmul.f32 %v1012, 1.442695
  %v1014 = vpow.pop %v1013
  %v1015 = vadd.f32 %v1014, 1.0
  %v1016 = vrcp.pop %v1015
  %v1017 = vmul.f32 1.0, %v1016
  %v1018 = vadd.f32 %v999, %v441
  %v1019 = vmul.f32 %v1010, %v1018
  %v1020 = vadd.f32 %v921, %v1019
  %v1021 = vtanh.pop %v1020
  %v1022 = vsub.f32 %v909, %v1021
  %v1023 = vmul.f32 %v1017, %v1022
  %v1024 = vadd.f32 %v1021, %v1023
  %s1025 = sadd.s32 %s680, 3
  %p1026 = scmp.eq.s32.totalorder %s1025, 7
  // Predicated region
  $region46: #{gru_forward.3} parent=0 // pred_check
    %p1027 = pneg %p1026
  $region47: #{gru_forward.3} parent=0 // pred_check_branch
    %1029 = sbr.rel (%p1027) target = $region49
  $region48: #{gru_forward.3} parent=0 // pred_region
    %1030 = vst [vmem:[#allocation4] sm:$0xff] %v1024
  $region49: #{gru_forward.3} parent=0 // pred_fallthru
    _
  %s1031 = smul.u32 4, 3
  %s1032 = smul.addr %s1031, 8
  %s1033 = scalar_lea.vmem [#allocation3], %s1032
  %v1034 = vld [vmem:[%s1033] sm:$0xff]
  %v1035 = vld [vmem:[%s1033 + $0x8] sm:$0xff]
  %v1036 = vld [vmem:[%s1033 + $0x10] sm:$0xff]
  %v1037 = vpack.c.bf16 %v1024, %v1024
  %1038 = vmatprep.subr.bf16.mxu0 %v531
  %1039 = vmatpush1.bf16.msra.mxu0 %v530
  %1040 = vmatprep.subr.bf16.mxu0 %v534
  %1041 = vmatpush1.bf16.msra.mxu0 %v533
  %1042 = vmatprep.subr.bf16.mxu0 %v537
  %1043 = vmatpush1.bf16.msra.mxu0 %v536
  %1044 = vmatprep.subr.bf16.mxu0 %v540
  %1045 = vmatpush1.bf16.msra.mxu0 %v539
  %1046 = vmatprep.subr.bf16.mxu0 %v543
  %1047 = vmatpush1.bf16.msra.mxu0 %v542
  %1048 = vmatprep.subr.bf16.mxu0 %v546
  %1049 = vmatpush1.bf16.msra.mxu0 %v545
  %1050 = vmatprep.subr.bf16.mxu0 %v549
  %1051 = vmatpush1.bf16.msra.mxu0 %v548
  %1052 = vmatprep.subr.bf16.mxu0 %v552
  %1053 = vmatpush1.bf16.msra.mxu0 %v551
  %1054 = vmatprep.subr.bf16.mxu0 0
  %1055 = vmatpush1.bf16.msra.mxu0 0
  %1056 = vmatprep.subr.bf16.mxu0 0
  %1057 = vmatpush1.bf16.msra.mxu0 0
  %1058 = vmatprep.subr.bf16.mxu0 0
  %1059 = vmatpush1.bf16.msra.mxu0 0
  %1060 = vmatprep.subr.bf16.mxu0 0
  %1061 = vmatpush1.bf16.msra.mxu0 0
  %1062 = vmatprep.subr.bf16.mxu0 0
  %1063 = vmatpush1.bf16.msra.mxu0 0
  %1064 = vmatprep.subr.bf16.mxu0 0
  %1065 = vmatpush1.bf16.msra.mxu0 0
  %1066 = vmatprep.subr.bf16.mxu0 0
  %1067 = vmatpush1.bf16.msra.mxu0 0
  %1068 = vmatprep.subr.bf16.mxu0 0
  %1069 = vmatpush1.bf16.msra.mxu0 0
  %1070 = vmatprep.mubr.bf16.mxu0 0
  %1071 = vmatmul.mubr.bf16.gmra.mrb[0].mxu0 %v1037
  %v1072 = vpop.f32.mrb[0].mxu0
  %v1073 = vadd.f32 0.0, %v1072
  %v1074 = vpop.f32.mrb[0].mxu0
  %v1075 = vadd.f32 0.0, %v1074
  %v1076 = vpop.f32.mrb[0].mxu0
  %v1077 = vpop.f32.mrb[0].mxu0
  %1078 = vdwg.mxu0
  %1079 = vmatprep.subr.bf16.mxu0 0
  %1080 = vmatpush1.bf16.msra.mxu0 %v532
  %1081 = vmatprep.subr.bf16.mxu0 0
  %1082 = vmatpush1.bf16.msra.mxu0 %v535
  %1083 = vmatprep.subr.bf16.mxu0 0
  %1084 = vmatpush1.bf16.msra.mxu0 %v538
  %1085 = vmatprep.subr.bf16.mxu0 0
  %1086 = vmatpush1.bf16.msra.mxu0 %v541
  %1087 = vmatprep.subr.bf16.mxu0 0
  %1088 = vmatpush1.bf16.msra.mxu0 %v544
  %1089 = vmatprep.subr.bf16.mxu0 0
  %1090 = vmatpush1.bf16.msra.mxu0 %v547
  %1091 = vmatprep.subr.bf16.mxu0 0
  %1092 = vmatpush1.bf16.msra.mxu0 %v550
  %1093 = vmatprep.subr.bf16.mxu0 0
  %1094 = vmatpush1.bf16.msra.mxu0 %v553
  %1095 = vmatprep.subr.bf16.mxu0 0
  %1096 = vmatpush1.bf16.msra.mxu0 0
  %1097 = vmatprep.subr.bf16.mxu0 0
  %1098 = vmatpush1.bf16.msra.mxu0 0
  %1099 = vmatprep.subr.bf16.mxu0 0
  %1100 = vmatpush1.bf16.msra.mxu0 0
  %1101 = vmatprep.subr.bf16.mxu0 0
  %1102 = vmatpush1.bf16.msra.mxu0 0
  %1103 = vmatprep.subr.bf16.mxu0 0
  %1104 = vmatpush1.bf16.msra.mxu0 0
  %1105 = vmatprep.subr.bf16.mxu0 0
  %1106 = vmatpush1.bf16.msra.mxu0 0
  %1107 = vmatprep.subr.bf16.mxu0 0
  %1108 = vmatpush1.bf16.msra.mxu0 0
  %1109 = vmatprep.subr.bf16.mxu0 0
  %1110 = vmatpush1.bf16.msra.mxu0 0
  %1111 = vmatprep.mubr.bf16.mxu0 0
  %1112 = vmatmul.mubr.bf16.gmra.mrb[0].mxu0 %v1037
  %v1113 = vpop.f32.mrb[0].mxu0
  %v1114 = vadd.f32 0.0, %v1113
  %v1115 = vpop.f32.mrb[0].mxu0
  %v1116 = vpop.f32.mrb[0].mxu0
  %v1117 = vpop.f32.mrb[0].mxu0
  %1118 = vdwg.mxu0
  %v1119 = vadd.f32 %v1034, %v1073
  %v1120 = vxor.u32 %v1119, 2147483648
  %v1121 = vmul.f32 %v1120, 1.442695
  %v1122 = vpow.pop %v1121
  %v1123 = vadd.f32 %v1122, 1.0
  %v1124 = vrcp.pop %v1123
  %v1125 = vmul.f32 1.0, %v1124
  %v1126 = vadd.f32 %v1035, %v1075
  %v1127 = vxor.u32 %v1126, 2147483648
  %v1128 = vmul.f32 %v1127, 1.442695
  %v1129 = vpow.pop %v1128
  %v1130 = vadd.f32 %v1129, 1.0
  %v1131 = vrcp.pop %v1130
  %v1132 = vmul.f32 1.0, %v1131
  %v1133 = vadd.f32 %v1114, %v441
  %v1134 = vmul.f32 %v1125, %v1133
  %v1135 = vadd.f32 %v1036, %v1134
  %v1136 = vtanh.pop %v1135
  %v1137 = vsub.f32 %v1024, %v1136
  %v1138 = vmul.f32 %v1132, %v1137
  %v1139 = vadd.f32 %v1136, %v1138
  %s1140 = sadd.s32 %s680, 4
  %p1141 = scmp.eq.s32.totalorder %s1140, 7
  // Predicated region
  $region50: #{gru_forward.3} parent=0 // pred_check
    %p1142 = pneg %p1141
  $region51: #{gru_forward.3} parent=0 // pred_check_branch
    %1144 = sbr.rel (%p1142) target = $region53
  $region52: #{gru_forward.3} parent=0 // pred_region
    %1145 = vst [vmem:[#allocation4] sm:$0xff] %v1139
  $region53: #{gru_forward.3} parent=0 // pred_fallthru
    _
  %s1146 = smul.u32 5, 3
  %s1147 = smul.addr %s1146, 8
  %s1148 = scalar_lea.vmem [#allocation3], %s1147
  %v1149 = vld [vmem:[%s1148] sm:$0xff]
  %v1150 = vld [vmem:[%s1148 + $0x8] sm:$0xff]
  %v1151 = vld [vmem:[%s1148 + $0x10] sm:$0xff]
  %v1152 = vpack.c.bf16 %v1139, %v1139
  %1153 = vmatprep.subr.bf16.mxu0 %v531
  %1154 = vmatpush1.bf16.msra.mxu0 %v530
  %1155 = vmatprep.subr.bf16.mxu0 %v534
  %1156 = vmatpush1.bf16.msra.mxu0 %v533
  %1157 = vmatprep.subr.bf16.mxu0 %v537
  %1158 = vmatpush1.bf16.msra.mxu0 %v536
  %1159 = vmatprep.subr.bf16.mxu0 %v540
  %1160 = vmatpush1.bf16.msra.mxu0 %v539
  %1161 = vmatprep.subr.bf16.mxu0 %v543
  %1162 = vmatpush1.bf16.msra.mxu0 %v542
  %1163 = vmatprep.subr.bf16.mxu0 %v546
  %1164 = vmatpush1.bf16.msra.mxu0 %v545
  %1165 = vmatprep.subr.bf16.mxu0 %v549
  %1166 = vmatpush1.bf16.msra.mxu0 %v548
  %1167 = vmatprep.subr.bf16.mxu0 %v552
  %1168 = vmatpush1.bf16.msra.mxu0 %v551
  %1169 = vmatprep.subr.bf16.mxu0 0
  %1170 = vmatpush1.bf16.msra.mxu0 0
  %1171 = vmatprep.subr.bf16.mxu0 0
  %1172 = vmatpush1.bf16.msra.mxu0 0
  %1173 = vmatprep.subr.bf16.mxu0 0
  %1174 = vmatpush1.bf16.msra.mxu0 0
  %1175 = vmatprep.subr.bf16.mxu0 0
  %1176 = vmatpush1.bf16.msra.mxu0 0
  %1177 = vmatprep.subr.bf16.mxu0 0
  %1178 = vmatpush1.bf16.msra.mxu0 0
  %1179 = vmatprep.subr.bf16.mxu0 0
  %1180 = vmatpush1.bf16.msra.mxu0 0
  %1181 = vmatprep.subr.bf16.mxu0 0
  %1182 = vmatpush1.bf16.msra.mxu0 0
  %1183 = vmatprep.subr.bf16.mxu0 0
  %1184 = vmatpush1.bf16.msra.mxu0 0
  %1185 = vmatprep.mubr.bf16.mxu0 0
  %1186 = vmatmul.mubr.bf16.gmra.mrb[0].mxu0 %v1152
  %v1187 = vpop.f32.mrb[0].mxu0
  %v1188 = vadd.f32 0.0, %v1187
  %v1189 = vpop.f32.mrb[0].mxu0
  %v1190 = vadd.f32 0.0, %v1189
  %v1191 = vpop.f32.mrb[0].mxu0
  %v1192 = vpop.f32.mrb[0].mxu0
  %1193 = vdwg.mxu0
  %1194 = vmatprep.subr.bf16.mxu0 0
  %1195 = vmatpush1.bf16.msra.mxu0 %v532
  %1196 = vmatprep.subr.bf16.mxu0 0
  %1197 = vmatpush1.bf16.msra.mxu0 %v535
  %1198 = vmatprep.subr.bf16.mxu0 0
  %1199 = vmatpush1.bf16.msra.mxu0 %v538
  %1200 = vmatprep.subr.bf16.mxu0 0
  %1201 = vmatpush1.bf16.msra.mxu0 %v541
  %1202 = vmatprep.subr.bf16.mxu0 0
  %1203 = vmatpush1.bf16.msra.mxu0 %v544
  %1204 = vmatprep.subr.bf16.mxu0 0
  %1205 = vmatpush1.bf16.msra.mxu0 %v547
  %1206 = vmatprep.subr.bf16.mxu0 0
  %1207 = vmatpush1.bf16.msra.mxu0 %v550
  %1208 = vmatprep.subr.bf16.mxu0 0
  %1209 = vmatpush1.bf16.msra.mxu0 %v553
  %1210 = vmatprep.subr.bf16.mxu0 0
  %1211 = vmatpush1.bf16.msra.mxu0 0
  %1212 = vmatprep.subr.bf16.mxu0 0
  %1213 = vmatpush1.bf16.msra.mxu0 0
  %1214 = vmatprep.subr.bf16.mxu0 0
  %1215 = vmatpush1.bf16.msra.mxu0 0
  %1216 = vmatprep.subr.bf16.mxu0 0
  %1217 = vmatpush1.bf16.msra.mxu0 0
  %1218 = vmatprep.subr.bf16.mxu0 0
  %1219 = vmatpush1.bf16.msra.mxu0 0
  %1220 = vmatprep.subr.bf16.mxu0 0
  %1221 = vmatpush1.bf16.msra.mxu0 0
  %1222 = vmatprep.subr.bf16.mxu0 0
  %1223 = vmatpush1.bf16.msra.mxu0 0
  %1224 = vmatprep.subr.bf16.mxu0 0
  %1225 = vmatpush1.bf16.msra.mxu0 0
  %1226 = vmatprep.mubr.bf16.mxu0 0
  %1227 = vmatmul.mubr.bf16.gmra.mrb[0].mxu0 %v1152
  %v1228 = vpop.f32.mrb[0].mxu0
  %v1229 = vadd.f32 0.0, %v1228
  %v1230 = vpop.f32.mrb[0].mxu0
  %v1231 = vpop.f32.mrb[0].mxu0
  %v1232 = vpop.f32.mrb[0].mxu0
  %1233 = vdwg.mxu0
  %v1234 = vadd.f32 %v1149, %v1188
  %v1235 = vxor.u32 %v1234, 2147483648
  %v1236 = vmul.f32 %v1235, 1.442695
  %v1237 = vpow.pop %v1236
  %v1238 = vadd.f32 %v1237, 1.0
  %v1239 = vrcp.pop %v1238
  %v1240 = vmul.f32 1.0, %v1239
  %v1241 = vadd.f32 %v1150, %v1190
  %v1242 = vxor.u32 %v1241, 2147483648
  %v1243 = vmul.f32 %v1242, 1.442695
  %v1244 = vpow.pop %v1243
  %v1245 = vadd.f32 %v1244, 1.0
  %v1246 = vrcp.pop %v1245
  %v1247 = vmul.f32 1.0, %v1246
  %v1248 = vadd.f32 %v1229, %v441
  %v1249 = vmul.f32 %v1240, %v1248
  %v1250 = vadd.f32 %v1151, %v1249
  %v1251 = vtanh.pop %v1250
  %v1252 = vsub.f32 %v1139, %v1251
  %v1253 = vmul.f32 %v1247, %v1252
  %v1254 = vadd.f32 %v1251, %v1253
  %s1255 = sadd.s32 %s680, 5
  %p1256 = scmp.eq.s32.totalorder %s1255, 7
  // Predicated region
  $region54: #{gru_forward.3} parent=0 // pred_check
    %p1257 = pneg %p1256
  $region55: #{gru_forward.3} parent=0 // pred_check_branch
    %1259 = sbr.rel (%p1257) target = $region57
  $region56: #{gru_forward.3} parent=0 // pred_region
    %1260 = vst [vmem:[#allocation4] sm:$0xff] %v1254
  $region57: #{gru_forward.3} parent=0 // pred_fallthru
    _
  %s1261 = smul.u32 6, 3
  %s1262 = smul.addr %s1261, 8
  %s1263 = scalar_lea.vmem [#allocation3], %s1262
  %v1264 = vld [vmem:[%s1263] sm:$0xff]
  %v1265 = vld [vmem:[%s1263 + $0x8] sm:$0xff]
  %v1266 = vld [vmem:[%s1263 + $0x10] sm:$0xff]
  %v1267 = vpack.c.bf16 %v1254, %v1254
  %1268 = vmatprep.subr.bf16.mxu0 %v531
  %1269 = vmatpush1.bf16.msra.mxu0 %v530
  %1270 = vmatprep.subr.bf16.mxu0 %v534
  %1271 = vmatpush1.bf16.msra.mxu0 %v533
  %1272 = vmatprep.subr.bf16.mxu0 %v537
  %1273 = vmatpush1.bf16.msra.mxu0 %v536
  %1274 = vmatprep.subr.bf16.mxu0 %v540
  %1275 = vmatpush1.bf16.msra.mxu0 %v539
  %1276 = vmatprep.subr.bf16.mxu0 %v543
  %1277 = vmatpush1.bf16.msra.mxu0 %v542
  %1278 = vmatprep.subr.bf16.mxu0 %v546
  %1279 = vmatpush1.bf16.msra.mxu0 %v545
  %1280 = vmatprep.subr.bf16.mxu0 %v549
  %1281 = vmatpush1.bf16.msra.mxu0 %v548
  %1282 = vmatprep.subr.bf16.mxu0 %v552
  %1283 = vmatpush1.bf16.msra.mxu0 %v551
  %1284 = vmatprep.subr.bf16.mxu0 0
  %1285 = vmatpush1.bf16.msra.mxu0 0
  %1286 = vmatprep.subr.bf16.mxu0 0
  %1287 = vmatpush1.bf16.msra.mxu0 0
  %1288 = vmatprep.subr.bf16.mxu0 0
  %1289 = vmatpush1.bf16.msra.mxu0 0
  %1290 = vmatprep.subr.bf16.mxu0 0
  %1291 = vmatpush1.bf16.msra.mxu0 0
  %1292 = vmatprep.subr.bf16.mxu0 0
  %1293 = vmatpush1.bf16.msra.mxu0 0
  %1294 = vmatprep.subr.bf16.mxu0 0
  %1295 = vmatpush1.bf16.msra.mxu0 0
  %1296 = vmatprep.subr.bf16.mxu0 0
  %1297 = vmatpush1.bf16.msra.mxu0 0
  %1298 = vmatprep.subr.bf16.mxu0 0
  %1299 = vmatpush1.bf16.msra.mxu0 0
  %1300 = vmatprep.mubr.bf16.mxu0 0
  %1301 = vmatmul.mubr.bf16.gmra.mrb[0].mxu0 %v1267
  %v1302 = vpop.f32.mrb[0].mxu0
  %v1303 = vadd.f32 0.0, %v1302
  %v1304 = vpop.f32.mrb[0].mxu0
  %v1305 = vadd.f32 0.0, %v1304
  %v1306 = vpop.f32.mrb[0].mxu0
  %v1307 = vpop.f32.mrb[0].mxu0
  %1308 = vdwg.mxu0
  %1309 = vmatprep.subr.bf16.mxu0 0
  %1310 = vmatpush1.bf16.msra.mxu0 %v532
  %1311 = vmatprep.subr.bf16.mxu0 0
  %1312 = vmatpush1.bf16.msra.mxu0 %v535
  %1313 = vmatprep.subr.bf16.mxu0 0
  %1314 = vmatpush1.bf16.msra.mxu0 %v538
  %1315 = vmatprep.subr.bf16.mxu0 0
  %1316 = vmatpush1.bf16.msra.mxu0 %v541
  %1317 = vmatprep.subr.bf16.mxu0 0
  %1318 = vmatpush1.bf16.msra.mxu0 %v544
  %1319 = vmatprep.subr.bf16.mxu0 0
  %1320 = vmatpush1.bf16.msra.mxu0 %v547
  %1321 = vmatprep.subr.bf16.mxu0 0
  %1322 = vmatpush1.bf16.msra.mxu0 %v550
  %1323 = vmatprep.subr.bf16.mxu0 0
  %1324 = vmatpush1.bf16.msra.mxu0 %v553
  %1325 = vmatprep.subr.bf16.mxu0 0
  %1326 = vmatpush1.bf16.msra.mxu0 0
  %1327 = vmatprep.subr.bf16.mxu0 0
  %1328 = vmatpush1.bf16.msra.mxu0 0
  %1329 = vmatprep.subr.bf16.mxu0 0
  %1330 = vmatpush1.bf16.msra.mxu0 0
  %1331 = vmatprep.subr.bf16.mxu0 0
  %1332 = vmatpush1.bf16.msra.mxu0 0
  %1333 = vmatprep.subr.bf16.mxu0 0
  %1334 = vmatpush1.bf16.msra.mxu0 0
  %1335 = vmatprep.subr.bf16.mxu0 0
  %1336 = vmatpush1.bf16.msra.mxu0 0
  %1337 = vmatprep.subr.bf16.mxu0 0
  %1338 = vmatpush1.bf16.msra.mxu0 0
  %1339 = vmatprep.subr.bf16.mxu0 0
  %1340 = vmatpush1.bf16.msra.mxu0 0
  %1341 = vmatprep.mubr.bf16.mxu0 0
  %1342 = vmatmul.mubr.bf16.gmra.mrb[0].mxu0 %v1267
  %v1343 = vpop.f32.mrb[0].mxu0
  %v1344 = vadd.f32 0.0, %v1343
  %v1345 = vpop.f32.mrb[0].mxu0
  %v1346 = vpop.f32.mrb[0].mxu0
  %v1347 = vpop.f32.mrb[0].mxu0
  %1348 = vdwg.mxu0
  %v1349 = vadd.f32 %v1264, %v1303
  %v1350 = vxor.u32 %v1349, 2147483648
  %v1351 = vmul.f32 %v1350, 1.442695
  %v1352 = vpow.pop %v1351
  %v1353 = vadd.f32 %v1352, 1.0
  %v1354 = vrcp.pop %v1353
  %v1355 = vmul.f32 1.0, %v1354
  %v1356 = vadd.f32 %v1265, %v1305
  %v1357 = vxor.u32 %v1356, 2147483648
  %v1358 = vmul.f32 %v1357, 1.442695
  %v1359 = vpow.pop %v1358
  %v1360 = vadd.f32 %v1359, 1.0
  %v1361 = vrcp.pop %v1360
  %v1362 = vmul.f32 1.0, %v1361
  %v1363 = vadd.f32 %v1344, %v441
  %v1364 = vmul.f32 %v1355, %v1363
  %v1365 = vadd.f32 %v1266, %v1364
  %v1366 = vtanh.pop %v1365
  %v1367 = vsub.f32 %v1254, %v1366
  %v1368 = vmul.f32 %v1362, %v1367
  %v1369 = vadd.f32 %v1366, %v1368
  %s1370 = sadd.s32 %s680, 6
  %p1371 = scmp.eq.s32.totalorder %s1370, 7
  // Predicated region
  $region58: #{gru_forward.3} parent=0 // pred_check
    %p1372 = pneg %p1371
  $region59: #{gru_forward.3} parent=0 // pred_check_branch
    %1374 = sbr.rel (%p1372) target = $region61
  $region60: #{gru_forward.3} parent=0 // pred_region
    %1375 = vst [vmem:[#allocation4] sm:$0xff] %v1369
  $region61: #{gru_forward.3} parent=0 // pred_fallthru
    _
  %s1376 = smul.u32 7, 3
  %s1377 = smul.addr %s1376, 8
  %s1378 = scalar_lea.vmem [#allocation3], %s1377
  %v1379 = vld [vmem:[%s1378] sm:$0xff]
  %v1380 = vld [vmem:[%s1378 + $0x8] sm:$0xff]
  %v1381 = vld [vmem:[%s1378 + $0x10] sm:$0xff]
  %v1382 = vpack.c.bf16 %v1369, %v1369
  %1383 = vmatprep.subr.bf16.mxu0 %v531
  %1384 = vmatpush1.bf16.msra.mxu0 %v530
  %1385 = vmatprep.subr.bf16.mxu0 %v534
  %1386 = vmatpush1.bf16.msra.mxu0 %v533
  %1387 = vmatprep.subr.bf16.mxu0 %v537
  %1388 = vmatpush1.bf16.msra.mxu0 %v536
  %1389 = vmatprep.subr.bf16.mxu0 %v540
  %1390 = vmatpush1.bf16.msra.mxu0 %v539
  %1391 = vmatprep.subr.bf16.mxu0 %v543
  %1392 = vmatpush1.bf16.msra.mxu0 %v542
  %1393 = vmatprep.subr.bf16.mxu0 %v546
  %1394 = vmatpush1.bf16.msra.mxu0 %v545
  %1395 = vmatprep.subr.bf16.mxu0 %v549
  %1396 = vmatpush1.bf16.msra.mxu0 %v548
  %1397 = vmatprep.subr.bf16.mxu0 %v552
  %1398 = vmatpush1.bf16.msra.mxu0 %v551
  %1399 = vmatprep.subr.bf16.mxu0 0
  %1400 = vmatpush1.bf16.msra.mxu0 0
  %1401 = vmatprep.subr.bf16.mxu0 0
  %1402 = vmatpush1.bf16.msra.mxu0 0
  %1403 = vmatprep.subr.bf16.mxu0 0
  %1404 = vmatpush1.bf16.msra.mxu0 0
  %1405 = vmatprep.subr.bf16.mxu0 0
  %1406 = vmatpush1.bf16.msra.mxu0 0
  %1407 = vmatprep.subr.bf16.mxu0 0
  %1408 = vmatpush1.bf16.msra.mxu0 0
  %1409 = vmatprep.subr.bf16.mxu0 0
  %1410 = vmatpush1.bf16.msra.mxu0 0
  %1411 = vmatprep.subr.bf16.mxu0 0
  %1412 = vmatpush1.bf16.msra.mxu0 0
  %1413 = vmatprep.subr.bf16.mxu0 0
  %1414 = vmatpush1.bf16.msra.mxu0 0
  %1415 = vmatprep.mubr.bf16.mxu0 0
  %1416 = vmatmul.mubr.bf16.gmra.mrb[0].mxu0 %v1382
  %v1417 = vpop.f32.mrb[0].mxu0
  %v1418 = vadd.f32 0.0, %v1417
  %v1419 = vpop.f32.mrb[0].mxu0
  %v1420 = vadd.f32 0.0, %v1419
  %v1421 = vpop.f32.mrb[0].mxu0
  %v1422 = vpop.f32.mrb[0].mxu0
  %1423 = vdwg.mxu0
  %1424 = vmatprep.subr.bf16.mxu0 0
  %1425 = vmatpush1.bf16.msra.mxu0 %v532
  %1426 = vmatprep.subr.bf16.mxu0 0
  %1427 = vmatpush1.bf16.msra.mxu0 %v535
  %1428 = vmatprep.subr.bf16.mxu0 0
  %1429 = vmatpush1.bf16.msra.mxu0 %v538
  %1430 = vmatprep.subr.bf16.mxu0 0
  %1431 = vmatpush1.bf16.msra.mxu0 %v541
  %1432 = vmatprep.subr.bf16.mxu0 0
  %1433 = vmatpush1.bf16.msra.mxu0 %v544
  %1434 = vmatprep.subr.bf16.mxu0 0
  %1435 = vmatpush1.bf16.msra.mxu0 %v547
  %1436 = vmatprep.subr.bf16.mxu0 0
  %1437 = vmatpush1.bf16.msra.mxu0 %v550
  %1438 = vmatprep.subr.bf16.mxu0 0
  %1439 = vmatpush1.bf16.msra.mxu0 %v553
  %1440 = vmatprep.subr.bf16.mxu0 0
  %1441 = vmatpush1.bf16.msra.mxu0 0
  %1442 = vmatprep.subr.bf16.mxu0 0
  %1443 = vmatpush1.bf16.msra.mxu0 0
  %1444 = vmatprep.subr.bf16.mxu0 0
  %1445 = vmatpush1.bf16.msra.mxu0 0
  %1446 = vmatprep.subr.bf16.mxu0 0
  %1447 = vmatpush1.bf16.msra.mxu0 0
  %1448 = vmatprep.subr.bf16.mxu0 0
  %1449 = vmatpush1.bf16.msra.mxu0 0
  %1450 = vmatprep.subr.bf16.mxu0 0
  %1451 = vmatpush1.bf16.msra.mxu0 0
  %1452 = vmatprep.subr.bf16.mxu0 0
  %1453 = vmatpush1.bf16.msra.mxu0 0
  %1454 = vmatprep.subr.bf16.mxu0 0
  %1455 = vmatpush1.bf16.msra.mxu0 0
  %1456 = vmatprep.mubr.bf16.mxu0 0
  %1457 = vmatmul.mubr.bf16.gmra.mrb[0].mxu0 %v1382
  %v1458 = vpop.f32.mrb[0].mxu0
  %v1459 = vadd.f32 0.0, %v1458
  %v1460 = vpop.f32.mrb[0].mxu0
  %v1461 = vpop.f32.mrb[0].mxu0
  %v1462 = vpop.f32.mrb[0].mxu0
  %1463 = vdwg.mxu0
  %v1464 = vadd.f32 %v1379, %v1418
  %v1465 = vxor.u32 %v1464, 2147483648
  %v1466 = vmul.f32 %v1465, 1.442695
  %v1467 = vpow.pop %v1466
  %v1468 = vadd.f32 %v1467, 1.0
  %v1469 = vrcp.pop %v1468
  %v1470 = vmul.f32 1.0, %v1469
  %v1471 = vadd.f32 %v1380, %v1420
  %v1472 = vxor.u32 %v1471, 2147483648
  %v1473 = vmul.f32 %v1472, 1.442695
  %v1474 = vpow.pop %v1473
  %v1475 = vadd.f32 %v1474, 1.0
  %v1476 = vrcp.pop %v1475
  %v1477 = vmul.f32 1.0, %v1476
  %v1478 = vadd.f32 %v1459, %v441
  %v1479 = vmul.f32 %v1470, %v1478
  %v1480 = vadd.f32 %v1381, %v1479
  %v1481 = vtanh.pop %v1480
  %v1482 = vsub.f32 %v1369, %v1481
  %v1483 = vmul.f32 %v1477, %v1482
  %v1484 = vadd.f32 %v1481, %v1483
  %s1485 = sadd.s32 %s680, 7
  %p1486 = scmp.eq.s32.totalorder %s1485, 7
  // Predicated region
  $region62: #{gru_forward.3} parent=0 // pred_check
    %p1487 = pneg %p1486
  $region63: #{gru_forward.3} parent=0 // pred_check_branch
    %1489 = sbr.rel (%p1487) target = $region65
  $region64: #{gru_forward.3} parent=0 // pred_region
    %1490 = vst [vmem:[#allocation4] sm:$0xff] %v1484
  $region65: #{gru_forward.3} parent=0 // pred_fallthru
    _
  %1491 = vst [vmem:[#allocation2] sm:$0xff] %v1484
  // Predicated region
  $region66: #{gru_forward.3} parent=0 // pred_check
    %p1492 = pneg %p27
  $region67: #{gru_forward.3} parent=0 // pred_check_branch
    %1494 = sbr.rel (%p1492) target = $region69
  $region68: #{gru_forward.3} parent=0 // pred_region
    %v1495 = vld [vmem:[#allocation4] sm:$0xff]
    %v1496 = vmax.f32 %v1495, 0.0
    %v1497 = vpack.c.bf16 %v1496, %v1496
    %v1498 = vld [vmem:[%s5] sm:$0xf]
    %v1499 = vld [vmem:[%s5 + $0x4] sm:$0xf]
    %v1500 = vld [vmem:[%s5 + $0x8] sm:$0xf]
    %v1501 = vld [vmem:[%s5 + $0xc] sm:$0xf]
    %v1502 = vld [vmem:[%s5 + $0x10] sm:$0xf]
    %v1503 = vld [vmem:[%s5 + $0x14] sm:$0xf]
    %v1504 = vld [vmem:[%s5 + $0x18] sm:$0xf]
    %v1505 = vld [vmem:[%s5 + $0x1c] sm:$0xf]
    %v1506 = vld [vmem:[%s5 + $0x20] sm:$0xf]
    %v1507 = vld [vmem:[%s5 + $0x24] sm:$0xf]
    %v1508 = vld [vmem:[%s5 + $0x28] sm:$0xf]
    %v1509 = vld [vmem:[%s5 + $0x2c] sm:$0xf]
    %v1510 = vld [vmem:[%s5 + $0x30] sm:$0xf]
    %v1511 = vld [vmem:[%s5 + $0x34] sm:$0xf]
    %v1512 = vld [vmem:[%s5 + $0x38] sm:$0xf]
    %v1513 = vld [vmem:[%s5 + $0x3c] sm:$0xf]
    %v1514 = vld [vmem:[%s6] sm:$0x1]
    %v1516 = vlaneseq
    %v1517 = vshrl.u32 %v1516, 7
    %v1518 = vsub.s32 0, %v1517
    %v1519 = vrot.slane %v1514, %v1518
    %v1537 = vunpack.c.l.b16 %v1498
    %v1538 = vunpack.c.l.b16 %v1499
    %v1539 = vunpack.c.l.b16 %v1500
    %v1540 = vunpack.c.l.b16 %v1501
    %v1541 = vunpack.c.l.b16 %v1502
    %v1542 = vunpack.c.l.b16 %v1503
    %v1543 = vunpack.c.l.b16 %v1504
    %v1544 = vunpack.c.l.b16 %v1505
    %v1545 = vunpack.c.l.b16 %v1506
    %v1546 = vunpack.c.l.b16 %v1507
    %v1547 = vunpack.c.l.b16 %v1508
    %v1548 = vunpack.c.l.b16 %v1509
    %v1549 = vunpack.c.l.b16 %v1510
    %v1550 = vunpack.c.l.b16 %v1511
    %v1551 = vunpack.c.l.b16 %v1512
    %v1552 = vunpack.c.l.b16 %v1513
    %v1553 = vpack.c.b16 %v1538, %v1537
    %v1554 = vpack.c.b16 %v1540, %v1539
    %v1555 = vpack.c.b16 %v1542, %v1541
    %v1556 = vpack.c.b16 %v1544, %v1543
    %v1557 = vpack.c.b16 %v1546, %v1545
    %v1558 = vpack.c.b16 %v1548, %v1547
    %v1559 = vpack.c.b16 %v1550, %v1549
    %v1560 = vpack.c.b16 %v1552, %v1551
    %1569 = vmatprep.subr.bf16.mxu0 0
    %1570 = vmatpush1.bf16.msra.mxu0 %v1553
    %1571 = vmatprep.subr.bf16.mxu0 0
    %1572 = vmatpush1.bf16.msra.mxu0 %v1554
    %1573 = vmatprep.subr.bf16.mxu0 0
    %1574 = vmatpush1.bf16.msra.mxu0 %v1555
    %1575 = vmatprep.subr.bf16.mxu0 0
    %1576 = vmatpush1.bf16.msra.mxu0 %v1556
    %1577 = vmatprep.subr.bf16.mxu0 0
    %1578 = vmatpush1.bf16.msra.mxu0 %v1557
    %1579 = vmatprep.subr.bf16.mxu0 0
    %1580 = vmatpush1.bf16.msra.mxu0 %v1558
    %1581 = vmatprep.subr.bf16.mxu0 0
    %1582 = vmatpush1.bf16.msra.mxu0 %v1559
    %1583 = vmatprep.subr.bf16.mxu0 0
    %1584 = vmatpush1.bf16.msra.mxu0 %v1560
    %1585 = vmatprep.subr.bf16.mxu0 0
    %1586 = vmatpush1.bf16.msra.mxu0 0
    %1587 = vmatprep.subr.bf16.mxu0 0
    %1588 = vmatpush1.bf16.msra.mxu0 0
    %1589 = vmatprep.subr.bf16.mxu0 0
    %1590 = vmatpush1.bf16.msra.mxu0 0
    %1591 = vmatprep.subr.bf16.mxu0 0
    %1592 = vmatpush1.bf16.msra.mxu0 0
    %1593 = vmatprep.subr.bf16.mxu0 0
    %1594 = vmatpush1.bf16.msra.mxu0 0
    %1595 = vmatprep.subr.bf16.mxu0 0
    %1596 = vmatpush1.bf16.msra.mxu0 0
    %1597 = vmatprep.subr.bf16.mxu0 0
    %1598 = vmatpush1.bf16.msra.mxu0 0
    %1599 = vmatprep.subr.bf16.mxu0 0
    %1600 = vmatpush1.bf16.msra.mxu0 0
    %1601 = vmatprep.mubr.bf16.mxu0 0
    %1602 = vmatmul.mubr.bf16.gmra.mrb[0].mxu0 %v1497
    %v1603 = vpop.f32.mrb[0].mxu0
    %v1604 = vadd.f32 %v1519, %v1603
    %v1605 = vpop.f32.mrb[0].mxu0
    %v1606 = vpop.f32.mrb[0].mxu0
    %v1607 = vpop.f32.mrb[0].mxu0
    %1608 = vdwg.mxu0
    %1609 = vst [vmem:[%s7] sm:$0xff] %v1604
  $region69: #{gru_forward.3} parent=0 // pred_fallthru
    _
  // Predicated region
  $region70: #{gru_forward.3} parent=0 // pred_check
    _
  $region71: #{gru_forward.3} parent=0 // pred_check_branch
    %1611 = sbr.rel (0) target = $region73
  $region72: #{gru_forward.3} parent=0 // pred_region
    _
  $region73: #{gru_forward.3} parent=0 // pred_fallthru
    _
  // Predicated region
  $region74: #{gru_forward.3} parent=0 // pred_check
    _
  $region75: #{gru_forward.3} parent=0 // pred_check_branch
    %1613 = sbr.rel (0) target = $region77
  $region76: #{gru_forward.3} parent=0 // pred_region
    _
  $region77: #{gru_forward.3} parent=0 // pred_fallthru
    _

// kernel: gru_forward.3
$region0: #{gru_forward.3}
  #allocation0 [shape = 'u32[]', space=smem, size = 0x4, offset = 0x4, fixed_abs, tag = 'smem constant byte address 0x4 - core index']
  #allocation1 [shape = 'u32[144,128]{1,0:T(1,128)}', space=vmem, size = 0x12000, scoped, tag = 'internal scratch']
  #allocation2 [shape = 'f32[8,128]{1,0:T(8,128)}', space=vmem, size = 0x1000, scoped, tag = 'scratch operand']
  #allocation3 [shape = 'f32[64,384]{1,0:T(8,128)}', space=vmem, size = 0x18000, scoped, tag = 'scratch operand']
  #allocation4 [shape = 'f32[8,128]{1,0:T(8,128)}', space=vmem, size = 0x1000, scoped, tag = 'scratch operand']
  %s0 = inlined_call_operand.vmem [shape: bf16[8,8,128], index: 0, kind: input, shape index: {}]
  %s1 = inlined_call_operand.vmem [shape: bf16[128,384], index: 1, kind: input, shape index: {}]
  %s2 = inlined_call_operand.vmem [shape: bf16[128,384], index: 2, kind: input, shape index: {}]
  %s3 = inlined_call_operand.vmem [shape: f32[1,384], index: 3, kind: input, shape index: {}]
  %s4 = inlined_call_operand.vmem [shape: f32[1,128], index: 4, kind: input, shape index: {}]
  %s5 = inlined_call_operand.vmem [shape: bf16[128,128], index: 5, kind: input, shape index: {}]
  %s6 = inlined_call_operand.vmem [shape: f32[1,128], index: 6, kind: input, shape index: {}]
  %s7 = inlined_call_operand.vmem [shape: f32[8,128], index: 7, kind: output, shape index: {}]
  %s8 = sld [smem:[#allocation0]]
  $region78: #{gru_forward.3} parent=0
    _
  %s10 = ssub.s32 1, %s8
  %s11 = scalar_select 0, %s10, %s8
  // Predicated region
  $region2: #{gru_forward.3} parent=0 // pred_check
    _
  $region3: #{gru_forward.3} parent=0 // pred_check_branch
    %13 = sbr.rel (0) target = $region5
  $region4: #{gru_forward.3} parent=0 // pred_region
    _
  $region5: #{gru_forward.3} parent=0 // pred_fallthru
    _
  // Predicated region
  $region6: #{gru_forward.3} parent=0 // pred_check
    _
  $region7: #{gru_forward.3} parent=0 // pred_check_branch
    %15 = sbr.rel (0) target = $region9
  $region8: #{gru_forward.3} parent=0 // pred_region
    _
  $region9: #{gru_forward.3} parent=0 // pred_fallthru
    _
  // Predicated region
  $region10: #{gru_forward.3} parent=0 // pred_check
    _
  $region11: #{gru_forward.3} parent=0 // pred_check_branch
    %17 = sbr.rel (0) target = $region13
  $region12: #{gru_forward.3} parent=0 // pred_region
    _
  $region13: #{gru_forward.3} parent=0 // pred_fallthru
    _
  // Predicated region
  $region14: #{gru_forward.3} parent=0 // pred_check
    _
  $region15: #{gru_forward.3} parent=0 // pred_check_branch
    %19 = sbr.rel (0) target = $region17
  $region16: #{gru_forward.3} parent=0 // pred_region
    _
  $region17: #{gru_forward.3} parent=0 // pred_fallthru
    _
  // Predicated region
  $region18: #{gru_forward.3} parent=0 // pred_check
    _
  $region19: #{gru_forward.3} parent=0 // pred_check_branch
    %21 = sbr.rel (0) target = $region21
  $region20: #{gru_forward.3} parent=0 // pred_region
    _
  $region21: #{gru_forward.3} parent=0 // pred_fallthru
    _
  // Predicated region
  $region22: #{gru_forward.3} parent=0 // pred_check
    _
  $region23: #{gru_forward.3} parent=0 // pred_check_branch
    %23 = sbr.rel (0) target = $region25
  $region24: #{gru_forward.3} parent=0 // pred_region
    _
  $region25: #{gru_forward.3} parent=0 // pred_fallthru
    _
  // Predicated region
  $region26: #{gru_forward.3} parent=0 // pred_check
    _
  $region27: #{gru_forward.3} parent=0 // pred_check_branch
    %25 = sbr.rel (0) target = $region29
  $region28: #{gru_forward.3} parent=0 // pred_region
    _
  $region29: #{gru_forward.3} parent=0 // pred_fallthru
    _
  %p27 = scmp.eq.s32.totalorder 0, 0
  // Predicated region
  $region30: #{gru_forward.3} parent=0 // pred_check
    %p28 = pneg %p27
  $region31: #{gru_forward.3} parent=0 // pred_check_branch
    %30 = sbr.rel (%p28) target = $region33
  $region32: #{gru_forward.3} parent=0 // pred_region
    %31 = vst [vmem:[#allocation2] sm:$0xff] 0.0
  $region33: #{gru_forward.3} parent=0 // pred_fallthru
    _
  %v32 = vld [vmem:[%s0] sm:$0xf]
  %v33 = vld [vmem:[%s0 + $0x4] sm:$0xf]
  %v34 = vld [vmem:[%s0 + $0x8] sm:$0xf]
  %v35 = vld [vmem:[%s0 + $0xc] sm:$0xf]
  %v36 = vld [vmem:[%s0 + $0x10] sm:$0xf]
  %v37 = vld [vmem:[%s0 + $0x14] sm:$0xf]
  %v38 = vld [vmem:[%s0 + $0x18] sm:$0xf]
  %v39 = vld [vmem:[%s0 + $0x1c] sm:$0xf]
  %v40 = vld [vmem:[%s1] sm:$0xff]
  %v41 = vld [vmem:[%s1 + $0x8] sm:$0xf]
  %v42 = vld [vmem:[%s1 + $0xc] sm:$0xff]
  %v43 = vld [vmem:[%s1 + $0x14] sm:$0xf]
  %v44 = vld [vmem:[%s1 + $0x18] sm:$0xff]
  %v45 = vld [vmem:[%s1 + $0x20] sm:$0xf]
  %v46 = vld [vmem:[%s1 + $0x24] sm:$0xff]
  %v47 = vld [vmem:[%s1 + $0x2c] sm:$0xf]
  %v48 = vld [vmem:[%s1 + $0x30] sm:$0xff]
  %v49 = vld [vmem:[%s1 + $0x38] sm:$0xf]
  %v50 = vld [vmem:[%s1 + $0x3c] sm:$0xff]
  %v51 = vld [vmem:[%s1 + $0x44] sm:$0xf]
  %v52 = vld [vmem:[%s1 + $0x48] sm:$0xff]
  %v53 = vld [vmem:[%s1 + $0x50] sm:$0xf]
  %v54 = vld [vmem:[%s1 + $0x54] sm:$0xff]
  %v55 = vld [vmem:[%s1 + $0x5c] sm:$0xf]
  %v56 = vld [vmem:[%s1 + $0x60] sm:$0xff]
  %v57 = vld [vmem:[%s1 + $0x68] sm:$0xf]
  %v58 = vld [vmem:[%s1 + $0x6c] sm:$0xff]
  %v59 = vld [vmem:[%s1 + $0x74] sm:$0xf]
  %v60 = vld [vmem:[%s1 + $0x78] sm:$0xff]
  %v61 = vld [vmem:[%s1 + $0x80] sm:$0xf]
  %v62 = vld [vmem:[%s1 + $0x84] sm:$0xff]
  %v63 = vld [vmem:[%s1 + $0x8c] sm:$0xf]
  %v64 = vld [vmem:[%s1 + $0x90] sm:$0xff]
  %v65 = vld [vmem:[%s1 + $0x98] sm:$0xf]
  %v66 = vld [vmem:[%s1 + $0x9c] sm:$0xff]
  %v67 = vld [vmem:[%s1 + $0xa4] sm:$0xf]
  %v68 = vld [vmem:[%s1 + $0xa8] sm:$0xff]
  %v69 = vld [vmem:[%s1 + $0xb0] sm:$0xf]
  %v70 = vld [vmem:[%s1 + $0xb4] sm:$0xff]
  %v71 = vld [vmem:[%s1 + $0xbc] sm:$0xf]
  %v72 = vld [vmem:[%s3] sm:$0x7]
  %v74 = vlaneseq
  %v75 = vshrl.u32 %v74, 7
  %v76 = vsub.s32 0, %v75
  %v77 = vrot.slane %v72, %v76
  %v78 = vlaneseq
  %v79 = vshrl.u32 %v78, 7
  %v80 = vsub.s32 1, %v79
  %v81 = vrot.slane %v72, %v80
  %v82 = vlaneseq
  %v83 = vshrl.u32 %v82, 7
  %v84 = vsub.s32 2, %v83
  %v85 = vrot.slane %v72, %v84
  %v97 = vunpack.c.l.b16 %v32
  %v98 = vunpack.c.l.b16 %v33
  %v99 = vunpack.c.l.b16 %v34
  %v100 = vunpack.c.l.b16 %v35
  %v101 = vunpack.c.l.b16 %v36
  %v102 = vunpack.c.l.b16 %v37
  %v103 = vunpack.c.l.b16 %v38
  %v104 = vunpack.c.l.b16 %v39
  %v105 = vpack.c.b16 %v98, %v97
  %v106 = vpack.c.b16 %v100, %v99
  %v107 = vpack.c.b16 %v102, %v101
  %v108 = vpack.c.b16 %v104, %v103
  %v145 = vunpack.c.l.b16 %v40
  %v146 = vunpack.c.h.b16 %v40
  %v147 = vunpack.c.l.b16 %v41
  %v148 = vunpack.c.l.b16 %v42
  %v149 = vunpack.c.h.b16 %v42
  %v150 = vunpack.c.l.b16 %v43
  %v151 = vunpack.c.l.b16 %v44
  %v152 = vunpack.c.h.b16 %v44
  %v153 = vunpack.c.l.b16 %v45
  %v154 = vunpack.c.l.b16 %v46
  %v155 = vunpack.c.h.b16 %v46
  %v156 = vunpack.c.l.b16 %v47
  %v157 = vunpack.c.l.b16 %v48
  %v158 = vunpack.c.h.b16 %v48
  %v159 = vunpack.c.l.b16 %v49
  %v160 = vunpack.c.l.b16 %v50
  %v161 = vunpack.c.h.b16 %v50
  %v162 = vunpack.c.l.b16 %v51
  %v163 = vunpack.c.l.b16 %v52
  %v164 = vunpack.c.h.b16 %v52
  %v165 = vunpack.c.l.b16 %v53
  %v166 = vunpack.c.l.b16 %v54
  %v167 = vunpack.c.h.b16 %v54
  %v168 = vunpack.c.l.b16 %v55
  %v169 = vunpack.c.l.b16 %v56
  %v170 = vunpack.c.h.b16 %v56
  %v171 = vunpack.c.l.b16 %v57
  %v172 = vunpack.c.l.b16 %v58
  %v173 = vunpack.c.h.b16 %v58
  %v174 = vunpack.c.l.b16 %v59
  %v175 = vunpack.c.l.b16 %v60
  %v176 = vunpack.c.h.b16 %v60
  %v177 = vunpack.c.l.b16 %v61
  %v178 = vunpack.c.l.b16 %v62
  %v179 = vunpack.c.h.b16 %v62
  %v180 = vunpack.c.l.b16 %v63
  %v181 = vunpack.c.l.b16 %v64
  %v182 = vunpack.c.h.b16 %v64
  %v183 = vunpack.c.l.b16 %v65
  %v184 = vunpack.c.l.b16 %v66
  %v185 = vunpack.c.h.b16 %v66
  %v186 = vunpack.c.l.b16 %v67
  %v187 = vunpack.c.l.b16 %v68
  %v188 = vunpack.c.h.b16 %v68
  %v189 = vunpack.c.l.b16 %v69
  %v190 = vunpack.c.l.b16 %v70
  %v191 = vunpack.c.h.b16 %v70
  %v192 = vunpack.c.l.b16 %v71
  %v193 = vpack.c.b16 %v148, %v145
  %v194 = vpack.c.b16 %v149, %v146
  %v195 = vpack.c.b16 %v150, %v147
  %v196 = vpack.c.b16 %v154, %v151
  %v197 = vpack.c.b16 %v155, %v152
  %v198 = vpack.c.b16 %v156, %v153
  %v199 = vpack.c.b16 %v160, %v157
  %v200 = vpack.c.b16 %v161, %v158
  %v201 = vpack.c.b16 %v162, %v159
  %v202 = vpack.c.b16 %v166, %v163
  %v203 = vpack.c.b16 %v167, %v164
  %v204 = vpack.c.b16 %v168, %v165
  %v205 = vpack.c.b16 %v172, %v169
  %v206 = vpack.c.b16 %v173, %v170
  %v207 = vpack.c.b16 %v174, %v171
  %v208 = vpack.c.b16 %v178, %v175
  %v209 = vpack.c.b16 %v179, %v176
  %v210 = vpack.c.b16 %v180, %v177
  %v211 = vpack.c.b16 %v184, %v181
  %v212 = vpack.c.b16 %v185, %v182
  %v213 = vpack.c.b16 %v186, %v183
  %v214 = vpack.c.b16 %v190, %v187
  %v215 = vpack.c.b16 %v191, %v188
  %v216 = vpack.c.b16 %v192, %v189
  %241 = vmatprep.subr.bf16.mxu0 %v194
  %242 = vmatpush1.bf16.msra.mxu0 %v193
  %243 = vmatprep.subr.bf16.mxu0 %v197
  %244 = vmatpush1.bf16.msra.mxu0 %v196
  %245 = vmatprep.subr.bf16.mxu0 %v200
  %246 = vmatpush1.bf16.msra.mxu0 %v199
  %247 = vmatprep.subr.bf16.mxu0 %v203
  %248 = vmatpush1.bf16.msra.mxu0 %v202
  %249 = vmatprep.subr.bf16.mxu0 %v206
  %250 = vmatpush1.bf16.msra.mxu0 %v205
  %251 = vmatprep.subr.bf16.mxu0 %v209
  %252 = vmatpush1.bf16.msra.mxu0 %v208
  %253 = vmatprep.subr.bf16.mxu0 %v212
  %254 = vmatpush1.bf16.msra.mxu0 %v211
  %255 = vmatprep.subr.bf16.mxu0 %v215
  %256 = vmatpush1.bf16.msra.mxu0 %v214
  %257 = vmatprep.subr.bf16.mxu0 0
  %258 = vmatpush1.bf16.msra.mxu0 0
  %259 = vmatprep.subr.bf16.mxu0 0
  %260 = vmatpush1.bf16.msra.mxu0 0
  %261 = vmatprep.subr.bf16.mxu0 0
  %262 = vmatpush1.bf16.msra.mxu0 0
  %263 = vmatprep.subr.bf16.mxu0 0
  %264 = vmatpush1.bf16.msra.mxu0 0
  %265 = vmatprep.subr.bf16.mxu0 0
  %266 = vmatpush1.bf16.msra.mxu0 0
  %267 = vmatprep.subr.bf16.mxu0 0
  %268 = vmatpush1.bf16.msra.mxu0 0
  %269 = vmatprep.subr.bf16.mxu0 0
  %270 = vmatpush1.bf16.msra.mxu0 0
  %271 = vmatprep.subr.bf16.mxu0 0
  %272 = vmatpush1.bf16.msra.mxu0 0
  %273 = vmatprep.mubr.bf16.mxu0 0
  %274 = vmatmul.mubr.bf16.gmra.mrb[0].mxu0 %v105
  %v275 = vpop.f32.mrb[0].mxu0
  %v276 = vadd.f32 %v77, %v275
  %v277 = vpop.f32.mrb[0].mxu0
  %v278 = vadd.f32 %v81, %v277
  %v279 = vpop.f32.mrb[0].mxu0
  %v280 = vadd.f32 %v77, %v279
  %v281 = vpop.f32.mrb[0].mxu0
  %v282 = vadd.f32 %v81, %v281
  %283 = vmatprep.mubr.bf16.mxu0 0
  %284 = vmatmul.mubr.bf16.gmra.mrb[0].mxu0 %v106
  %v285 = vpop.f32.mrb[0].mxu0
  %v286 = vadd.f32 %v77, %v285
  %v287 = vpop.f32.mrb[0].mxu0
  %v288 = vadd.f32 %v81, %v287
  %v289 = vpop.f32.mrb[0].mxu0
  %v290 = vadd.f32 %v77, %v289
  %v291 = vpop.f32.mrb[0].mxu0
  %v292 = vadd.f32 %v81, %v291
  %293 = vmatprep.mubr.bf16.mxu0 0
  %294 = vmatmul.mubr.bf16.gmra.mrb[0].mxu0 %v107
  %v295 = vpop.f32.mrb[0].mxu0
  %v296 = vadd.f32 %v77, %v295
  %v297 = vpop.f32.mrb[0].mxu0
  %v298 = vadd.f32 %v81, %v297
  %v299 = vpop.f32.mrb[0].mxu0
  %v300 = vadd.f32 %v77, %v299
  %v301 = vpop.f32.mrb[0].mxu0
  %v302 = vadd.f32 %v81, %v301
  %303 = vmatprep.mubr.bf16.mxu0 0
  %304 = vmatmul.mubr.bf16.gmra.mrb[0].mxu0 %v108
  %v305 = vpop.f32.mrb[0].mxu0
  %v306 = vadd.f32 %v77, %v305
  %v307 = vpop.f32.mrb[0].mxu0
  %v308 = vadd.f32 %v81, %v307
  %v309 = vpop.f32.mrb[0].mxu0
  %v310 = vadd.f32 %v77, %v309
  %v311 = vpop.f32.mrb[0].mxu0
  %v312 = vadd.f32 %v81, %v311
  %313 = vdwg.mxu0
  %314 = vmatprep.subr.bf16.mxu0 0
  %315 = vmatpush1.bf16.msra.mxu0 %v195
  %316 = vmatprep.subr.bf16.mxu0 0
  %317 = vmatpush1.bf16.msra.mxu0 %v198
  %318 = vmatprep.subr.bf16.mxu0 0
  %319 = vmatpush1.bf16.msra.mxu0 %v201
  %320 = vmatprep.subr.bf16.mxu0 0
  %321 = vmatpush1.bf16.msra.mxu0 %v204
  %322 = vmatprep.subr.bf16.mxu0 0
  %323 = vmatpush1.bf16.msra.mxu0 %v207
  %324 = vmatprep.subr.bf16.mxu0 0
  %325 = vmatpush1.bf16.msra.mxu0 %v210
  %326 = vmatprep.subr.bf16.mxu0 0
  %327 = vmatpush1.bf16.msra.mxu0 %v213
  %328 = vmatprep.subr.bf16.mxu0 0
  %329 = vmatpush1.bf16.msra.mxu0 %v216
  %330 = vmatprep.subr.bf16.mxu0 0
  %331 = vmatpush1.bf16.msra.mxu0 0
  %332 = vmatprep.subr.bf16.mxu0 0
  %333 = vmatpush1.bf16.msra.mxu0 0
  %334 = vmatprep.subr.bf16.mxu0 0
  %335 = vmatpush1.bf16.msra.mxu0 0
  %336 = vmatprep.subr.bf16.mxu0 0
  %337 = vmatpush1.bf16.msra.mxu0 0
  %338 = vmatprep.subr.bf16.mxu0 0
  %339 = vmatpush1.bf16.msra.mxu0 0
  %340 = vmatprep.subr.bf16.mxu0 0
  %341 = vmatpush1.bf16.msra.mxu0 0
  %342 = vmatprep.subr.bf16.mxu0 0
  %343 = vmatpush1.bf16.msra.mxu0 0
  %344 = vmatprep.subr.bf16.mxu0 0
  %345 = vmatpush1.bf16.msra.mxu0 0
  %346 = vmatprep.mubr.bf16.mxu0 0
  %347 = vmatmul.mubr.bf16.gmra.mrb[0].mxu0 %v105
  %v348 = vpop.f32.mrb[0].mxu0
  %v349 = vadd.f32 %v85, %v348
  %v350 = vpop.f32.mrb[0].mxu0
  %v351 = vpop.f32.mrb[0].mxu0
  %v352 = vadd.f32 %v85, %v351
  %v353 = vpop.f32.mrb[0].mxu0
  %354 = vmatprep.mubr.bf16.mxu0 0
  %355 = vmatmul.mubr.bf16.gmra.mrb[0].mxu0 %v106
  %v356 = vpop.f32.mrb[0].mxu0
  %v357 = vadd.f32 %v85, %v356
  %v358 = vpop.f32.mrb[0].mxu0
  %v359 = vpop.f32.mrb[0].mxu0
  %v360 = vadd.f32 %v85, %v359
  %v361 = vpop.f32.mrb[0].mxu0
  %362 = vmatprep.mubr.bf16.mxu0 0
  %363 = vmatmul.mubr.bf16.gmra.mrb[0].mxu0 %v107
  %v364 = vpop.f32.mrb[0].mxu0
  %v365 = vadd.f32 %v85, %v364
  %v366 = vpop.f32.mrb[0].mxu0
  %v367 = vpop.f32.mrb[0].mxu0
  %v368 = vadd.f32 %v85, %v367
  %v369 = vpop.f32.mrb[0].mxu0
  %370 = vmatprep.mubr.bf16.mxu0 0
  %371 = vmatmul.mubr.bf16.gmra.mrb[0].mxu0 %v108
  %v372 = vpop.f32.mrb[0].mxu0
  %v373 = vadd.f32 %v85, %v372
  %v374 = vpop.f32.mrb[0].mxu0
  %v375 = vpop.f32.mrb[0].mxu0
  %v376 = vadd.f32 %v85, %v375
  %v377 = vpop.f32.mrb[0].mxu0
  %378 = vdwg.mxu0
  %379 = vst [vmem:[#allocation3] sm:$0xff] %v276
  %380 = vst [vmem:[#allocation3 + $0x8] sm:$0xff] %v278
  %381 = vst [vmem:[#allocation3 + $0x10] sm:$0xff] %v349
  %382 = vst [vmem:[#allocation3 + $0x18] sm:$0xff] %v280
  %383 = vst [vmem:[#allocation3 + $0x20] sm:$0xff] %v282
  %384 = vst [vmem:[#allocation3 + $0x28] sm:$0xff] %v352
  %385 = vst [vmem:[#allocation3 + $0x30] sm:$0xff] %v286
  %386 = vst [vmem:[#allocation3 + $0x38] sm:$0xff] %v288
  %387 = vst [vmem:[#allocation3 + $0x40] sm:$0xff] %v357
  %388 = vst [vmem:[#allocation3 + $0x48] sm:$0xff] %v290
  %389 = vst [vmem:[#allocation3 + $0x50] sm:$0xff] %v292
  %390 = vst [vmem:[#allocation3 + $0x58] sm:$0xff] %v360
  %391 = vst [vmem:[#allocation3 + $0x60] sm:$0xff] %v296
  %392 = vst [vmem:[#allocation3 + $0x68] sm:$0xff] %v298
  %393 = vst [vmem:[#allocation3 + $0x70] sm:$0xff] %v365
  %394 = vst [vmem:[#allocation3 + $0x78] sm:$0xff] %v300
  %395 = vst [vmem:[#allocation3 + $0x80] sm:$0xff] %v302
  %396 = vst [vmem:[#allocation3 + $0x88] sm:$0xff] %v368
  %397 = vst [vmem:[#allocation3 + $0x90] sm:$0xff] %v306
  %398 = vst [vmem:[#allocation3 + $0x98] sm:$0xff] %v308
  %399 = vst [vmem:[#allocation3 + $0xa0] sm:$0xff] %v373
  %400 = vst [vmem:[#allocation3 + $0xa8] sm:$0xff] %v310
  %401 = vst [vmem:[#allocation3 + $0xb0] sm:$0xff] %v312
  %402 = vst [vmem:[#allocation3 + $0xb8] sm:$0xff] %v376
  %v403 = vld [vmem:[#allocation2] sm:$0xff]
  %v404 = vld [vmem:[%s2] sm:$0xff]
  %v405 = vld [vmem:[%s2 + $0x8] sm:$0xf]
  %v406 = vld [vmem:[%s2 + $0xc] sm:$0xff]
  %v407 = vld [vmem:[%s2 + $0x14] sm:$0xf]
  %v408 = vld [vmem:[%s2 + $0x18] sm:$0xff]
  %v409 = vld [vmem:[%s2 + $0x20] sm:$0xf]
  %v410 = vld [vmem:[%s2 + $0x24] sm:$0xff]
  %v411 = vld [vmem:[%s2 + $0x2c] sm:$0xf]
  %v412 = vld [vmem:[%s2 + $0x30] sm:$0xff]
  %v413 = vld [vmem:[%s2 + $0x38] sm:$0xf]
  %v414 = vld [vmem:[%s2 + $0x3c] sm:$0xff]
  %v415 = vld [vmem:[%s2 + $0x44] sm:$0xf]
  %v416 = vld [vmem:[%s2 + $0x48] sm:$0xff]
  %v417 = vld [vmem:[%s2 + $0x50] sm:$0xf]
  %v418 = vld [vmem:[%s2 + $0x54] sm:$0xff]
  %v419 = vld [vmem:[%s2 + $0x5c] sm:$0xf]
  %v420 = vld [vmem:[%s2 + $0x60] sm:$0xff]
  %v421 = vld [vmem:[%s2 + $0x68] sm:$0xf]
  %v422 = vld [vmem:[%s2 + $0x6c] sm:$0xff]
  %v423 = vld [vmem:[%s2 + $0x74] sm:$0xf]
  %v424 = vld [vmem:[%s2 + $0x78] sm:$0xff]
  %v425 = vld [vmem:[%s2 + $0x80] sm:$0xf]
  %v426 = vld [vmem:[%s2 + $0x84] sm:$0xff]
  %v427 = vld [vmem:[%s2 + $0x8c] sm:$0xf]
  %v428 = vld [vmem:[%s2 + $0x90] sm:$0xff]
  %v429 = vld [vmem:[%s2 + $0x98] sm:$0xf]
  %v430 = vld [vmem:[%s2 + $0x9c] sm:$0xff]
  %v431 = vld [vmem:[%s2 + $0xa4] sm:$0xf]
  %v432 = vld [vmem:[%s2 + $0xa8] sm:$0xff]
  %v433 = vld [vmem:[%s2 + $0xb0] sm:$0xf]
  %v434 = vld [vmem:[%s2 + $0xb4] sm:$0xff]
  %v435 = vld [vmem:[%s2 + $0xbc] sm:$0xf]
  %v436 = vld [vmem:[%s4] sm:$0x1]
  %v438 = vlaneseq
  %v439 = vshrl.u32 %v438, 7
  %v440 = vsub.s32 0, %v439
  %v441 = vrot.slane %v436, %v440
  %s443 = smul.u32 0, 3
  %s444 = smul.addr %s443, 8
  %s445 = scalar_lea.vmem [#allocation3], %s444
  %v446 = vld [vmem:[%s445] sm:$0xff]
  %v447 = vld [vmem:[%s445 + $0x8] sm:$0xff]
  %v448 = vld [vmem:[%s445 + $0x10] sm:$0xff]
  %v449 = vpack.c.bf16 %v403, %v403
  %v482 = vunpack.c.l.b16 %v404
  %v483 = vunpack.c.h.b16 %v404
  %v484 = vunpack.c.l.b16 %v405
  %v485 = vunpack.c.l.b16 %v406
  %v486 = vunpack.c.h.b16 %v406
  %v487 = vunpack.c.l.b16 %v407
  %v488 = vunpack.c.l.b16 %v408
  %v489 = vunpack.c.h.b16 %v408
  %v490 = vunpack.c.l.b16 %v409
  %v491 = vunpack.c.l.b16 %v410
  %v492 = vunpack.c.h.b16 %v410
  %v493 = vunpack.c.l.b16 %v411
  %v494 = vunpack.c.l.b16 %v412
  %v495 = vunpack.c.h.b16 %v412
  %v496 = vunpack.c.l.b16 %v413
  %v497 = vunpack.c.l.b16 %v414
  %v498 = vunpack.c.h.b16 %v414
  %v499 = vunpack.c.l.b16 %v415
  %v500 = vunpack.c.l.b16 %v416
  %v501 = vunpack.c.h.b16 %v416
  %v502 = vunpack.c.l.b16 %v417
  %v503 = vunpack.c.l.b16 %v418
  %v504 = vunpack.c.h.b16 %v418
  %v505 = vunpack.c.l.b16 %v419
  %v506 = vunpack.c.l.b16 %v420
  %v507 = vunpack.c.h.b16 %v420
  %v508 = vunpack.c.l.b16 %v421
  %v509 = vunpack.c.l.b16 %v422
  %v510 = vunpack.c.h.b16 %v422
  %v511 = vunpack.c.l.b16 %v423
  %v512 = vunpack.c.l.b16 %v424
  %v513 = vunpack.c.h.b16 %v424
  %v514 = vunpack.c.l.b16 %v425
  %v515 = vunpack.c.l.b16 %v426
  %v516 = vunpack.c.h.b16 %v426
  %v517 = vunpack.c.l.b16 %v427
  %v518 = vunpack.c.l.b16 %v428
  %v519 = vunpack.c.h.b16 %v428
  %v520 = vunpack.c.l.b16 %v429
  %v521 = vunpack.c.l.b16 %v430
  %v522 = vunpack.c.h.b16 %v430
  %v523 = vunpack.c.l.b16 %v431
  %v524 = vunpack.c.l.b16 %v432
  %v525 = vunpack.c.h.b16 %v432
  %v526 = vunpack.c.l.b16 %v433
  %v527 = vunpack.c.l.b16 %v434
  %v528 = vunpack.c.h.b16 %v434
  %v529 = vunpack.c.l.b16 %v435
  %v530 = vpack.c.b16 %v485, %v482
  %v531 = vpack.c.b16 %v486, %v483
  %v532 = vpack.c.b16 %v487, %v484
  %v533 = vpack.c.b16 %v491, %v488
  %v534 = vpack.c.b16 %v492, %v489
  %v535 = vpack.c.b16 %v493, %v490
  %v536 = vpack.c.b16 %v497, %v494
  %v537 = vpack.c.b16 %v498, %v495
  %v538 = vpack.c.b16 %v499, %v496
  %v539 = vpack.c.b16 %v503, %v500
  %v540 = vpack.c.b16 %v504, %v501
  %v541 = vpack.c.b16 %v505, %v502
  %v542 = vpack.c.b16 %v509, %v506
  %v543 = vpack.c.b16 %v510, %v507
  %v544 = vpack.c.b16 %v511, %v508
  %v545 = vpack.c.b16 %v515, %v512
  %v546 = vpack.c.b16 %v516, %v513
  %v547 = vpack.c.b16 %v517, %v514
  %v548 = vpack.c.b16 %v521, %v518
  %v549 = vpack.c.b16 %v522, %v519
  %v550 = vpack.c.b16 %v523, %v520
  %v551 = vpack.c.b16 %v527, %v524
  %v552 = vpack.c.b16 %v528, %v525
  %v553 = vpack.c.b16 %v529, %v526
  %578 = vmatprep.subr.bf16.mxu0 %v531
  %579 = vmatpush1.bf16.msra.mxu0 %v530
  %580 = vmatprep.subr.bf16.mxu0 %v534
  %581 = vmatpush1.bf16.msra.mxu0 %v533
  %582 = vmatprep.subr.bf16.mxu0 %v537
  %583 = vmatpush1.bf16.msra.mxu0 %v536
  %584 = vmatprep.subr.bf16.mxu0 %v540
  %585 = vmatpush1.bf16.msra.mxu0 %v539
  %586 = vmatprep.subr.bf16.mxu0 %v543
  %587 = vmatpush1.bf16.msra.mxu0 %v542
  %588 = vmatprep.subr.bf16.mxu0 %v546
  %589 = vmatpush1.bf16.msra.mxu0 %v545
  %590 = vmatprep.subr.bf16.mxu0 %v549
  %591 = vmatpush1.bf16.msra.mxu0 %v548
  %592 = vmatprep.subr.bf16.mxu0 %v552
  %593 = vmatpush1.bf16.msra.mxu0 %v551
  %594 = vmatprep.subr.bf16.mxu0 0
  %595 = vmatpush1.bf16.msra.mxu0 0
  %596 = vmatprep.subr.bf16.mxu0 0
  %597 = vmatpush1.bf16.msra.mxu0 0
  %598 = vmatprep.subr.bf16.mxu0 0
  %599 = vmatpush1.bf16.msra.mxu0 0
  %600 = vmatprep.subr.bf16.mxu0 0
  %601 = vmatpush1.bf16.msra.mxu0 0
  %602 = vmatprep.subr.bf16.mxu0 0
  %603 = vmatpush1.bf16.msra.mxu0 0
  %604 = vmatprep.subr.bf16.mxu0 0
  %605 = vmatpush1.bf16.msra.mxu0 0
  %606 = vmatprep.subr.bf16.mxu0 0
  %607 = vmatpush1.bf16.msra.mxu0 0
  %608 = vmatprep.subr.bf16.mxu0 0
  %609 = vmatpush1.bf16.msra.mxu0 0
  %610 = vmatprep.mubr.bf16.mxu0 0
  %611 = vmatmul.mubr.bf16.gmra.mrb[0].mxu0 %v449
  %v612 = vpop.f32.mrb[0].mxu0
  %v613 = vadd.f32 0.0, %v612
  %v614 = vpop.f32.mrb[0].mxu0
  %v615 = vadd.f32 0.0, %v614
  %v616 = vpop.f32.mrb[0].mxu0
  %v617 = vpop.f32.mrb[0].mxu0
  %618 = vdwg.mxu0
  %619 = vmatprep.subr.bf16.mxu0 0
  %620 = vmatpush1.bf16.msra.mxu0 %v532
  %621 = vmatprep.subr.bf16.mxu0 0
  %622 = vmatpush1.bf16.msra.mxu0 %v535
  %623 = vmatprep.subr.bf16.mxu0 0
  %624 = vmatpush1.bf16.msra.mxu0 %v538
  %625 = vmatprep.subr.bf16.mxu0 0
  %626 = vmatpush1.bf16.msra.mxu0 %v541
  %627 = vmatprep.subr.bf16.mxu0 0
  %628 = vmatpush1.bf16.msra.mxu0 %v544
  %629 = vmatprep.subr.bf16.mxu0 0
  %630 = vmatpush1.bf16.msra.mxu0 %v547
  %631 = vmatprep.subr.bf16.mxu0 0
  %632 = vmatpush1.bf16.msra.mxu0 %v550
  %633 = vmatprep.subr.bf16.mxu0 0
  %634 = vmatpush1.bf16.msra.mxu0 %v553
  %635 = vmatprep.subr.bf16.mxu0 0
  %636 = vmatpush1.bf16.msra.mxu0 0
  %637 = vmatprep.subr.bf16.mxu0 0
  %638 = vmatpush1.bf16.msra.mxu0 0
  %639 = vmatprep.subr.bf16.mxu0 0
  %640 = vmatpush1.bf16.msra.mxu0 0
  %641 = vmatprep.subr.bf16.mxu0 0
  %642 = vmatpush1.bf16.msra.mxu0 0
  %643 = vmatprep.subr.bf16.mxu0 0
  %644 = vmatpush1.bf16.msra.mxu0 0
  %645 = vmatprep.subr.bf16.mxu0 0
  %646 = vmatpush1.bf16.msra.mxu0 0
  %647 = vmatprep.subr.bf16.mxu0 0
  %648 = vmatpush1.bf16.msra.mxu0 0
  %649 = vmatprep.subr.bf16.mxu0 0
  %650 = vmatpush1.bf16.msra.mxu0 0
  %651 = vmatprep.mubr.bf16.mxu0 0
  %652 = vmatmul.mubr.bf16.gmra.mrb[0].mxu0 %v449
  %v653 = vpop.f32.mrb[0].mxu0
  %v654 = vadd.f32 0.0, %v653
  %v655 = vpop.f32.mrb[0].mxu0
  %v656 = vpop.f32.mrb[0].mxu0
  %v657 = vpop.f32.mrb[0].mxu0
  %658 = vdwg.mxu0
  %v659 = vadd.f32 %v446, %v613
  %v660 = vxor.u32 %v659, 2147483648
  %v661 = vmul.f32 %v660, 1.442695
  %v662 = vpow.pop %v661
  %v663 = vadd.f32 %v662, 1.0
  %v664 = vrcp.pop %v663
  %v665 = vmul.f32 1.0, %v664
  %v666 = vadd.f32 %v447, %v615
  %v667 = vxor.u32 %v666, 2147483648
  %v668 = vmul.f32 %v667, 1.442695
  %v669 = vpow.pop %v668
  %v670 = vadd.f32 %v669, 1.0
  %v671 = vrcp.pop %v670
  %v672 = vmul.f32 1.0, %v671
  %v673 = vadd.f32 %v654, %v441
  %v674 = vmul.f32 %v665, %v673
  %v675 = vadd.f32 %v448, %v674
  %v676 = vtanh.pop %v675
  %v677 = vsub.f32 %v403, %v676
  %v678 = vmul.f32 %v672, %v677
  %v679 = vadd.f32 %v676, %v678
  %s680 = smul.u32 0, 8
  %p681 = scmp.eq.s32.totalorder %s680, 7
  // Predicated region
  $region34: #{gru_forward.3} parent=0 // pred_check
    %p682 = pneg %p681
  $region35: #{gru_forward.3} parent=0 // pred_check_branch
    %684 = sbr.rel (%p682) target = $region37
  $region36: #{gru_forward.3} parent=0 // pred_region
    %685 = vst [vmem:[#allocation4] sm:$0xff] %v679
  $region37: #{gru_forward.3} parent=0 // pred_fallthru
    _
  %s686 = smul.u32 1, 3
  %s687 = smul.addr %s686, 8
  %s688 = scalar_lea.vmem [#allocation3], %s687
  %v689 = vld [vmem:[%s688] sm:$0xff]
  %v690 = vld [vmem:[%s688 + $0x8] sm:$0xff]
  %v691 = vld [vmem:[%s688 + $0x10] sm:$0xff]
  %v692 = vpack.c.bf16 %v679, %v679
  %693 = vmatprep.subr.bf16.mxu0 %v531
  %694 = vmatpush1.bf16.msra.mxu0 %v530
  %695 = vmatprep.subr.bf16.mxu0 %v534
  %696 = vmatpush1.bf16.msra.mxu0 %v533
  %697 = vmatprep.subr.bf16.mxu0 %v537
  %698 = vmatpush1.bf16.msra.mxu0 %v536
  %699 = vmatprep.subr.bf16.mxu0 %v540
  %700 = vmatpush1.bf16.msra.mxu0 %v539
  %701 = vmatprep.subr.bf16.mxu0 %v543
  %702 = vmatpush1.bf16.msra.mxu0 %v542
  %703 = vmatprep.subr.bf16.mxu0 %v546
  %704 = vmatpush1.bf16.msra.mxu0 %v545
  %705 = vmatprep.subr.bf16.mxu0 %v549
  %706 = vmatpush1.bf16.msra.mxu0 %v548
  %707 = vmatprep.subr.bf16.mxu0 %v552
  %708 = vmatpush1.bf16.msra.mxu0 %v551
  %709 = vmatprep.subr.bf16.mxu0 0
  %710 = vmatpush1.bf16.msra.mxu0 0
  %711 = vmatprep.subr.bf16.mxu0 0
  %712 = vmatpush1.bf16.msra.mxu0 0
  %713 = vmatprep.subr.bf16.mxu0 0
  %714 = vmatpush1.bf16.msra.mxu0 0
  %715 = vmatprep.subr.bf16.mxu0 0
  %716 = vmatpush1.bf16.msra.mxu0 0
  %717 = vmatprep.subr.bf16.mxu0 0
  %718 = vmatpush1.bf16.msra.mxu0 0
  %719 = vmatprep.subr.bf16.mxu0 0
  %720 = vmatpush1.bf16.msra.mxu0 0
  %721 = vmatprep.subr.bf16.mxu0 0
  %722 = vmatpush1.bf16.msra.mxu0 0
  %723 = vmatprep.subr.bf16.mxu0 0
  %724 = vmatpush1.bf16.msra.mxu0 0
  %725 = vmatprep.mubr.bf16.mxu0 0
  %726 = vmatmul.mubr.bf16.gmra.mrb[0].mxu0 %v692
  %v727 = vpop.f32.mrb[0].mxu0
  %v728 = vadd.f32 0.0, %v727
  %v729 = vpop.f32.mrb[0].mxu0
  %v730 = vadd.f32 0.0, %v729
  %v731 = vpop.f32.mrb[0].mxu0
  %v732 = vpop.f32.mrb[0].mxu0
  %733 = vdwg.mxu0
  %734 = vmatprep.subr.bf16.mxu0 0
  %735 = vmatpush1.bf16.msra.mxu0 %v532
  %736 = vmatprep.subr.bf16.mxu0 0
  %737 = vmatpush1.bf16.msra.mxu0 %v535
  %738 = vmatprep.subr.bf16.mxu0 0
  %739 = vmatpush1.bf16.msra.mxu0 %v538
  %740 = vmatprep.subr.bf16.mxu0 0
  %741 = vmatpush1.bf16.msra.mxu0 %v541
  %742 = vmatprep.subr.bf16.mxu0 0
  %743 = vmatpush1.bf16.msra.mxu0 %v544
  %744 = vmatprep.subr.bf16.mxu0 0
  %745 = vmatpush1.bf16.msra.mxu0 %v547
  %746 = vmatprep.subr.bf16.mxu0 0
  %747 = vmatpush1.bf16.msra.mxu0 %v550
  %748 = vmatprep.subr.bf16.mxu0 0
  %749 = vmatpush1.bf16.msra.mxu0 %v553
  %750 = vmatprep.subr.bf16.mxu0 0
  %751 = vmatpush1.bf16.msra.mxu0 0
  %752 = vmatprep.subr.bf16.mxu0 0
  %753 = vmatpush1.bf16.msra.mxu0 0
  %754 = vmatprep.subr.bf16.mxu0 0
  %755 = vmatpush1.bf16.msra.mxu0 0
  %756 = vmatprep.subr.bf16.mxu0 0
  %757 = vmatpush1.bf16.msra.mxu0 0
  %758 = vmatprep.subr.bf16.mxu0 0
  %759 = vmatpush1.bf16.msra.mxu0 0
  %760 = vmatprep.subr.bf16.mxu0 0
  %761 = vmatpush1.bf16.msra.mxu0 0
  %762 = vmatprep.subr.bf16.mxu0 0
  %763 = vmatpush1.bf16.msra.mxu0 0
  %764 = vmatprep.subr.bf16.mxu0 0
  %765 = vmatpush1.bf16.msra.mxu0 0
  %766 = vmatprep.mubr.bf16.mxu0 0
  %767 = vmatmul.mubr.bf16.gmra.mrb[0].mxu0 %v692
  %v768 = vpop.f32.mrb[0].mxu0
  %v769 = vadd.f32 0.0, %v768
  %v770 = vpop.f32.mrb[0].mxu0
  %v771 = vpop.f32.mrb[0].mxu0
  %v772 = vpop.f32.mrb[0].mxu0
  %773 = vdwg.mxu0
  %v774 = vadd.f32 %v689, %v728
  %v775 = vxor.u32 %v774, 2147483648
  %v776 = vmul.f32 %v775, 1.442695
  %v777 = vpow.pop %v776
  %v778 = vadd.f32 %v777, 1.0
  %v779 = vrcp.pop %v778
  %v780 = vmul.f32 1.0, %v779
  %v781 = vadd.f32 %v690, %v730
  %v782 = vxor.u32 %v781, 2147483648
  %v783 = vmul.f32 %v782, 1.442695
  %v784 = vpow.pop %v783
  %v785 = vadd.f32 %v784, 1.0
  %v786 = vrcp.pop %v785
  %v787 = vmul.f32 1.0, %v786
  %v788 = vadd.f32 %v769, %v441
  %v789 = vmul.f32 %v780, %v788
  %v790 = vadd.f32 %v691, %v789
  %v791 = vtanh.pop %v790
  %v792 = vsub.f32 %v679, %v791
  %v793 = vmul.f32 %v787, %v792
  %v794 = vadd.f32 %v791, %v793
  %s795 = sadd.s32 %s680, 1
  %p796 = scmp.eq.s32.totalorder %s795, 7
  // Predicated region
  $region38: #{gru_forward.3} parent=0 // pred_check
    %p797 = pneg %p796
  $region39: #{gru_forward.3} parent=0 // pred_check_branch
    %799 = sbr.rel (%p797) target = $region41
  $region40: #{gru_forward.3} parent=0 // pred_region
    %800 = vst [vmem:[#allocation4] sm:$0xff] %v794
  $region41: #{gru_forward.3} parent=0 // pred_fallthru
    _
  %s801 = smul.u32 2, 3
  %s802 = smul.addr %s801, 8
  %s803 = scalar_lea.vmem [#allocation3], %s802
  %v804 = vld [vmem:[%s803] sm:$0xff]
  %v805 = vld [vmem:[%s803 + $0x8] sm:$0xff]
  %v806 = vld [vmem:[%s803 + $0x10] sm:$0xff]
  %v807 = vpack.c.bf16 %v794, %v794
  %808 = vmatprep.subr.bf16.mxu0 %v531
  %809 = vmatpush1.bf16.msra.mxu0 %v530
  %810 = vmatprep.subr.bf16.mxu0 %v534
  %811 = vmatpush1.bf16.msra.mxu0 %v533
  %812 = vmatprep.subr.bf16.mxu0 %v537
  %813 = vmatpush1.bf16.msra.mxu0 %v536
  %814 = vmatprep.subr.bf16.mxu0 %v540
  %815 = vmatpush1.bf16.msra.mxu0 %v539
  %816 = vmatprep.subr.bf16.mxu0 %v543
  %817 = vmatpush1.bf16.msra.mxu0 %v542
  %818 = vmatprep.subr.bf16.mxu0 %v546
  %819 = vmatpush1.bf16.msra.mxu0 %v545
  %820 = vmatprep.subr.bf16.mxu0 %v549
  %821 = vmatpush1.bf16.msra.mxu0 %v548
  %822 = vmatprep.subr.bf16.mxu0 %v552
  %823 = vmatpush1.bf16.msra.mxu0 %v551
  %824 = vmatprep.subr.bf16.mxu0 0
  %825 = vmatpush1.bf16.msra.mxu0 0
  %826 = vmatprep.subr.bf16.mxu0 0
  %827 = vmatpush1.bf16.msra.mxu0 0
  %828 = vmatprep.subr.bf16.mxu0 0
  %829 = vmatpush1.bf16.msra.mxu0 0
  %830 = vmatprep.subr.bf16.mxu0 0
  %831 = vmatpush1.bf16.msra.mxu0 0
  %832 = vmatprep.subr.bf16.mxu0 0
  %833 = vmatpush1.bf16.msra.mxu0 0
  %834 = vmatprep.subr.bf16.mxu0 0
  %835 = vmatpush1.bf16.msra.mxu0 0
  %836 = vmatprep.subr.bf16.mxu0 0
  %837 = vmatpush1.bf16.msra.mxu0 0
  %838 = vmatprep.subr.bf16.mxu0 0
  %839 = vmatpush1.bf16.msra.mxu0 0
  %840 = vmatprep.mubr.bf16.mxu0 0
  %841 = vmatmul.mubr.bf16.gmra.mrb[0].mxu0 %v807
  %v842 = vpop.f32.mrb[0].mxu0
  %v843 = vadd.f32 0.0, %v842
  %v844 = vpop.f32.mrb[0].mxu0
  %v845 = vadd.f32 0.0, %v844
  %v846 = vpop.f32.mrb[0].mxu0
  %v847 = vpop.f32.mrb[0].mxu0
  %848 = vdwg.mxu0
  %849 = vmatprep.subr.bf16.mxu0 0
  %850 = vmatpush1.bf16.msra.mxu0 %v532
  %851 = vmatprep.subr.bf16.mxu0 0
  %852 = vmatpush1.bf16.msra.mxu0 %v535
  %853 = vmatprep.subr.bf16.mxu0 0
  %854 = vmatpush1.bf16.msra.mxu0 %v538
  %855 = vmatprep.subr.bf16.mxu0 0
  %856 = vmatpush1.bf16.msra.mxu0 %v541
  %857 = vmatprep.subr.bf16.mxu0 0
  %858 = vmatpush1.bf16.msra.mxu0 %v544
  %859 = vmatprep.subr.bf16.mxu0 0
  %860 = vmatpush1.bf16.msra.mxu0 %v547
  %861 = vmatprep.subr.bf16.mxu0 0
  %862 = vmatpush1.bf16.msra.mxu0 %v550
  %863 = vmatprep.subr.bf16.mxu0 0
  %864 = vmatpush1.bf16.msra.mxu0 %v553
  %865 = vmatprep.subr.bf16.mxu0 0
  %866 = vmatpush1.bf16.msra.mxu0 0
  %867 = vmatprep.subr.bf16.mxu0 0
  %868 = vmatpush1.bf16.msra.mxu0 0
  %869 = vmatprep.subr.bf16.mxu0 0
  %870 = vmatpush1.bf16.msra.mxu0 0
  %871 = vmatprep.subr.bf16.mxu0 0
  %872 = vmatpush1.bf16.msra.mxu0 0
  %873 = vmatprep.subr.bf16.mxu0 0
  %874 = vmatpush1.bf16.msra.mxu0 0
  %875 = vmatprep.subr.bf16.mxu0 0
  %876 = vmatpush1.bf16.msra.mxu0 0
  %877 = vmatprep.subr.bf16.mxu0 0
  %878 = vmatpush1.bf16.msra.mxu0 0
  %879 = vmatprep.subr.bf16.mxu0 0
  %880 = vmatpush1.bf16.msra.mxu0 0
  %881 = vmatprep.mubr.bf16.mxu0 0
  %882 = vmatmul.mubr.bf16.gmra.mrb[0].mxu0 %v807
  %v883 = vpop.f32.mrb[0].mxu0
  %v884 = vadd.f32 0.0, %v883
  %v885 = vpop.f32.mrb[0].mxu0
  %v886 = vpop.f32.mrb[0].mxu0
  %v887 = vpop.f32.mrb[0].mxu0
  %888 = vdwg.mxu0
  %v889 = vadd.f32 %v804, %v843
  %v890 = vxor.u32 %v889, 2147483648
  %v891 = vmul.f32 %v890, 1.442695
  %v892 = vpow.pop %v891
  %v893 = vadd.f32 %v892, 1.0
  %v894 = vrcp.pop %v893
  %v895 = vmul.f32 1.0, %v894
  %v896 = vadd.f32 %v805, %v845
  %v897 = vxor.u32 %v896, 2147483648
  %v898 = vmul.f32 %v897, 1.442695
  %v899 = vpow.pop %v898
  %v900 = vadd.f32 %v899, 1.0
  %v901 = vrcp.pop %v900
  %v902 = vmul.f32 1.0, %v901
  %v903 = vadd.f32 %v884, %v441
  %v904 = vmul.f32 %v895, %v903
  %v905 = vadd.f32 %v806, %v904
  %v906 = vtanh.pop %v905
  %v907 = vsub.f32 %v794, %v906
  %v908 = vmul.f32 %v902, %v907
  %v909 = vadd.f32 %v906, %v908
  %s910 = sadd.s32 %s680, 2
  %p911 = scmp.eq.s32.totalorder %s910, 7
  // Predicated region
  $region42: #{gru_forward.3} parent=0 // pred_check
    %p912 = pneg %p911
  $region43: #{gru_forward.3} parent=0 // pred_check_branch
    %914 = sbr.rel (%p912) target = $region45
  $region44: #{gru_forward.3} parent=0 // pred_region
    %915 = vst [vmem:[#allocation4] sm:$0xff] %v909
  $region45: #{gru_forward.3} parent=0 // pred_fallthru
    _
  %s916 = smul.u32 3, 3
  %s917 = smul.addr %s916, 8
  %s918 = scalar_lea.vmem [#allocation3], %s917
  %v919 = vld [vmem:[%s918] sm:$0xff]
  %v920 = vld [vmem:[%s918 + $0x8] sm:$0xff]
  %v921 = vld [vmem:[%s918 + $0x10] sm:$0xff]
  %v922 = vpack.c.bf16 %v909, %v909
  %923 = vmatprep.subr.bf16.mxu0 %v531
  %924 = vmatpush1.bf16.msra.mxu0 %v530
  %925 = vmatprep.subr.bf16.mxu0 %v534
  %926 = vmatpush1.bf16.msra.mxu0 %v533
  %927 = vmatprep.subr.bf16.mxu0 %v537
  %928 = vmatpush1.bf16.msra.mxu0 %v536
  %929 = vmatprep.subr.bf16.mxu0 %v540
  %930 = vmatpush1.bf16.msra.mxu0 %v539
  %931 = vmatprep.subr.bf16.mxu0 %v543
  %932 = vmatpush1.bf16.msra.mxu0 %v542
  %933 = vmatprep.subr.bf16.mxu0 %v546
  %934 = vmatpush1.bf16.msra.mxu0 %v545
  %935 = vmatprep.subr.bf16.mxu0 %v549
  %936 = vmatpush1.bf16.msra.mxu0 %v548
  %937 = vmatprep.subr.bf16.mxu0 %v552
  %938 = vmatpush1.bf16.msra.mxu0 %v551
  %939 = vmatprep.subr.bf16.mxu0 0
  %940 = vmatpush1.bf16.msra.mxu0 0
  %941 = vmatprep.subr.bf16.mxu0 0
  %942 = vmatpush1.bf16.msra.mxu0 0
  %943 = vmatprep.subr.bf16.mxu0 0
  %944 = vmatpush1.bf16.msra.mxu0 0
  %945 = vmatprep.subr.bf16.mxu0 0
  %946 = vmatpush1.bf16.msra.mxu0 0
  %947 = vmatprep.subr.bf16.mxu0 0
  %948 = vmatpush1.bf16.msra.mxu0 0
  %949 = vmatprep.subr.bf16.mxu0 0
  %950 = vmatpush1.bf16.msra.mxu0 0
  %951 = vmatprep.subr.bf16.mxu0 0
  %952 = vmatpush1.bf16.msra.mxu0 0
  %953 = vmatprep.subr.bf16.mxu0 0
  %954 = vmatpush1.bf16.msra.mxu0 0
  %955 = vmatprep.mubr.bf16.mxu0 0
  %956 = vmatmul.mubr.bf16.gmra.mrb[0].mxu0 %v922
  %v957 = vpop.f32.mrb[0].mxu0
  %v958 = vadd.f32 0.0, %v957
  %v959 = vpop.f32.mrb[0].mxu0
  %v960 = vadd.f32 0.0, %v959
  %v961 = vpop.f32.mrb[0].mxu0
  %v962 = vpop.f32.mrb[0].mxu0
  %963 = vdwg.mxu0
  %964 = vmatprep.subr.bf16.mxu0 0
  %965 = vmatpush1.bf16.msra.mxu0 %v532
  %966 = vmatprep.subr.bf16.mxu0 0
  %967 = vmatpush1.bf16.msra.mxu0 %v535
  %968 = vmatprep.subr.bf16.mxu0 0
  %969 = vmatpush1.bf16.msra.mxu0 %v538
  %970 = vmatprep.subr.bf16.mxu0 0
  %971 = vmatpush1.bf16.msra.mxu0 %v541
  %972 = vmatprep.subr.bf16.mxu0 0
  %973 = vmatpush1.bf16.msra.mxu0 %v544
  %974 = vmatprep.subr.bf16.mxu0 0
  %975 = vmatpush1.bf16.msra.mxu0 %v547
  %976 = vmatprep.subr.bf16.mxu0 0
  %977 = vmatpush1.bf16.msra.mxu0 %v550
  %978 = vmatprep.subr.bf16.mxu0 0
  %979 = vmatpush1.bf16.msra.mxu0 %v553
  %980 = vmatprep.subr.bf16.mxu0 0
  %981 = vmatpush1.bf16.msra.mxu0 0
  %982 = vmatprep.subr.bf16.mxu0 0
  %983 = vmatpush1.bf16.msra.mxu0 0
  %984 = vmatprep.subr.bf16.mxu0 0
  %985 = vmatpush1.bf16.msra.mxu0 0
  %986 = vmatprep.subr.bf16.mxu0 0
  %987 = vmatpush1.bf16.msra.mxu0 0
  %988 = vmatprep.subr.bf16.mxu0 0
  %989 = vmatpush1.bf16.msra.mxu0 0
  %990 = vmatprep.subr.bf16.mxu0 0
  %991 = vmatpush1.bf16.msra.mxu0 0
  %992 = vmatprep.subr.bf16.mxu0 0
  %993 = vmatpush1.bf16.msra.mxu0 0
  %994 = vmatprep.subr.bf16.mxu0 0
  %995 = vmatpush1.bf16.msra.mxu0 0
  %996 = vmatprep.mubr.bf16.mxu0 0
  %997 = vmatmul.mubr.bf16.gmra.mrb[0].mxu0 %v922
  %v998 = vpop.f32.mrb[0].mxu0
  %v999 = vadd.f32 0.0, %v998
  %v1000 = vpop.f32.mrb[0].mxu0
  %v1001 = vpop.f32.mrb[0].mxu0
  %v1002 = vpop.f32.mrb[0].mxu0
  %1003 = vdwg.mxu0
  %v1004 = vadd.f32 %v919, %v958
  %v1005 = vxor.u32 %v1004, 2147483648
  %v1006 = vmul.f32 %v1005, 1.442695
  %v1007 = vpow.pop %v1006
  %v1008 = vadd.f32 %v1007, 1.0
  %v1009 = vrcp.pop %v1008
  %v1010 = vmul.f32 1.0, %v1009
  %v1011 = vadd.f32 %v920, %v960
  %v1012 = vxor.u32 %v1011, 2147483648
  %v1013 = vmul.f32 %v1012, 1.442695
  %v1014 = vpow.pop %v1013
  %v1015 = vadd.f32 %v1014, 1.0
  %v1016 = vrcp.pop %v1015
  %v1017 = vmul.f32 1.0, %v1016
  %v1018 = vadd.f32 %v999, %v441
  %v1019 = vmul.f32 %v1010, %v1018
  %v1020 = vadd.f32 %v921, %v1019
  %v1021 = vtanh.pop %v1020
  %v1022 = vsub.f32 %v909, %v1021
  %v1023 = vmul.f32 %v1017, %v1022
  %v1024 = vadd.f32 %v1021, %v1023
  %s1025 = sadd.s32 %s680, 3
  %p1026 = scmp.eq.s32.totalorder %s1025, 7
  // Predicated region
  $region46: #{gru_forward.3} parent=0 // pred_check
    %p1027 = pneg %p1026
  $region47: #{gru_forward.3} parent=0 // pred_check_branch
    %1029 = sbr.rel (%p1027) target = $region49
  $region48: #{gru_forward.3} parent=0 // pred_region
    %1030 = vst [vmem:[#allocation4] sm:$0xff] %v1024
  $region49: #{gru_forward.3} parent=0 // pred_fallthru
    _
  %s1031 = smul.u32 4, 3
  %s1032 = smul.addr %s1031, 8
  %s1033 = scalar_lea.vmem [#allocation3], %s1032
  %v1034 = vld [vmem:[%s1033] sm:$0xff]
  %v1035 = vld [vmem:[%s1033 + $0x8] sm:$0xff]
  %v1036 = vld [vmem:[%s1033 + $0x10] sm:$0xff]
  %v1037 = vpack.c.bf16 %v1024, %v1024
  %1038 = vmatprep.subr.bf16.mxu0 %v531
  %1039 = vmatpush1.bf16.msra.mxu0 %v530
  %1040 = vmatprep.subr.bf16.mxu0 %v534
  %1041 = vmatpush1.bf16.msra.mxu0 %v533
  %1042 = vmatprep.subr.bf16.mxu0 %v537
  %1043 = vmatpush1.bf16.msra.mxu0 %v536
  %1044 = vmatprep.subr.bf16.mxu0 %v540
  %1045 = vmatpush1.bf16.msra.mxu0 %v539
  %1046 = vmatprep.subr.bf16.mxu0 %v543
  %1047 = vmatpush1.bf16.msra.mxu0 %v542
  %1048 = vmatprep.subr.bf16.mxu0 %v546
  %1049 = vmatpush1.bf16.msra.mxu0 %v545
  %1050 = vmatprep.subr.bf16.mxu0 %v549
  %1051 = vmatpush1.bf16.msra.mxu0 %v548
  %1052 = vmatprep.subr.bf16.mxu0 %v552
  %1053 = vmatpush1.bf16.msra.mxu0 %v551
  %1054 = vmatprep.subr.bf16.mxu0 0
  %1055 = vmatpush1.bf16.msra.mxu0 0
  %1056 = vmatprep.subr.bf16.mxu0 0
  %1057 = vmatpush1.bf16.msra.mxu0 0
  %1058 = vmatprep.subr.bf16.mxu0 0
  %1059 = vmatpush1.bf16.msra.mxu0 0
  %1060 = vmatprep.subr.bf16.mxu0 0
  %1061 = vmatpush1.bf16.msra.mxu0 0
  %1062 = vmatprep.subr.bf16.mxu0 0
  %1063 = vmatpush1.bf16.msra.mxu0 0
  %1064 = vmatprep.subr.bf16.mxu0 0
  %1065 = vmatpush1.bf16.msra.mxu0 0
  %1066 = vmatprep.subr.bf16.mxu0 0
  %1067 = vmatpush1.bf16.msra.mxu0 0
  %1068 = vmatprep.subr.bf16.mxu0 0
  %1069 = vmatpush1.bf16.msra.mxu0 0
  %1070 = vmatprep.mubr.bf16.mxu0 0
  %1071 = vmatmul.mubr.bf16.gmra.mrb[0].mxu0 %v1037
  %v1072 = vpop.f32.mrb[0].mxu0
  %v1073 = vadd.f32 0.0, %v1072
  %v1074 = vpop.f32.mrb[0].mxu0
  %v1075 = vadd.f32 0.0, %v1074
  %v1076 = vpop.f32.mrb[0].mxu0
  %v1077 = vpop.f32.mrb[0].mxu0
  %1078 = vdwg.mxu0
  %1079 = vmatprep.subr.bf16.mxu0 0
  %1080 = vmatpush1.bf16.msra.mxu0 %v532
  %1081 = vmatprep.subr.bf16.mxu0 0
  %1082 = vmatpush1.bf16.msra.mxu0 %v535
  %1083 = vmatprep.subr.bf16.mxu0 0
  %1084 = vmatpush1.bf16.msra.mxu0 %v538
  %1085 = vmatprep.subr.bf16.mxu0 0
  %1086 = vmatpush1.bf16.msra.mxu0 %v541
  %1087 = vmatprep.subr.bf16.mxu0 0
  %1088 = vmatpush1.bf16.msra.mxu0 %v544
  %1089 = vmatprep.subr.bf16.mxu0 0
  %1090 = vmatpush1.bf16.msra.mxu0 %v547
  %1091 = vmatprep.subr.bf16.mxu0 0
  %1092 = vmatpush1.bf16.msra.mxu0 %v550
  %1093 = vmatprep.subr.bf16.mxu0 0
  %1094 = vmatpush1.bf16.msra.mxu0 %v553
  %1095 = vmatprep.subr.bf16.mxu0 0
  %1096 = vmatpush1.bf16.msra.mxu0 0
  %1097 = vmatprep.subr.bf16.mxu0 0
  %1098 = vmatpush1.bf16.msra.mxu0 0
  %1099 = vmatprep.subr.bf16.mxu0 0
  %1100 = vmatpush1.bf16.msra.mxu0 0
  %1101 = vmatprep.subr.bf16.mxu0 0
  %1102 = vmatpush1.bf16.msra.mxu0 0
  %1103 = vmatprep.subr.bf16.mxu0 0
  %1104 = vmatpush1.bf16.msra.mxu0 0
  %1105 = vmatprep.subr.bf16.mxu0 0
  %1106 = vmatpush1.bf16.msra.mxu0 0
  %1107 = vmatprep.subr.bf16.mxu0 0
  %1108 = vmatpush1.bf16.msra.mxu0 0
  %1109 = vmatprep.subr.bf16.mxu0 0
  %1110 = vmatpush1.bf16.msra.mxu0 0
  %1111 = vmatprep.mubr.bf16.mxu0 0
  %1112 = vmatmul.mubr.bf16.gmra.mrb[0].mxu0 %v1037
  %v1113 = vpop.f32.mrb[0].mxu0
  %v1114 = vadd.f32 0.0, %v1113
  %v1115 = vpop.f32.mrb[0].mxu0
  %v1116 = vpop.f32.mrb[0].mxu0
  %v1117 = vpop.f32.mrb[0].mxu0
  %1118 = vdwg.mxu0
  %v1119 = vadd.f32 %v1034, %v1073
  %v1120 = vxor.u32 %v1119, 2147483648
  %v1121 = vmul.f32 %v1120, 1.442695
  %v1122 = vpow.pop %v1121
  %v1123 = vadd.f32 %v1122, 1.0
  %v1124 = vrcp.pop %v1123
  %v1125 = vmul.f32 1.0, %v1124
  %v1126 = vadd.f32 %v1035, %v1075
  %v1127 = vxor.u32 %v1126, 2147483648
  %v1128 = vmul.f32 %v1127, 1.442695
  %v1129 = vpow.pop %v1128
  %v1130 = vadd.f32 %v1129, 1.0
  %v1131 = vrcp.pop %v1130
  %v1132 = vmul.f32 1.0, %v1131
  %v1133 = vadd.f32 %v1114, %v441
  %v1134 = vmul.f32 %v1125, %v1133
  %v1135 = vadd.f32 %v1036, %v1134
  %v1136 = vtanh.pop %v1135
  %v1137 = vsub.f32 %v1024, %v1136
  %v1138 = vmul.f32 %v1132, %v1137
  %v1139 = vadd.f32 %v1136, %v1138
  %s1140 = sadd.s32 %s680, 4
  %p1141 = scmp.eq.s32.totalorder %s1140, 7
  // Predicated region
  $region50: #{gru_forward.3} parent=0 // pred_check
    %p1142 = pneg %p1141
  $region51: #{gru_forward.3} parent=0 // pred_check_branch
    %1144 = sbr.rel (%p1142) target = $region53
  $region52: #{gru_forward.3} parent=0 // pred_region
    %1145 = vst [vmem:[#allocation4] sm:$0xff] %v1139
  $region53: #{gru_forward.3} parent=0 // pred_fallthru
    _
  %s1146 = smul.u32 5, 3
  %s1147 = smul.addr %s1146, 8
  %s1148 = scalar_lea.vmem [#allocation3], %s1147
  %v1149 = vld [vmem:[%s1148] sm:$0xff]
  %v1150 = vld [vmem:[%s1148 + $0x8] sm:$0xff]
  %v1151 = vld [vmem:[%s1148 + $0x10] sm:$0xff]
  %v1152 = vpack.c.bf16 %v1139, %v1139
  %1153 = vmatprep.subr.bf16.mxu0 %v531
  %1154 = vmatpush1.bf16.msra.mxu0 %v530
  %1155 = vmatprep.subr.bf16.mxu0 %v534
  %1156 = vmatpush1.bf16.msra.mxu0 %v533
  %1157 = vmatprep.subr.bf16.mxu0 %v537
  %1158 = vmatpush1.bf16.msra.mxu0 %v536
  %1159 = vmatprep.subr.bf16.mxu0 %v540
  %1160 = vmatpush1.bf16.msra.mxu0 %v539
  %1161 = vmatprep.subr.bf16.mxu0 %v543
  %1162 = vmatpush1.bf16.msra.mxu0 %v542
  %1163 = vmatprep.subr.bf16.mxu0 %v546
  %1164 = vmatpush1.bf16.msra.mxu0 %v545
  %1165 = vmatprep.subr.bf16.mxu0 %v549
  %1166 = vmatpush1.bf16.msra.mxu0 %v548
  %1167 = vmatprep.subr.bf16.mxu0 %v552
  %1168 = vmatpush1.bf16.msra.mxu0 %v551
  %1169 = vmatprep.subr.bf16.mxu0 0
  %1170 = vmatpush1.bf16.msra.mxu0 0
  %1171 = vmatprep.subr.bf16.mxu0 0
  %1172 = vmatpush1.bf16.msra.mxu0 0
  %1173 = vmatprep.subr.bf16.mxu0 0
  %1174 = vmatpush1.bf16.msra.mxu0 0
  %1175 = vmatprep.subr.bf16.mxu0 0
  %1176 = vmatpush1.bf16.msra.mxu0 0
  %1177 = vmatprep.subr.bf16.mxu0 0
  %1178 = vmatpush1.bf16.msra.mxu0 0
  %1179 = vmatprep.subr.bf16.mxu0 0
  %1180 = vmatpush1.bf16.msra.mxu0 0
  %1181 = vmatprep.subr.bf16.mxu0 0
  %1182 = vmatpush1.bf16.msra.mxu0 0
  %1183 = vmatprep.subr.bf16.mxu0 0
  %1184 = vmatpush1.bf16.msra.mxu0 0
  %1185 = vmatprep.mubr.bf16.mxu0 0
  %1186 = vmatmul.mubr.bf16.gmra.mrb[0].mxu0 %v1152
  %v1187 = vpop.f32.mrb[0].mxu0
  %v1188 = vadd.f32 0.0, %v1187
  %v1189 = vpop.f32.mrb[0].mxu0
  %v1190 = vadd.f32 0.0, %v1189
  %v1191 = vpop.f32.mrb[0].mxu0
  %v1192 = vpop.f32.mrb[0].mxu0
  %1193 = vdwg.mxu0
  %1194 = vmatprep.subr.bf16.mxu0 0
  %1195 = vmatpush1.bf16.msra.mxu0 %v532
  %1196 = vmatprep.subr.bf16.mxu0 0
  %1197 = vmatpush1.bf16.msra.mxu0 %v535
  %1198 = vmatprep.subr.bf16.mxu0 0
  %1199 = vmatpush1.bf16.msra.mxu0 %v538
  %1200 = vmatprep.subr.bf16.mxu0 0
  %1201 = vmatpush1.bf16.msra.mxu0 %v541
  %1202 = vmatprep.subr.bf16.mxu0 0
  %1203 = vmatpush1.bf16.msra.mxu0 %v544
  %1204 = vmatprep.subr.bf16.mxu0 0
  %1205 = vmatpush1.bf16.msra.mxu0 %v547
  %1206 = vmatprep.subr.bf16.mxu0 0
  %1207 = vmatpush1.bf16.msra.mxu0 %v550
  %1208 = vmatprep.subr.bf16.mxu0 0
  %1209 = vmatpush1.bf16.msra.mxu0 %v553
  %1210 = vmatprep.subr.bf16.mxu0 0
  %1211 = vmatpush1.bf16.msra.mxu0 0
  %1212 = vmatprep.subr.bf16.mxu0 0
  %1213 = vmatpush1.bf16.msra.mxu0 0
  %1214 = vmatprep.subr.bf16.mxu0 0
  %1215 = vmatpush1.bf16.msra.mxu0 0
  %1216 = vmatprep.subr.bf16.mxu0 0
  %1217 = vmatpush1.bf16.msra.mxu0 0
  %1218 = vmatprep.subr.bf16.mxu0 0
  %1219 = vmatpush1.bf16.msra.mxu0 0
  %1220 = vmatprep.subr.bf16.mxu0 0
  %1221 = vmatpush1.bf16.msra.mxu0 0
  %1222 = vmatprep.subr.bf16.mxu0 0
  %1223 = vmatpush1.bf16.msra.mxu0 0
  %1224 = vmatprep.subr.bf16.mxu0 0
  %1225 = vmatpush1.bf16.msra.mxu0 0
  %1226 = vmatprep.mubr.bf16.mxu0 0
  %1227 = vmatmul.mubr.bf16.gmra.mrb[0].mxu0 %v1152
  %v1228 = vpop.f32.mrb[0].mxu0
  %v1229 = vadd.f32 0.0, %v1228
  %v1230 = vpop.f32.mrb[0].mxu0
  %v1231 = vpop.f32.mrb[0].mxu0
  %v1232 = vpop.f32.mrb[0].mxu0
  %1233 = vdwg.mxu0
  %v1234 = vadd.f32 %v1149, %v1188
  %v1235 = vxor.u32 %v1234, 2147483648
  %v1236 = vmul.f32 %v1235, 1.442695
  %v1237 = vpow.pop %v1236
  %v1238 = vadd.f32 %v1237, 1.0
  %v1239 = vrcp.pop %v1238
  %v1240 = vmul.f32 1.0, %v1239
  %v1241 = vadd.f32 %v1150, %v1190
  %v1242 = vxor.u32 %v1241, 2147483648
  %v1243 = vmul.f32 %v1242, 1.442695
  %v1244 = vpow.pop %v1243
  %v1245 = vadd.f32 %v1244, 1.0
  %v1246 = vrcp.pop %v1245
  %v1247 = vmul.f32 1.0, %v1246
  %v1248 = vadd.f32 %v1229, %v441
  %v1249 = vmul.f32 %v1240, %v1248
  %v1250 = vadd.f32 %v1151, %v1249
  %v1251 = vtanh.pop %v1250
  %v1252 = vsub.f32 %v1139, %v1251
  %v1253 = vmul.f32 %v1247, %v1252
  %v1254 = vadd.f32 %v1251, %v1253
  %s1255 = sadd.s32 %s680, 5
  %p1256 = scmp.eq.s32.totalorder %s1255, 7
  // Predicated region
  $region54: #{gru_forward.3} parent=0 // pred_check
    %p1257 = pneg %p1256
  $region55: #{gru_forward.3} parent=0 // pred_check_branch
    %1259 = sbr.rel (%p1257) target = $region57
  $region56: #{gru_forward.3} parent=0 // pred_region
    %1260 = vst [vmem:[#allocation4] sm:$0xff] %v1254
  $region57: #{gru_forward.3} parent=0 // pred_fallthru
    _
  %s1261 = smul.u32 6, 3
  %s1262 = smul.addr %s1261, 8
  %s1263 = scalar_lea.vmem [#allocation3], %s1262
  %v1264 = vld [vmem:[%s1263] sm:$0xff]
  %v1265 = vld [vmem:[%s1263 + $0x8] sm:$0xff]
  %v1266 = vld [vmem:[%s1263 + $0x10] sm:$0xff]
  %v1267 = vpack.c.bf16 %v1254, %v1254
  %1268 = vmatprep.subr.bf16.mxu0 %v531
  %1269 = vmatpush1.bf16.msra.mxu0 %v530
  %1270 = vmatprep.subr.bf16.mxu0 %v534
  %1271 = vmatpush1.bf16.msra.mxu0 %v533
  %1272 = vmatprep.subr.bf16.mxu0 %v537
  %1273 = vmatpush1.bf16.msra.mxu0 %v536
  %1274 = vmatprep.subr.bf16.mxu0 %v540
  %1275 = vmatpush1.bf16.msra.mxu0 %v539
  %1276 = vmatprep.subr.bf16.mxu0 %v543
  %1277 = vmatpush1.bf16.msra.mxu0 %v542
  %1278 = vmatprep.subr.bf16.mxu0 %v546
  %1279 = vmatpush1.bf16.msra.mxu0 %v545
  %1280 = vmatprep.subr.bf16.mxu0 %v549
  %1281 = vmatpush1.bf16.msra.mxu0 %v548
  %1282 = vmatprep.subr.bf16.mxu0 %v552
  %1283 = vmatpush1.bf16.msra.mxu0 %v551
  %1284 = vmatprep.subr.bf16.mxu0 0
  %1285 = vmatpush1.bf16.msra.mxu0 0
  %1286 = vmatprep.subr.bf16.mxu0 0
  %1287 = vmatpush1.bf16.msra.mxu0 0
  %1288 = vmatprep.subr.bf16.mxu0 0
  %1289 = vmatpush1.bf16.msra.mxu0 0
  %1290 = vmatprep.subr.bf16.mxu0 0
  %1291 = vmatpush1.bf16.msra.mxu0 0
  %1292 = vmatprep.subr.bf16.mxu0 0
  %1293 = vmatpush1.bf16.msra.mxu0 0
  %1294 = vmatprep.subr.bf16.mxu0 0
  %1295 = vmatpush1.bf16.msra.mxu0 0
  %1296 = vmatprep.subr.bf16.mxu0 0
  %1297 = vmatpush1.bf16.msra.mxu0 0
  %1298 = vmatprep.subr.bf16.mxu0 0
  %1299 = vmatpush1.bf16.msra.mxu0 0
  %1300 = vmatprep.mubr.bf16.mxu0 0
  %1301 = vmatmul.mubr.bf16.gmra.mrb[0].mxu0 %v1267
  %v1302 = vpop.f32.mrb[0].mxu0
  %v1303 = vadd.f32 0.0, %v1302
  %v1304 = vpop.f32.mrb[0].mxu0
  %v1305 = vadd.f32 0.0, %v1304
  %v1306 = vpop.f32.mrb[0].mxu0
  %v1307 = vpop.f32.mrb[0].mxu0
  %1308 = vdwg.mxu0
  %1309 = vmatprep.subr.bf16.mxu0 0
  %1310 = vmatpush1.bf16.msra.mxu0 %v532
  %1311 = vmatprep.subr.bf16.mxu0 0
  %1312 = vmatpush1.bf16.msra.mxu0 %v535
  %1313 = vmatprep.subr.bf16.mxu0 0
  %1314 = vmatpush1.bf16.msra.mxu0 %v538
  %1315 = vmatprep.subr.bf16.mxu0 0
  %1316 = vmatpush1.bf16.msra.mxu0 %v541
  %1317 = vmatprep.subr.bf16.mxu0 0
  %1318 = vmatpush1.bf16.msra.mxu0 %v544
  %1319 = vmatprep.subr.bf16.mxu0 0
  %1320 = vmatpush1.bf16.msra.mxu0 %v547
  %1321 = vmatprep.subr.bf16.mxu0 0
  %1322 = vmatpush1.bf16.msra.mxu0 %v550
  %1323 = vmatprep.subr.bf16.mxu0 0
  %1324 = vmatpush1.bf16.msra.mxu0 %v553
  %1325 = vmatprep.subr.bf16.mxu0 0
  %1326 = vmatpush1.bf16.msra.mxu0 0
  %1327 = vmatprep.subr.bf16.mxu0 0
  %1328 = vmatpush1.bf16.msra.mxu0 0
  %1329 = vmatprep.subr.bf16.mxu0 0
  %1330 = vmatpush1.bf16.msra.mxu0 0
  %1331 = vmatprep.subr.bf16.mxu0 0
  %1332 = vmatpush1.bf16.msra.mxu0 0
  %1333 = vmatprep.subr.bf16.mxu0 0
  %1334 = vmatpush1.bf16.msra.mxu0 0
  %1335 = vmatprep.subr.bf16.mxu0 0
  %1336 = vmatpush1.bf16.msra.mxu0 0
  %1337 = vmatprep.subr.bf16.mxu0 0
  %1338 = vmatpush1.bf16.msra.mxu0 0
  %1339 = vmatprep.subr.bf16.mxu0 0
  %1340 = vmatpush1.bf16.msra.mxu0 0
  %1341 = vmatprep.mubr.bf16.mxu0 0
  %1342 = vmatmul.mubr.bf16.gmra.mrb[0].mxu0 %v1267
  %v1343 = vpop.f32.mrb[0].mxu0
  %v1344 = vadd.f32 0.0, %v1343
  %v1345 = vpop.f32.mrb[0].mxu0
  %v1346 = vpop.f32.mrb[0].mxu0
  %v1347 = vpop.f32.mrb[0].mxu0
  %1348 = vdwg.mxu0
  %v1349 = vadd.f32 %v1264, %v1303
  %v1350 = vxor.u32 %v1349, 2147483648
  %v1351 = vmul.f32 %v1350, 1.442695
  %v1352 = vpow.pop %v1351
  %v1353 = vadd.f32 %v1352, 1.0
  %v1354 = vrcp.pop %v1353
  %v1355 = vmul.f32 1.0, %v1354
  %v1356 = vadd.f32 %v1265, %v1305
  %v1357 = vxor.u32 %v1356, 2147483648
  %v1358 = vmul.f32 %v1357, 1.442695
  %v1359 = vpow.pop %v1358
  %v1360 = vadd.f32 %v1359, 1.0
  %v1361 = vrcp.pop %v1360
  %v1362 = vmul.f32 1.0, %v1361
  %v1363 = vadd.f32 %v1344, %v441
  %v1364 = vmul.f32 %v1355, %v1363
  %v1365 = vadd.f32 %v1266, %v1364
  %v1366 = vtanh.pop %v1365
  %v1367 = vsub.f32 %v1254, %v1366
  %v1368 = vmul.f32 %v1362, %v1367
  %v1369 = vadd.f32 %v1366, %v1368
  %s1370 = sadd.s32 %s680, 6
  %p1371 = scmp.eq.s32.totalorder %s1370, 7
  // Predicated region
  $region58: #{gru_forward.3} parent=0 // pred_check
    %p1372 = pneg %p1371
  $region59: #{gru_forward.3} parent=0 // pred_check_branch
    %1374 = sbr.rel (%p1372) target = $region61
  $region60: #{gru_forward.3} parent=0 // pred_region
    %1375 = vst [vmem:[#allocation4] sm:$0xff] %v1369
  $region61: #{gru_forward.3} parent=0 // pred_fallthru
    _
  %s1376 = smul.u32 7, 3
  %s1377 = smul.addr %s1376, 8
  %s1378 = scalar_lea.vmem [#allocation3], %s1377
  %v1379 = vld [vmem:[%s1378] sm:$0xff]
  %v1380 = vld [vmem:[%s1378 + $0x8] sm:$0xff]
  %v1381 = vld [vmem:[%s1378 + $0x10] sm:$0xff]
  %v1382 = vpack.c.bf16 %v1369, %v1369
  %1383 = vmatprep.subr.bf16.mxu0 %v531
  %1384 = vmatpush1.bf16.msra.mxu0 %v530
  %1385 = vmatprep.subr.bf16.mxu0 %v534
  %1386 = vmatpush1.bf16.msra.mxu0 %v533
  %1387 = vmatprep.subr.bf16.mxu0 %v537
  %1388 = vmatpush1.bf16.msra.mxu0 %v536
  %1389 = vmatprep.subr.bf16.mxu0 %v540
  %1390 = vmatpush1.bf16.msra.mxu0 %v539
  %1391 = vmatprep.subr.bf16.mxu0 %v543
  %1392 = vmatpush1.bf16.msra.mxu0 %v542
  %1393 = vmatprep.subr.bf16.mxu0 %v546
  %1394 = vmatpush1.bf16.msra.mxu0 %v545
  %1395 = vmatprep.subr.bf16.mxu0 %v549
  %1396 = vmatpush1.bf16.msra.mxu0 %v548
  %1397 = vmatprep.subr.bf16.mxu0 %v552
  %1398 = vmatpush1.bf16.msra.mxu0 %v551
  %1399 = vmatprep.subr.bf16.mxu0 0
  %1400 = vmatpush1.bf16.msra.mxu0 0
  %1401 = vmatprep.subr.bf16.mxu0 0
  %1402 = vmatpush1.bf16.msra.mxu0 0
  %1403 = vmatprep.subr.bf16.mxu0 0
  %1404 = vmatpush1.bf16.msra.mxu0 0
  %1405 = vmatprep.subr.bf16.mxu0 0
  %1406 = vmatpush1.bf16.msra.mxu0 0
  %1407 = vmatprep.subr.bf16.mxu0 0
  %1408 = vmatpush1.bf16.msra.mxu0 0
  %1409 = vmatprep.subr.bf16.mxu0 0
  %1410 = vmatpush1.bf16.msra.mxu0 0
  %1411 = vmatprep.subr.bf16.mxu0 0
  %1412 = vmatpush1.bf16.msra.mxu0 0
  %1413 = vmatprep.subr.bf16.mxu0 0
  %1414 = vmatpush1.bf16.msra.mxu0 0
  %1415 = vmatprep.mubr.bf16.mxu0 0
  %1416 = vmatmul.mubr.bf16.gmra.mrb[0].mxu0 %v1382
  %v1417 = vpop.f32.mrb[0].mxu0
  %v1418 = vadd.f32 0.0, %v1417
  %v1419 = vpop.f32.mrb[0].mxu0
  %v1420 = vadd.f32 0.0, %v1419
  %v1421 = vpop.f32.mrb[0].mxu0
  %v1422 = vpop.f32.mrb[0].mxu0
  %1423 = vdwg.mxu0
  %1424 = vmatprep.subr.bf16.mxu0 0
  %1425 = vmatpush1.bf16.msra.mxu0 %v532
  %1426 = vmatprep.subr.bf16.mxu0 0
  %1427 = vmatpush1.bf16.msra.mxu0 %v535
  %1428 = vmatprep.subr.bf16.mxu0 0
  %1429 = vmatpush1.bf16.msra.mxu0 %v538
  %1430 = vmatprep.subr.bf16.mxu0 0
  %1431 = vmatpush1.bf16.msra.mxu0 %v541
  %1432 = vmatprep.subr.bf16.mxu0 0
  %1433 = vmatpush1.bf16.msra.mxu0 %v544
  %1434 = vmatprep.subr.bf16.mxu0 0
  %1435 = vmatpush1.bf16.msra.mxu0 %v547
  %1436 = vmatprep.subr.bf16.mxu0 0
  %1437 = vmatpush1.bf16.msra.mxu0 %v550
  %1438 = vmatprep.subr.bf16.mxu0 0
  %1439 = vmatpush1.bf16.msra.mxu0 %v553
  %1440 = vmatprep.subr.bf16.mxu0 0
  %1441 = vmatpush1.bf16.msra.mxu0 0
  %1442 = vmatprep.subr.bf16.mxu0 0
  %1443 = vmatpush1.bf16.msra.mxu0 0
  %1444 = vmatprep.subr.bf16.mxu0 0
  %1445 = vmatpush1.bf16.msra.mxu0 0
  %1446 = vmatprep.subr.bf16.mxu0 0
  %1447 = vmatpush1.bf16.msra.mxu0 0
  %1448 = vmatprep.subr.bf16.mxu0 0
  %1449 = vmatpush1.bf16.msra.mxu0 0
  %1450 = vmatprep.subr.bf16.mxu0 0
  %1451 = vmatpush1.bf16.msra.mxu0 0
  %1452 = vmatprep.subr.bf16.mxu0 0
  %1453 = vmatpush1.bf16.msra.mxu0 0
  %1454 = vmatprep.subr.bf16.mxu0 0
  %1455 = vmatpush1.bf16.msra.mxu0 0
  %1456 = vmatprep.mubr.bf16.mxu0 0
  %1457 = vmatmul.mubr.bf16.gmra.mrb[0].mxu0 %v1382
  %v1458 = vpop.f32.mrb[0].mxu0
  %v1459 = vadd.f32 0.0, %v1458
  %v1460 = vpop.f32.mrb[0].mxu0
  %v1461 = vpop.f32.mrb[0].mxu0
  %v1462 = vpop.f32.mrb[0].mxu0
  %1463 = vdwg.mxu0
  %v1464 = vadd.f32 %v1379, %v1418
  %v1465 = vxor.u32 %v1464, 2147483648
  %v1466 = vmul.f32 %v1465, 1.442695
  %v1467 = vpow.pop %v1466
  %v1468 = vadd.f32 %v1467, 1.0
  %v1469 = vrcp.pop %v1468
  %v1470 = vmul.f32 1.0, %v1469
  %v1471 = vadd.f32 %v1380, %v1420
  %v1472 = vxor.u32 %v1471, 2147483648
  %v1473 = vmul.f32 %v1472, 1.442695
  %v1474 = vpow.pop %v1473
  %v1475 = vadd.f32 %v1474, 1.0
  %v1476 = vrcp.pop %v1475
  %v1477 = vmul.f32 1.0, %v1476
  %v1478 = vadd.f32 %v1459, %v441
  %v1479 = vmul.f32 %v1470, %v1478
  %v1480 = vadd.f32 %v1381, %v1479
  %v1481 = vtanh.pop %v1480
  %v1482 = vsub.f32 %v1369, %v1481
  %v1483 = vmul.f32 %v1477, %v1482
  %v1484 = vadd.f32 %v1481, %v1483
  %s1485 = sadd.s32 %s680, 7
  %p1486 = scmp.eq.s32.totalorder %s1485, 7
  // Predicated region
  $region62: #{gru_forward.3} parent=0 // pred_check
    %p1487 = pneg %p1486
  $region63: #{gru_forward.3} parent=0 // pred_check_branch
    %1489 = sbr.rel (%p1487) target = $region65
  $region64: #{gru_forward.3} parent=0 // pred_region
    %1490 = vst [vmem:[#allocation4] sm:$0xff] %v1484
  $region65: #{gru_forward.3} parent=0 // pred_fallthru
    _
  %1491 = vst [vmem:[#allocation2] sm:$0xff] %v1484
  // Predicated region
  $region66: #{gru_forward.3} parent=0 // pred_check
    %p1492 = pneg %p27
  $region67: #{gru_forward.3} parent=0 // pred_check_branch
    %1494 = sbr.rel (%p1492) target = $region69
  $region68: #{gru_forward.3} parent=0 // pred_region
    %v1495 = vld [vmem:[#allocation4] sm:$0xff]
    %v1496 = vmax.f32 %v1495, 0.0
    %v1497 = vpack.c.bf16 %v1496, %v1496
    %v1498 = vld [vmem:[%s5] sm:$0xf]
    %v1499 = vld [vmem:[%s5 + $0x4] sm:$0xf]
    %v1500 = vld [vmem:[%s5 + $0x8] sm:$0xf]
    %v1501 = vld [vmem:[%s5 + $0xc] sm:$0xf]
    %v1502 = vld [vmem:[%s5 + $0x10] sm:$0xf]
    %v1503 = vld [vmem:[%s5 + $0x14] sm:$0xf]
    %v1504 = vld [vmem:[%s5 + $0x18] sm:$0xf]
    %v1505 = vld [vmem:[%s5 + $0x1c] sm:$0xf]
    %v1506 = vld [vmem:[%s5 + $0x20] sm:$0xf]
    %v1507 = vld [vmem:[%s5 + $0x24] sm:$0xf]
    %v1508 = vld [vmem:[%s5 + $0x28] sm:$0xf]
    %v1509 = vld [vmem:[%s5 + $0x2c] sm:$0xf]
    %v1510 = vld [vmem:[%s5 + $0x30] sm:$0xf]
    %v1511 = vld [vmem:[%s5 + $0x34] sm:$0xf]
    %v1512 = vld [vmem:[%s5 + $0x38] sm:$0xf]
    %v1513 = vld [vmem:[%s5 + $0x3c] sm:$0xf]
    %v1514 = vld [vmem:[%s6] sm:$0x1]
    %v1516 = vlaneseq
    %v1517 = vshrl.u32 %v1516, 7
    %v1518 = vsub.s32 0, %v1517
    %v1519 = vrot.slane %v1514, %v1518
    %v1537 = vunpack.c.l.b16 %v1498
    %v1538 = vunpack.c.l.b16 %v1499
    %v1539 = vunpack.c.l.b16 %v1500
    %v1540 = vunpack.c.l.b16 %v1501
    %v1541 = vunpack.c.l.b16 %v1502
    %v1542 = vunpack.c.l.b16 %v1503
    %v1543 = vunpack.c.l.b16 %v1504
    %v1544 = vunpack.c.l.b16 %v1505
    %v1545 = vunpack.c.l.b16 %v1506
    %v1546 = vunpack.c.l.b16 %v1507
    %v1547 = vunpack.c.l.b16 %v1508
    %v1548 = vunpack.c.l.b16 %v1509
    %v1549 = vunpack.c.l.b16 %v1510
    %v1550 = vunpack.c.l.b16 %v1511
    %v1551 = vunpack.c.l.b16 %v1512
    %v1552 = vunpack.c.l.b16 %v1513
    %v1553 = vpack.c.b16 %v1538, %v1537
    %v1554 = vpack.c.b16 %v1540, %v1539
    %v1555 = vpack.c.b16 %v1542, %v1541
    %v1556 = vpack.c.b16 %v1544, %v1543
    %v1557 = vpack.c.b16 %v1546, %v1545
    %v1558 = vpack.c.b16 %v1548, %v1547
    %v1559 = vpack.c.b16 %v1550, %v1549
    %v1560 = vpack.c.b16 %v1552, %v1551
    %1569 = vmatprep.subr.bf16.mxu0 0
    %1570 = vmatpush1.bf16.msra.mxu0 %v1553
    %1571 = vmatprep.subr.bf16.mxu0 0
    %1572 = vmatpush1.bf16.msra.mxu0 %v1554
    %1573 = vmatprep.subr.bf16.mxu0 0
    %1574 = vmatpush1.bf16.msra.mxu0 %v1555
    %1575 = vmatprep.subr.bf16.mxu0 0
    %1576 = vmatpush1.bf16.msra.mxu0 %v1556
    %1577 = vmatprep.subr.bf16.mxu0 0
    %1578 = vmatpush1.bf16.msra.mxu0 %v1557
    %1579 = vmatprep.subr.bf16.mxu0 0
    %1580 = vmatpush1.bf16.msra.mxu0 %v1558
    %1581 = vmatprep.subr.bf16.mxu0 0
    %1582 = vmatpush1.bf16.msra.mxu0 %v1559
    %1583 = vmatprep.subr.bf16.mxu0 0
    %1584 = vmatpush1.bf16.msra.mxu0 %v1560
    %1585 = vmatprep.subr.bf16.mxu0 0
    %1586 = vmatpush1.bf16.msra.mxu0 0
    %1587 = vmatprep.subr.bf16.mxu0 0
    %1588 = vmatpush1.bf16.msra.mxu0 0
    %1589 = vmatprep.subr.bf16.mxu0 0
    %1590 = vmatpush1.bf16.msra.mxu0 0
    %1591 = vmatprep.subr.bf16.mxu0 0
    %1592 = vmatpush1.bf16.msra.mxu0 0
    %1593 = vmatprep.subr.bf16.mxu0 0
    %1594 = vmatpush1.bf16.msra.mxu0 0
    %1595 = vmatprep.subr.bf16.mxu0 0
    %1596 = vmatpush1.bf16.msra.mxu0 0
    %1597 = vmatprep.subr.bf16.mxu0 0
    %1598 = vmatpush1.bf16.msra.mxu0 0
    %1599 = vmatprep.subr.bf16.mxu0 0
    %1600 = vmatpush1.bf16.msra.mxu0 0
    %1601 = vmatprep.mubr.bf16.mxu0 0
    %1602 = vmatmul.mubr.bf16.gmra.mrb[0].mxu0 %v1497
    %v1603 = vpop.f32.mrb[0].mxu0
    %v1604 = vadd.f32 %v1519, %v1603
    %v1605 = vpop.f32.mrb[0].mxu0
    %v1606 = vpop.f32.mrb[0].mxu0
    %v1607 = vpop.f32.mrb[0].mxu0
    %1608 = vdwg.mxu0
    %1609 = vst [vmem:[%s7] sm:$0xff] %v1604
  $region69: #{gru_forward.3} parent=0 // pred_fallthru
    _
  // Predicated region
  $region70: #{gru_forward.3} parent=0 // pred_check
    _
  $region71: #{gru_forward.3} parent=0 // pred_check_branch
    %1611 = sbr.rel (0) target = $region73
  $region72: #{gru_forward.3} parent=0 // pred_region
    _
  $region73: #{gru_forward.3} parent=0 // pred_fallthru
    _
  // Predicated region
  $region74: #{gru_forward.3} parent=0 // pred_check
    _
  $region75: #{gru_forward.3} parent=0 // pred_check_branch
    %1613 = sbr.rel (0) target = $region77
  $region76: #{gru_forward.3} parent=0 // pred_region
    _
  $region77: #{gru_forward.3} parent=0 // pred_fallthru
    _

// kernel: gru_forward.2
$region0: #{gru_forward.2}
  #allocation0 [shape = 'u32[]', space=smem, size = 0x4, offset = 0x4, fixed_abs, tag = 'smem constant byte address 0x4 - core index']
  #allocation1 [shape = 'u32[144,128]{1,0:T(1,128)}', space=vmem, size = 0x12000, scoped, tag = 'internal scratch']
  #allocation2 [shape = 'f32[8,128]{1,0:T(8,128)}', space=vmem, size = 0x1000, scoped, tag = 'scratch operand']
  #allocation3 [shape = 'f32[64,384]{1,0:T(8,128)}', space=vmem, size = 0x18000, scoped, tag = 'scratch operand']
  %s0 = inlined_call_operand.vmem [shape: bf16[8,8,128], index: 0, kind: input, shape index: {}]
  %s1 = inlined_call_operand.vmem [shape: bf16[128,384], index: 1, kind: input, shape index: {}]
  %s2 = inlined_call_operand.vmem [shape: bf16[128,384], index: 2, kind: input, shape index: {}]
  %s3 = inlined_call_operand.vmem [shape: f32[1,384], index: 3, kind: input, shape index: {}]
  %s4 = inlined_call_operand.vmem [shape: f32[1,128], index: 4, kind: input, shape index: {}]
  %s5 = inlined_call_operand.vmem [shape: bf16[8,8,128], index: 5, kind: output, shape index: {}]
  %s6 = sld [smem:[#allocation0]]
  $region34: #{gru_forward.2} parent=0
    _
  %s8 = ssub.s32 1, %s6
  %s9 = scalar_select 0, %s8, %s6
  // Predicated region
  $region2: #{gru_forward.2} parent=0 // pred_check
    _
  $region3: #{gru_forward.2} parent=0 // pred_check_branch
    %11 = sbr.rel (0) target = $region5
  $region4: #{gru_forward.2} parent=0 // pred_region
    _
  $region5: #{gru_forward.2} parent=0 // pred_fallthru
    _
  // Predicated region
  $region6: #{gru_forward.2} parent=0 // pred_check
    _
  $region7: #{gru_forward.2} parent=0 // pred_check_branch
    %13 = sbr.rel (0) target = $region9
  $region8: #{gru_forward.2} parent=0 // pred_region
    _
  $region9: #{gru_forward.2} parent=0 // pred_fallthru
    _
  // Predicated region
  $region10: #{gru_forward.2} parent=0 // pred_check
    _
  $region11: #{gru_forward.2} parent=0 // pred_check_branch
    %15 = sbr.rel (0) target = $region13
  $region12: #{gru_forward.2} parent=0 // pred_region
    _
  $region13: #{gru_forward.2} parent=0 // pred_fallthru
    _
  // Predicated region
  $region14: #{gru_forward.2} parent=0 // pred_check
    _
  $region15: #{gru_forward.2} parent=0 // pred_check_branch
    %17 = sbr.rel (0) target = $region17
  $region16: #{gru_forward.2} parent=0 // pred_region
    _
  $region17: #{gru_forward.2} parent=0 // pred_fallthru
    _
  // Predicated region
  $region18: #{gru_forward.2} parent=0 // pred_check
    _
  $region19: #{gru_forward.2} parent=0 // pred_check_branch
    %19 = sbr.rel (0) target = $region21
  $region20: #{gru_forward.2} parent=0 // pred_region
    _
  $region21: #{gru_forward.2} parent=0 // pred_fallthru
    _
  %p21 = scmp.eq.s32.totalorder 0, 0
  // Predicated region
  $region22: #{gru_forward.2} parent=0 // pred_check
    %p22 = pneg %p21
  $region23: #{gru_forward.2} parent=0 // pred_check_branch
    %24 = sbr.rel (%p22) target = $region25
  $region24: #{gru_forward.2} parent=0 // pred_region
    %25 = vst [vmem:[#allocation2] sm:$0xff] 0.0
  $region25: #{gru_forward.2} parent=0 // pred_fallthru
    _
  %v26 = vld [vmem:[%s0] sm:$0xf]
  %v27 = vld [vmem:[%s0 + $0x4] sm:$0xf]
  %v28 = vld [vmem:[%s0 + $0x8] sm:$0xf]
  %v29 = vld [vmem:[%s0 + $0xc] sm:$0xf]
  %v30 = vld [vmem:[%s0 + $0x10] sm:$0xf]
  %v31 = vld [vmem:[%s0 + $0x14] sm:$0xf]
  %v32 = vld [vmem:[%s0 + $0x18] sm:$0xf]
  %v33 = vld [vmem:[%s0 + $0x1c] sm:$0xf]
  %v34 = vld [vmem:[%s1] sm:$0xff]
  %v35 = vld [vmem:[%s1 + $0x8] sm:$0xf]
  %v36 = vld [vmem:[%s1 + $0xc] sm:$0xff]
  %v37 = vld [vmem:[%s1 + $0x14] sm:$0xf]
  %v38 = vld [vmem:[%s1 + $0x18] sm:$0xff]
  %v39 = vld [vmem:[%s1 + $0x20] sm:$0xf]
  %v40 = vld [vmem:[%s1 + $0x24] sm:$0xff]
  %v41 = vld [vmem:[%s1 + $0x2c] sm:$0xf]
  %v42 = vld [vmem:[%s1 + $0x30] sm:$0xff]
  %v43 = vld [vmem:[%s1 + $0x38] sm:$0xf]
  %v44 = vld [vmem:[%s1 + $0x3c] sm:$0xff]
  %v45 = vld [vmem:[%s1 + $0x44] sm:$0xf]
  %v46 = vld [vmem:[%s1 + $0x48] sm:$0xff]
  %v47 = vld [vmem:[%s1 + $0x50] sm:$0xf]
  %v48 = vld [vmem:[%s1 + $0x54] sm:$0xff]
  %v49 = vld [vmem:[%s1 + $0x5c] sm:$0xf]
  %v50 = vld [vmem:[%s1 + $0x60] sm:$0xff]
  %v51 = vld [vmem:[%s1 + $0x68] sm:$0xf]
  %v52 = vld [vmem:[%s1 + $0x6c] sm:$0xff]
  %v53 = vld [vmem:[%s1 + $0x74] sm:$0xf]
  %v54 = vld [vmem:[%s1 + $0x78] sm:$0xff]
  %v55 = vld [vmem:[%s1 + $0x80] sm:$0xf]
  %v56 = vld [vmem:[%s1 + $0x84] sm:$0xff]
  %v57 = vld [vmem:[%s1 + $0x8c] sm:$0xf]
  %v58 = vld [vmem:[%s1 + $0x90] sm:$0xff]
  %v59 = vld [vmem:[%s1 + $0x98] sm:$0xf]
  %v60 = vld [vmem:[%s1 + $0x9c] sm:$0xff]
  %v61 = vld [vmem:[%s1 + $0xa4] sm:$0xf]
  %v62 = vld [vmem:[%s1 + $0xa8] sm:$0xff]
  %v63 = vld [vmem:[%s1 + $0xb0] sm:$0xf]
  %v64 = vld [vmem:[%s1 + $0xb4] sm:$0xff]
  %v65 = vld [vmem:[%s1 + $0xbc] sm:$0xf]
  %v66 = vld [vmem:[%s3] sm:$0x7]
  %v68 = vlaneseq
  %v69 = vshrl.u32 %v68, 7
  %v70 = vsub.s32 0, %v69
  %v71 = vrot.slane %v66, %v70
  %v72 = vlaneseq
  %v73 = vshrl.u32 %v72, 7
  %v74 = vsub.s32 1, %v73
  %v75 = vrot.slane %v66, %v74
  %v76 = vlaneseq
  %v77 = vshrl.u32 %v76, 7
  %v78 = vsub.s32 2, %v77
  %v79 = vrot.slane %v66, %v78
  %v91 = vunpack.c.l.b16 %v26
  %v92 = vunpack.c.l.b16 %v27
  %v93 = vunpack.c.l.b16 %v28
  %v94 = vunpack.c.l.b16 %v29
  %v95 = vunpack.c.l.b16 %v30
  %v96 = vunpack.c.l.b16 %v31
  %v97 = vunpack.c.l.b16 %v32
  %v98 = vunpack.c.l.b16 %v33
  %v99 = vpack.c.b16 %v92, %v91
  %v100 = vpack.c.b16 %v94, %v93
  %v101 = vpack.c.b16 %v96, %v95
  %v102 = vpack.c.b16 %v98, %v97
  %v139 = vunpack.c.l.b16 %v34
  %v140 = vunpack.c.h.b16 %v34
  %v141 = vunpack.c.l.b16 %v35
  %v142 = vunpack.c.l.b16 %v36
  %v143 = vunpack.c.h.b16 %v36
  %v144 = vunpack.c.l.b16 %v37
  %v145 = vunpack.c.l.b16 %v38
  %v146 = vunpack.c.h.b16 %v38
  %v147 = vunpack.c.l.b16 %v39
  %v148 = vunpack.c.l.b16 %v40
  %v149 = vunpack.c.h.b16 %v40
  %v150 = vunpack.c.l.b16 %v41
  %v151 = vunpack.c.l.b16 %v42
  %v152 = vunpack.c.h.b16 %v42
  %v153 = vunpack.c.l.b16 %v43
  %v154 = vunpack.c.l.b16 %v44
  %v155 = vunpack.c.h.b16 %v44
  %v156 = vunpack.c.l.b16 %v45
  %v157 = vunpack.c.l.b16 %v46
  %v158 = vunpack.c.h.b16 %v46
  %v159 = vunpack.c.l.b16 %v47
  %v160 = vunpack.c.l.b16 %v48
  %v161 = vunpack.c.h.b16 %v48
  %v162 = vunpack.c.l.b16 %v49
  %v163 = vunpack.c.l.b16 %v50
  %v164 = vunpack.c.h.b16 %v50
  %v165 = vunpack.c.l.b16 %v51
  %v166 = vunpack.c.l.b16 %v52
  %v167 = vunpack.c.h.b16 %v52
  %v168 = vunpack.c.l.b16 %v53
  %v169 = vunpack.c.l.b16 %v54
  %v170 = vunpack.c.h.b16 %v54
  %v171 = vunpack.c.l.b16 %v55
  %v172 = vunpack.c.l.b16 %v56
  %v173 = vunpack.c.h.b16 %v56
  %v174 = vunpack.c.l.b16 %v57
  %v175 = vunpack.c.l.b16 %v58
  %v176 = vunpack.c.h.b16 %v58
  %v177 = vunpack.c.l.b16 %v59
  %v178 = vunpack.c.l.b16 %v60
  %v179 = vunpack.c.h.b16 %v60
  %v180 = vunpack.c.l.b16 %v61
  %v181 = vunpack.c.l.b16 %v62
  %v182 = vunpack.c.h.b16 %v62
  %v183 = vunpack.c.l.b16 %v63
  %v184 = vunpack.c.l.b16 %v64
  %v185 = vunpack.c.h.b16 %v64
  %v186 = vunpack.c.l.b16 %v65
  %v187 = vpack.c.b16 %v142, %v139
  %v188 = vpack.c.b16 %v143, %v140
  %v189 = vpack.c.b16 %v144, %v141
  %v190 = vpack.c.b16 %v148, %v145
  %v191 = vpack.c.b16 %v149, %v146
  %v192 = vpack.c.b16 %v150, %v147
  %v193 = vpack.c.b16 %v154, %v151
  %v194 = vpack.c.b16 %v155, %v152
  %v195 = vpack.c.b16 %v156, %v153
  %v196 = vpack.c.b16 %v160, %v157
  %v197 = vpack.c.b16 %v161, %v158
  %v198 = vpack.c.b16 %v162, %v159
  %v199 = vpack.c.b16 %v166, %v163
  %v200 = vpack.c.b16 %v167, %v164
  %v201 = vpack.c.b16 %v168, %v165
  %v202 = vpack.c.b16 %v172, %v169
  %v203 = vpack.c.b16 %v173, %v170
  %v204 = vpack.c.b16 %v174, %v171
  %v205 = vpack.c.b16 %v178, %v175
  %v206 = vpack.c.b16 %v179, %v176
  %v207 = vpack.c.b16 %v180, %v177
  %v208 = vpack.c.b16 %v184, %v181
  %v209 = vpack.c.b16 %v185, %v182
  %v210 = vpack.c.b16 %v186, %v183
  %235 = vmatprep.subr.bf16.mxu0 %v188
  %236 = vmatpush1.bf16.msra.mxu0 %v187
  %237 = vmatprep.subr.bf16.mxu0 %v191
  %238 = vmatpush1.bf16.msra.mxu0 %v190
  %239 = vmatprep.subr.bf16.mxu0 %v194
  %240 = vmatpush1.bf16.msra.mxu0 %v193
  %241 = vmatprep.subr.bf16.mxu0 %v197
  %242 = vmatpush1.bf16.msra.mxu0 %v196
  %243 = vmatprep.subr.bf16.mxu0 %v200
  %244 = vmatpush1.bf16.msra.mxu0 %v199
  %245 = vmatprep.subr.bf16.mxu0 %v203
  %246 = vmatpush1.bf16.msra.mxu0 %v202
  %247 = vmatprep.subr.bf16.mxu0 %v206
  %248 = vmatpush1.bf16.msra.mxu0 %v205
  %249 = vmatprep.subr.bf16.mxu0 %v209
  %250 = vmatpush1.bf16.msra.mxu0 %v208
  %251 = vmatprep.subr.bf16.mxu0 0
  %252 = vmatpush1.bf16.msra.mxu0 0
  %253 = vmatprep.subr.bf16.mxu0 0
  %254 = vmatpush1.bf16.msra.mxu0 0
  %255 = vmatprep.subr.bf16.mxu0 0
  %256 = vmatpush1.bf16.msra.mxu0 0
  %257 = vmatprep.subr.bf16.mxu0 0
  %258 = vmatpush1.bf16.msra.mxu0 0
  %259 = vmatprep.subr.bf16.mxu0 0
  %260 = vmatpush1.bf16.msra.mxu0 0
  %261 = vmatprep.subr.bf16.mxu0 0
  %262 = vmatpush1.bf16.msra.mxu0 0
  %263 = vmatprep.subr.bf16.mxu0 0
  %264 = vmatpush1.bf16.msra.mxu0 0
  %265 = vmatprep.subr.bf16.mxu0 0
  %266 = vmatpush1.bf16.msra.mxu0 0
  %267 = vmatprep.mubr.bf16.mxu0 0
  %268 = vmatmul.mubr.bf16.gmra.mrb[0].mxu0 %v99
  %v269 = vpop.f32.mrb[0].mxu0
  %v270 = vadd.f32 %v71, %v269
  %v271 = vpop.f32.mrb[0].mxu0
  %v272 = vadd.f32 %v75, %v271
  %v273 = vpop.f32.mrb[0].mxu0
  %v274 = vadd.f32 %v71, %v273
  %v275 = vpop.f32.mrb[0].mxu0
  %v276 = vadd.f32 %v75, %v275
  %277 = vmatprep.mubr.bf16.mxu0 0
  %278 = vmatmul.mubr.bf16.gmra.mrb[0].mxu0 %v100
  %v279 = vpop.f32.mrb[0].mxu0
  %v280 = vadd.f32 %v71, %v279
  %v281 = vpop.f32.mrb[0].mxu0
  %v282 = vadd.f32 %v75, %v281
  %v283 = vpop.f32.mrb[0].mxu0
  %v284 = vadd.f32 %v71, %v283
  %v285 = vpop.f32.mrb[0].mxu0
  %v286 = vadd.f32 %v75, %v285
  %287 = vmatprep.mubr.bf16.mxu0 0
  %288 = vmatmul.mubr.bf16.gmra.mrb[0].mxu0 %v101
  %v289 = vpop.f32.mrb[0].mxu0
  %v290 = vadd.f32 %v71, %v289
  %v291 = vpop.f32.mrb[0].mxu0
  %v292 = vadd.f32 %v75, %v291
  %v293 = vpop.f32.mrb[0].mxu0
  %v294 = vadd.f32 %v71, %v293
  %v295 = vpop.f32.mrb[0].mxu0
  %v296 = vadd.f32 %v75, %v295
  %297 = vmatprep.mubr.bf16.mxu0 0
  %298 = vmatmul.mubr.bf16.gmra.mrb[0].mxu0 %v102
  %v299 = vpop.f32.mrb[0].mxu0
  %v300 = vadd.f32 %v71, %v299
  %v301 = vpop.f32.mrb[0].mxu0
  %v302 = vadd.f32 %v75, %v301
  %v303 = vpop.f32.mrb[0].mxu0
  %v304 = vadd.f32 %v71, %v303
  %v305 = vpop.f32.mrb[0].mxu0
  %v306 = vadd.f32 %v75, %v305
  %307 = vdwg.mxu0
  %308 = vmatprep.subr.bf16.mxu0 0
  %309 = vmatpush1.bf16.msra.mxu0 %v189
  %310 = vmatprep.subr.bf16.mxu0 0
  %311 = vmatpush1.bf16.msra.mxu0 %v192
  %312 = vmatprep.subr.bf16.mxu0 0
  %313 = vmatpush1.bf16.msra.mxu0 %v195
  %314 = vmatprep.subr.bf16.mxu0 0
  %315 = vmatpush1.bf16.msra.mxu0 %v198
  %316 = vmatprep.subr.bf16.mxu0 0
  %317 = vmatpush1.bf16.msra.mxu0 %v201
  %318 = vmatprep.subr.bf16.mxu0 0
  %319 = vmatpush1.bf16.msra.mxu0 %v204
  %320 = vmatprep.subr.bf16.mxu0 0
  %321 = vmatpush1.bf16.msra.mxu0 %v207
  %322 = vmatprep.subr.bf16.mxu0 0
  %323 = vmatpush1.bf16.msra.mxu0 %v210
  %324 = vmatprep.subr.bf16.mxu0 0
  %325 = vmatpush1.bf16.msra.mxu0 0
  %326 = vmatprep.subr.bf16.mxu0 0
  %327 = vmatpush1.bf16.msra.mxu0 0
  %328 = vmatprep.subr.bf16.mxu0 0
  %329 = vmatpush1.bf16.msra.mxu0 0
  %330 = vmatprep.subr.bf16.mxu0 0
  %331 = vmatpush1.bf16.msra.mxu0 0
  %332 = vmatprep.subr.bf16.mxu0 0
  %333 = vmatpush1.bf16.msra.mxu0 0
  %334 = vmatprep.subr.bf16.mxu0 0
  %335 = vmatpush1.bf16.msra.mxu0 0
  %336 = vmatprep.subr.bf16.mxu0 0
  %337 = vmatpush1.bf16.msra.mxu0 0
  %338 = vmatprep.subr.bf16.mxu0 0
  %339 = vmatpush1.bf16.msra.mxu0 0
  %340 = vmatprep.mubr.bf16.mxu0 0
  %341 = vmatmul.mubr.bf16.gmra.mrb[0].mxu0 %v99
  %v342 = vpop.f32.mrb[0].mxu0
  %v343 = vadd.f32 %v79, %v342
  %v344 = vpop.f32.mrb[0].mxu0
  %v345 = vpop.f32.mrb[0].mxu0
  %v346 = vadd.f32 %v79, %v345
  %v347 = vpop.f32.mrb[0].mxu0
  %348 = vmatprep.mubr.bf16.mxu0 0
  %349 = vmatmul.mubr.bf16.gmra.mrb[0].mxu0 %v100
  %v350 = vpop.f32.mrb[0].mxu0
  %v351 = vadd.f32 %v79, %v350
  %v352 = vpop.f32.mrb[0].mxu0
  %v353 = vpop.f32.mrb[0].mxu0
  %v354 = vadd.f32 %v79, %v353
  %v355 = vpop.f32.mrb[0].mxu0
  %356 = vmatprep.mubr.bf16.mxu0 0
  %357 = vmatmul.mubr.bf16.gmra.mrb[0].mxu0 %v101
  %v358 = vpop.f32.mrb[0].mxu0
  %v359 = vadd.f32 %v79, %v358
  %v360 = vpop.f32.mrb[0].mxu0
  %v361 = vpop.f32.mrb[0].mxu0
  %v362 = vadd.f32 %v79, %v361
  %v363 = vpop.f32.mrb[0].mxu0
  %364 = vmatprep.mubr.bf16.mxu0 0
  %365 = vmatmul.mubr.bf16.gmra.mrb[0].mxu0 %v102
  %v366 = vpop.f32.mrb[0].mxu0
  %v367 = vadd.f32 %v79, %v366
  %v368 = vpop.f32.mrb[0].mxu0
  %v369 = vpop.f32.mrb[0].mxu0
  %v370 = vadd.f32 %v79, %v369
  %v371 = vpop.f32.mrb[0].mxu0
  %372 = vdwg.mxu0
  %373 = vst [vmem:[#allocation3] sm:$0xff] %v270
  %374 = vst [vmem:[#allocation3 + $0x8] sm:$0xff] %v272
  %375 = vst [vmem:[#allocation3 + $0x10] sm:$0xff] %v343
  %376 = vst [vmem:[#allocation3 + $0x18] sm:$0xff] %v274
  %377 = vst [vmem:[#allocation3 + $0x20] sm:$0xff] %v276
  %378 = vst [vmem:[#allocation3 + $0x28] sm:$0xff] %v346
  %379 = vst [vmem:[#allocation3 + $0x30] sm:$0xff] %v280
  %380 = vst [vmem:[#allocation3 + $0x38] sm:$0xff] %v282
  %381 = vst [vmem:[#allocation3 + $0x40] sm:$0xff] %v351
  %382 = vst [vmem:[#allocation3 + $0x48] sm:$0xff] %v284
  %383 = vst [vmem:[#allocation3 + $0x50] sm:$0xff] %v286
  %384 = vst [vmem:[#allocation3 + $0x58] sm:$0xff] %v354
  %385 = vst [vmem:[#allocation3 + $0x60] sm:$0xff] %v290
  %386 = vst [vmem:[#allocation3 + $0x68] sm:$0xff] %v292
  %387 = vst [vmem:[#allocation3 + $0x70] sm:$0xff] %v359
  %388 = vst [vmem:[#allocation3 + $0x78] sm:$0xff] %v294
  %389 = vst [vmem:[#allocation3 + $0x80] sm:$0xff] %v296
  %390 = vst [vmem:[#allocation3 + $0x88] sm:$0xff] %v362
  %391 = vst [vmem:[#allocation3 + $0x90] sm:$0xff] %v300
  %392 = vst [vmem:[#allocation3 + $0x98] sm:$0xff] %v302
  %393 = vst [vmem:[#allocation3 + $0xa0] sm:$0xff] %v367
  %394 = vst [vmem:[#allocation3 + $0xa8] sm:$0xff] %v304
  %395 = vst [vmem:[#allocation3 + $0xb0] sm:$0xff] %v306
  %396 = vst [vmem:[#allocation3 + $0xb8] sm:$0xff] %v370
  %v397 = vld [vmem:[#allocation2] sm:$0xff]
  %v398 = vld [vmem:[%s2] sm:$0xff]
  %v399 = vld [vmem:[%s2 + $0x8] sm:$0xf]
  %v400 = vld [vmem:[%s2 + $0xc] sm:$0xff]
  %v401 = vld [vmem:[%s2 + $0x14] sm:$0xf]
  %v402 = vld [vmem:[%s2 + $0x18] sm:$0xff]
  %v403 = vld [vmem:[%s2 + $0x20] sm:$0xf]
  %v404 = vld [vmem:[%s2 + $0x24] sm:$0xff]
  %v405 = vld [vmem:[%s2 + $0x2c] sm:$0xf]
  %v406 = vld [vmem:[%s2 + $0x30] sm:$0xff]
  %v407 = vld [vmem:[%s2 + $0x38] sm:$0xf]
  %v408 = vld [vmem:[%s2 + $0x3c] sm:$0xff]
  %v409 = vld [vmem:[%s2 + $0x44] sm:$0xf]
  %v410 = vld [vmem:[%s2 + $0x48] sm:$0xff]
  %v411 = vld [vmem:[%s2 + $0x50] sm:$0xf]
  %v412 = vld [vmem:[%s2 + $0x54] sm:$0xff]
  %v413 = vld [vmem:[%s2 + $0x5c] sm:$0xf]
  %v414 = vld [vmem:[%s2 + $0x60] sm:$0xff]
  %v415 = vld [vmem:[%s2 + $0x68] sm:$0xf]
  %v416 = vld [vmem:[%s2 + $0x6c] sm:$0xff]
  %v417 = vld [vmem:[%s2 + $0x74] sm:$0xf]
  %v418 = vld [vmem:[%s2 + $0x78] sm:$0xff]
  %v419 = vld [vmem:[%s2 + $0x80] sm:$0xf]
  %v420 = vld [vmem:[%s2 + $0x84] sm:$0xff]
  %v421 = vld [vmem:[%s2 + $0x8c] sm:$0xf]
  %v422 = vld [vmem:[%s2 + $0x90] sm:$0xff]
  %v423 = vld [vmem:[%s2 + $0x98] sm:$0xf]
  %v424 = vld [vmem:[%s2 + $0x9c] sm:$0xff]
  %v425 = vld [vmem:[%s2 + $0xa4] sm:$0xf]
  %v426 = vld [vmem:[%s2 + $0xa8] sm:$0xff]
  %v427 = vld [vmem:[%s2 + $0xb0] sm:$0xf]
  %v428 = vld [vmem:[%s2 + $0xb4] sm:$0xff]
  %v429 = vld [vmem:[%s2 + $0xbc] sm:$0xf]
  %v430 = vld [vmem:[%s4] sm:$0x1]
  %v432 = vlaneseq
  %v433 = vshrl.u32 %v432, 7
  %v434 = vsub.s32 0, %v433
  %v435 = vrot.slane %v430, %v434
  %s437 = smul.u32 0, 3
  %s438 = smul.addr %s437, 8
  %s439 = scalar_lea.vmem [#allocation3], %s438
  %v440 = vld [vmem:[%s439] sm:$0xff]
  %v441 = vld [vmem:[%s439 + $0x8] sm:$0xff]
  %v442 = vld [vmem:[%s439 + $0x10] sm:$0xff]
  %v443 = vpack.c.bf16 %v397, %v397
  %v476 = vunpack.c.l.b16 %v398
  %v477 = vunpack.c.h.b16 %v398
  %v478 = vunpack.c.l.b16 %v399
  %v479 = vunpack.c.l.b16 %v400
  %v480 = vunpack.c.h.b16 %v400
  %v481 = vunpack.c.l.b16 %v401
  %v482 = vunpack.c.l.b16 %v402
  %v483 = vunpack.c.h.b16 %v402
  %v484 = vunpack.c.l.b16 %v403
  %v485 = vunpack.c.l.b16 %v404
  %v486 = vunpack.c.h.b16 %v404
  %v487 = vunpack.c.l.b16 %v405
  %v488 = vunpack.c.l.b16 %v406
  %v489 = vunpack.c.h.b16 %v406
  %v490 = vunpack.c.l.b16 %v407
  %v491 = vunpack.c.l.b16 %v408
  %v492 = vunpack.c.h.b16 %v408
  %v493 = vunpack.c.l.b16 %v409
  %v494 = vunpack.c.l.b16 %v410
  %v495 = vunpack.c.h.b16 %v410
  %v496 = vunpack.c.l.b16 %v411
  %v497 = vunpack.c.l.b16 %v412
  %v498 = vunpack.c.h.b16 %v412
  %v499 = vunpack.c.l.b16 %v413
  %v500 = vunpack.c.l.b16 %v414
  %v501 = vunpack.c.h.b16 %v414
  %v502 = vunpack.c.l.b16 %v415
  %v503 = vunpack.c.l.b16 %v416
  %v504 = vunpack.c.h.b16 %v416
  %v505 = vunpack.c.l.b16 %v417
  %v506 = vunpack.c.l.b16 %v418
  %v507 = vunpack.c.h.b16 %v418
  %v508 = vunpack.c.l.b16 %v419
  %v509 = vunpack.c.l.b16 %v420
  %v510 = vunpack.c.h.b16 %v420
  %v511 = vunpack.c.l.b16 %v421
  %v512 = vunpack.c.l.b16 %v422
  %v513 = vunpack.c.h.b16 %v422
  %v514 = vunpack.c.l.b16 %v423
  %v515 = vunpack.c.l.b16 %v424
  %v516 = vunpack.c.h.b16 %v424
  %v517 = vunpack.c.l.b16 %v425
  %v518 = vunpack.c.l.b16 %v426
  %v519 = vunpack.c.h.b16 %v426
  %v520 = vunpack.c.l.b16 %v427
  %v521 = vunpack.c.l.b16 %v428
  %v522 = vunpack.c.h.b16 %v428
  %v523 = vunpack.c.l.b16 %v429
  %v524 = vpack.c.b16 %v479, %v476
  %v525 = vpack.c.b16 %v480, %v477
  %v526 = vpack.c.b16 %v481, %v478
  %v527 = vpack.c.b16 %v485, %v482
  %v528 = vpack.c.b16 %v486, %v483
  %v529 = vpack.c.b16 %v487, %v484
  %v530 = vpack.c.b16 %v491, %v488
  %v531 = vpack.c.b16 %v492, %v489
  %v532 = vpack.c.b16 %v493, %v490
  %v533 = vpack.c.b16 %v497, %v494
  %v534 = vpack.c.b16 %v498, %v495
  %v535 = vpack.c.b16 %v499, %v496
  %v536 = vpack.c.b16 %v503, %v500
  %v537 = vpack.c.b16 %v504, %v501
  %v538 = vpack.c.b16 %v505, %v502
  %v539 = vpack.c.b16 %v509, %v506
  %v540 = vpack.c.b16 %v510, %v507
  %v541 = vpack.c.b16 %v511, %v508
  %v542 = vpack.c.b16 %v515, %v512
  %v543 = vpack.c.b16 %v516, %v513
  %v544 = vpack.c.b16 %v517, %v514
  %v545 = vpack.c.b16 %v521, %v518
  %v546 = vpack.c.b16 %v522, %v519
  %v547 = vpack.c.b16 %v523, %v520
  %572 = vmatprep.subr.bf16.mxu0 %v525
  %573 = vmatpush1.bf16.msra.mxu0 %v524
  %574 = vmatprep.subr.bf16.mxu0 %v528
  %575 = vmatpush1.bf16.msra.mxu0 %v527
  %576 = vmatprep.subr.bf16.mxu0 %v531
  %577 = vmatpush1.bf16.msra.mxu0 %v530
  %578 = vmatprep.subr.bf16.mxu0 %v534
  %579 = vmatpush1.bf16.msra.mxu0 %v533
  %580 = vmatprep.subr.bf16.mxu0 %v537
  %581 = vmatpush1.bf16.msra.mxu0 %v536
  %582 = vmatprep.subr.bf16.mxu0 %v540
  %583 = vmatpush1.bf16.msra.mxu0 %v539
  %584 = vmatprep.subr.bf16.mxu0 %v543
  %585 = vmatpush1.bf16.msra.mxu0 %v542
  %586 = vmatprep.subr.bf16.mxu0 %v546
  %587 = vmatpush1.bf16.msra.mxu0 %v545
  %588 = vmatprep.subr.bf16.mxu0 0
  %589 = vmatpush1.bf16.msra.mxu0 0
  %590 = vmatprep.subr.bf16.mxu0 0
  %591 = vmatpush1.bf16.msra.mxu0 0
  %592 = vmatprep.subr.bf16.mxu0 0
  %593 = vmatpush1.bf16.msra.mxu0 0
  %594 = vmatprep.subr.bf16.mxu0 0
  %595 = vmatpush1.bf16.msra.mxu0 0
  %596 = vmatprep.subr.bf16.mxu0 0
  %597 = vmatpush1.bf16.msra.mxu0 0
  %598 = vmatprep.subr.bf16.mxu0 0
  %599 = vmatpush1.bf16.msra.mxu0 0
  %600 = vmatprep.subr.bf16.mxu0 0
  %601 = vmatpush1.bf16.msra.mxu0 0
  %602 = vmatprep.subr.bf16.mxu0 0
  %603 = vmatpush1.bf16.msra.mxu0 0
  %604 = vmatprep.mubr.bf16.mxu0 0
  %605 = vmatmul.mubr.bf16.gmra.mrb[0].mxu0 %v443
  %v606 = vpop.f32.mrb[0].mxu0
  %v607 = vadd.f32 0.0, %v606
  %v608 = vpop.f32.mrb[0].mxu0
  %v609 = vadd.f32 0.0, %v608
  %v610 = vpop.f32.mrb[0].mxu0
  %v611 = vpop.f32.mrb[0].mxu0
  %612 = vdwg.mxu0
  %613 = vmatprep.subr.bf16.mxu0 0
  %614 = vmatpush1.bf16.msra.mxu0 %v526
  %615 = vmatprep.subr.bf16.mxu0 0
  %616 = vmatpush1.bf16.msra.mxu0 %v529
  %617 = vmatprep.subr.bf16.mxu0 0
  %618 = vmatpush1.bf16.msra.mxu0 %v532
  %619 = vmatprep.subr.bf16.mxu0 0
  %620 = vmatpush1.bf16.msra.mxu0 %v535
  %621 = vmatprep.subr.bf16.mxu0 0
  %622 = vmatpush1.bf16.msra.mxu0 %v538
  %623 = vmatprep.subr.bf16.mxu0 0
  %624 = vmatpush1.bf16.msra.mxu0 %v541
  %625 = vmatprep.subr.bf16.mxu0 0
  %626 = vmatpush1.bf16.msra.mxu0 %v544
  %627 = vmatprep.subr.bf16.mxu0 0
  %628 = vmatpush1.bf16.msra.mxu0 %v547
  %629 = vmatprep.subr.bf16.mxu0 0
  %630 = vmatpush1.bf16.msra.mxu0 0
  %631 = vmatprep.subr.bf16.mxu0 0
  %632 = vmatpush1.bf16.msra.mxu0 0
  %633 = vmatprep.subr.bf16.mxu0 0
  %634 = vmatpush1.bf16.msra.mxu0 0
  %635 = vmatprep.subr.bf16.mxu0 0
  %636 = vmatpush1.bf16.msra.mxu0 0
  %637 = vmatprep.subr.bf16.mxu0 0
  %638 = vmatpush1.bf16.msra.mxu0 0
  %639 = vmatprep.subr.bf16.mxu0 0
  %640 = vmatpush1.bf16.msra.mxu0 0
  %641 = vmatprep.subr.bf16.mxu0 0
  %642 = vmatpush1.bf16.msra.mxu0 0
  %643 = vmatprep.subr.bf16.mxu0 0
  %644 = vmatpush1.bf16.msra.mxu0 0
  %645 = vmatprep.mubr.bf16.mxu0 0
  %646 = vmatmul.mubr.bf16.gmra.mrb[0].mxu0 %v443
  %v647 = vpop.f32.mrb[0].mxu0
  %v648 = vadd.f32 0.0, %v647
  %v649 = vpop.f32.mrb[0].mxu0
  %v650 = vpop.f32.mrb[0].mxu0
  %v651 = vpop.f32.mrb[0].mxu0
  %652 = vdwg.mxu0
  %v653 = vadd.f32 %v440, %v607
  %v654 = vxor.u32 %v653, 2147483648
  %v655 = vmul.f32 %v654, 1.442695
  %v656 = vpow.pop %v655
  %v657 = vadd.f32 %v656, 1.0
  %v658 = vrcp.pop %v657
  %v659 = vmul.f32 1.0, %v658
  %v660 = vadd.f32 %v441, %v609
  %v661 = vxor.u32 %v660, 2147483648
  %v662 = vmul.f32 %v661, 1.442695
  %v663 = vpow.pop %v662
  %v664 = vadd.f32 %v663, 1.0
  %v665 = vrcp.pop %v664
  %v666 = vmul.f32 1.0, %v665
  %v667 = vadd.f32 %v648, %v435
  %v668 = vmul.f32 %v659, %v667
  %v669 = vadd.f32 %v442, %v668
  %v670 = vtanh.pop %v669
  %v671 = vsub.f32 %v397, %v670
  %v672 = vmul.f32 %v666, %v671
  %v673 = vadd.f32 %v670, %v672
  %v674 = vpack.c.bf16 %v673, %v673
  %675 = vst [vmem:[%s5] sm:$0xf] %v674
  %s676 = smul.u32 1, 3
  %s677 = smul.addr %s676, 8
  %s678 = scalar_lea.vmem [#allocation3], %s677
  %v679 = vld [vmem:[%s678] sm:$0xff]
  %v680 = vld [vmem:[%s678 + $0x8] sm:$0xff]
  %v681 = vld [vmem:[%s678 + $0x10] sm:$0xff]
  %682 = vmatprep.subr.bf16.mxu0 %v525
  %683 = vmatpush1.bf16.msra.mxu0 %v524
  %684 = vmatprep.subr.bf16.mxu0 %v528
  %685 = vmatpush1.bf16.msra.mxu0 %v527
  %686 = vmatprep.subr.bf16.mxu0 %v531
  %687 = vmatpush1.bf16.msra.mxu0 %v530
  %688 = vmatprep.subr.bf16.mxu0 %v534
  %689 = vmatpush1.bf16.msra.mxu0 %v533
  %690 = vmatprep.subr.bf16.mxu0 %v537
  %691 = vmatpush1.bf16.msra.mxu0 %v536
  %692 = vmatprep.subr.bf16.mxu0 %v540
  %693 = vmatpush1.bf16.msra.mxu0 %v539
  %694 = vmatprep.subr.bf16.mxu0 %v543
  %695 = vmatpush1.bf16.msra.mxu0 %v542
  %696 = vmatprep.subr.bf16.mxu0 %v546
  %697 = vmatpush1.bf16.msra.mxu0 %v545
  %698 = vmatprep.subr.bf16.mxu0 0
  %699 = vmatpush1.bf16.msra.mxu0 0
  %700 = vmatprep.subr.bf16.mxu0 0
  %701 = vmatpush1.bf16.msra.mxu0 0
  %702 = vmatprep.subr.bf16.mxu0 0
  %703 = vmatpush1.bf16.msra.mxu0 0
  %704 = vmatprep.subr.bf16.mxu0 0
  %705 = vmatpush1.bf16.msra.mxu0 0
  %706 = vmatprep.subr.bf16.mxu0 0
  %707 = vmatpush1.bf16.msra.mxu0 0
  %708 = vmatprep.subr.bf16.mxu0 0
  %709 = vmatpush1.bf16.msra.mxu0 0
  %710 = vmatprep.subr.bf16.mxu0 0
  %711 = vmatpush1.bf16.msra.mxu0 0
  %712 = vmatprep.subr.bf16.mxu0 0
  %713 = vmatpush1.bf16.msra.mxu0 0
  %714 = vmatprep.mubr.bf16.mxu0 0
  %715 = vmatmul.mubr.bf16.gmra.mrb[0].mxu0 %v674
  %v716 = vpop.f32.mrb[0].mxu0
  %v717 = vadd.f32 0.0, %v716
  %v718 = vpop.f32.mrb[0].mxu0
  %v719 = vadd.f32 0.0, %v718
  %v720 = vpop.f32.mrb[0].mxu0
  %v721 = vpop.f32.mrb[0].mxu0
  %722 = vdwg.mxu0
  %723 = vmatprep.subr.bf16.mxu0 0
  %724 = vmatpush1.bf16.msra.mxu0 %v526
  %725 = vmatprep.subr.bf16.mxu0 0
  %726 = vmatpush1.bf16.msra.mxu0 %v529
  %727 = vmatprep.subr.bf16.mxu0 0
  %728 = vmatpush1.bf16.msra.mxu0 %v532
  %729 = vmatprep.subr.bf16.mxu0 0
  %730 = vmatpush1.bf16.msra.mxu0 %v535
  %731 = vmatprep.subr.bf16.mxu0 0
  %732 = vmatpush1.bf16.msra.mxu0 %v538
  %733 = vmatprep.subr.bf16.mxu0 0
  %734 = vmatpush1.bf16.msra.mxu0 %v541
  %735 = vmatprep.subr.bf16.mxu0 0
  %736 = vmatpush1.bf16.msra.mxu0 %v544
  %737 = vmatprep.subr.bf16.mxu0 0
  %738 = vmatpush1.bf16.msra.mxu0 %v547
  %739 = vmatprep.subr.bf16.mxu0 0
  %740 = vmatpush1.bf16.msra.mxu0 0
  %741 = vmatprep.subr.bf16.mxu0 0
  %742 = vmatpush1.bf16.msra.mxu0 0
  %743 = vmatprep.subr.bf16.mxu0 0
  %744 = vmatpush1.bf16.msra.mxu0 0
  %745 = vmatprep.subr.bf16.mxu0 0
  %746 = vmatpush1.bf16.msra.mxu0 0
  %747 = vmatprep.subr.bf16.mxu0 0
  %748 = vmatpush1.bf16.msra.mxu0 0
  %749 = vmatprep.subr.bf16.mxu0 0
  %750 = vmatpush1.bf16.msra.mxu0 0
  %751 = vmatprep.subr.bf16.mxu0 0
  %752 = vmatpush1.bf16.msra.mxu0 0
  %753 = vmatprep.subr.bf16.mxu0 0
  %754 = vmatpush1.bf16.msra.mxu0 0
  %755 = vmatprep.mubr.bf16.mxu0 0
  %756 = vmatmul.mubr.bf16.gmra.mrb[0].mxu0 %v674
  %v757 = vpop.f32.mrb[0].mxu0
  %v758 = vadd.f32 0.0, %v757
  %v759 = vpop.f32.mrb[0].mxu0
  %v760 = vpop.f32.mrb[0].mxu0
  %v761 = vpop.f32.mrb[0].mxu0
  %762 = vdwg.mxu0
  %v763 = vadd.f32 %v679, %v717
  %v764 = vxor.u32 %v763, 2147483648
  %v765 = vmul.f32 %v764, 1.442695
  %v766 = vpow.pop %v765
  %v767 = vadd.f32 %v766, 1.0
  %v768 = vrcp.pop %v767
  %v769 = vmul.f32 1.0, %v768
  %v770 = vadd.f32 %v680, %v719
  %v771 = vxor.u32 %v770, 2147483648
  %v772 = vmul.f32 %v771, 1.442695
  %v773 = vpow.pop %v772
  %v774 = vadd.f32 %v773, 1.0
  %v775 = vrcp.pop %v774
  %v776 = vmul.f32 1.0, %v775
  %v777 = vadd.f32 %v758, %v435
  %v778 = vmul.f32 %v769, %v777
  %v779 = vadd.f32 %v681, %v778
  %v780 = vtanh.pop %v779
  %v781 = vsub.f32 %v673, %v780
  %v782 = vmul.f32 %v776, %v781
  %v783 = vadd.f32 %v780, %v782
  %v784 = vpack.c.bf16 %v783, %v783
  %s785 = scalar_lea.vmem %s5, 4
  %786 = vst [vmem:[%s785] sm:$0xf] %v784
  %s787 = smul.u32 2, 3
  %s788 = smul.addr %s787, 8
  %s789 = scalar_lea.vmem [#allocation3], %s788
  %v790 = vld [vmem:[%s789] sm:$0xff]
  %v791 = vld [vmem:[%s789 + $0x8] sm:$0xff]
  %v792 = vld [vmem:[%s789 + $0x10] sm:$0xff]
  %793 = vmatprep.subr.bf16.mxu0 %v525
  %794 = vmatpush1.bf16.msra.mxu0 %v524
  %795 = vmatprep.subr.bf16.mxu0 %v528
  %796 = vmatpush1.bf16.msra.mxu0 %v527
  %797 = vmatprep.subr.bf16.mxu0 %v531
  %798 = vmatpush1.bf16.msra.mxu0 %v530
  %799 = vmatprep.subr.bf16.mxu0 %v534
  %800 = vmatpush1.bf16.msra.mxu0 %v533
  %801 = vmatprep.subr.bf16.mxu0 %v537
  %802 = vmatpush1.bf16.msra.mxu0 %v536
  %803 = vmatprep.subr.bf16.mxu0 %v540
  %804 = vmatpush1.bf16.msra.mxu0 %v539
  %805 = vmatprep.subr.bf16.mxu0 %v543
  %806 = vmatpush1.bf16.msra.mxu0 %v542
  %807 = vmatprep.subr.bf16.mxu0 %v546
  %808 = vmatpush1.bf16.msra.mxu0 %v545
  %809 = vmatprep.subr.bf16.mxu0 0
  %810 = vmatpush1.bf16.msra.mxu0 0
  %811 = vmatprep.subr.bf16.mxu0 0
  %812 = vmatpush1.bf16.msra.mxu0 0
  %813 = vmatprep.subr.bf16.mxu0 0
  %814 = vmatpush1.bf16.msra.mxu0 0
  %815 = vmatprep.subr.bf16.mxu0 0
  %816 = vmatpush1.bf16.msra.mxu0 0
  %817 = vmatprep.subr.bf16.mxu0 0
  %818 = vmatpush1.bf16.msra.mxu0 0
  %819 = vmatprep.subr.bf16.mxu0 0
  %820 = vmatpush1.bf16.msra.mxu0 0
  %821 = vmatprep.subr.bf16.mxu0 0
  %822 = vmatpush1.bf16.msra.mxu0 0
  %823 = vmatprep.subr.bf16.mxu0 0
  %824 = vmatpush1.bf16.msra.mxu0 0
  %825 = vmatprep.mubr.bf16.mxu0 0
  %826 = vmatmul.mubr.bf16.gmra.mrb[0].mxu0 %v784
  %v827 = vpop.f32.mrb[0].mxu0
  %v828 = vadd.f32 0.0, %v827
  %v829 = vpop.f32.mrb[0].mxu0
  %v830 = vadd.f32 0.0, %v829
  %v831 = vpop.f32.mrb[0].mxu0
  %v832 = vpop.f32.mrb[0].mxu0
  %833 = vdwg.mxu0
  %834 = vmatprep.subr.bf16.mxu0 0
  %835 = vmatpush1.bf16.msra.mxu0 %v526
  %836 = vmatprep.subr.bf16.mxu0 0
  %837 = vmatpush1.bf16.msra.mxu0 %v529
  %838 = vmatprep.subr.bf16.mxu0 0
  %839 = vmatpush1.bf16.msra.mxu0 %v532
  %840 = vmatprep.subr.bf16.mxu0 0
  %841 = vmatpush1.bf16.msra.mxu0 %v535
  %842 = vmatprep.subr.bf16.mxu0 0
  %843 = vmatpush1.bf16.msra.mxu0 %v538
  %844 = vmatprep.subr.bf16.mxu0 0
  %845 = vmatpush1.bf16.msra.mxu0 %v541
  %846 = vmatprep.subr.bf16.mxu0 0
  %847 = vmatpush1.bf16.msra.mxu0 %v544
  %848 = vmatprep.subr.bf16.mxu0 0
  %849 = vmatpush1.bf16.msra.mxu0 %v547
  %850 = vmatprep.subr.bf16.mxu0 0
  %851 = vmatpush1.bf16.msra.mxu0 0
  %852 = vmatprep.subr.bf16.mxu0 0
  %853 = vmatpush1.bf16.msra.mxu0 0
  %854 = vmatprep.subr.bf16.mxu0 0
  %855 = vmatpush1.bf16.msra.mxu0 0
  %856 = vmatprep.subr.bf16.mxu0 0
  %857 = vmatpush1.bf16.msra.mxu0 0
  %858 = vmatprep.subr.bf16.mxu0 0
  %859 = vmatpush1.bf16.msra.mxu0 0
  %860 = vmatprep.subr.bf16.mxu0 0
  %861 = vmatpush1.bf16.msra.mxu0 0
  %862 = vmatprep.subr.bf16.mxu0 0
  %863 = vmatpush1.bf16.msra.mxu0 0
  %864 = vmatprep.subr.bf16.mxu0 0
  %865 = vmatpush1.bf16.msra.mxu0 0
  %866 = vmatprep.mubr.bf16.mxu0 0
  %867 = vmatmul.mubr.bf16.gmra.mrb[0].mxu0 %v784
  %v868 = vpop.f32.mrb[0].mxu0
  %v869 = vadd.f32 0.0, %v868
  %v870 = vpop.f32.mrb[0].mxu0
  %v871 = vpop.f32.mrb[0].mxu0
  %v872 = vpop.f32.mrb[0].mxu0
  %873 = vdwg.mxu0
  %v874 = vadd.f32 %v790, %v828
  %v875 = vxor.u32 %v874, 2147483648
  %v876 = vmul.f32 %v875, 1.442695
  %v877 = vpow.pop %v876
  %v878 = vadd.f32 %v877, 1.0
  %v879 = vrcp.pop %v878
  %v880 = vmul.f32 1.0, %v879
  %v881 = vadd.f32 %v791, %v830
  %v882 = vxor.u32 %v881, 2147483648
  %v883 = vmul.f32 %v882, 1.442695
  %v884 = vpow.pop %v883
  %v885 = vadd.f32 %v884, 1.0
  %v886 = vrcp.pop %v885
  %v887 = vmul.f32 1.0, %v886
  %v888 = vadd.f32 %v869, %v435
  %v889 = vmul.f32 %v880, %v888
  %v890 = vadd.f32 %v792, %v889
  %v891 = vtanh.pop %v890
  %v892 = vsub.f32 %v783, %v891
  %v893 = vmul.f32 %v887, %v892
  %v894 = vadd.f32 %v891, %v893
  %v895 = vpack.c.bf16 %v894, %v894
  %s896 = scalar_lea.vmem %s5, 8
  %897 = vst [vmem:[%s896] sm:$0xf] %v895
  %s898 = smul.u32 3, 3
  %s899 = smul.addr %s898, 8
  %s900 = scalar_lea.vmem [#allocation3], %s899
  %v901 = vld [vmem:[%s900] sm:$0xff]
  %v902 = vld [vmem:[%s900 + $0x8] sm:$0xff]
  %v903 = vld [vmem:[%s900 + $0x10] sm:$0xff]
  %904 = vmatprep.subr.bf16.mxu0 %v525
  %905 = vmatpush1.bf16.msra.mxu0 %v524
  %906 = vmatprep.subr.bf16.mxu0 %v528
  %907 = vmatpush1.bf16.msra.mxu0 %v527
  %908 = vmatprep.subr.bf16.mxu0 %v531
  %909 = vmatpush1.bf16.msra.mxu0 %v530
  %910 = vmatprep.subr.bf16.mxu0 %v534
  %911 = vmatpush1.bf16.msra.mxu0 %v533
  %912 = vmatprep.subr.bf16.mxu0 %v537
  %913 = vmatpush1.bf16.msra.mxu0 %v536
  %914 = vmatprep.subr.bf16.mxu0 %v540
  %915 = vmatpush1.bf16.msra.mxu0 %v539
  %916 = vmatprep.subr.bf16.mxu0 %v543
  %917 = vmatpush1.bf16.msra.mxu0 %v542
  %918 = vmatprep.subr.bf16.mxu0 %v546
  %919 = vmatpush1.bf16.msra.mxu0 %v545
  %920 = vmatprep.subr.bf16.mxu0 0
  %921 = vmatpush1.bf16.msra.mxu0 0
  %922 = vmatprep.subr.bf16.mxu0 0
  %923 = vmatpush1.bf16.msra.mxu0 0
  %924 = vmatprep.subr.bf16.mxu0 0
  %925 = vmatpush1.bf16.msra.mxu0 0
  %926 = vmatprep.subr.bf16.mxu0 0
  %927 = vmatpush1.bf16.msra.mxu0 0
  %928 = vmatprep.subr.bf16.mxu0 0
  %929 = vmatpush1.bf16.msra.mxu0 0
  %930 = vmatprep.subr.bf16.mxu0 0
  %931 = vmatpush1.bf16.msra.mxu0 0
  %932 = vmatprep.subr.bf16.mxu0 0
  %933 = vmatpush1.bf16.msra.mxu0 0
  %934 = vmatprep.subr.bf16.mxu0 0
  %935 = vmatpush1.bf16.msra.mxu0 0
  %936 = vmatprep.mubr.bf16.mxu0 0
  %937 = vmatmul.mubr.bf16.gmra.mrb[0].mxu0 %v895
  %v938 = vpop.f32.mrb[0].mxu0
  %v939 = vadd.f32 0.0, %v938
  %v940 = vpop.f32.mrb[0].mxu0
  %v941 = vadd.f32 0.0, %v940
  %v942 = vpop.f32.mrb[0].mxu0
  %v943 = vpop.f32.mrb[0].mxu0
  %944 = vdwg.mxu0
  %945 = vmatprep.subr.bf16.mxu0 0
  %946 = vmatpush1.bf16.msra.mxu0 %v526
  %947 = vmatprep.subr.bf16.mxu0 0
  %948 = vmatpush1.bf16.msra.mxu0 %v529
  %949 = vmatprep.subr.bf16.mxu0 0
  %950 = vmatpush1.bf16.msra.mxu0 %v532
  %951 = vmatprep.subr.bf16.mxu0 0
  %952 = vmatpush1.bf16.msra.mxu0 %v535
  %953 = vmatprep.subr.bf16.mxu0 0
  %954 = vmatpush1.bf16.msra.mxu0 %v538
  %955 = vmatprep.subr.bf16.mxu0 0
  %956 = vmatpush1.bf16.msra.mxu0 %v541
  %957 = vmatprep.subr.bf16.mxu0 0
  %958 = vmatpush1.bf16.msra.mxu0 %v544
  %959 = vmatprep.subr.bf16.mxu0 0
  %960 = vmatpush1.bf16.msra.mxu0 %v547
  %961 = vmatprep.subr.bf16.mxu0 0
  %962 = vmatpush1.bf16.msra.mxu0 0
  %963 = vmatprep.subr.bf16.mxu0 0
  %964 = vmatpush1.bf16.msra.mxu0 0
  %965 = vmatprep.subr.bf16.mxu0 0
  %966 = vmatpush1.bf16.msra.mxu0 0
  %967 = vmatprep.subr.bf16.mxu0 0
  %968 = vmatpush1.bf16.msra.mxu0 0
  %969 = vmatprep.subr.bf16.mxu0 0
  %970 = vmatpush1.bf16.msra.mxu0 0
  %971 = vmatprep.subr.bf16.mxu0 0
  %972 = vmatpush1.bf16.msra.mxu0 0
  %973 = vmatprep.subr.bf16.mxu0 0
  %974 = vmatpush1.bf16.msra.mxu0 0
  %975 = vmatprep.subr.bf16.mxu0 0
  %976 = vmatpush1.bf16.msra.mxu0 0
  %977 = vmatprep.mubr.bf16.mxu0 0
  %978 = vmatmul.mubr.bf16.gmra.mrb[0].mxu0 %v895
  %v979 = vpop.f32.mrb[0].mxu0
  %v980 = vadd.f32 0.0, %v979
  %v981 = vpop.f32.mrb[0].mxu0
  %v982 = vpop.f32.mrb[0].mxu0
  %v983 = vpop.f32.mrb[0].mxu0
  %984 = vdwg.mxu0
  %v985 = vadd.f32 %v901, %v939
  %v986 = vxor.u32 %v985, 2147483648
  %v987 = vmul.f32 %v986, 1.442695
  %v988 = vpow.pop %v987
  %v989 = vadd.f32 %v988, 1.0
  %v990 = vrcp.pop %v989
  %v991 = vmul.f32 1.0, %v990
  %v992 = vadd.f32 %v902, %v941
  %v993 = vxor.u32 %v992, 2147483648
  %v994 = vmul.f32 %v993, 1.442695
  %v995 = vpow.pop %v994
  %v996 = vadd.f32 %v995, 1.0
  %v997 = vrcp.pop %v996
  %v998 = vmul.f32 1.0, %v997
  %v999 = vadd.f32 %v980, %v435
  %v1000 = vmul.f32 %v991, %v999
  %v1001 = vadd.f32 %v903, %v1000
  %v1002 = vtanh.pop %v1001
  %v1003 = vsub.f32 %v894, %v1002
  %v1004 = vmul.f32 %v998, %v1003
  %v1005 = vadd.f32 %v1002, %v1004
  %v1006 = vpack.c.bf16 %v1005, %v1005
  %s1007 = scalar_lea.vmem %s5, 12
  %1008 = vst [vmem:[%s1007] sm:$0xf] %v1006
  %s1009 = smul.u32 4, 3
  %s1010 = smul.addr %s1009, 8
  %s1011 = scalar_lea.vmem [#allocation3], %s1010
  %v1012 = vld [vmem:[%s1011] sm:$0xff]
  %v1013 = vld [vmem:[%s1011 + $0x8] sm:$0xff]
  %v1014 = vld [vmem:[%s1011 + $0x10] sm:$0xff]
  %1015 = vmatprep.subr.bf16.mxu0 %v525
  %1016 = vmatpush1.bf16.msra.mxu0 %v524
  %1017 = vmatprep.subr.bf16.mxu0 %v528
  %1018 = vmatpush1.bf16.msra.mxu0 %v527
  %1019 = vmatprep.subr.bf16.mxu0 %v531
  %1020 = vmatpush1.bf16.msra.mxu0 %v530
  %1021 = vmatprep.subr.bf16.mxu0 %v534
  %1022 = vmatpush1.bf16.msra.mxu0 %v533
  %1023 = vmatprep.subr.bf16.mxu0 %v537
  %1024 = vmatpush1.bf16.msra.mxu0 %v536
  %1025 = vmatprep.subr.bf16.mxu0 %v540
  %1026 = vmatpush1.bf16.msra.mxu0 %v539
  %1027 = vmatprep.subr.bf16.mxu0 %v543
  %1028 = vmatpush1.bf16.msra.mxu0 %v542
  %1029 = vmatprep.subr.bf16.mxu0 %v546
  %1030 = vmatpush1.bf16.msra.mxu0 %v545
  %1031 = vmatprep.subr.bf16.mxu0 0
  %1032 = vmatpush1.bf16.msra.mxu0 0
  %1033 = vmatprep.subr.bf16.mxu0 0
  %1034 = vmatpush1.bf16.msra.mxu0 0
  %1035 = vmatprep.subr.bf16.mxu0 0
  %1036 = vmatpush1.bf16.msra.mxu0 0
  %1037 = vmatprep.subr.bf16.mxu0 0
  %1038 = vmatpush1.bf16.msra.mxu0 0
  %1039 = vmatprep.subr.bf16.mxu0 0
  %1040 = vmatpush1.bf16.msra.mxu0 0
  %1041 = vmatprep.subr.bf16.mxu0 0
  %1042 = vmatpush1.bf16.msra.mxu0 0
  %1043 = vmatprep.subr.bf16.mxu0 0
  %1044 = vmatpush1.bf16.msra.mxu0 0
  %1045 = vmatprep.subr.bf16.mxu0 0
  %1046 = vmatpush1.bf16.msra.mxu0 0
  %1047 = vmatprep.mubr.bf16.mxu0 0
  %1048 = vmatmul.mubr.bf16.gmra.mrb[0].mxu0 %v1006
  %v1049 = vpop.f32.mrb[0].mxu0
  %v1050 = vadd.f32 0.0, %v1049
  %v1051 = vpop.f32.mrb[0].mxu0
  %v1052 = vadd.f32 0.0, %v1051
  %v1053 = vpop.f32.mrb[0].mxu0
  %v1054 = vpop.f32.mrb[0].mxu0
  %1055 = vdwg.mxu0
  %1056 = vmatprep.subr.bf16.mxu0 0
  %1057 = vmatpush1.bf16.msra.mxu0 %v526
  %1058 = vmatprep.subr.bf16.mxu0 0
  %1059 = vmatpush1.bf16.msra.mxu0 %v529
  %1060 = vmatprep.subr.bf16.mxu0 0
  %1061 = vmatpush1.bf16.msra.mxu0 %v532
  %1062 = vmatprep.subr.bf16.mxu0 0
  %1063 = vmatpush1.bf16.msra.mxu0 %v535
  %1064 = vmatprep.subr.bf16.mxu0 0
  %1065 = vmatpush1.bf16.msra.mxu0 %v538
  %1066 = vmatprep.subr.bf16.mxu0 0
  %1067 = vmatpush1.bf16.msra.mxu0 %v541
  %1068 = vmatprep.subr.bf16.mxu0 0
  %1069 = vmatpush1.bf16.msra.mxu0 %v544
  %1070 = vmatprep.subr.bf16.mxu0 0
  %1071 = vmatpush1.bf16.msra.mxu0 %v547
  %1072 = vmatprep.subr.bf16.mxu0 0
  %1073 = vmatpush1.bf16.msra.mxu0 0
  %1074 = vmatprep.subr.bf16.mxu0 0
  %1075 = vmatpush1.bf16.msra.mxu0 0
  %1076 = vmatprep.subr.bf16.mxu0 0
  %1077 = vmatpush1.bf16.msra.mxu0 0
  %1078 = vmatprep.subr.bf16.mxu0 0
  %1079 = vmatpush1.bf16.msra.mxu0 0
  %1080 = vmatprep.subr.bf16.mxu0 0
  %1081 = vmatpush1.bf16.msra.mxu0 0
  %1082 = vmatprep.subr.bf16.mxu0 0
  %1083 = vmatpush1.bf16.msra.mxu0 0
  %1084 = vmatprep.subr.bf16.mxu0 0
  %1085 = vmatpush1.bf16.msra.mxu0 0
  %1086 = vmatprep.subr.bf16.mxu0 0
  %1087 = vmatpush1.bf16.msra.mxu0 0
  %1088 = vmatprep.mubr.bf16.mxu0 0
  %1089 = vmatmul.mubr.bf16.gmra.mrb[0].mxu0 %v1006
  %v1090 = vpop.f32.mrb[0].mxu0
  %v1091 = vadd.f32 0.0, %v1090
  %v1092 = vpop.f32.mrb[0].mxu0
  %v1093 = vpop.f32.mrb[0].mxu0
  %v1094 = vpop.f32.mrb[0].mxu0
  %1095 = vdwg.mxu0
  %v1096 = vadd.f32 %v1012, %v1050
  %v1097 = vxor.u32 %v1096, 2147483648
  %v1098 = vmul.f32 %v1097, 1.442695
  %v1099 = vpow.pop %v1098
  %v1100 = vadd.f32 %v1099, 1.0
  %v1101 = vrcp.pop %v1100
  %v1102 = vmul.f32 1.0, %v1101
  %v1103 = vadd.f32 %v1013, %v1052
  %v1104 = vxor.u32 %v1103, 2147483648
  %v1105 = vmul.f32 %v1104, 1.442695
  %v1106 = vpow.pop %v1105
  %v1107 = vadd.f32 %v1106, 1.0
  %v1108 = vrcp.pop %v1107
  %v1109 = vmul.f32 1.0, %v1108
  %v1110 = vadd.f32 %v1091, %v435
  %v1111 = vmul.f32 %v1102, %v1110
  %v1112 = vadd.f32 %v1014, %v1111
  %v1113 = vtanh.pop %v1112
  %v1114 = vsub.f32 %v1005, %v1113
  %v1115 = vmul.f32 %v1109, %v1114
  %v1116 = vadd.f32 %v1113, %v1115
  %v1117 = vpack.c.bf16 %v1116, %v1116
  %s1118 = scalar_lea.vmem %s5, 16
  %1119 = vst [vmem:[%s1118] sm:$0xf] %v1117
  %s1120 = smul.u32 5, 3
  %s1121 = smul.addr %s1120, 8
  %s1122 = scalar_lea.vmem [#allocation3], %s1121
  %v1123 = vld [vmem:[%s1122] sm:$0xff]
  %v1124 = vld [vmem:[%s1122 + $0x8] sm:$0xff]
  %v1125 = vld [vmem:[%s1122 + $0x10] sm:$0xff]
  %1126 = vmatprep.subr.bf16.mxu0 %v525
  %1127 = vmatpush1.bf16.msra.mxu0 %v524
  %1128 = vmatprep.subr.bf16.mxu0 %v528
  %1129 = vmatpush1.bf16.msra.mxu0 %v527
  %1130 = vmatprep.subr.bf16.mxu0 %v531
  %1131 = vmatpush1.bf16.msra.mxu0 %v530
  %1132 = vmatprep.subr.bf16.mxu0 %v534
  %1133 = vmatpush1.bf16.msra.mxu0 %v533
  %1134 = vmatprep.subr.bf16.mxu0 %v537
  %1135 = vmatpush1.bf16.msra.mxu0 %v536
  %1136 = vmatprep.subr.bf16.mxu0 %v540
  %1137 = vmatpush1.bf16.msra.mxu0 %v539
  %1138 = vmatprep.subr.bf16.mxu0 %v543
  %1139 = vmatpush1.bf16.msra.mxu0 %v542
  %1140 = vmatprep.subr.bf16.mxu0 %v546
  %1141 = vmatpush1.bf16.msra.mxu0 %v545
  %1142 = vmatprep.subr.bf16.mxu0 0
  %1143 = vmatpush1.bf16.msra.mxu0 0
  %1144 = vmatprep.subr.bf16.mxu0 0
  %1145 = vmatpush1.bf16.msra.mxu0 0
  %1146 = vmatprep.subr.bf16.mxu0 0
  %1147 = vmatpush1.bf16.msra.mxu0 0
  %1148 = vmatprep.subr.bf16.mxu0 0
  %1149 = vmatpush1.bf16.msra.mxu0 0
  %1150 = vmatprep.subr.bf16.mxu0 0
  %1151 = vmatpush1.bf16.msra.mxu0 0
  %1152 = vmatprep.subr.bf16.mxu0 0
  %1153 = vmatpush1.bf16.msra.mxu0 0
  %1154 = vmatprep.subr.bf16.mxu0 0
  %1155 = vmatpush1.bf16.msra.mxu0 0
  %1156 = vmatprep.subr.bf16.mxu0 0
  %1157 = vmatpush1.bf16.msra.mxu0 0
  %1158 = vmatprep.mubr.bf16.mxu0 0
  %1159 = vmatmul.mubr.bf16.gmra.mrb[0].mxu0 %v1117
  %v1160 = vpop.f32.mrb[0].mxu0
  %v1161 = vadd.f32 0.0, %v1160
  %v1162 = vpop.f32.mrb[0].mxu0
  %v1163 = vadd.f32 0.0, %v1162
  %v1164 = vpop.f32.mrb[0].mxu0
  %v1165 = vpop.f32.mrb[0].mxu0
  %1166 = vdwg.mxu0
  %1167 = vmatprep.subr.bf16.mxu0 0
  %1168 = vmatpush1.bf16.msra.mxu0 %v526
  %1169 = vmatprep.subr.bf16.mxu0 0
  %1170 = vmatpush1.bf16.msra.mxu0 %v529
  %1171 = vmatprep.subr.bf16.mxu0 0
  %1172 = vmatpush1.bf16.msra.mxu0 %v532
  %1173 = vmatprep.subr.bf16.mxu0 0
  %1174 = vmatpush1.bf16.msra.mxu0 %v535
  %1175 = vmatprep.subr.bf16.mxu0 0
  %1176 = vmatpush1.bf16.msra.mxu0 %v538
  %1177 = vmatprep.subr.bf16.mxu0 0
  %1178 = vmatpush1.bf16.msra.mxu0 %v541
  %1179 = vmatprep.subr.bf16.mxu0 0
  %1180 = vmatpush1.bf16.msra.mxu0 %v544
  %1181 = vmatprep.subr.bf16.mxu0 0
  %1182 = vmatpush1.bf16.msra.mxu0 %v547
  %1183 = vmatprep.subr.bf16.mxu0 0
  %1184 = vmatpush1.bf16.msra.mxu0 0
  %1185 = vmatprep.subr.bf16.mxu0 0
  %1186 = vmatpush1.bf16.msra.mxu0 0
  %1187 = vmatprep.subr.bf16.mxu0 0
  %1188 = vmatpush1.bf16.msra.mxu0 0
  %1189 = vmatprep.subr.bf16.mxu0 0
  %1190 = vmatpush1.bf16.msra.mxu0 0
  %1191 = vmatprep.subr.bf16.mxu0 0
  %1192 = vmatpush1.bf16.msra.mxu0 0
  %1193 = vmatprep.subr.bf16.mxu0 0
  %1194 = vmatpush1.bf16.msra.mxu0 0
  %1195 = vmatprep.subr.bf16.mxu0 0
  %1196 = vmatpush1.bf16.msra.mxu0 0
  %1197 = vmatprep.subr.bf16.mxu0 0
  %1198 = vmatpush1.bf16.msra.mxu0 0
  %1199 = vmatprep.mubr.bf16.mxu0 0
  %1200 = vmatmul.mubr.bf16.gmra.mrb[0].mxu0 %v1117
  %v1201 = vpop.f32.mrb[0].mxu0
  %v1202 = vadd.f32 0.0, %v1201
  %v1203 = vpop.f32.mrb[0].mxu0
  %v1204 = vpop.f32.mrb[0].mxu0
  %v1205 = vpop.f32.mrb[0].mxu0
  %1206 = vdwg.mxu0
  %v1207 = vadd.f32 %v1123, %v1161
  %v1208 = vxor.u32 %v1207, 2147483648
  %v1209 = vmul.f32 %v1208, 1.442695
  %v1210 = vpow.pop %v1209
  %v1211 = vadd.f32 %v1210, 1.0
  %v1212 = vrcp.pop %v1211
  %v1213 = vmul.f32 1.0, %v1212
  %v1214 = vadd.f32 %v1124, %v1163
  %v1215 = vxor.u32 %v1214, 2147483648
  %v1216 = vmul.f32 %v1215, 1.442695
  %v1217 = vpow.pop %v1216
  %v1218 = vadd.f32 %v1217, 1.0
  %v1219 = vrcp.pop %v1218
  %v1220 = vmul.f32 1.0, %v1219
  %v1221 = vadd.f32 %v1202, %v435
  %v1222 = vmul.f32 %v1213, %v1221
  %v1223 = vadd.f32 %v1125, %v1222
  %v1224 = vtanh.pop %v1223
  %v1225 = vsub.f32 %v1116, %v1224
  %v1226 = vmul.f32 %v1220, %v1225
  %v1227 = vadd.f32 %v1224, %v1226
  %v1228 = vpack.c.bf16 %v1227, %v1227
  %s1229 = scalar_lea.vmem %s5, 20
  %1230 = vst [vmem:[%s1229] sm:$0xf] %v1228
  %s1231 = smul.u32 6, 3
  %s1232 = smul.addr %s1231, 8
  %s1233 = scalar_lea.vmem [#allocation3], %s1232
  %v1234 = vld [vmem:[%s1233] sm:$0xff]
  %v1235 = vld [vmem:[%s1233 + $0x8] sm:$0xff]
  %v1236 = vld [vmem:[%s1233 + $0x10] sm:$0xff]
  %1237 = vmatprep.subr.bf16.mxu0 %v525
  %1238 = vmatpush1.bf16.msra.mxu0 %v524
  %1239 = vmatprep.subr.bf16.mxu0 %v528
  %1240 = vmatpush1.bf16.msra.mxu0 %v527
  %1241 = vmatprep.subr.bf16.mxu0 %v531
  %1242 = vmatpush1.bf16.msra.mxu0 %v530
  %1243 = vmatprep.subr.bf16.mxu0 %v534
  %1244 = vmatpush1.bf16.msra.mxu0 %v533
  %1245 = vmatprep.subr.bf16.mxu0 %v537
  %1246 = vmatpush1.bf16.msra.mxu0 %v536
  %1247 = vmatprep.subr.bf16.mxu0 %v540
  %1248 = vmatpush1.bf16.msra.mxu0 %v539
  %1249 = vmatprep.subr.bf16.mxu0 %v543
  %1250 = vmatpush1.bf16.msra.mxu0 %v542
  %1251 = vmatprep.subr.bf16.mxu0 %v546
  %1252 = vmatpush1.bf16.msra.mxu0 %v545
  %1253 = vmatprep.subr.bf16.mxu0 0
  %1254 = vmatpush1.bf16.msra.mxu0 0
  %1255 = vmatprep.subr.bf16.mxu0 0
  %1256 = vmatpush1.bf16.msra.mxu0 0
  %1257 = vmatprep.subr.bf16.mxu0 0
  %1258 = vmatpush1.bf16.msra.mxu0 0
  %1259 = vmatprep.subr.bf16.mxu0 0
  %1260 = vmatpush1.bf16.msra.mxu0 0
  %1261 = vmatprep.subr.bf16.mxu0 0
  %1262 = vmatpush1.bf16.msra.mxu0 0
  %1263 = vmatprep.subr.bf16.mxu0 0
  %1264 = vmatpush1.bf16.msra.mxu0 0
  %1265 = vmatprep.subr.bf16.mxu0 0
  %1266 = vmatpush1.bf16.msra.mxu0 0
  %1267 = vmatprep.subr.bf16.mxu0 0
  %1268 = vmatpush1.bf16.msra.mxu0 0
  %1269 = vmatprep.mubr.bf16.mxu0 0
  %1270 = vmatmul.mubr.bf16.gmra.mrb[0].mxu0 %v1228
  %v1271 = vpop.f32.mrb[0].mxu0
  %v1272 = vadd.f32 0.0, %v1271
  %v1273 = vpop.f32.mrb[0].mxu0
  %v1274 = vadd.f32 0.0, %v1273
  %v1275 = vpop.f32.mrb[0].mxu0
  %v1276 = vpop.f32.mrb[0].mxu0
  %1277 = vdwg.mxu0
  %1278 = vmatprep.subr.bf16.mxu0 0
  %1279 = vmatpush1.bf16.msra.mxu0 %v526
  %1280 = vmatprep.subr.bf16.mxu0 0
  %1281 = vmatpush1.bf16.msra.mxu0 %v529
  %1282 = vmatprep.subr.bf16.mxu0 0
  %1283 = vmatpush1.bf16.msra.mxu0 %v532
  %1284 = vmatprep.subr.bf16.mxu0 0
  %1285 = vmatpush1.bf16.msra.mxu0 %v535
  %1286 = vmatprep.subr.bf16.mxu0 0
  %1287 = vmatpush1.bf16.msra.mxu0 %v538
  %1288 = vmatprep.subr.bf16.mxu0 0
  %1289 = vmatpush1.bf16.msra.mxu0 %v541
  %1290 = vmatprep.subr.bf16.mxu0 0
  %1291 = vmatpush1.bf16.msra.mxu0 %v544
  %1292 = vmatprep.subr.bf16.mxu0 0
  %1293 = vmatpush1.bf16.msra.mxu0 %v547
  %1294 = vmatprep.subr.bf16.mxu0 0
  %1295 = vmatpush1.bf16.msra.mxu0 0
  %1296 = vmatprep.subr.bf16.mxu0 0
  %1297 = vmatpush1.bf16.msra.mxu0 0
  %1298 = vmatprep.subr.bf16.mxu0 0
  %1299 = vmatpush1.bf16.msra.mxu0 0
  %1300 = vmatprep.subr.bf16.mxu0 0
  %1301 = vmatpush1.bf16.msra.mxu0 0
  %1302 = vmatprep.subr.bf16.mxu0 0
  %1303 = vmatpush1.bf16.msra.mxu0 0
  %1304 = vmatprep.subr.bf16.mxu0 0
  %1305 = vmatpush1.bf16.msra.mxu0 0
  %1306 = vmatprep.subr.bf16.mxu0 0
  %1307 = vmatpush1.bf16.msra.mxu0 0
  %1308 = vmatprep.subr.bf16.mxu0 0
  %1309 = vmatpush1.bf16.msra.mxu0 0
  %1310 = vmatprep.mubr.bf16.mxu0 0
  %1311 = vmatmul.mubr.bf16.gmra.mrb[0].mxu0 %v1228
  %v1312 = vpop.f32.mrb[0].mxu0
  %v1313 = vadd.f32 0.0, %v1312
  %v1314 = vpop.f32.mrb[0].mxu0
  %v1315 = vpop.f32.mrb[0].mxu0
  %v1316 = vpop.f32.mrb[0].mxu0
  %1317 = vdwg.mxu0
  %v1318 = vadd.f32 %v1234, %v1272
  %v1319 = vxor.u32 %v1318, 2147483648
  %v1320 = vmul.f32 %v1319, 1.442695
  %v1321 = vpow.pop %v1320
  %v1322 = vadd.f32 %v1321, 1.0
  %v1323 = vrcp.pop %v1322
  %v1324 = vmul.f32 1.0, %v1323
  %v1325 = vadd.f32 %v1235, %v1274
  %v1326 = vxor.u32 %v1325, 2147483648
  %v1327 = vmul.f32 %v1326, 1.442695
  %v1328 = vpow.pop %v1327
  %v1329 = vadd.f32 %v1328, 1.0
  %v1330 = vrcp.pop %v1329
  %v1331 = vmul.f32 1.0, %v1330
  %v1332 = vadd.f32 %v1313, %v435
  %v1333 = vmul.f32 %v1324, %v1332
  %v1334 = vadd.f32 %v1236, %v1333
  %v1335 = vtanh.pop %v1334
  %v1336 = vsub.f32 %v1227, %v1335
  %v1337 = vmul.f32 %v1331, %v1336
  %v1338 = vadd.f32 %v1335, %v1337
  %v1339 = vpack.c.bf16 %v1338, %v1338
  %s1340 = scalar_lea.vmem %s5, 24
  %1341 = vst [vmem:[%s1340] sm:$0xf] %v1339
  %s1342 = smul.u32 7, 3
  %s1343 = smul.addr %s1342, 8
  %s1344 = scalar_lea.vmem [#allocation3], %s1343
  %v1345 = vld [vmem:[%s1344] sm:$0xff]
  %v1346 = vld [vmem:[%s1344 + $0x8] sm:$0xff]
  %v1347 = vld [vmem:[%s1344 + $0x10] sm:$0xff]
  %1348 = vmatprep.subr.bf16.mxu0 %v525
  %1349 = vmatpush1.bf16.msra.mxu0 %v524
  %1350 = vmatprep.subr.bf16.mxu0 %v528
  %1351 = vmatpush1.bf16.msra.mxu0 %v527
  %1352 = vmatprep.subr.bf16.mxu0 %v531
  %1353 = vmatpush1.bf16.msra.mxu0 %v530
  %1354 = vmatprep.subr.bf16.mxu0 %v534
  %1355 = vmatpush1.bf16.msra.mxu0 %v533
  %1356 = vmatprep.subr.bf16.mxu0 %v537
  %1357 = vmatpush1.bf16.msra.mxu0 %v536
  %1358 = vmatprep.subr.bf16.mxu0 %v540
  %1359 = vmatpush1.bf16.msra.mxu0 %v539
  %1360 = vmatprep.subr.bf16.mxu0 %v543
  %1361 = vmatpush1.bf16.msra.mxu0 %v542
  %1362 = vmatprep.subr.bf16.mxu0 %v546
  %1363 = vmatpush1.bf16.msra.mxu0 %v545
  %1364 = vmatprep.subr.bf16.mxu0 0
  %1365 = vmatpush1.bf16.msra.mxu0 0
  %1366 = vmatprep.subr.bf16.mxu0 0
  %1367 = vmatpush1.bf16.msra.mxu0 0
  %1368 = vmatprep.subr.bf16.mxu0 0
  %1369 = vmatpush1.bf16.msra.mxu0 0
  %1370 = vmatprep.subr.bf16.mxu0 0
  %1371 = vmatpush1.bf16.msra.mxu0 0
  %1372 = vmatprep.subr.bf16.mxu0 0
  %1373 = vmatpush1.bf16.msra.mxu0 0
  %1374 = vmatprep.subr.bf16.mxu0 0
  %1375 = vmatpush1.bf16.msra.mxu0 0
  %1376 = vmatprep.subr.bf16.mxu0 0
  %1377 = vmatpush1.bf16.msra.mxu0 0
  %1378 = vmatprep.subr.bf16.mxu0 0
  %1379 = vmatpush1.bf16.msra.mxu0 0
  %1380 = vmatprep.mubr.bf16.mxu0 0
  %1381 = vmatmul.mubr.bf16.gmra.mrb[0].mxu0 %v1339
  %v1382 = vpop.f32.mrb[0].mxu0
  %v1383 = vadd.f32 0.0, %v1382
  %v1384 = vpop.f32.mrb[0].mxu0
  %v1385 = vadd.f32 0.0, %v1384
  %v1386 = vpop.f32.mrb[0].mxu0
  %v1387 = vpop.f32.mrb[0].mxu0
  %1388 = vdwg.mxu0
  %1389 = vmatprep.subr.bf16.mxu0 0
  %1390 = vmatpush1.bf16.msra.mxu0 %v526
  %1391 = vmatprep.subr.bf16.mxu0 0
  %1392 = vmatpush1.bf16.msra.mxu0 %v529
  %1393 = vmatprep.subr.bf16.mxu0 0
  %1394 = vmatpush1.bf16.msra.mxu0 %v532
  %1395 = vmatprep.subr.bf16.mxu0 0
  %1396 = vmatpush1.bf16.msra.mxu0 %v535
  %1397 = vmatprep.subr.bf16.mxu0 0
  %1398 = vmatpush1.bf16.msra.mxu0 %v538
  %1399 = vmatprep.subr.bf16.mxu0 0
  %1400 = vmatpush1.bf16.msra.mxu0 %v541
  %1401 = vmatprep.subr.bf16.mxu0 0
  %1402 = vmatpush1.bf16.msra.mxu0 %v544
  %1403 = vmatprep.subr.bf16.mxu0 0
  %1404 = vmatpush1.bf16.msra.mxu0 %v547
  %1405 = vmatprep.subr.bf16.mxu0 0
  %1406 = vmatpush1.bf16.msra.mxu0 0
  %1407 = vmatprep.subr.bf16.mxu0 0
  %1408 = vmatpush1.bf16.msra.mxu0 0
  %1409 = vmatprep.subr.bf16.mxu0 0
  %1410 = vmatpush1.bf16.msra.mxu0 0
  %1411 = vmatprep.subr.bf16.mxu0 0
  %1412 = vmatpush1.bf16.msra.mxu0 0
  %1413 = vmatprep.subr.bf16.mxu0 0
  %1414 = vmatpush1.bf16.msra.mxu0 0
  %1415 = vmatprep.subr.bf16.mxu0 0
  %1416 = vmatpush1.bf16.msra.mxu0 0
  %1417 = vmatprep.subr.bf16.mxu0 0
  %1418 = vmatpush1.bf16.msra.mxu0 0
  %1419 = vmatprep.subr.bf16.mxu0 0
  %1420 = vmatpush1.bf16.msra.mxu0 0
  %1421 = vmatprep.mubr.bf16.mxu0 0
  %1422 = vmatmul.mubr.bf16.gmra.mrb[0].mxu0 %v1339
  %v1423 = vpop.f32.mrb[0].mxu0
  %v1424 = vadd.f32 0.0, %v1423
  %v1425 = vpop.f32.mrb[0].mxu0
  %v1426 = vpop.f32.mrb[0].mxu0
  %v1427 = vpop.f32.mrb[0].mxu0
  %1428 = vdwg.mxu0
  %v1429 = vadd.f32 %v1345, %v1383
  %v1430 = vxor.u32 %v1429, 2147483648
  %v1431 = vmul.f32 %v1430, 1.442695
  %v1432 = vpow.pop %v1431
  %v1433 = vadd.f32 %v1432, 1.0
  %v1434 = vrcp.pop %v1433
  %v1435 = vmul.f32 1.0, %v1434
  %v1436 = vadd.f32 %v1346, %v1385
  %v1437 = vxor.u32 %v1436, 2147483648
  %v1438 = vmul.f32 %v1437, 1.442695
  %v1439 = vpow.pop %v1438
  %v1440 = vadd.f32 %v1439, 1.0
  %v1441 = vrcp.pop %v1440
  %v1442 = vmul.f32 1.0, %v1441
  %v1443 = vadd.f32 %v1424, %v435
  %v1444 = vmul.f32 %v1435, %v1443
  %v1445 = vadd.f32 %v1347, %v1444
  %v1446 = vtanh.pop %v1445
  %v1447 = vsub.f32 %v1338, %v1446
  %v1448 = vmul.f32 %v1442, %v1447
  %v1449 = vadd.f32 %v1446, %v1448
  %v1450 = vpack.c.bf16 %v1449, %v1449
  %s1451 = scalar_lea.vmem %s5, 28
  %1452 = vst [vmem:[%s1451] sm:$0xf] %v1450
  %1453 = vst [vmem:[#allocation2] sm:$0xff] %v1449
  // Predicated region
  $region26: #{gru_forward.2} parent=0 // pred_check
    _
  $region27: #{gru_forward.2} parent=0 // pred_check_branch
    %1455 = sbr.rel (0) target = $region29
  $region28: #{gru_forward.2} parent=0 // pred_region
    _
  $region29: #{gru_forward.2} parent=0 // pred_fallthru
    _
  // Predicated region
  $region30: #{gru_forward.2} parent=0 // pred_check
    _
  $region31: #{gru_forward.2} parent=0 // pred_check_branch
    %1457 = sbr.rel (0) target = $region33
  $region32: #{gru_forward.2} parent=0 // pred_region
    _
  $region33: #{gru_forward.2} parent=0 // pred_fallthru
    _

</llo_original>
